<compile_context>
chip_gen: v6e
topology: v6e:2x2x1
jax: 0.10.0
libtpu: 0.0.40
codegen_flags: <defaults>
</compile_context>

<pallas_src>
import functools

import jax
import jax.numpy as jnp
from jax.experimental import pallas as pl
from jax.experimental.pallas import tpu as pltpu

_LANE_PAD = 128          # lane-pad hidden/class dims to one full lane group
_NEG_BIG = -1.0e30       # mask value for padded class columns in log_softmax


def _round_up(x, m):
    return ((x + m - 1) // m) * m


def _pick_tile(n_pad, target, step=256):
    """Largest multiple of `step` that divides n_pad and is <= target."""
    best = step
    t = step
    while t <= min(target, n_pad):
        if n_pad % t == 0:
            best = t
        t += step
    return best


# ------------- layer 1: H = relu(d_row * (A @ feat) + b1) -------------------
def _gcn_layer1_kernel(a_ref, feat_ref, d_ref, b_ref, h_ref, acc_ref, *, tk):
    k = pl.program_id(1)

    @pl.when(k == 0)
    def _():
        acc_ref[...] = jnp.zeros_like(acc_ref)

    start = pl.multiple_of(k * tk, tk)
    # (tm, tk) bf16 @ (tk, 128) bf16 on the MXU, f32 accumulation in VMEM.
    acc_ref[...] += jnp.dot(
        a_ref[...], feat_ref[pl.ds(start, tk), :],
        preferred_element_type=jnp.float32,
    )

    @pl.when(k == pl.num_programs(1) - 1)
    def _():
        z = d_ref[...] * acc_ref[...] + b_ref[...]
        # F.dropout(..., training=self.training) is identity in eval mode.
        # TODO(synk): add training-mode dropout via pltpu.prng_random_bits.
        h_ref[...] = jnp.maximum(z, 0.0).astype(h_ref.dtype)


# ------ layer 2: out = log_softmax(d_row * (A @ feat) + b2, dim=1) ----------
def _gcn_layer2_kernel(a_ref, feat_ref, d_ref, b_ref, o_ref, acc_ref, *, tk,
                       n_classes):
    k = pl.program_id(1)

    @pl.when(k == 0)
    def _():
        acc_ref[...] = jnp.zeros_like(acc_ref)

    start = pl.multiple_of(k * tk, tk)
    acc_ref[...] += jnp.dot(
        a_ref[...], feat_ref[pl.ds(start, tk), :],
        preferred_element_type=jnp.float32,
    )

    @pl.when(k == pl.num_programs(1) - 1)
    def _():
        z = d_ref[...] * acc_ref[...] + b_ref[...]
        # Mask lane-padded class columns out of the softmax normalization.
        col = jax.lax.broadcasted_iota(jnp.int32, z.shape, 1)
        zm = jnp.where(col < n_classes, z, _NEG_BIG)
        m = jnp.max(zm, axis=1, keepdims=True)
        lse = jnp.log(jnp.sum(jnp.exp(zm - m), axis=1, keepdims=True)) + m
        o_ref[...] = (zm - lse).astype(o_ref.dtype)


def _gcn_aggregate(kernel, adj_pad, feat_pad, d_col, bias_pad, out_dtype,
                   tm, tk):
    """One GCNConv aggregation: grid = (row blocks of A, K blocks of A)."""
    n_pad = adj_pad.shape[0]
    d_pad = feat_pad.shape[1]
    grid = (n_pad // tm, n_pad // tk)

    # VMEM budget: double-buffered A tiles + resident feature operand + acc +
    # double-buffered output tile, plus headroom. Capped well below v7x's
    # 64 MiB physical VMEM.
    a_tile_bytes = tm * tk * adj_pad.dtype.itemsize
    feat_bytes = n_pad * d_pad * feat_pad.dtype.itemsize
    acc_bytes = tm * d_pad * 4
    out_bytes = tm * d_pad * jnp.dtype(out_dtype).itemsize
    vmem_bytes = (2 * a_tile_bytes + 2 * feat_bytes + acc_bytes
                  + 2 * out_bytes + (4 << 20))
    vmem_bytes = int(max(min(vmem_bytes, 48 << 20), 16 << 20))

    return pl.pallas_call(
        kernel,
        out_shape=jax.ShapeDtypeStruct((n_pad, d_pad), out_dtype),
        grid_spec=pltpu.PrefetchScalarGridSpec(
            num_scalar_prefetch=0,
            grid=grid,
            in_specs=[
                # A streamed in (tm, tk) bf16 tiles -> auto double-buffered DMA.
                pl.BlockSpec((tm, tk), lambda i, k: (i, k)),
                # Pre-transformed features: fully VMEM-resident (DMA'd once),
                # the K chunk is sliced inside the kernel.
                pl.BlockSpec((n_pad, d_pad), lambda i, k: (0, 0)),
                # Row-side D^-1/2 scale for this row block.
                pl.BlockSpec((tm, 1), lambda i, k: (i, 0)),
                # Lane-padded bias, VMEM-resident.
                pl.BlockSpec((1, d_pad), lambda i, k: (0, 0)),
            ],
            # Same output block across K -> VMEM-resident accumulator pattern.
            out_specs=pl.BlockSpec((tm, d_pad), lambda i, k: (i, 0)),
            scratch_shapes=[pltpu.VMEM((tm, d_pad), jnp.float32)],
        ),
        compiler_params=pltpu.CompilerParams(
            # Row blocks shard across TensorCores (v7x megacore); the K
            # reduction axis is last and "arbitrary".
            dimension_semantics=("parallel", "arbitrary"),
            vmem_limit_bytes=vmem_bytes,
        ),
    )(adj_pad, feat_pad, d_col, bias_pad)


def _build_adjacency_padded(edge_index, num_nodes, n_pad):
    """Raw (A + I) as 0/1 bf16 at the padded size, plus f32 D^-1/2 column.

    A[dst, src] = 1 so out[i] = sum_j A[i, j] * h[j] aggregates at the
    destination (PyG GCNConv flow='source_to_target'). Multi-edges are
    deduplicated by `.set` (PyG sums duplicate edges), so results can differ
    from torch_geometric on multigraphs. Padded rows/cols stay zero.
    """
    src, dst = edge_index[0], edge_index[1]
    adj = jnp.zeros((n_pad, n_pad), dtype=jnp.bfloat16)
    adj = adj.at[dst, src].set(1.0)
    diag = jnp.arange(num_nodes)
    adj = adj.at[diag, diag].set(1.0)                # add self loops (A + I)
    deg = jnp.sum(adj, axis=1, dtype=jnp.float32)    # exact: entries are 0/1
    d_inv_sqrt = jnp.where(deg > 0.0, jax.lax.rsqrt(deg), 0.0)
    return adj, d_inv_sqrt.reshape(n_pad, 1)


def gcn_forward(x, edge_index, w1, b1, w2, b2, *, tm_target=256,
                tk_target=2048):
    """Fused 2-layer GCN forward (eval mode). Returns (N, C) log-probs."""
    n, _ = x.shape
    hidden = w1.shape[1]
    n_classes = w2.shape[1]
    d_pad = _LANE_PAD
    assert hidden <= d_pad and n_classes <= d_pad

    n_pad = _round_up(n, 256)
    tm = _pick_tile(n_pad, tm_target)
    if n_pad // tm < 2 and tm > 128:
        tm //= 2          # keep >= 2 row blocks for the v7x "parallel" axis
    tk = _pick_tile(n_pad, tk_target)

    # Raw (A + I) built directly in bf16 at the padded size (no f32 N^2 pass).
    adj, d_col = _build_adjacency_padded(edge_index, n, n_pad)

    # ----- layer 1: hoisted transform, column-side D^-1/2 fused into features
    # A_hat @ (X W1) = D^-1/2 (A + I) (D^-1/2 (X W1))
    xw1 = x.astype(jnp.float32) @ w1.astype(jnp.float32)          # (n, H) f32
    xw1 = xw1 * d_col[:n]
    xw1_pad = jnp.zeros((n_pad, d_pad), jnp.bfloat16).at[:n, :hidden].set(
        xw1.astype(jnp.bfloat16))
    b1_pad = jnp.zeros((1, d_pad), jnp.float32).at[0, :hidden].set(
        b1.reshape(-1).astype(jnp.float32))

    h_pad = _gcn_aggregate(
        functools.partial(_gcn_layer1_kernel, tk=tk),
        adj, xw1_pad, d_col, b1_pad, jnp.float32, tm, tk)

    # ----- layer 2: hoisted transform on the f32 hidden activations
    hw2 = h_pad[:, :hidden] @ w2.astype(jnp.float32)              # (n_pad, C)
    hw2 = hw2 * d_col                                  # zero on padded rows
    hw2_pad = jnp.zeros((n_pad, d_pad), jnp.bfloat16).at[:, :n_classes].set(
        hw2.astype(jnp.bfloat16))
    b2_pad = jnp.zeros((1, d_pad), jnp.float32).at[0, :n_classes].set(
        b2.reshape(-1).astype(jnp.float32))

    out_pad = _gcn_aggregate(
        functools.partial(_gcn_layer2_kernel, tk=tk, n_classes=n_classes),
        adj, hw2_pad, d_col, b2_pad, jnp.float32, tm, tk)

    return out_pad[:n, :n_classes]


if __name__ == "__main__":
    key = jax.random.PRNGKey(0)
    k_x, k_e, k_w1, k_w2 = jax.random.split(key, 4)

    # Synthetic graph sized so the kernel actually tiles: N=2500 -> n_pad=2560,
    # tm=256, tk=1280 -> grid (10, 2) per layer (multi-row-block + multi-K).
    N, F_IN, HIDDEN, CLASSES, E = 2500, 16, 4, 2, 8192

    x = jax.random.normal(k_x, (N, F_IN), dtype=jnp.float32)
    edge_index = jax.random.randint(k_e, (2, E), 0, N, dtype=jnp.int32)

    def glorot(k, shape):
        lim = jnp.sqrt(6.0 / (shape[0] + shape[1]))
        return jax.random.uniform(k, shape, jnp.float32, -lim, lim)

    w1 = glorot(k_w1, (F_IN, HIDDEN))
    b1 = jnp.zeros((HIDDEN,), dtype=jnp.float32)
    w2 = glorot(k_w2, (HIDDEN, CLASSES))
    b2 = jnp.zeros((CLASSES,), dtype=jnp.float32)

    out = jax.jit(gcn_forward)(x, edge_index, w1, b1, w2, b2)
    out = jax.block_until_ready(out)
    assert out.shape == (N, CLASSES)

    # Rows of log_softmax must exp-sum to 1 (epilogue is f32).
    assert bool(jnp.allclose(jnp.sum(jnp.exp(out), axis=1), 1.0, atol=1e-3))

    # Plain-JAX f32 reference on the same (dedup'd) adjacency; bf16 feature
    # rounding in the kernel => loose tolerance.
    n_pad_ref = _round_up(N, 256)
    adj_ref, d_ref = _build_adjacency_padded(edge_index, N, n_pad_ref)
    a_hat = d_ref[:N] * adj_ref[:N, :N].astype(jnp.float32) * d_ref[:N].T
    h_ref = jnp.maximum(a_hat @ (x @ w1) + b1, 0.0)
    z_ref = a_hat @ (h_ref @ w2) + b2
    ref = z_ref - jax.scipy.special.logsumexp(z_ref, axis=1, keepdims=True)
    assert bool(jnp.allclose(out, ref, atol=1e-1))

    print("KERNEL_OK")
</pallas_src>

<mosaic_0001>
module attributes {stable_mosaic.version = 11 : i64} {
  func.func @_gcn_layer1_kernel(%arg0: i32, %arg1: i32, %arg2: memref<256x1280xbf16, #tpu.memory_space<vmem>>, %arg3: memref<2560x128xbf16, #tpu.memory_space<vmem>>, %arg4: memref<256x1xf32, #tpu.memory_space<vmem>>, %arg5: memref<1x128xf32, #tpu.memory_space<vmem>>, %arg6: memref<256x128xf32, #tpu.memory_space<vmem>>, %arg7: memref<256x128xf32, #tpu.memory_space<vmem>>) attributes {dimension_semantics = [#tpu.dimension_semantics<parallel>, #tpu.dimension_semantics<arbitrary>], iteration_bounds = array<i64: 10, 2>, scalar_prefetch = 0 : i64, scratch_operands = 1 : i64, tpu.core_type = #tpu.core_type<tc>, window_params = [{transform_indices = @transform_0, window_bounds = array<i64: 256, 1280>}, {pipeline_mode = #tpu.pipeline_mode<synchronous>, transform_indices = @transform_1, window_bounds = array<i64: 2560, 128>}, {transform_indices = @transform_2, window_bounds = array<i64: 256, 1>}, {pipeline_mode = #tpu.pipeline_mode<synchronous>, transform_indices = @transform_3, window_bounds = array<i64: 1, 128>}, {transform_indices = @transform_4, window_bounds = array<i64: 256, 128>}]} {
    %c0_i32 = arith.constant 0 : i32
    %0 = arith.cmpi eq, %arg1, %c0_i32 : i32
    %1 = arith.extui %0 : i1 to i32
    %c0_i32_0 = arith.constant 0 : i32
    %2 = arith.cmpi ne, %1, %c0_i32_0 : i32
    scf.if %2 {
      %cst_8 = arith.constant 0.000000e+00 : f32
      %15 = vector.broadcast %cst_8 : f32 to vector<256x128xf32>
      %c0_9 = arith.constant 0 : index
      %c0_10 = arith.constant 0 : index
      %16 = vector.load %arg7[%c0_9, %c0_10] : memref<256x128xf32, #tpu.memory_space<vmem>>, vector<256x128xf32>
      tpu.vector_store %arg7[%c0_9, %c0_10], %15 {strides = array<i32>} : memref<256x128xf32, #tpu.memory_space<vmem>>, vector<256x128xf32>,
    } else {
    }
    %c1280_i32 = arith.constant 1280 : i32
    %3 = arith.muli %arg1, %c1280_i32 : i32
    %4 = tpu.assume_multiple %3, 1280 : i32
    %c0 = arith.constant 0 : index
    %c0_1 = arith.constant 0 : index
    %5 = vector.load %arg7[%c0, %c0_1] : memref<256x128xf32, #tpu.memory_space<vmem>>, vector<256x128xf32>
    %c0_2 = arith.constant 0 : index
    %c0_3 = arith.constant 0 : index
    %6 = vector.load %arg2[%c0_2, %c0_3] : memref<256x1280xbf16, #tpu.memory_space<vmem>>, vector<256x1280xbf16>
    %7 = arith.index_cast %4 : i32 to index
    %c0_4 = arith.constant 0 : index
    %8 = vector.load %arg3[%7, %c0_4] : memref<2560x128xbf16, #tpu.memory_space<vmem>>, vector<1280x128xbf16>
    %cst = arith.constant dense<0.000000e+00> : vector<256x128xf32>
    %9 = tpu.matmul %6, %8, %cst {dimension_numbers = #tpu.dot_dimension_numbers<[1], [0], [0], [1], [0, 0, 1, 1], [], []>} : vector<256x1280xbf16>, vector<1280x128xbf16>, vector<256x128xf32> -> vector<256x128xf32>
    %10 = arith.addf %5, %9 : vector<256x128xf32>
    %c0_5 = arith.constant 0 : index
    %c0_6 = arith.constant 0 : index
    %11 = vector.load %arg7[%c0_5, %c0_6] : memref<256x128xf32, #tpu.memory_space<vmem>>, vector<256x128xf32>
    tpu.vector_store %arg7[%c0_5, %c0_6], %10 {strides = array<i32>} : memref<256x128xf32, #tpu.memory_space<vmem>>, vector<256x128xf32>,
    %c1_i32 = arith.constant 1 : i32
    %12 = arith.cmpi eq, %arg1, %c1_i32 : i32
    %13 = arith.extui %12 : i1 to i32
    %c0_i32_7 = arith.constant 0 : i32
    %14 = arith.cmpi ne, %13, %c0_i32_7 : i32
    scf.if %14 {
      %c0_8 = arith.constant 0 : index
      %c0_9 = arith.constant 0 : index
      %15 = vector.load %arg4[%c0_8, %c0_9] : memref<256x1xf32, #tpu.memory_space<vmem>>, vector<256x1xf32>
      %c0_10 = arith.constant 0 : index
      %c0_11 = arith.constant 0 : index
      %16 = vector.load %arg7[%c0_10, %c0_11] : memref<256x128xf32, #tpu.memory_space<vmem>>, vector<256x128xf32>
      %17 = vector.broadcast %15 : vector<256x1xf32> to vector<256x128xf32>
      %18 = arith.mulf %17, %16 : vector<256x128xf32>
      %c0_12 = arith.constant 0 : index
      %c0_13 = arith.constant 0 : index
      %19 = vector.load %arg5[%c0_12, %c0_13] : memref<1x128xf32, #tpu.memory_space<vmem>>, vector<1x128xf32>
      %20 = vector.broadcast %19 : vector<1x128xf32> to vector<256x128xf32>
      %21 = arith.addf %18, %20 : vector<256x128xf32>
      %cst_14 = arith.constant 0.000000e+00 : f32
      %22 = vector.broadcast %cst_14 : f32 to vector<256x128xf32>
      %23 = arith.maximumf %21, %22 : vector<256x128xf32>
      %c0_15 = arith.constant 0 : index
      %c0_16 = arith.constant 0 : index
      %24 = vector.load %arg6[%c0_15, %c0_16] : memref<256x128xf32, #tpu.memory_space<vmem>>, vector<256x128xf32>
      tpu.vector_store %arg6[%c0_15, %c0_16], %23 {strides = array<i32>} : memref<256x128xf32, #tpu.memory_space<vmem>>, vector<256x128xf32>,
    } else {
    }
    return
  }
  func.func @transform_0(%arg0: i32, %arg1: i32) -> (i32, i32) {
    %c0_i32 = arith.constant 0 : i32
    return %arg0, %arg1 : i32, i32
  }
  func.func @transform_1(%arg0: i32, %arg1: i32) -> (i32, i32) {
    %c0_i32 = arith.constant 0 : i32
    %c0_i32_0 = arith.constant 0 : i32
    %c0_i32_1 = arith.constant 0 : i32
    return %c0_i32, %c0_i32_0 : i32, i32
  }
  func.func @transform_2(%arg0: i32, %arg1: i32) -> (i32, i32) {
    %c0_i32 = arith.constant 0 : i32
    %c0_i32_0 = arith.constant 0 : i32
    return %arg0, %c0_i32 : i32, i32
  }
  func.func @transform_3(%arg0: i32, %arg1: i32) -> (i32, i32) {
    %c0_i32 = arith.constant 0 : i32
    %c0_i32_0 = arith.constant 0 : i32
    %c0_i32_1 = arith.constant 0 : i32
    return %c0_i32, %c0_i32_0 : i32, i32
  }
  func.func @transform_4(%arg0: i32, %arg1: i32) -> (i32, i32) {
    %c0_i32 = arith.constant 0 : i32
    %c0_i32_0 = arith.constant 0 : i32
    return %arg0, %c0_i32 : i32, i32
  }
}

module attributes {stable_mosaic.version = 11 : i64} {
  func.func @_gcn_layer2_kernel(%arg0: i32, %arg1: i32, %arg2: memref<256x1280xbf16, #tpu.memory_space<vmem>>, %arg3: memref<2560x128xbf16, #tpu.memory_space<vmem>>, %arg4: memref<256x1xf32, #tpu.memory_space<vmem>>, %arg5: memref<1x128xf32, #tpu.memory_space<vmem>>, %arg6: memref<256x128xf32, #tpu.memory_space<vmem>>, %arg7: memref<256x128xf32, #tpu.memory_space<vmem>>) attributes {dimension_semantics = [#tpu.dimension_semantics<parallel>, #tpu.dimension_semantics<arbitrary>], iteration_bounds = array<i64: 10, 2>, scalar_prefetch = 0 : i64, scratch_operands = 1 : i64, tpu.core_type = #tpu.core_type<tc>, window_params = [{transform_indices = @transform_0, window_bounds = array<i64: 256, 1280>}, {pipeline_mode = #tpu.pipeline_mode<synchronous>, transform_indices = @transform_1, window_bounds = array<i64: 2560, 128>}, {transform_indices = @transform_2, window_bounds = array<i64: 256, 1>}, {pipeline_mode = #tpu.pipeline_mode<synchronous>, transform_indices = @transform_3, window_bounds = array<i64: 1, 128>}, {transform_indices = @transform_4, window_bounds = array<i64: 256, 128>}]} {
    %c0_i32 = arith.constant 0 : i32
    %0 = arith.cmpi eq, %arg1, %c0_i32 : i32
    %1 = arith.extui %0 : i1 to i32
    %c0_i32_0 = arith.constant 0 : i32
    %2 = arith.cmpi ne, %1, %c0_i32_0 : i32
    scf.if %2 {
      %cst_8 = arith.constant 0.000000e+00 : f32
      %15 = vector.broadcast %cst_8 : f32 to vector<256x128xf32>
      %c0_9 = arith.constant 0 : index
      %c0_10 = arith.constant 0 : index
      %16 = vector.load %arg7[%c0_9, %c0_10] : memref<256x128xf32, #tpu.memory_space<vmem>>, vector<256x128xf32>
      tpu.vector_store %arg7[%c0_9, %c0_10], %15 {strides = array<i32>} : memref<256x128xf32, #tpu.memory_space<vmem>>, vector<256x128xf32>,
    } else {
    }
    %c1280_i32 = arith.constant 1280 : i32
    %3 = arith.muli %arg1, %c1280_i32 : i32
    %4 = tpu.assume_multiple %3, 1280 : i32
    %c0 = arith.constant 0 : index
    %c0_1 = arith.constant 0 : index
    %5 = vector.load %arg7[%c0, %c0_1] : memref<256x128xf32, #tpu.memory_space<vmem>>, vector<256x128xf32>
    %c0_2 = arith.constant 0 : index
    %c0_3 = arith.constant 0 : index
    %6 = vector.load %arg2[%c0_2, %c0_3] : memref<256x1280xbf16, #tpu.memory_space<vmem>>, vector<256x1280xbf16>
    %7 = arith.index_cast %4 : i32 to index
    %c0_4 = arith.constant 0 : index
    %8 = vector.load %arg3[%7, %c0_4] : memref<2560x128xbf16, #tpu.memory_space<vmem>>, vector<1280x128xbf16>
    %cst = arith.constant dense<0.000000e+00> : vector<256x128xf32>
    %9 = tpu.matmul %6, %8, %cst {dimension_numbers = #tpu.dot_dimension_numbers<[1], [0], [0], [1], [0, 0, 1, 1], [], []>} : vector<256x1280xbf16>, vector<1280x128xbf16>, vector<256x128xf32> -> vector<256x128xf32>
    %10 = arith.addf %5, %9 : vector<256x128xf32>
    %c0_5 = arith.constant 0 : index
    %c0_6 = arith.constant 0 : index
    %11 = vector.load %arg7[%c0_5, %c0_6] : memref<256x128xf32, #tpu.memory_space<vmem>>, vector<256x128xf32>
    tpu.vector_store %arg7[%c0_5, %c0_6], %10 {strides = array<i32>} : memref<256x128xf32, #tpu.memory_space<vmem>>, vector<256x128xf32>,
    %c1_i32 = arith.constant 1 : i32
    %12 = arith.cmpi eq, %arg1, %c1_i32 : i32
    %13 = arith.extui %12 : i1 to i32
    %c0_i32_7 = arith.constant 0 : i32
    %14 = arith.cmpi ne, %13, %c0_i32_7 : i32
    scf.if %14 {
      %c0_8 = arith.constant 0 : index
      %c0_9 = arith.constant 0 : index
      %15 = vector.load %arg4[%c0_8, %c0_9] : memref<256x1xf32, #tpu.memory_space<vmem>>, vector<256x1xf32>
      %c0_10 = arith.constant 0 : index
      %c0_11 = arith.constant 0 : index
      %16 = vector.load %arg7[%c0_10, %c0_11] : memref<256x128xf32, #tpu.memory_space<vmem>>, vector<256x128xf32>
      %17 = vector.broadcast %15 : vector<256x1xf32> to vector<256x128xf32>
      %18 = arith.mulf %17, %16 : vector<256x128xf32>
      %c0_12 = arith.constant 0 : index
      %c0_13 = arith.constant 0 : index
      %19 = vector.load %arg5[%c0_12, %c0_13] : memref<1x128xf32, #tpu.memory_space<vmem>>, vector<1x128xf32>
      %20 = vector.broadcast %19 : vector<1x128xf32> to vector<256x128xf32>
      %21 = arith.addf %18, %20 : vector<256x128xf32>
      %22 = tpu.iota {dimensions = array<i32: 1>} : vector<256x128xi32>
      %c2_i32 = arith.constant 2 : i32
      %23 = vector.broadcast %c2_i32 : i32 to vector<256x128xi32>
      %24 = arith.cmpi slt, %22, %23 : vector<256x128xi32>
      %cst_14 = arith.constant -1.000000e+30 : f32
      %25 = vector.broadcast %cst_14 : f32 to vector<256x128xf32>
      %26 = arith.select %24, %21, %25 : vector<256x128xi1>, vector<256x128xf32>
      %cst_15 = arith.constant dense<0xFF800000> : vector<256xf32>
      %27 = vector.multi_reduction <maximumf>, %26, %cst_15 [1] : vector<256x128xf32> to vector<256xf32>
      %28 = vector.shape_cast %27 : vector<256xf32> to vector<256x1xf32>
      %29 = vector.broadcast %28 : vector<256x1xf32> to vector<256x128xf32>
      %30 = arith.subf %26, %29 : vector<256x128xf32>
      %31 = math.exp %30 : vector<256x128xf32>
      %cst_16 = arith.constant dense<0.000000e+00> : vector<256xf32>
      %32 = vector.multi_reduction <add>, %31, %cst_16 [1] : vector<256x128xf32> to vector<256xf32>
      %33 = vector.shape_cast %32 : vector<256xf32> to vector<256x1xf32>
      %34 = math.log %33 : vector<256x1xf32>
      %35 = arith.addf %34, %28 : vector<256x1xf32>
      %36 = vector.broadcast %35 : vector<256x1xf32> to vector<256x128xf32>
      %37 = arith.subf %26, %36 : vector<256x128xf32>
      %c0_17 = arith.constant 0 : index
      %c0_18 = arith.constant 0 : index
      %38 = vector.load %arg6[%c0_17, %c0_18] : memref<256x128xf32, #tpu.memory_space<vmem>>, vector<256x128xf32>
      tpu.vector_store %arg6[%c0_17, %c0_18], %37 {strides = array<i32>} : memref<256x128xf32, #tpu.memory_space<vmem>>, vector<256x128xf32>,
    } else {
    }
    return
  }
  func.func @transform_0(%arg0: i32, %arg1: i32) -> (i32, i32) {
    %c0_i32 = arith.constant 0 : i32
    return %arg0, %arg1 : i32, i32
  }
  func.func @transform_1(%arg0: i32, %arg1: i32) -> (i32, i32) {
    %c0_i32 = arith.constant 0 : i32
    %c0_i32_0 = arith.constant 0 : i32
    %c0_i32_1 = arith.constant 0 : i32
    return %c0_i32, %c0_i32_0 : i32, i32
  }
  func.func @transform_2(%arg0: i32, %arg1: i32) -> (i32, i32) {
    %c0_i32 = arith.constant 0 : i32
    %c0_i32_0 = arith.constant 0 : i32
    return %arg0, %c0_i32 : i32, i32
  }
  func.func @transform_3(%arg0: i32, %arg1: i32) -> (i32, i32) {
    %c0_i32 = arith.constant 0 : i32
    %c0_i32_0 = arith.constant 0 : i32
    %c0_i32_1 = arith.constant 0 : i32
    return %c0_i32, %c0_i32_0 : i32, i32
  }
  func.func @transform_4(%arg0: i32, %arg1: i32) -> (i32, i32) {
    %c0_i32 = arith.constant 0 : i32
    %c0_i32_0 = arith.constant 0 : i32
    return %arg0, %c0_i32 : i32, i32
  }
}

</mosaic_0001>

<llo_original>
// kernel: gcn_forward.2
$region0: #{gcn_forward.2}
  #allocation0 [shape = 'u32[]', space=smem, size = 0x4, offset = 0x4, fixed_abs, tag = 'smem constant byte address 0x4 - core index']
  #allocation1 [shape = 'u32[144,128]{1,0:T(1,128)}', space=vmem, size = 0x12000, scoped, tag = 'internal scratch']
  #allocation2 [shape = 'f32[256,128]{1,0:T(8,128)}', space=vmem, size = 0x20000, scoped, tag = 'scratch operand']
  %s0 = inlined_call_operand.vmem [shape: bf16[2560,2560], index: 0, kind: input, shape index: {}]
  %s1 = inlined_call_operand.vmem [shape: bf16[2560,128], index: 1, kind: input, shape index: {}]
  %s2 = inlined_call_operand.vmem [shape: f32[2560,1], index: 2, kind: input, shape index: {}]
  %s3 = inlined_call_operand.vmem [shape: f32[1,128], index: 3, kind: input, shape index: {}]
  %s4 = inlined_call_operand.vmem [shape: f32[2560,128], index: 4, kind: output, shape index: {}]
  %s5 = sld [smem:[#allocation0]]
  $region80: #{gcn_forward.2} parent=0
    _
  %s7 = ssub.s32 1, %s5
  %s8 = scalar_select 0, %s7, %s5
  $region1: #{gcn_forward.2} parent=0
    #allocation3 [shape = 'u8[1310720]{0}', space=vmem, size = 0x140000, scoped, tag = 'input window, operand 0']
    loop: start=0, step=1, limit=22
    $region2: #{gcn_forward.2} parent=1 // loop_pre_header
      _
    $region3: #{gcn_forward.2} parent=1 // loop_header
      %s10 = sphi 0, %s14
      %p11 = scmp.ge.s32.totalorder %s10, 22
      %s17 = sphi 0, %s29
      %s18 = sphi 0, %s25
      %s19 = sphi 0, %s17
      %s20 = sphi 0, %s18
      %s21 = sphi 0, %s19
      %s22 = sphi 0, %s20
      %s34 = sphi 0, %s36
      %s37 = sphi 0, %s34
      %s38 = sphi 0, %s37
      %s54 = sphi 0, %s38
      %s58 = sphi 0, %s58
      %s60 = sphi 0, %s58
      %s61 = sphi 0, %s60
      %s75 = sphi 0, %s61
      %s81 = sphi 0, %s83
      %s84 = sphi 0, %s81
      %s85 = sphi 0, %s84
      %s101 = sphi 0, %s85
      %s105 = sphi 0, %s105
      %s107 = sphi 0, %s105
      %s108 = sphi 0, %s107
      %s122 = sphi 0, %s108
      %s128 = sphi 0, %s130
      %s131 = sphi 0, %s128
      %s132 = sphi 0, %s131
      %s148 = sphi 0, %s132
    $region4: #{gcn_forward.2} parent=1 // loop_header_branch
      %13 = sbr.rel (%p11) target = $region8
    $region5: #{gcn_forward.2} parent=1 // loop_body
      %s15 = ssub.s32 %s10, 1
      %s16 = ssub.s32 %s10, 2
      %s23 = sadd.s32 1, %s18
      %p24 = scmp.ge.s32.totalorder %s23, 2
      %s25 = scalar_select %p24, 0, %s23
      %s26 = sadd.s32 1, %s17
      %s27 = scalar_select %p24, %s26, %s17
      %p28 = scmp.ge.s32.totalorder %s27, 10
      %s29 = scalar_select %p28, 0, %s27
      %s30 = ssub.s32 %s17, %s29
      %s31 = ssub.s32 %s18, %s25
      %s32 = sor.u32 %s30, %s31
      %p33 = scmp.eq.s32.totalorder %s32, 0
      %s35 = sadd.s32 %s34, 1
      %s36 = scalar_select %p33, %s34, %s35
      %p39 = pneg %p33
      %p40 = scmp.eq.s32.totalorder %s10, 19
      %p41 = por %p39, %p40
      %p42 = scmp.ne.s32.totalorder %s34, %s37
      %p43 = scmp.eq.s32.totalorder %s10, 0
      %p44 = por %p42, %p43
      %p45 = scmp.ne.s32.totalorder %s34, %s37
      %p46 = scmp.eq.s32.totalorder %s15, 19
      %p47 = por %p45, %p46
      %p48 = scmp.ne.s32.totalorder %s37, %s38
      %p49 = scmp.eq.s32.totalorder %s15, 0
      %p50 = por %p48, %p49
      %p51 = scmp.ne.s32.totalorder %s37, %s38
      %p52 = scmp.eq.s32.totalorder %s16, 19
      %p53 = por %p51, %p52
      %p55 = scmp.ne.s32.totalorder %s38, %s54
      %p56 = scmp.eq.s32.totalorder %s16, 0
      %p57 = por %p55, %p56
      %s59 = sadd.s32 %s58, 1
      %p62 = scmp.eq.s32.totalorder %s10, 19
      %p63 = scmp.ne.s32.totalorder %s58, %s60
      %p64 = scmp.eq.s32.totalorder %s10, 0
      %p65 = por %p63, %p64
      %p66 = scmp.ne.s32.totalorder %s58, %s60
      %p67 = scmp.eq.s32.totalorder %s15, 19
      %p68 = por %p66, %p67
      %p69 = scmp.ne.s32.totalorder %s60, %s61
      %p70 = scmp.eq.s32.totalorder %s15, 0
      %p71 = por %p69, %p70
      %p72 = scmp.ne.s32.totalorder %s60, %s61
      %p73 = scmp.eq.s32.totalorder %s16, 19
      %p74 = por %p72, %p73
      %p76 = scmp.ne.s32.totalorder %s61, %s75
      %p77 = scmp.eq.s32.totalorder %s16, 0
      %p78 = por %p76, %p77
      %s79 = ssub.s32 %s17, %s29
      %p80 = scmp.eq.s32.totalorder %s79, 0
      %s82 = sadd.s32 %s81, 1
      %s83 = scalar_select %p80, %s81, %s82
      %p86 = pneg %p80
      %p87 = scmp.eq.s32.totalorder %s10, 19
      %p88 = por %p86, %p87
      %p89 = scmp.ne.s32.totalorder %s81, %s84
      %p90 = scmp.eq.s32.totalorder %s10, 0
      %p91 = por %p89, %p90
      %p92 = scmp.ne.s32.totalorder %s81, %s84
      %p93 = scmp.eq.s32.totalorder %s15, 19
      %p94 = por %p92, %p93
      %p95 = scmp.ne.s32.totalorder %s84, %s85
      %p96 = scmp.eq.s32.totalorder %s15, 0
      %p97 = por %p95, %p96
      %p98 = scmp.ne.s32.totalorder %s84, %s85
      %p99 = scmp.eq.s32.totalorder %s16, 19
      %p100 = por %p98, %p99
      %p102 = scmp.ne.s32.totalorder %s85, %s101
      %p103 = scmp.eq.s32.totalorder %s16, 0
      %p104 = por %p102, %p103
      %s106 = sadd.s32 %s105, 1
      %p109 = scmp.eq.s32.totalorder %s10, 19
      %p110 = scmp.ne.s32.totalorder %s105, %s107
      %p111 = scmp.eq.s32.totalorder %s10, 0
      %p112 = por %p110, %p111
      %p113 = scmp.ne.s32.totalorder %s105, %s107
      %p114 = scmp.eq.s32.totalorder %s15, 19
      %p115 = por %p113, %p114
      %p116 = scmp.ne.s32.totalorder %s107, %s108
      %p117 = scmp.eq.s32.totalorder %s15, 0
      %p118 = por %p116, %p117
      %p119 = scmp.ne.s32.totalorder %s107, %s108
      %p120 = scmp.eq.s32.totalorder %s16, 19
      %p121 = por %p119, %p120
      %p123 = scmp.ne.s32.totalorder %s108, %s122
      %p124 = scmp.eq.s32.totalorder %s16, 0
      %p125 = por %p123, %p124
      %s126 = ssub.s32 %s17, %s29
      %p127 = scmp.eq.s32.totalorder %s126, 0
      %s129 = sadd.s32 %s128, 1
      %s130 = scalar_select %p127, %s128, %s129
      %p133 = pneg %p127
      %p134 = scmp.eq.s32.totalorder %s10, 19
      %p135 = por %p133, %p134
      %p136 = scmp.ne.s32.totalorder %s128, %s131
      %p137 = scmp.eq.s32.totalorder %s10, 0
      %p138 = por %p136, %p137
      %p139 = scmp.ne.s32.totalorder %s128, %s131
      %p140 = scmp.eq.s32.totalorder %s15, 19
      %p141 = por %p139, %p140
      %p142 = scmp.ne.s32.totalorder %s131, %s132
      %p143 = scmp.eq.s32.totalorder %s15, 0
      %p144 = por %p142, %p143
      %p145 = scmp.ne.s32.totalorder %s131, %s132
      %p146 = scmp.eq.s32.totalorder %s16, 19
      %p147 = por %p145, %p146
      %p149 = scmp.ne.s32.totalorder %s132, %s148
      %p150 = scmp.eq.s32.totalorder %s16, 0
      %p151 = por %p149, %p150
      %p152 = scmp.le.s32.totalorder 1, %s10
      %p153 = scmp.lt.s32.totalorder %s10, 21
      %p154 = pnand %p152, %p153
      %p155 = pneg %p154
      // Predicated region
      $region9: #{gcn_forward.2} parent=5 // pred_check
        _
      $region10: #{gcn_forward.2} parent=5 // pred_check_branch
        %157 = sbr.rel (%p154) target = $region12
      $region11: #{gcn_forward.2} parent=5 // pred_region
        %s158 = ssub.s32 %s10, 1
        // Predicated region
        $region13: #{gcn_forward.2} parent=11 // pred_check
          %p159 = pneg %p71
        $region14: #{gcn_forward.2} parent=11 // pred_check_branch
          %161 = sbr.rel (%p159) target = $region16
        $region15: #{gcn_forward.2} parent=11 // pred_region
          _
        $region16: #{gcn_forward.2} parent=11 // pred_fallthru
          _
        // Predicated region
        $region17: #{gcn_forward.2} parent=11 // pred_check
          %p162 = pneg %p118
        $region18: #{gcn_forward.2} parent=11 // pred_check_branch
          %164 = sbr.rel (%p162) target = $region20
        $region19: #{gcn_forward.2} parent=11 // pred_region
          _
        $region20: #{gcn_forward.2} parent=11 // pred_fallthru
          _
      $region12: #{gcn_forward.2} parent=5 // pred_fallthru
        _
      %p165 = scmp.lt.s32.totalorder %s10, 20
      // Predicated region
      $region21: #{gcn_forward.2} parent=5 // pred_check
        %p166 = pneg %p165
      $region22: #{gcn_forward.2} parent=5 // pred_check_branch
        %168 = sbr.rel (%p166) target = $region24
      $region23: #{gcn_forward.2} parent=5 // pred_region
        // Predicated region
        $region25: #{gcn_forward.2} parent=23 // pred_check
          %p169 = pneg %p44
        $region26: #{gcn_forward.2} parent=23 // pred_check_branch
          %171 = sbr.rel (%p169) target = $region28
        $region27: #{gcn_forward.2} parent=23 // pred_region
          %s172 = sand.u32 %s34, 1
          %s173 = sand.u32 %s34, 1
          %s174 = smul.addr %s173, 1280
          %s175 = scalar_lea.vmem [#allocation3], %s174
          %s176 = smul.u32 32, %s17
          %s177 = smul.u32 10, %s18
          %s178 = smul.addr %s176, 20
          %s179 = sadd.s32 %s177, %s178
          %s180 = smul.addr %s179, 4
          %s181 = scalar_lea.vmem %s0, %s180
          // Predicated region
          $region29: #{gcn_forward.2} parent=27 // pred_check
            _
          $region30: #{gcn_forward.2} parent=27 // pred_check_branch
            %183 = sbr.rel (0) target = $region32
          $region31: #{gcn_forward.2} parent=27 // pred_region
            // Predicated region
            $region33: #{gcn_forward.2} parent=31 // pred_check
              _
            $region34: #{gcn_forward.2} parent=31 // pred_check_branch
              %185 = sbr.rel (0) target = $region36
            $region35: #{gcn_forward.2} parent=31 // pred_region
              loop: start=0, step=1, limit=1
              $region37: #{gcn_forward.2} parent=35 // loop_pre_header
                _
              $region38: #{gcn_forward.2} parent=35 // loop_header
                %s187 = sphi 0, %s191
                %p188 = scmp.ge.s32.totalorder %s187, 1
                %s192 = sphi %s181, %s181
                %s193 = sphi %s175, %s175
              $region39: #{gcn_forward.2} parent=35 // loop_header_branch
                %190 = sbr.rel (%p188) target = $region43
              $region40: #{gcn_forward.2} parent=35 // loop_body
                %v194 = vld [vmem:[%s192] sm:$0xff]
                %195 = vst [vmem:[%s193] sm:$0xff] %v194
                %v196 = vld [vmem:[%s192 + $0x8] sm:$0xff]
                %197 = vst [vmem:[%s193 + $0x8] sm:$0xff] %v196
                %v198 = vld [vmem:[%s192 + $0x10] sm:$0xff]
                %199 = vst [vmem:[%s193 + $0x10] sm:$0xff] %v198
                %v200 = vld [vmem:[%s192 + $0x18] sm:$0xff]
                %201 = vst [vmem:[%s193 + $0x18] sm:$0xff] %v200
                %v202 = vld [vmem:[%s192 + $0x20] sm:$0xff]
                %203 = vst [vmem:[%s193 + $0x20] sm:$0xff] %v202
                %v204 = vld [vmem:[%s192 + $0x50] sm:$0xff]
                %205 = vst [vmem:[%s193 + $0x28] sm:$0xff] %v204
                %v206 = vld [vmem:[%s192 + $0x58] sm:$0xff]
                %207 = vst [vmem:[%s193 + $0x30] sm:$0xff] %v206
                %v208 = vld [vmem:[%s192 + $0x60] sm:$0xff]
                %209 = vst [vmem:[%s193 + $0x38] sm:$0xff] %v208
                %v210 = vld [vmem:[%s192 + $0x68] sm:$0xff]
                %211 = vst [vmem:[%s193 + $0x40] sm:$0xff] %v210
                %v212 = vld [vmem:[%s192 + $0x70] sm:$0xff]
                %213 = vst [vmem:[%s193 + $0x48] sm:$0xff] %v212
                %v214 = vld [vmem:[%s192 + $0xa0] sm:$0xff]
                %215 = vst [vmem:[%s193 + $0x50] sm:$0xff] %v214
                %v216 = vld [vmem:[%s192 + $0xa8] sm:$0xff]
                %217 = vst [vmem:[%s193 + $0x58] sm:$0xff] %v216
                %v218 = vld [vmem:[%s192 + $0xb0] sm:$0xff]
                %219 = vst [vmem:[%s193 + $0x60] sm:$0xff] %v218
                %v220 = vld [vmem:[%s192 + $0xb8] sm:$0xff]
                %221 = vst [vmem:[%s193 + $0x68] sm:$0xff] %v220
                %v222 = vld [vmem:[%s192 + $0xc0] sm:$0xff]
                %223 = vst [vmem:[%s193 + $0x70] sm:$0xff] %v222
                %v224 = vld [vmem:[%s192 + $0xf0] sm:$0xff]
                %225 = vst [vmem:[%s193 + $0x78] sm:$0xff] %v224
                %v226 = vld [vmem:[%s192 + $0xf8] sm:$0xff]
                %227 = vst [vmem:[%s193 + $0x80] sm:$0xff] %v226
                %v228 = vld [vmem:[%s192 + $0x100] sm:$0xff]
                %229 = vst [vmem:[%s193 + $0x88] sm:$0xff] %v228
                %v230 = vld [vmem:[%s192 + $0x108] sm:$0xff]
                %231 = vst [vmem:[%s193 + $0x90] sm:$0xff] %v230
                %v232 = vld [vmem:[%s192 + $0x110] sm:$0xff]
                %233 = vst [vmem:[%s193 + $0x98] sm:$0xff] %v232
                %v234 = vld [vmem:[%s192 + $0x140] sm:$0xff]
                %235 = vst [vmem:[%s193 + $0xa0] sm:$0xff] %v234
                %v236 = vld [vmem:[%s192 + $0x148] sm:$0xff]
                %237 = vst [vmem:[%s193 + $0xa8] sm:$0xff] %v236
                %v238 = vld [vmem:[%s192 + $0x150] sm:$0xff]
                %239 = vst [vmem:[%s193 + $0xb0] sm:$0xff] %v238
                %v240 = vld [vmem:[%s192 + $0x158] sm:$0xff]
                %241 = vst [vmem:[%s193 + $0xb8] sm:$0xff] %v240
                %v242 = vld [vmem:[%s192 + $0x160] sm:$0xff]
                %243 = vst [vmem:[%s193 + $0xc0] sm:$0xff] %v242
                %v244 = vld [vmem:[%s192 + $0x190] sm:$0xff]
                %245 = vst [vmem:[%s193 + $0xc8] sm:$0xff] %v244
                %v246 = vld [vmem:[%s192 + $0x198] sm:$0xff]
                %247 = vst [vmem:[%s193 + $0xd0] sm:$0xff] %v246
                %v248 = vld [vmem:[%s192 + $0x1a0] sm:$0xff]
                %249 = vst [vmem:[%s193 + $0xd8] sm:$0xff] %v248
                %v250 = vld [vmem:[%s192 + $0x1a8] sm:$0xff]
                %251 = vst [vmem:[%s193 + $0xe0] sm:$0xff] %v250
                %v252 = vld [vmem:[%s192 + $0x1b0] sm:$0xff]
                %253 = vst [vmem:[%s193 + $0xe8] sm:$0xff] %v252
                %v254 = vld [vmem:[%s192 + $0x1e0] sm:$0xff]
                %255 = vst [vmem:[%s193 + $0xf0] sm:$0xff] %v254
                %v256 = vld [vmem:[%s192 + $0x1e8] sm:$0xff]
                %257 = vst [vmem:[%s193 + $0xf8] sm:$0xff] %v256
                %v258 = vld [vmem:[%s192 + $0x1f0] sm:$0xff]
                %259 = vst [vmem:[%s193 + $0x100] sm:$0xff] %v258
                %v260 = vld [vmem:[%s192 + $0x1f8] sm:$0xff]
                %261 = vst [vmem:[%s193 + $0x108] sm:$0xff] %v260
                %v262 = vld [vmem:[%s192 + $0x200] sm:$0xff]
                %263 = vst [vmem:[%s193 + $0x110] sm:$0xff] %v262
                %v264 = vld [vmem:[%s192 + $0x230] sm:$0xff]
                %265 = vst [vmem:[%s193 + $0x118] sm:$0xff] %v264
                %v266 = vld [vmem:[%s192 + $0x238] sm:$0xff]
                %267 = vst [vmem:[%s193 + $0x120] sm:$0xff] %v266
                %v268 = vld [vmem:[%s192 + $0x240] sm:$0xff]
                %269 = vst [vmem:[%s193 + $0x128] sm:$0xff] %v268
                %v270 = vld [vmem:[%s192 + $0x248] sm:$0xff]
                %271 = vst [vmem:[%s193 + $0x130] sm:$0xff] %v270
                %v272 = vld [vmem:[%s192 + $0x250] sm:$0xff]
                %273 = vst [vmem:[%s193 + $0x138] sm:$0xff] %v272
                %v274 = vld [vmem:[%s192 + $0x280] sm:$0xff]
                %275 = vst [vmem:[%s193 + $0x140] sm:$0xff] %v274
                %v276 = vld [vmem:[%s192 + $0x288] sm:$0xff]
                %277 = vst [vmem:[%s193 + $0x148] sm:$0xff] %v276
                %v278 = vld [vmem:[%s192 + $0x290] sm:$0xff]
                %279 = vst [vmem:[%s193 + $0x150] sm:$0xff] %v278
                %v280 = vld [vmem:[%s192 + $0x298] sm:$0xff]
                %281 = vst [vmem:[%s193 + $0x158] sm:$0xff] %v280
                %v282 = vld [vmem:[%s192 + $0x2a0] sm:$0xff]
                %283 = vst [vmem:[%s193 + $0x160] sm:$0xff] %v282
                %v284 = vld [vmem:[%s192 + $0x2d0] sm:$0xff]
                %285 = vst [vmem:[%s193 + $0x168] sm:$0xff] %v284
                %v286 = vld [vmem:[%s192 + $0x2d8] sm:$0xff]
                %287 = vst [vmem:[%s193 + $0x170] sm:$0xff] %v286
                %v288 = vld [vmem:[%s192 + $0x2e0] sm:$0xff]
                %289 = vst [vmem:[%s193 + $0x178] sm:$0xff] %v288
                %v290 = vld [vmem:[%s192 + $0x2e8] sm:$0xff]
                %291 = vst [vmem:[%s193 + $0x180] sm:$0xff] %v290
                %v292 = vld [vmem:[%s192 + $0x2f0] sm:$0xff]
                %293 = vst [vmem:[%s193 + $0x188] sm:$0xff] %v292
                %v294 = vld [vmem:[%s192 + $0x320] sm:$0xff]
                %295 = vst [vmem:[%s193 + $0x190] sm:$0xff] %v294
                %v296 = vld [vmem:[%s192 + $0x328] sm:$0xff]
                %297 = vst [vmem:[%s193 + $0x198] sm:$0xff] %v296
                %v298 = vld [vmem:[%s192 + $0x330] sm:$0xff]
                %299 = vst [vmem:[%s193 + $0x1a0] sm:$0xff] %v298
                %v300 = vld [vmem:[%s192 + $0x338] sm:$0xff]
                %301 = vst [vmem:[%s193 + $0x1a8] sm:$0xff] %v300
                %v302 = vld [vmem:[%s192 + $0x340] sm:$0xff]
                %303 = vst [vmem:[%s193 + $0x1b0] sm:$0xff] %v302
                %v304 = vld [vmem:[%s192 + $0x370] sm:$0xff]
                %305 = vst [vmem:[%s193 + $0x1b8] sm:$0xff] %v304
                %v306 = vld [vmem:[%s192 + $0x378] sm:$0xff]
                %307 = vst [vmem:[%s193 + $0x1c0] sm:$0xff] %v306
                %v308 = vld [vmem:[%s192 + $0x380] sm:$0xff]
                %309 = vst [vmem:[%s193 + $0x1c8] sm:$0xff] %v308
                %v310 = vld [vmem:[%s192 + $0x388] sm:$0xff]
                %311 = vst [vmem:[%s193 + $0x1d0] sm:$0xff] %v310
                %v312 = vld [vmem:[%s192 + $0x390] sm:$0xff]
                %313 = vst [vmem:[%s193 + $0x1d8] sm:$0xff] %v312
                %v314 = vld [vmem:[%s192 + $0x3c0] sm:$0xff]
                %315 = vst [vmem:[%s193 + $0x1e0] sm:$0xff] %v314
                %v316 = vld [vmem:[%s192 + $0x3c8] sm:$0xff]
                %317 = vst [vmem:[%s193 + $0x1e8] sm:$0xff] %v316
                %v318 = vld [vmem:[%s192 + $0x3d0] sm:$0xff]
                %319 = vst [vmem:[%s193 + $0x1f0] sm:$0xff] %v318
                %v320 = vld [vmem:[%s192 + $0x3d8] sm:$0xff]
                %321 = vst [vmem:[%s193 + $0x1f8] sm:$0xff] %v320
                %v322 = vld [vmem:[%s192 + $0x3e0] sm:$0xff]
                %323 = vst [vmem:[%s193 + $0x200] sm:$0xff] %v322
                %v324 = vld [vmem:[%s192 + $0x410] sm:$0xff]
                %325 = vst [vmem:[%s193 + $0x208] sm:$0xff] %v324
                %v326 = vld [vmem:[%s192 + $0x418] sm:$0xff]
                %327 = vst [vmem:[%s193 + $0x210] sm:$0xff] %v326
                %v328 = vld [vmem:[%s192 + $0x420] sm:$0xff]
                %329 = vst [vmem:[%s193 + $0x218] sm:$0xff] %v328
                %v330 = vld [vmem:[%s192 + $0x428] sm:$0xff]
                %331 = vst [vmem:[%s193 + $0x220] sm:$0xff] %v330
                %v332 = vld [vmem:[%s192 + $0x430] sm:$0xff]
                %333 = vst [vmem:[%s193 + $0x228] sm:$0xff] %v332
                %v334 = vld [vmem:[%s192 + $0x460] sm:$0xff]
                %335 = vst [vmem:[%s193 + $0x230] sm:$0xff] %v334
                %v336 = vld [vmem:[%s192 + $0x468] sm:$0xff]
                %337 = vst [vmem:[%s193 + $0x238] sm:$0xff] %v336
                %v338 = vld [vmem:[%s192 + $0x470] sm:$0xff]
                %339 = vst [vmem:[%s193 + $0x240] sm:$0xff] %v338
                %v340 = vld [vmem:[%s192 + $0x478] sm:$0xff]
                %341 = vst [vmem:[%s193 + $0x248] sm:$0xff] %v340
                %v342 = vld [vmem:[%s192 + $0x480] sm:$0xff]
                %343 = vst [vmem:[%s193 + $0x250] sm:$0xff] %v342
                %v344 = vld [vmem:[%s192 + $0x4b0] sm:$0xff]
                %345 = vst [vmem:[%s193 + $0x258] sm:$0xff] %v344
                %v346 = vld [vmem:[%s192 + $0x4b8] sm:$0xff]
                %347 = vst [vmem:[%s193 + $0x260] sm:$0xff] %v346
                %v348 = vld [vmem:[%s192 + $0x4c0] sm:$0xff]
                %349 = vst [vmem:[%s193 + $0x268] sm:$0xff] %v348
                %v350 = vld [vmem:[%s192 + $0x4c8] sm:$0xff]
                %351 = vst [vmem:[%s193 + $0x270] sm:$0xff] %v350
                %v352 = vld [vmem:[%s192 + $0x4d0] sm:$0xff]
                %353 = vst [vmem:[%s193 + $0x278] sm:$0xff] %v352
                %v354 = vld [vmem:[%s192 + $0x500] sm:$0xff]
                %355 = vst [vmem:[%s193 + $0x280] sm:$0xff] %v354
                %v356 = vld [vmem:[%s192 + $0x508] sm:$0xff]
                %357 = vst [vmem:[%s193 + $0x288] sm:$0xff] %v356
                %v358 = vld [vmem:[%s192 + $0x510] sm:$0xff]
                %359 = vst [vmem:[%s193 + $0x290] sm:$0xff] %v358
                %v360 = vld [vmem:[%s192 + $0x518] sm:$0xff]
                %361 = vst [vmem:[%s193 + $0x298] sm:$0xff] %v360
                %v362 = vld [vmem:[%s192 + $0x520] sm:$0xff]
                %363 = vst [vmem:[%s193 + $0x2a0] sm:$0xff] %v362
                %v364 = vld [vmem:[%s192 + $0x550] sm:$0xff]
                %365 = vst [vmem:[%s193 + $0x2a8] sm:$0xff] %v364
                %v366 = vld [vmem:[%s192 + $0x558] sm:$0xff]
                %367 = vst [vmem:[%s193 + $0x2b0] sm:$0xff] %v366
                %v368 = vld [vmem:[%s192 + $0x560] sm:$0xff]
                %369 = vst [vmem:[%s193 + $0x2b8] sm:$0xff] %v368
                %v370 = vld [vmem:[%s192 + $0x568] sm:$0xff]
                %371 = vst [vmem:[%s193 + $0x2c0] sm:$0xff] %v370
                %v372 = vld [vmem:[%s192 + $0x570] sm:$0xff]
                %373 = vst [vmem:[%s193 + $0x2c8] sm:$0xff] %v372
                %v374 = vld [vmem:[%s192 + $0x5a0] sm:$0xff]
                %375 = vst [vmem:[%s193 + $0x2d0] sm:$0xff] %v374
                %v376 = vld [vmem:[%s192 + $0x5a8] sm:$0xff]
                %377 = vst [vmem:[%s193 + $0x2d8] sm:$0xff] %v376
                %v378 = vld [vmem:[%s192 + $0x5b0] sm:$0xff]
                %379 = vst [vmem:[%s193 + $0x2e0] sm:$0xff] %v378
                %v380 = vld [vmem:[%s192 + $0x5b8] sm:$0xff]
                %381 = vst [vmem:[%s193 + $0x2e8] sm:$0xff] %v380
                %v382 = vld [vmem:[%s192 + $0x5c0] sm:$0xff]
                %383 = vst [vmem:[%s193 + $0x2f0] sm:$0xff] %v382
                %v384 = vld [vmem:[%s192 + $0x5f0] sm:$0xff]
                %385 = vst [vmem:[%s193 + $0x2f8] sm:$0xff] %v384
                %v386 = vld [vmem:[%s192 + $0x5f8] sm:$0xff]
                %387 = vst [vmem:[%s193 + $0x300] sm:$0xff] %v386
                %v388 = vld [vmem:[%s192 + $0x600] sm:$0xff]
                %389 = vst [vmem:[%s193 + $0x308] sm:$0xff] %v388
                %v390 = vld [vmem:[%s192 + $0x608] sm:$0xff]
                %391 = vst [vmem:[%s193 + $0x310] sm:$0xff] %v390
                %v392 = vld [vmem:[%s192 + $0x610] sm:$0xff]
                %393 = vst [vmem:[%s193 + $0x318] sm:$0xff] %v392
                %v394 = vld [vmem:[%s192 + $0x640] sm:$0xff]
                %395 = vst [vmem:[%s193 + $0x320] sm:$0xff] %v394
                %v396 = vld [vmem:[%s192 + $0x648] sm:$0xff]
                %397 = vst [vmem:[%s193 + $0x328] sm:$0xff] %v396
                %v398 = vld [vmem:[%s192 + $0x650] sm:$0xff]
                %399 = vst [vmem:[%s193 + $0x330] sm:$0xff] %v398
                %v400 = vld [vmem:[%s192 + $0x658] sm:$0xff]
                %401 = vst [vmem:[%s193 + $0x338] sm:$0xff] %v400
                %v402 = vld [vmem:[%s192 + $0x660] sm:$0xff]
                %403 = vst [vmem:[%s193 + $0x340] sm:$0xff] %v402
                %v404 = vld [vmem:[%s192 + $0x690] sm:$0xff]
                %405 = vst [vmem:[%s193 + $0x348] sm:$0xff] %v404
                %v406 = vld [vmem:[%s192 + $0x698] sm:$0xff]
                %407 = vst [vmem:[%s193 + $0x350] sm:$0xff] %v406
                %v408 = vld [vmem:[%s192 + $0x6a0] sm:$0xff]
                %409 = vst [vmem:[%s193 + $0x358] sm:$0xff] %v408
                %v410 = vld [vmem:[%s192 + $0x6a8] sm:$0xff]
                %411 = vst [vmem:[%s193 + $0x360] sm:$0xff] %v410
                %v412 = vld [vmem:[%s192 + $0x6b0] sm:$0xff]
                %413 = vst [vmem:[%s193 + $0x368] sm:$0xff] %v412
                %v414 = vld [vmem:[%s192 + $0x6e0] sm:$0xff]
                %415 = vst [vmem:[%s193 + $0x370] sm:$0xff] %v414
                %v416 = vld [vmem:[%s192 + $0x6e8] sm:$0xff]
                %417 = vst [vmem:[%s193 + $0x378] sm:$0xff] %v416
                %v418 = vld [vmem:[%s192 + $0x6f0] sm:$0xff]
                %419 = vst [vmem:[%s193 + $0x380] sm:$0xff] %v418
                %v420 = vld [vmem:[%s192 + $0x6f8] sm:$0xff]
                %421 = vst [vmem:[%s193 + $0x388] sm:$0xff] %v420
                %v422 = vld [vmem:[%s192 + $0x700] sm:$0xff]
                %423 = vst [vmem:[%s193 + $0x390] sm:$0xff] %v422
                %v424 = vld [vmem:[%s192 + $0x730] sm:$0xff]
                %425 = vst [vmem:[%s193 + $0x398] sm:$0xff] %v424
                %v426 = vld [vmem:[%s192 + $0x738] sm:$0xff]
                %427 = vst [vmem:[%s193 + $0x3a0] sm:$0xff] %v426
                %v428 = vld [vmem:[%s192 + $0x740] sm:$0xff]
                %429 = vst [vmem:[%s193 + $0x3a8] sm:$0xff] %v428
                %v430 = vld [vmem:[%s192 + $0x748] sm:$0xff]
                %431 = vst [vmem:[%s193 + $0x3b0] sm:$0xff] %v430
                %v432 = vld [vmem:[%s192 + $0x750] sm:$0xff]
                %433 = vst [vmem:[%s193 + $0x3b8] sm:$0xff] %v432
                %v434 = vld [vmem:[%s192 + $0x780] sm:$0xff]
                %435 = vst [vmem:[%s193 + $0x3c0] sm:$0xff] %v434
                %v436 = vld [vmem:[%s192 + $0x788] sm:$0xff]
                %437 = vst [vmem:[%s193 + $0x3c8] sm:$0xff] %v436
                %v438 = vld [vmem:[%s192 + $0x790] sm:$0xff]
                %439 = vst [vmem:[%s193 + $0x3d0] sm:$0xff] %v438
                %v440 = vld [vmem:[%s192 + $0x798] sm:$0xff]
                %441 = vst [vmem:[%s193 + $0x3d8] sm:$0xff] %v440
                %v442 = vld [vmem:[%s192 + $0x7a0] sm:$0xff]
                %443 = vst [vmem:[%s193 + $0x3e0] sm:$0xff] %v442
                %v444 = vld [vmem:[%s192 + $0x7d0] sm:$0xff]
                %445 = vst [vmem:[%s193 + $0x3e8] sm:$0xff] %v444
                %v446 = vld [vmem:[%s192 + $0x7d8] sm:$0xff]
                %447 = vst [vmem:[%s193 + $0x3f0] sm:$0xff] %v446
                %v448 = vld [vmem:[%s192 + $0x7e0] sm:$0xff]
                %449 = vst [vmem:[%s193 + $0x3f8] sm:$0xff] %v448
                %v450 = vld [vmem:[%s192 + $0x7e8] sm:$0xff]
                %451 = vst [vmem:[%s193 + $0x400] sm:$0xff] %v450
                %v452 = vld [vmem:[%s192 + $0x7f0] sm:$0xff]
                %453 = vst [vmem:[%s193 + $0x408] sm:$0xff] %v452
                %v454 = vld [vmem:[%s192 + $0x820] sm:$0xff]
                %455 = vst [vmem:[%s193 + $0x410] sm:$0xff] %v454
                %v456 = vld [vmem:[%s192 + $0x828] sm:$0xff]
                %457 = vst [vmem:[%s193 + $0x418] sm:$0xff] %v456
                %v458 = vld [vmem:[%s192 + $0x830] sm:$0xff]
                %459 = vst [vmem:[%s193 + $0x420] sm:$0xff] %v458
                %v460 = vld [vmem:[%s192 + $0x838] sm:$0xff]
                %461 = vst [vmem:[%s193 + $0x428] sm:$0xff] %v460
                %v462 = vld [vmem:[%s192 + $0x840] sm:$0xff]
                %463 = vst [vmem:[%s193 + $0x430] sm:$0xff] %v462
                %v464 = vld [vmem:[%s192 + $0x870] sm:$0xff]
                %465 = vst [vmem:[%s193 + $0x438] sm:$0xff] %v464
                %v466 = vld [vmem:[%s192 + $0x878] sm:$0xff]
                %467 = vst [vmem:[%s193 + $0x440] sm:$0xff] %v466
                %v468 = vld [vmem:[%s192 + $0x880] sm:$0xff]
                %469 = vst [vmem:[%s193 + $0x448] sm:$0xff] %v468
                %v470 = vld [vmem:[%s192 + $0x888] sm:$0xff]
                %471 = vst [vmem:[%s193 + $0x450] sm:$0xff] %v470
                %v472 = vld [vmem:[%s192 + $0x890] sm:$0xff]
                %473 = vst [vmem:[%s193 + $0x458] sm:$0xff] %v472
                %v474 = vld [vmem:[%s192 + $0x8c0] sm:$0xff]
                %475 = vst [vmem:[%s193 + $0x460] sm:$0xff] %v474
                %v476 = vld [vmem:[%s192 + $0x8c8] sm:$0xff]
                %477 = vst [vmem:[%s193 + $0x468] sm:$0xff] %v476
                %v478 = vld [vmem:[%s192 + $0x8d0] sm:$0xff]
                %479 = vst [vmem:[%s193 + $0x470] sm:$0xff] %v478
                %v480 = vld [vmem:[%s192 + $0x8d8] sm:$0xff]
                %481 = vst [vmem:[%s193 + $0x478] sm:$0xff] %v480
                %v482 = vld [vmem:[%s192 + $0x8e0] sm:$0xff]
                %483 = vst [vmem:[%s193 + $0x480] sm:$0xff] %v482
                %v484 = vld [vmem:[%s192 + $0x910] sm:$0xff]
                %485 = vst [vmem:[%s193 + $0x488] sm:$0xff] %v484
                %v486 = vld [vmem:[%s192 + $0x918] sm:$0xff]
                %487 = vst [vmem:[%s193 + $0x490] sm:$0xff] %v486
                %v488 = vld [vmem:[%s192 + $0x920] sm:$0xff]
                %489 = vst [vmem:[%s193 + $0x498] sm:$0xff] %v488
                %v490 = vld [vmem:[%s192 + $0x928] sm:$0xff]
                %491 = vst [vmem:[%s193 + $0x4a0] sm:$0xff] %v490
                %v492 = vld [vmem:[%s192 + $0x930] sm:$0xff]
                %493 = vst [vmem:[%s193 + $0x4a8] sm:$0xff] %v492
                %v494 = vld [vmem:[%s192 + $0x960] sm:$0xff]
                %495 = vst [vmem:[%s193 + $0x4b0] sm:$0xff] %v494
                %v496 = vld [vmem:[%s192 + $0x968] sm:$0xff]
                %497 = vst [vmem:[%s193 + $0x4b8] sm:$0xff] %v496
                %v498 = vld [vmem:[%s192 + $0x970] sm:$0xff]
                %499 = vst [vmem:[%s193 + $0x4c0] sm:$0xff] %v498
                %v500 = vld [vmem:[%s192 + $0x978] sm:$0xff]
                %501 = vst [vmem:[%s193 + $0x4c8] sm:$0xff] %v500
                %v502 = vld [vmem:[%s192 + $0x980] sm:$0xff]
                %503 = vst [vmem:[%s193 + $0x4d0] sm:$0xff] %v502
                %v504 = vld [vmem:[%s192 + $0x9b0] sm:$0xff]
                %505 = vst [vmem:[%s193 + $0x4d8] sm:$0xff] %v504
                %v506 = vld [vmem:[%s192 + $0x9b8] sm:$0xff]
                %507 = vst [vmem:[%s193 + $0x4e0] sm:$0xff] %v506
                %v508 = vld [vmem:[%s192 + $0x9c0] sm:$0xff]
                %509 = vst [vmem:[%s193 + $0x4e8] sm:$0xff] %v508
                %v510 = vld [vmem:[%s192 + $0x9c8] sm:$0xff]
                %511 = vst [vmem:[%s193 + $0x4f0] sm:$0xff] %v510
                %v512 = vld [vmem:[%s192 + $0x9d0] sm:$0xff]
                %513 = vst [vmem:[%s193 + $0x4f8] sm:$0xff] %v512
              $region41: #{gcn_forward.2} parent=35 // loop_footer
                %s191 = sadd.s32 1, %s187
              $region42: #{gcn_forward.2} parent=35 // loop_footer_branch
                %186 = sbr.rel target = $region38
              $region43: #{gcn_forward.2} parent=35 // loop_exit
                _
            $region36: #{gcn_forward.2} parent=31 // pred_fallthru
              _
            // Predicated region
            $region44: #{gcn_forward.2} parent=31 // pred_check
              _
            $region45: #{gcn_forward.2} parent=31 // pred_check_branch
              %515 = sbr.rel target = $region47
            $region46: #{gcn_forward.2} parent=31 // pred_region
              _
            $region47: #{gcn_forward.2} parent=31 // pred_fallthru
              _
          $region32: #{gcn_forward.2} parent=27 // pred_fallthru
            _
          %516 = vnop
        $region28: #{gcn_forward.2} parent=23 // pred_fallthru
          _
        // Predicated region
        $region48: #{gcn_forward.2} parent=23 // pred_check
          %p517 = pneg %p91
        $region49: #{gcn_forward.2} parent=23 // pred_check_branch
          %519 = sbr.rel (%p517) target = $region51
        $region50: #{gcn_forward.2} parent=23 // pred_region
          %s520 = smul.u32 32, %s17
          %p521 = scmp.lt.s32.totalorder %s520, 319
          %s522 = scalar_select %p521, %s520, 319
          %s523 = smul.addr %s522, 8
          %s524 = scalar_lea.vmem %s2, %s523
          %s525 = smul.u32 32, %s17
        $region51: #{gcn_forward.2} parent=23 // pred_fallthru
          _
      $region24: #{gcn_forward.2} parent=5 // pred_fallthru
        _
      %p526 = scmp.le.s32.totalorder 1, %s10
      %p527 = scmp.lt.s32.totalorder %s10, 21
      %p528 = pnand %p526, %p527
      %p529 = pneg %p528
      // Predicated region
      $region52: #{gcn_forward.2} parent=5 // pred_check
        _
      $region53: #{gcn_forward.2} parent=5 // pred_check_branch
        %531 = sbr.rel (%p528) target = $region55
      $region54: #{gcn_forward.2} parent=5 // pred_region
        %s532 = ssub.s32 %s10, 1
        %s533 = sand.u32 %s37, 1
        %s534 = sand.u32 %s37, 1
        %s535 = smul.addr %s534, 1280
        %s536 = scalar_lea.vmem [#allocation3], %s535
        // Predicated region
        $region56: #{gcn_forward.2} parent=54 // pred_check
          %p537 = pneg %p50
        $region57: #{gcn_forward.2} parent=54 // pred_check_branch
          %539 = sbr.rel (%p537) target = $region59
        $region58: #{gcn_forward.2} parent=54 // pred_region
          _
        $region59: #{gcn_forward.2} parent=54 // pred_fallthru
          _
        %s540 = sand.u32 %s37, 1
        %s541 = sand.u32 %s37, 1
        %s542 = smul.addr %s541, 1280
        %s543 = scalar_lea.vmem [#allocation3], %s542
        %p544 = pneg %p50
        %p545 = pneg %p47
        %p546 = pneg %p71
        %p547 = pneg %p68
        %s548 = smul.u32 32, %s19
        %p549 = scmp.lt.s32.totalorder %s548, 319
        %s550 = scalar_select %p549, %s548, 319
        %s551 = smul.addr %s550, 8
        %s552 = scalar_lea.vmem %s2, %s551
        %p553 = pneg %p97
        %p554 = pneg %p94
        %p555 = pneg %p118
        %p556 = pneg %p115
        %p557 = pneg %p144
        %p558 = pneg %p141
        %s559 = smul.u32 32, %s19
        %p560 = scmp.lt.s32.totalorder %s559, 319
        %s561 = scalar_select %p560, %s559, 319
        %s562 = smul.addr %s561, 8
        %s563 = scalar_lea.vmem %s4, %s562
        %s564 = smul.u32 32, %s19
        %s565 = smul.u32 10, %s20
        %s566 = smul.u32 32, %s19
        %p567 = scmp.lt.s32.totalorder %s566, 319
        %s568 = scalar_select %p567, %s566, 319
        %s569 = smul.addr %s568, 8
        %s570 = scalar_lea.vmem %s2, %s569
        %s571 = smul.u32 32, %s19
        %s572 = smul.u32 32, %s19
        %p573 = scmp.lt.s32.totalorder %s572, 319
        %s574 = scalar_select %p573, %s572, 319
        %s575 = smul.addr %s574, 8
        %s576 = scalar_lea.vmem %s4, %s575
        %s577 = smul.u32 32, %s19
        %p579 = scmp.eq.s32.totalorder %s20, 0
        // Predicated region
        $region60: #{gcn_forward.2} parent=54 // pred_check
          %p580 = pneg %p579
        $region61: #{gcn_forward.2} parent=54 // pred_check_branch
          %582 = sbr.rel (%p580) target = $region63
        $region62: #{gcn_forward.2} parent=54 // pred_region
          %583 = vst [vmem:[#allocation2] sm:$0xff] 0.0
          %584 = vst [vmem:[#allocation2 + $0x8] sm:$0xff] 0.0
          %585 = vst [vmem:[#allocation2 + $0x10] sm:$0xff] 0.0
          %586 = vst [vmem:[#allocation2 + $0x18] sm:$0xff] 0.0
          %587 = vst [vmem:[#allocation2 + $0x20] sm:$0xff] 0.0
          %588 = vst [vmem:[#allocation2 + $0x28] sm:$0xff] 0.0
          %589 = vst [vmem:[#allocation2 + $0x30] sm:$0xff] 0.0
          %590 = vst [vmem:[#allocation2 + $0x38] sm:$0xff] 0.0
          %591 = vst [vmem:[#allocation2 + $0x40] sm:$0xff] 0.0
          %592 = vst [vmem:[#allocation2 + $0x48] sm:$0xff] 0.0
          %593 = vst [vmem:[#allocation2 + $0x50] sm:$0xff] 0.0
          %594 = vst [vmem:[#allocation2 + $0x58] sm:$0xff] 0.0
          %595 = vst [vmem:[#allocation2 + $0x60] sm:$0xff] 0.0
          %596 = vst [vmem:[#allocation2 + $0x68] sm:$0xff] 0.0
          %597 = vst [vmem:[#allocation2 + $0x70] sm:$0xff] 0.0
          %598 = vst [vmem:[#allocation2 + $0x78] sm:$0xff] 0.0
          %599 = vst [vmem:[#allocation2 + $0x80] sm:$0xff] 0.0
          %600 = vst [vmem:[#allocation2 + $0x88] sm:$0xff] 0.0
          %601 = vst [vmem:[#allocation2 + $0x90] sm:$0xff] 0.0
          %602 = vst [vmem:[#allocation2 + $0x98] sm:$0xff] 0.0
          %603 = vst [vmem:[#allocation2 + $0xa0] sm:$0xff] 0.0
          %604 = vst [vmem:[#allocation2 + $0xa8] sm:$0xff] 0.0
          %605 = vst [vmem:[#allocation2 + $0xb0] sm:$0xff] 0.0
          %606 = vst [vmem:[#allocation2 + $0xb8] sm:$0xff] 0.0
          %607 = vst [vmem:[#allocation2 + $0xc0] sm:$0xff] 0.0
          %608 = vst [vmem:[#allocation2 + $0xc8] sm:$0xff] 0.0
          %609 = vst [vmem:[#allocation2 + $0xd0] sm:$0xff] 0.0
          %610 = vst [vmem:[#allocation2 + $0xd8] sm:$0xff] 0.0
          %611 = vst [vmem:[#allocation2 + $0xe0] sm:$0xff] 0.0
          %612 = vst [vmem:[#allocation2 + $0xe8] sm:$0xff] 0.0
          %613 = vst [vmem:[#allocation2 + $0xf0] sm:$0xff] 0.0
          %614 = vst [vmem:[#allocation2 + $0xf8] sm:$0xff] 0.0
        $region63: #{gcn_forward.2} parent=54 // pred_fallthru
          _
        %s615 = smul.u32 %s20, 1280
        %v616 = vld [vmem:[#allocation2] sm:$0xff]
        %v617 = vld [vmem:[#allocation2 + $0x8] sm:$0xff]
        %v618 = vld [vmem:[#allocation2 + $0x10] sm:$0xff]
        %v619 = vld [vmem:[#allocation2 + $0x18] sm:$0xff]
        %v620 = vld [vmem:[#allocation2 + $0x20] sm:$0xff]
        %v621 = vld [vmem:[#allocation2 + $0x28] sm:$0xff]
        %v622 = vld [vmem:[#allocation2 + $0x30] sm:$0xff]
        %v623 = vld [vmem:[#allocation2 + $0x38] sm:$0xff]
        %v624 = vld [vmem:[#allocation2 + $0x40] sm:$0xff]
        %v625 = vld [vmem:[#allocation2 + $0x48] sm:$0xff]
        %v626 = vld [vmem:[#allocation2 + $0x50] sm:$0xff]
        %v627 = vld [vmem:[#allocation2 + $0x58] sm:$0xff]
        %v628 = vld [vmem:[#allocation2 + $0x60] sm:$0xff]
        %v629 = vld [vmem:[#allocation2 + $0x68] sm:$0xff]
        %v630 = vld [vmem:[#allocation2 + $0x70] sm:$0xff]
        %v631 = vld [vmem:[#allocation2 + $0x78] sm:$0xff]
        %v632 = vld [vmem:[#allocation2 + $0x80] sm:$0xff]
        %v633 = vld [vmem:[#allocation2 + $0x88] sm:$0xff]
        %v634 = vld [vmem:[#allocation2 + $0x90] sm:$0xff]
        %v635 = vld [vmem:[#allocation2 + $0x98] sm:$0xff]
        %v636 = vld [vmem:[#allocation2 + $0xa0] sm:$0xff]
        %v637 = vld [vmem:[#allocation2 + $0xa8] sm:$0xff]
        %v638 = vld [vmem:[#allocation2 + $0xb0] sm:$0xff]
        %v639 = vld [vmem:[#allocation2 + $0xb8] sm:$0xff]
        %v640 = vld [vmem:[#allocation2 + $0xc0] sm:$0xff]
        %v641 = vld [vmem:[#allocation2 + $0xc8] sm:$0xff]
        %v642 = vld [vmem:[#allocation2 + $0xd0] sm:$0xff]
        %v643 = vld [vmem:[#allocation2 + $0xd8] sm:$0xff]
        %v644 = vld [vmem:[#allocation2 + $0xe0] sm:$0xff]
        %v645 = vld [vmem:[#allocation2 + $0xe8] sm:$0xff]
        %v646 = vld [vmem:[#allocation2 + $0xf0] sm:$0xff]
        %v647 = vld [vmem:[#allocation2 + $0xf8] sm:$0xff]
        %v648 = vld [vmem:[%s536] sm:$0xff]
        %v649 = vld [vmem:[%s536 + $0x8] sm:$0xff]
        %v650 = vld [vmem:[%s536 + $0x10] sm:$0xff]
        %v651 = vld [vmem:[%s536 + $0x18] sm:$0xff]
        %v652 = vld [vmem:[%s536 + $0x20] sm:$0xff]
        %v653 = vld [vmem:[%s536 + $0x28] sm:$0xff]
        %v654 = vld [vmem:[%s536 + $0x30] sm:$0xff]
        %v655 = vld [vmem:[%s536 + $0x38] sm:$0xff]
        %v656 = vld [vmem:[%s536 + $0x40] sm:$0xff]
        %v657 = vld [vmem:[%s536 + $0x48] sm:$0xff]
        %v658 = vld [vmem:[%s536 + $0x50] sm:$0xff]
        %v659 = vld [vmem:[%s536 + $0x58] sm:$0xff]
        %v660 = vld [vmem:[%s536 + $0x60] sm:$0xff]
        %v661 = vld [vmem:[%s536 + $0x68] sm:$0xff]
        %v662 = vld [vmem:[%s536 + $0x70] sm:$0xff]
        %v663 = vld [vmem:[%s536 + $0x78] sm:$0xff]
        %v664 = vld [vmem:[%s536 + $0x80] sm:$0xff]
        %v665 = vld [vmem:[%s536 + $0x88] sm:$0xff]
        %v666 = vld [vmem:[%s536 + $0x90] sm:$0xff]
        %v667 = vld [vmem:[%s536 + $0x98] sm:$0xff]
        %v668 = vld [vmem:[%s536 + $0xa0] sm:$0xff]
        %v669 = vld [vmem:[%s536 + $0xa8] sm:$0xff]
        %v670 = vld [vmem:[%s536 + $0xb0] sm:$0xff]
        %v671 = vld [vmem:[%s536 + $0xb8] sm:$0xff]
        %v672 = vld [vmem:[%s536 + $0xc0] sm:$0xff]
        %v673 = vld [vmem:[%s536 + $0xc8] sm:$0xff]
        %v674 = vld [vmem:[%s536 + $0xd0] sm:$0xff]
        %v675 = vld [vmem:[%s536 + $0xd8] sm:$0xff]
        %v676 = vld [vmem:[%s536 + $0xe0] sm:$0xff]
        %v677 = vld [vmem:[%s536 + $0xe8] sm:$0xff]
        %v678 = vld [vmem:[%s536 + $0xf0] sm:$0xff]
        %v679 = vld [vmem:[%s536 + $0xf8] sm:$0xff]
        %v680 = vld [vmem:[%s536 + $0x100] sm:$0xff]
        %v681 = vld [vmem:[%s536 + $0x108] sm:$0xff]
        %v682 = vld [vmem:[%s536 + $0x110] sm:$0xff]
        %v683 = vld [vmem:[%s536 + $0x118] sm:$0xff]
        %v684 = vld [vmem:[%s536 + $0x120] sm:$0xff]
        %v685 = vld [vmem:[%s536 + $0x128] sm:$0xff]
        %v686 = vld [vmem:[%s536 + $0x130] sm:$0xff]
        %v687 = vld [vmem:[%s536 + $0x138] sm:$0xff]
        %v688 = vld [vmem:[%s536 + $0x140] sm:$0xff]
        %v689 = vld [vmem:[%s536 + $0x148] sm:$0xff]
        %v690 = vld [vmem:[%s536 + $0x150] sm:$0xff]
        %v691 = vld [vmem:[%s536 + $0x158] sm:$0xff]
        %v692 = vld [vmem:[%s536 + $0x160] sm:$0xff]
        %v693 = vld [vmem:[%s536 + $0x168] sm:$0xff]
        %v694 = vld [vmem:[%s536 + $0x170] sm:$0xff]
        %v695 = vld [vmem:[%s536 + $0x178] sm:$0xff]
        %v696 = vld [vmem:[%s536 + $0x180] sm:$0xff]
        %v697 = vld [vmem:[%s536 + $0x188] sm:$0xff]
        %v698 = vld [vmem:[%s536 + $0x190] sm:$0xff]
        %v699 = vld [vmem:[%s536 + $0x198] sm:$0xff]
        %v700 = vld [vmem:[%s536 + $0x1a0] sm:$0xff]
        %v701 = vld [vmem:[%s536 + $0x1a8] sm:$0xff]
        %v702 = vld [vmem:[%s536 + $0x1b0] sm:$0xff]
        %v703 = vld [vmem:[%s536 + $0x1b8] sm:$0xff]
        %v704 = vld [vmem:[%s536 + $0x1c0] sm:$0xff]
        %v705 = vld [vmem:[%s536 + $0x1c8] sm:$0xff]
        %v706 = vld [vmem:[%s536 + $0x1d0] sm:$0xff]
        %v707 = vld [vmem:[%s536 + $0x1d8] sm:$0xff]
        %v708 = vld [vmem:[%s536 + $0x1e0] sm:$0xff]
        %v709 = vld [vmem:[%s536 + $0x1e8] sm:$0xff]
        %v710 = vld [vmem:[%s536 + $0x1f0] sm:$0xff]
        %v711 = vld [vmem:[%s536 + $0x1f8] sm:$0xff]
        %v712 = vld [vmem:[%s536 + $0x200] sm:$0xff]
        %v713 = vld [vmem:[%s536 + $0x208] sm:$0xff]
        %v714 = vld [vmem:[%s536 + $0x210] sm:$0xff]
        %v715 = vld [vmem:[%s536 + $0x218] sm:$0xff]
        %v716 = vld [vmem:[%s536 + $0x220] sm:$0xff]
        %v717 = vld [vmem:[%s536 + $0x228] sm:$0xff]
        %v718 = vld [vmem:[%s536 + $0x230] sm:$0xff]
        %v719 = vld [vmem:[%s536 + $0x238] sm:$0xff]
        %v720 = vld [vmem:[%s536 + $0x240] sm:$0xff]
        %v721 = vld [vmem:[%s536 + $0x248] sm:$0xff]
        %v722 = vld [vmem:[%s536 + $0x250] sm:$0xff]
        %v723 = vld [vmem:[%s536 + $0x258] sm:$0xff]
        %v724 = vld [vmem:[%s536 + $0x260] sm:$0xff]
        %v725 = vld [vmem:[%s536 + $0x268] sm:$0xff]
        %v726 = vld [vmem:[%s536 + $0x270] sm:$0xff]
        %v727 = vld [vmem:[%s536 + $0x278] sm:$0xff]
        %v728 = vld [vmem:[%s536 + $0x280] sm:$0xff]
        %v729 = vld [vmem:[%s536 + $0x288] sm:$0xff]
        %v730 = vld [vmem:[%s536 + $0x290] sm:$0xff]
        %v731 = vld [vmem:[%s536 + $0x298] sm:$0xff]
        %v732 = vld [vmem:[%s536 + $0x2a0] sm:$0xff]
        %v733 = vld [vmem:[%s536 + $0x2a8] sm:$0xff]
        %v734 = vld [vmem:[%s536 + $0x2b0] sm:$0xff]
        %v735 = vld [vmem:[%s536 + $0x2b8] sm:$0xff]
        %v736 = vld [vmem:[%s536 + $0x2c0] sm:$0xff]
        %v737 = vld [vmem:[%s536 + $0x2c8] sm:$0xff]
        %v738 = vld [vmem:[%s536 + $0x2d0] sm:$0xff]
        %v739 = vld [vmem:[%s536 + $0x2d8] sm:$0xff]
        %v740 = vld [vmem:[%s536 + $0x2e0] sm:$0xff]
        %v741 = vld [vmem:[%s536 + $0x2e8] sm:$0xff]
        %v742 = vld [vmem:[%s536 + $0x2f0] sm:$0xff]
        %v743 = vld [vmem:[%s536 + $0x2f8] sm:$0xff]
        %v744 = vld [vmem:[%s536 + $0x300] sm:$0xff]
        %v745 = vld [vmem:[%s536 + $0x308] sm:$0xff]
        %v746 = vld [vmem:[%s536 + $0x310] sm:$0xff]
        %v747 = vld [vmem:[%s536 + $0x318] sm:$0xff]
        %v748 = vld [vmem:[%s536 + $0x320] sm:$0xff]
        %v749 = vld [vmem:[%s536 + $0x328] sm:$0xff]
        %v750 = vld [vmem:[%s536 + $0x330] sm:$0xff]
        %v751 = vld [vmem:[%s536 + $0x338] sm:$0xff]
        %v752 = vld [vmem:[%s536 + $0x340] sm:$0xff]
        %v753 = vld [vmem:[%s536 + $0x348] sm:$0xff]
        %v754 = vld [vmem:[%s536 + $0x350] sm:$0xff]
        %v755 = vld [vmem:[%s536 + $0x358] sm:$0xff]
        %v756 = vld [vmem:[%s536 + $0x360] sm:$0xff]
        %v757 = vld [vmem:[%s536 + $0x368] sm:$0xff]
        %v758 = vld [vmem:[%s536 + $0x370] sm:$0xff]
        %v759 = vld [vmem:[%s536 + $0x378] sm:$0xff]
        %v760 = vld [vmem:[%s536 + $0x380] sm:$0xff]
        %v761 = vld [vmem:[%s536 + $0x388] sm:$0xff]
        %v762 = vld [vmem:[%s536 + $0x390] sm:$0xff]
        %v763 = vld [vmem:[%s536 + $0x398] sm:$0xff]
        %v764 = vld [vmem:[%s536 + $0x3a0] sm:$0xff]
        %v765 = vld [vmem:[%s536 + $0x3a8] sm:$0xff]
        %v766 = vld [vmem:[%s536 + $0x3b0] sm:$0xff]
        %v767 = vld [vmem:[%s536 + $0x3b8] sm:$0xff]
        %v768 = vld [vmem:[%s536 + $0x3c0] sm:$0xff]
        %v769 = vld [vmem:[%s536 + $0x3c8] sm:$0xff]
        %v770 = vld [vmem:[%s536 + $0x3d0] sm:$0xff]
        %v771 = vld [vmem:[%s536 + $0x3d8] sm:$0xff]
        %v772 = vld [vmem:[%s536 + $0x3e0] sm:$0xff]
        %v773 = vld [vmem:[%s536 + $0x3e8] sm:$0xff]
        %v774 = vld [vmem:[%s536 + $0x3f0] sm:$0xff]
        %v775 = vld [vmem:[%s536 + $0x3f8] sm:$0xff]
        %v776 = vld [vmem:[%s536 + $0x400] sm:$0xff]
        %v777 = vld [vmem:[%s536 + $0x408] sm:$0xff]
        %v778 = vld [vmem:[%s536 + $0x410] sm:$0xff]
        %v779 = vld [vmem:[%s536 + $0x418] sm:$0xff]
        %v780 = vld [vmem:[%s536 + $0x420] sm:$0xff]
        %v781 = vld [vmem:[%s536 + $0x428] sm:$0xff]
        %v782 = vld [vmem:[%s536 + $0x430] sm:$0xff]
        %v783 = vld [vmem:[%s536 + $0x438] sm:$0xff]
        %v784 = vld [vmem:[%s536 + $0x440] sm:$0xff]
        %v785 = vld [vmem:[%s536 + $0x448] sm:$0xff]
        %v786 = vld [vmem:[%s536 + $0x450] sm:$0xff]
        %v787 = vld [vmem:[%s536 + $0x458] sm:$0xff]
        %v788 = vld [vmem:[%s536 + $0x460] sm:$0xff]
        %v789 = vld [vmem:[%s536 + $0x468] sm:$0xff]
        %v790 = vld [vmem:[%s536 + $0x470] sm:$0xff]
        %v791 = vld [vmem:[%s536 + $0x478] sm:$0xff]
        %v792 = vld [vmem:[%s536 + $0x480] sm:$0xff]
        %v793 = vld [vmem:[%s536 + $0x488] sm:$0xff]
        %v794 = vld [vmem:[%s536 + $0x490] sm:$0xff]
        %v795 = vld [vmem:[%s536 + $0x498] sm:$0xff]
        %v796 = vld [vmem:[%s536 + $0x4a0] sm:$0xff]
        %v797 = vld [vmem:[%s536 + $0x4a8] sm:$0xff]
        %v798 = vld [vmem:[%s536 + $0x4b0] sm:$0xff]
        %v799 = vld [vmem:[%s536 + $0x4b8] sm:$0xff]
        %v800 = vld [vmem:[%s536 + $0x4c0] sm:$0xff]
        %v801 = vld [vmem:[%s536 + $0x4c8] sm:$0xff]
        %v802 = vld [vmem:[%s536 + $0x4d0] sm:$0xff]
        %v803 = vld [vmem:[%s536 + $0x4d8] sm:$0xff]
        %v804 = vld [vmem:[%s536 + $0x4e0] sm:$0xff]
        %v805 = vld [vmem:[%s536 + $0x4e8] sm:$0xff]
        %v806 = vld [vmem:[%s536 + $0x4f0] sm:$0xff]
        %v807 = vld [vmem:[%s536 + $0x4f8] sm:$0xff]
        %s808 = sshra.s32 %s615, 3
        %s809 = sand.u32 %s615, 7
        %s810 = smul.addr %s808, 4
        %s811 = scalar_lea.vmem %s1, %s810
        %v812 = vld [vmem:[%s811] sm:$0xf]
        %v813 = vld [vmem:[%s811 + $0x4] sm:$0xf]
        %v814 = vld [vmem:[%s811 + $0x8] sm:$0xf]
        %v815 = vld [vmem:[%s811 + $0xc] sm:$0xf]
        %v816 = vld [vmem:[%s811 + $0x10] sm:$0xf]
        %v817 = vld [vmem:[%s811 + $0x14] sm:$0xf]
        %v818 = vld [vmem:[%s811 + $0x18] sm:$0xf]
        %v819 = vld [vmem:[%s811 + $0x1c] sm:$0xf]
        %v820 = vld [vmem:[%s811 + $0x20] sm:$0xf]
        %v821 = vld [vmem:[%s811 + $0x24] sm:$0xf]
        %v822 = vld [vmem:[%s811 + $0x28] sm:$0xf]
        %v823 = vld [vmem:[%s811 + $0x2c] sm:$0xf]
        %v824 = vld [vmem:[%s811 + $0x30] sm:$0xf]
        %v825 = vld [vmem:[%s811 + $0x34] sm:$0xf]
        %v826 = vld [vmem:[%s811 + $0x38] sm:$0xf]
        %v827 = vld [vmem:[%s811 + $0x3c] sm:$0xf]
        %v828 = vld [vmem:[%s811 + $0x40] sm:$0xf]
        %v829 = vld [vmem:[%s811 + $0x44] sm:$0xf]
        %v830 = vld [vmem:[%s811 + $0x48] sm:$0xf]
        %v831 = vld [vmem:[%s811 + $0x4c] sm:$0xf]
        %v832 = vld [vmem:[%s811 + $0x50] sm:$0xf]
        %v833 = vld [vmem:[%s811 + $0x54] sm:$0xf]
        %v834 = vld [vmem:[%s811 + $0x58] sm:$0xf]
        %v835 = vld [vmem:[%s811 + $0x5c] sm:$0xf]
        %v836 = vld [vmem:[%s811 + $0x60] sm:$0xf]
        %v837 = vld [vmem:[%s811 + $0x64] sm:$0xf]
        %v838 = vld [vmem:[%s811 + $0x68] sm:$0xf]
        %v839 = vld [vmem:[%s811 + $0x6c] sm:$0xf]
        %v840 = vld [vmem:[%s811 + $0x70] sm:$0xf]
        %v841 = vld [vmem:[%s811 + $0x74] sm:$0xf]
        %v842 = vld [vmem:[%s811 + $0x78] sm:$0xf]
        %v843 = vld [vmem:[%s811 + $0x7c] sm:$0xf]
        %v844 = vld [vmem:[%s811 + $0x80] sm:$0xf]
        %v845 = vld [vmem:[%s811 + $0x84] sm:$0xf]
        %v846 = vld [vmem:[%s811 + $0x88] sm:$0xf]
        %v847 = vld [vmem:[%s811 + $0x8c] sm:$0xf]
        %v848 = vld [vmem:[%s811 + $0x90] sm:$0xf]
        %v849 = vld [vmem:[%s811 + $0x94] sm:$0xf]
        %v850 = vld [vmem:[%s811 + $0x98] sm:$0xf]
        %v851 = vld [vmem:[%s811 + $0x9c] sm:$0xf]
        %v852 = vld [vmem:[%s811 + $0xa0] sm:$0xf]
        %v853 = vld [vmem:[%s811 + $0xa4] sm:$0xf]
        %v854 = vld [vmem:[%s811 + $0xa8] sm:$0xf]
        %v855 = vld [vmem:[%s811 + $0xac] sm:$0xf]
        %v856 = vld [vmem:[%s811 + $0xb0] sm:$0xf]
        %v857 = vld [vmem:[%s811 + $0xb4] sm:$0xf]
        %v858 = vld [vmem:[%s811 + $0xb8] sm:$0xf]
        %v859 = vld [vmem:[%s811 + $0xbc] sm:$0xf]
        %v860 = vld [vmem:[%s811 + $0xc0] sm:$0xf]
        %v861 = vld [vmem:[%s811 + $0xc4] sm:$0xf]
        %v862 = vld [vmem:[%s811 + $0xc8] sm:$0xf]
        %v863 = vld [vmem:[%s811 + $0xcc] sm:$0xf]
        %v864 = vld [vmem:[%s811 + $0xd0] sm:$0xf]
        %v865 = vld [vmem:[%s811 + $0xd4] sm:$0xf]
        %v866 = vld [vmem:[%s811 + $0xd8] sm:$0xf]
        %v867 = vld [vmem:[%s811 + $0xdc] sm:$0xf]
        %v868 = vld [vmem:[%s811 + $0xe0] sm:$0xf]
        %v869 = vld [vmem:[%s811 + $0xe4] sm:$0xf]
        %v870 = vld [vmem:[%s811 + $0xe8] sm:$0xf]
        %v871 = vld [vmem:[%s811 + $0xec] sm:$0xf]
        %v872 = vld [vmem:[%s811 + $0xf0] sm:$0xf]
        %v873 = vld [vmem:[%s811 + $0xf4] sm:$0xf]
        %v874 = vld [vmem:[%s811 + $0xf8] sm:$0xf]
        %v875 = vld [vmem:[%s811 + $0xfc] sm:$0xf]
        %v876 = vld [vmem:[%s811 + $0x100] sm:$0xf]
        %v877 = vld [vmem:[%s811 + $0x104] sm:$0xf]
        %v878 = vld [vmem:[%s811 + $0x108] sm:$0xf]
        %v879 = vld [vmem:[%s811 + $0x10c] sm:$0xf]
        %v880 = vld [vmem:[%s811 + $0x110] sm:$0xf]
        %v881 = vld [vmem:[%s811 + $0x114] sm:$0xf]
        %v882 = vld [vmem:[%s811 + $0x118] sm:$0xf]
        %v883 = vld [vmem:[%s811 + $0x11c] sm:$0xf]
        %v884 = vld [vmem:[%s811 + $0x120] sm:$0xf]
        %v885 = vld [vmem:[%s811 + $0x124] sm:$0xf]
        %v886 = vld [vmem:[%s811 + $0x128] sm:$0xf]
        %v887 = vld [vmem:[%s811 + $0x12c] sm:$0xf]
        %v888 = vld [vmem:[%s811 + $0x130] sm:$0xf]
        %v889 = vld [vmem:[%s811 + $0x134] sm:$0xf]
        %v890 = vld [vmem:[%s811 + $0x138] sm:$0xf]
        %v891 = vld [vmem:[%s811 + $0x13c] sm:$0xf]
        %v892 = vld [vmem:[%s811 + $0x140] sm:$0xf]
        %v893 = vld [vmem:[%s811 + $0x144] sm:$0xf]
        %v894 = vld [vmem:[%s811 + $0x148] sm:$0xf]
        %v895 = vld [vmem:[%s811 + $0x14c] sm:$0xf]
        %v896 = vld [vmem:[%s811 + $0x150] sm:$0xf]
        %v897 = vld [vmem:[%s811 + $0x154] sm:$0xf]
        %v898 = vld [vmem:[%s811 + $0x158] sm:$0xf]
        %v899 = vld [vmem:[%s811 + $0x15c] sm:$0xf]
        %v900 = vld [vmem:[%s811 + $0x160] sm:$0xf]
        %v901 = vld [vmem:[%s811 + $0x164] sm:$0xf]
        %v902 = vld [vmem:[%s811 + $0x168] sm:$0xf]
        %v903 = vld [vmem:[%s811 + $0x16c] sm:$0xf]
        %v904 = vld [vmem:[%s811 + $0x170] sm:$0xf]
        %v905 = vld [vmem:[%s811 + $0x174] sm:$0xf]
        %v906 = vld [vmem:[%s811 + $0x178] sm:$0xf]
        %v907 = vld [vmem:[%s811 + $0x17c] sm:$0xf]
        %v908 = vld [vmem:[%s811 + $0x180] sm:$0xf]
        %v909 = vld [vmem:[%s811 + $0x184] sm:$0xf]
        %v910 = vld [vmem:[%s811 + $0x188] sm:$0xf]
        %v911 = vld [vmem:[%s811 + $0x18c] sm:$0xf]
        %v912 = vld [vmem:[%s811 + $0x190] sm:$0xf]
        %v913 = vld [vmem:[%s811 + $0x194] sm:$0xf]
        %v914 = vld [vmem:[%s811 + $0x198] sm:$0xf]
        %v915 = vld [vmem:[%s811 + $0x19c] sm:$0xf]
        %v916 = vld [vmem:[%s811 + $0x1a0] sm:$0xf]
        %v917 = vld [vmem:[%s811 + $0x1a4] sm:$0xf]
        %v918 = vld [vmem:[%s811 + $0x1a8] sm:$0xf]
        %v919 = vld [vmem:[%s811 + $0x1ac] sm:$0xf]
        %v920 = vld [vmem:[%s811 + $0x1b0] sm:$0xf]
        %v921 = vld [vmem:[%s811 + $0x1b4] sm:$0xf]
        %v922 = vld [vmem:[%s811 + $0x1b8] sm:$0xf]
        %v923 = vld [vmem:[%s811 + $0x1bc] sm:$0xf]
        %v924 = vld [vmem:[%s811 + $0x1c0] sm:$0xf]
        %v925 = vld [vmem:[%s811 + $0x1c4] sm:$0xf]
        %v926 = vld [vmem:[%s811 + $0x1c8] sm:$0xf]
        %v927 = vld [vmem:[%s811 + $0x1cc] sm:$0xf]
        %v928 = vld [vmem:[%s811 + $0x1d0] sm:$0xf]
        %v929 = vld [vmem:[%s811 + $0x1d4] sm:$0xf]
        %v930 = vld [vmem:[%s811 + $0x1d8] sm:$0xf]
        %v931 = vld [vmem:[%s811 + $0x1dc] sm:$0xf]
        %v932 = vld [vmem:[%s811 + $0x1e0] sm:$0xf]
        %v933 = vld [vmem:[%s811 + $0x1e4] sm:$0xf]
        %v934 = vld [vmem:[%s811 + $0x1e8] sm:$0xf]
        %v935 = vld [vmem:[%s811 + $0x1ec] sm:$0xf]
        %v936 = vld [vmem:[%s811 + $0x1f0] sm:$0xf]
        %v937 = vld [vmem:[%s811 + $0x1f4] sm:$0xf]
        %v938 = vld [vmem:[%s811 + $0x1f8] sm:$0xf]
        %v939 = vld [vmem:[%s811 + $0x1fc] sm:$0xf]
        %v940 = vld [vmem:[%s811 + $0x200] sm:$0xf]
        %v941 = vld [vmem:[%s811 + $0x204] sm:$0xf]
        %v942 = vld [vmem:[%s811 + $0x208] sm:$0xf]
        %v943 = vld [vmem:[%s811 + $0x20c] sm:$0xf]
        %v944 = vld [vmem:[%s811 + $0x210] sm:$0xf]
        %v945 = vld [vmem:[%s811 + $0x214] sm:$0xf]
        %v946 = vld [vmem:[%s811 + $0x218] sm:$0xf]
        %v947 = vld [vmem:[%s811 + $0x21c] sm:$0xf]
        %v948 = vld [vmem:[%s811 + $0x220] sm:$0xf]
        %v949 = vld [vmem:[%s811 + $0x224] sm:$0xf]
        %v950 = vld [vmem:[%s811 + $0x228] sm:$0xf]
        %v951 = vld [vmem:[%s811 + $0x22c] sm:$0xf]
        %v952 = vld [vmem:[%s811 + $0x230] sm:$0xf]
        %v953 = vld [vmem:[%s811 + $0x234] sm:$0xf]
        %v954 = vld [vmem:[%s811 + $0x238] sm:$0xf]
        %v955 = vld [vmem:[%s811 + $0x23c] sm:$0xf]
        %v956 = vld [vmem:[%s811 + $0x240] sm:$0xf]
        %v957 = vld [vmem:[%s811 + $0x244] sm:$0xf]
        %v958 = vld [vmem:[%s811 + $0x248] sm:$0xf]
        %v959 = vld [vmem:[%s811 + $0x24c] sm:$0xf]
        %v960 = vld [vmem:[%s811 + $0x250] sm:$0xf]
        %v961 = vld [vmem:[%s811 + $0x254] sm:$0xf]
        %v962 = vld [vmem:[%s811 + $0x258] sm:$0xf]
        %v963 = vld [vmem:[%s811 + $0x25c] sm:$0xf]
        %v964 = vld [vmem:[%s811 + $0x260] sm:$0xf]
        %v965 = vld [vmem:[%s811 + $0x264] sm:$0xf]
        %v966 = vld [vmem:[%s811 + $0x268] sm:$0xf]
        %v967 = vld [vmem:[%s811 + $0x26c] sm:$0xf]
        %v968 = vld [vmem:[%s811 + $0x270] sm:$0xf]
        %v969 = vld [vmem:[%s811 + $0x274] sm:$0xf]
        %v970 = vld [vmem:[%s811 + $0x278] sm:$0xf]
        %v971 = vld [vmem:[%s811 + $0x27c] sm:$0xf]
        %v1132 = vunpack.c.l.b16 %v648
        %v1133 = vunpack.c.h.b16 %v648
        %v1134 = vunpack.c.l.b16 %v649
        %v1135 = vunpack.c.h.b16 %v649
        %v1136 = vunpack.c.l.b16 %v650
        %v1137 = vunpack.c.h.b16 %v650
        %v1138 = vunpack.c.l.b16 %v651
        %v1139 = vunpack.c.h.b16 %v651
        %v1140 = vunpack.c.l.b16 %v652
        %v1141 = vunpack.c.h.b16 %v652
        %v1142 = vunpack.c.l.b16 %v653
        %v1143 = vunpack.c.h.b16 %v653
        %v1144 = vunpack.c.l.b16 %v654
        %v1145 = vunpack.c.h.b16 %v654
        %v1146 = vunpack.c.l.b16 %v655
        %v1147 = vunpack.c.h.b16 %v655
        %v1148 = vunpack.c.l.b16 %v656
        %v1149 = vunpack.c.h.b16 %v656
        %v1150 = vunpack.c.l.b16 %v657
        %v1151 = vunpack.c.h.b16 %v657
        %v1152 = vunpack.c.l.b16 %v658
        %v1153 = vunpack.c.h.b16 %v658
        %v1154 = vunpack.c.l.b16 %v659
        %v1155 = vunpack.c.h.b16 %v659
        %v1156 = vunpack.c.l.b16 %v660
        %v1157 = vunpack.c.h.b16 %v660
        %v1158 = vunpack.c.l.b16 %v661
        %v1159 = vunpack.c.h.b16 %v661
        %v1160 = vunpack.c.l.b16 %v662
        %v1161 = vunpack.c.h.b16 %v662
        %v1162 = vunpack.c.l.b16 %v663
        %v1163 = vunpack.c.h.b16 %v663
        %v1164 = vunpack.c.l.b16 %v664
        %v1165 = vunpack.c.h.b16 %v664
        %v1166 = vunpack.c.l.b16 %v665
        %v1167 = vunpack.c.h.b16 %v665
        %v1168 = vunpack.c.l.b16 %v666
        %v1169 = vunpack.c.h.b16 %v666
        %v1170 = vunpack.c.l.b16 %v667
        %v1171 = vunpack.c.h.b16 %v667
        %v1172 = vunpack.c.l.b16 %v668
        %v1173 = vunpack.c.h.b16 %v668
        %v1174 = vunpack.c.l.b16 %v669
        %v1175 = vunpack.c.h.b16 %v669
        %v1176 = vunpack.c.l.b16 %v670
        %v1177 = vunpack.c.h.b16 %v670
        %v1178 = vunpack.c.l.b16 %v671
        %v1179 = vunpack.c.h.b16 %v671
        %v1180 = vunpack.c.l.b16 %v672
        %v1181 = vunpack.c.h.b16 %v672
        %v1182 = vunpack.c.l.b16 %v673
        %v1183 = vunpack.c.h.b16 %v673
        %v1184 = vunpack.c.l.b16 %v674
        %v1185 = vunpack.c.h.b16 %v674
        %v1186 = vunpack.c.l.b16 %v675
        %v1187 = vunpack.c.h.b16 %v675
        %v1188 = vunpack.c.l.b16 %v676
        %v1189 = vunpack.c.h.b16 %v676
        %v1190 = vunpack.c.l.b16 %v677
        %v1191 = vunpack.c.h.b16 %v677
        %v1192 = vunpack.c.l.b16 %v678
        %v1193 = vunpack.c.h.b16 %v678
        %v1194 = vunpack.c.l.b16 %v679
        %v1195 = vunpack.c.h.b16 %v679
        %v1196 = vunpack.c.l.b16 %v680
        %v1197 = vunpack.c.h.b16 %v680
        %v1198 = vunpack.c.l.b16 %v681
        %v1199 = vunpack.c.h.b16 %v681
        %v1200 = vunpack.c.l.b16 %v682
        %v1201 = vunpack.c.h.b16 %v682
        %v1202 = vunpack.c.l.b16 %v683
        %v1203 = vunpack.c.h.b16 %v683
        %v1204 = vunpack.c.l.b16 %v684
        %v1205 = vunpack.c.h.b16 %v684
        %v1206 = vunpack.c.l.b16 %v685
        %v1207 = vunpack.c.h.b16 %v685
        %v1208 = vunpack.c.l.b16 %v686
        %v1209 = vunpack.c.h.b16 %v686
        %v1210 = vunpack.c.l.b16 %v687
        %v1211 = vunpack.c.h.b16 %v687
        %v1212 = vunpack.c.l.b16 %v688
        %v1213 = vunpack.c.h.b16 %v688
        %v1214 = vunpack.c.l.b16 %v689
        %v1215 = vunpack.c.h.b16 %v689
        %v1216 = vunpack.c.l.b16 %v690
        %v1217 = vunpack.c.h.b16 %v690
        %v1218 = vunpack.c.l.b16 %v691
        %v1219 = vunpack.c.h.b16 %v691
        %v1220 = vunpack.c.l.b16 %v692
        %v1221 = vunpack.c.h.b16 %v692
        %v1222 = vunpack.c.l.b16 %v693
        %v1223 = vunpack.c.h.b16 %v693
        %v1224 = vunpack.c.l.b16 %v694
        %v1225 = vunpack.c.h.b16 %v694
        %v1226 = vunpack.c.l.b16 %v695
        %v1227 = vunpack.c.h.b16 %v695
        %v1228 = vunpack.c.l.b16 %v696
        %v1229 = vunpack.c.h.b16 %v696
        %v1230 = vunpack.c.l.b16 %v697
        %v1231 = vunpack.c.h.b16 %v697
        %v1232 = vunpack.c.l.b16 %v698
        %v1233 = vunpack.c.h.b16 %v698
        %v1234 = vunpack.c.l.b16 %v699
        %v1235 = vunpack.c.h.b16 %v699
        %v1236 = vunpack.c.l.b16 %v700
        %v1237 = vunpack.c.h.b16 %v700
        %v1238 = vunpack.c.l.b16 %v701
        %v1239 = vunpack.c.h.b16 %v701
        %v1240 = vunpack.c.l.b16 %v702
        %v1241 = vunpack.c.h.b16 %v702
        %v1242 = vunpack.c.l.b16 %v703
        %v1243 = vunpack.c.h.b16 %v703
        %v1244 = vunpack.c.l.b16 %v704
        %v1245 = vunpack.c.h.b16 %v704
        %v1246 = vunpack.c.l.b16 %v705
        %v1247 = vunpack.c.h.b16 %v705
        %v1248 = vunpack.c.l.b16 %v706
        %v1249 = vunpack.c.h.b16 %v706
        %v1250 = vunpack.c.l.b16 %v707
        %v1251 = vunpack.c.h.b16 %v707
        %v1252 = vunpack.c.l.b16 %v708
        %v1253 = vunpack.c.h.b16 %v708
        %v1254 = vunpack.c.l.b16 %v709
        %v1255 = vunpack.c.h.b16 %v709
        %v1256 = vunpack.c.l.b16 %v710
        %v1257 = vunpack.c.h.b16 %v710
        %v1258 = vunpack.c.l.b16 %v711
        %v1259 = vunpack.c.h.b16 %v711
        %v1260 = vunpack.c.l.b16 %v712
        %v1261 = vunpack.c.h.b16 %v712
        %v1262 = vunpack.c.l.b16 %v713
        %v1263 = vunpack.c.h.b16 %v713
        %v1264 = vunpack.c.l.b16 %v714
        %v1265 = vunpack.c.h.b16 %v714
        %v1266 = vunpack.c.l.b16 %v715
        %v1267 = vunpack.c.h.b16 %v715
        %v1268 = vunpack.c.l.b16 %v716
        %v1269 = vunpack.c.h.b16 %v716
        %v1270 = vunpack.c.l.b16 %v717
        %v1271 = vunpack.c.h.b16 %v717
        %v1272 = vunpack.c.l.b16 %v718
        %v1273 = vunpack.c.h.b16 %v718
        %v1274 = vunpack.c.l.b16 %v719
        %v1275 = vunpack.c.h.b16 %v719
        %v1276 = vunpack.c.l.b16 %v720
        %v1277 = vunpack.c.h.b16 %v720
        %v1278 = vunpack.c.l.b16 %v721
        %v1279 = vunpack.c.h.b16 %v721
        %v1280 = vunpack.c.l.b16 %v722
        %v1281 = vunpack.c.h.b16 %v722
        %v1282 = vunpack.c.l.b16 %v723
        %v1283 = vunpack.c.h.b16 %v723
        %v1284 = vunpack.c.l.b16 %v724
        %v1285 = vunpack.c.h.b16 %v724
        %v1286 = vunpack.c.l.b16 %v725
        %v1287 = vunpack.c.h.b16 %v725
        %v1288 = vunpack.c.l.b16 %v726
        %v1289 = vunpack.c.h.b16 %v726
        %v1290 = vunpack.c.l.b16 %v727
        %v1291 = vunpack.c.h.b16 %v727
        %v1292 = vunpack.c.l.b16 %v728
        %v1293 = vunpack.c.h.b16 %v728
        %v1294 = vunpack.c.l.b16 %v729
        %v1295 = vunpack.c.h.b16 %v729
        %v1296 = vunpack.c.l.b16 %v730
        %v1297 = vunpack.c.h.b16 %v730
        %v1298 = vunpack.c.l.b16 %v731
        %v1299 = vunpack.c.h.b16 %v731
        %v1300 = vunpack.c.l.b16 %v732
        %v1301 = vunpack.c.h.b16 %v732
        %v1302 = vunpack.c.l.b16 %v733
        %v1303 = vunpack.c.h.b16 %v733
        %v1304 = vunpack.c.l.b16 %v734
        %v1305 = vunpack.c.h.b16 %v734
        %v1306 = vunpack.c.l.b16 %v735
        %v1307 = vunpack.c.h.b16 %v735
        %v1308 = vunpack.c.l.b16 %v736
        %v1309 = vunpack.c.h.b16 %v736
        %v1310 = vunpack.c.l.b16 %v737
        %v1311 = vunpack.c.h.b16 %v737
        %v1312 = vunpack.c.l.b16 %v738
        %v1313 = vunpack.c.h.b16 %v738
        %v1314 = vunpack.c.l.b16 %v739
        %v1315 = vunpack.c.h.b16 %v739
        %v1316 = vunpack.c.l.b16 %v740
        %v1317 = vunpack.c.h.b16 %v740
        %v1318 = vunpack.c.l.b16 %v741
        %v1319 = vunpack.c.h.b16 %v741
        %v1320 = vunpack.c.l.b16 %v742
        %v1321 = vunpack.c.h.b16 %v742
        %v1322 = vunpack.c.l.b16 %v743
        %v1323 = vunpack.c.h.b16 %v743
        %v1324 = vunpack.c.l.b16 %v744
        %v1325 = vunpack.c.h.b16 %v744
        %v1326 = vunpack.c.l.b16 %v745
        %v1327 = vunpack.c.h.b16 %v745
        %v1328 = vunpack.c.l.b16 %v746
        %v1329 = vunpack.c.h.b16 %v746
        %v1330 = vunpack.c.l.b16 %v747
        %v1331 = vunpack.c.h.b16 %v747
        %v1332 = vunpack.c.l.b16 %v748
        %v1333 = vunpack.c.h.b16 %v748
        %v1334 = vunpack.c.l.b16 %v749
        %v1335 = vunpack.c.h.b16 %v749
        %v1336 = vunpack.c.l.b16 %v750
        %v1337 = vunpack.c.h.b16 %v750
        %v1338 = vunpack.c.l.b16 %v751
        %v1339 = vunpack.c.h.b16 %v751
        %v1340 = vunpack.c.l.b16 %v752
        %v1341 = vunpack.c.h.b16 %v752
        %v1342 = vunpack.c.l.b16 %v753
        %v1343 = vunpack.c.h.b16 %v753
        %v1344 = vunpack.c.l.b16 %v754
        %v1345 = vunpack.c.h.b16 %v754
        %v1346 = vunpack.c.l.b16 %v755
        %v1347 = vunpack.c.h.b16 %v755
        %v1348 = vunpack.c.l.b16 %v756
        %v1349 = vunpack.c.h.b16 %v756
        %v1350 = vunpack.c.l.b16 %v757
        %v1351 = vunpack.c.h.b16 %v757
        %v1352 = vunpack.c.l.b16 %v758
        %v1353 = vunpack.c.h.b16 %v758
        %v1354 = vunpack.c.l.b16 %v759
        %v1355 = vunpack.c.h.b16 %v759
        %v1356 = vunpack.c.l.b16 %v760
        %v1357 = vunpack.c.h.b16 %v760
        %v1358 = vunpack.c.l.b16 %v761
        %v1359 = vunpack.c.h.b16 %v761
        %v1360 = vunpack.c.l.b16 %v762
        %v1361 = vunpack.c.h.b16 %v762
        %v1362 = vunpack.c.l.b16 %v763
        %v1363 = vunpack.c.h.b16 %v763
        %v1364 = vunpack.c.l.b16 %v764
        %v1365 = vunpack.c.h.b16 %v764
        %v1366 = vunpack.c.l.b16 %v765
        %v1367 = vunpack.c.h.b16 %v765
        %v1368 = vunpack.c.l.b16 %v766
        %v1369 = vunpack.c.h.b16 %v766
        %v1370 = vunpack.c.l.b16 %v767
        %v1371 = vunpack.c.h.b16 %v767
        %v1372 = vunpack.c.l.b16 %v768
        %v1373 = vunpack.c.h.b16 %v768
        %v1374 = vunpack.c.l.b16 %v769
        %v1375 = vunpack.c.h.b16 %v769
        %v1376 = vunpack.c.l.b16 %v770
        %v1377 = vunpack.c.h.b16 %v770
        %v1378 = vunpack.c.l.b16 %v771
        %v1379 = vunpack.c.h.b16 %v771
        %v1380 = vunpack.c.l.b16 %v772
        %v1381 = vunpack.c.h.b16 %v772
        %v1382 = vunpack.c.l.b16 %v773
        %v1383 = vunpack.c.h.b16 %v773
        %v1384 = vunpack.c.l.b16 %v774
        %v1385 = vunpack.c.h.b16 %v774
        %v1386 = vunpack.c.l.b16 %v775
        %v1387 = vunpack.c.h.b16 %v775
        %v1388 = vunpack.c.l.b16 %v776
        %v1389 = vunpack.c.h.b16 %v776
        %v1390 = vunpack.c.l.b16 %v777
        %v1391 = vunpack.c.h.b16 %v777
        %v1392 = vunpack.c.l.b16 %v778
        %v1393 = vunpack.c.h.b16 %v778
        %v1394 = vunpack.c.l.b16 %v779
        %v1395 = vunpack.c.h.b16 %v779
        %v1396 = vunpack.c.l.b16 %v780
        %v1397 = vunpack.c.h.b16 %v780
        %v1398 = vunpack.c.l.b16 %v781
        %v1399 = vunpack.c.h.b16 %v781
        %v1400 = vunpack.c.l.b16 %v782
        %v1401 = vunpack.c.h.b16 %v782
        %v1402 = vunpack.c.l.b16 %v783
        %v1403 = vunpack.c.h.b16 %v783
        %v1404 = vunpack.c.l.b16 %v784
        %v1405 = vunpack.c.h.b16 %v784
        %v1406 = vunpack.c.l.b16 %v785
        %v1407 = vunpack.c.h.b16 %v785
        %v1408 = vunpack.c.l.b16 %v786
        %v1409 = vunpack.c.h.b16 %v786
        %v1410 = vunpack.c.l.b16 %v787
        %v1411 = vunpack.c.h.b16 %v787
        %v1412 = vunpack.c.l.b16 %v788
        %v1413 = vunpack.c.h.b16 %v788
        %v1414 = vunpack.c.l.b16 %v789
        %v1415 = vunpack.c.h.b16 %v789
        %v1416 = vunpack.c.l.b16 %v790
        %v1417 = vunpack.c.h.b16 %v790
        %v1418 = vunpack.c.l.b16 %v791
        %v1419 = vunpack.c.h.b16 %v791
        %v1420 = vunpack.c.l.b16 %v792
        %v1421 = vunpack.c.h.b16 %v792
        %v1422 = vunpack.c.l.b16 %v793
        %v1423 = vunpack.c.h.b16 %v793
        %v1424 = vunpack.c.l.b16 %v794
        %v1425 = vunpack.c.h.b16 %v794
        %v1426 = vunpack.c.l.b16 %v795
        %v1427 = vunpack.c.h.b16 %v795
        %v1428 = vunpack.c.l.b16 %v796
        %v1429 = vunpack.c.h.b16 %v796
        %v1430 = vunpack.c.l.b16 %v797
        %v1431 = vunpack.c.h.b16 %v797
        %v1432 = vunpack.c.l.b16 %v798
        %v1433 = vunpack.c.h.b16 %v798
        %v1434 = vunpack.c.l.b16 %v799
        %v1435 = vunpack.c.h.b16 %v799
        %v1436 = vunpack.c.l.b16 %v800
        %v1437 = vunpack.c.h.b16 %v800
        %v1438 = vunpack.c.l.b16 %v801
        %v1439 = vunpack.c.h.b16 %v801
        %v1440 = vunpack.c.l.b16 %v802
        %v1441 = vunpack.c.h.b16 %v802
        %v1442 = vunpack.c.l.b16 %v803
        %v1443 = vunpack.c.h.b16 %v803
        %v1444 = vunpack.c.l.b16 %v804
        %v1445 = vunpack.c.h.b16 %v804
        %v1446 = vunpack.c.l.b16 %v805
        %v1447 = vunpack.c.h.b16 %v805
        %v1448 = vunpack.c.l.b16 %v806
        %v1449 = vunpack.c.h.b16 %v806
        %v1450 = vunpack.c.l.b16 %v807
        %v1451 = vunpack.c.h.b16 %v807
        %v1452 = vpack.c.b16 %v1142, %v1132
        %v1453 = vpack.c.b16 %v1143, %v1133
        %v1454 = vpack.c.b16 %v1144, %v1134
        %v1455 = vpack.c.b16 %v1145, %v1135
        %v1456 = vpack.c.b16 %v1146, %v1136
        %v1457 = vpack.c.b16 %v1147, %v1137
        %v1458 = vpack.c.b16 %v1148, %v1138
        %v1459 = vpack.c.b16 %v1149, %v1139
        %v1460 = vpack.c.b16 %v1150, %v1140
        %v1461 = vpack.c.b16 %v1151, %v1141
        %v1462 = vpack.c.b16 %v1162, %v1152
        %v1463 = vpack.c.b16 %v1163, %v1153
        %v1464 = vpack.c.b16 %v1164, %v1154
        %v1465 = vpack.c.b16 %v1165, %v1155
        %v1466 = vpack.c.b16 %v1166, %v1156
        %v1467 = vpack.c.b16 %v1167, %v1157
        %v1468 = vpack.c.b16 %v1168, %v1158
        %v1469 = vpack.c.b16 %v1169, %v1159
        %v1470 = vpack.c.b16 %v1170, %v1160
        %v1471 = vpack.c.b16 %v1171, %v1161
        %v1472 = vpack.c.b16 %v1182, %v1172
        %v1473 = vpack.c.b16 %v1183, %v1173
        %v1474 = vpack.c.b16 %v1184, %v1174
        %v1475 = vpack.c.b16 %v1185, %v1175
        %v1476 = vpack.c.b16 %v1186, %v1176
        %v1477 = vpack.c.b16 %v1187, %v1177
        %v1478 = vpack.c.b16 %v1188, %v1178
        %v1479 = vpack.c.b16 %v1189, %v1179
        %v1480 = vpack.c.b16 %v1190, %v1180
        %v1481 = vpack.c.b16 %v1191, %v1181
        %v1482 = vpack.c.b16 %v1202, %v1192
        %v1483 = vpack.c.b16 %v1203, %v1193
        %v1484 = vpack.c.b16 %v1204, %v1194
        %v1485 = vpack.c.b16 %v1205, %v1195
        %v1486 = vpack.c.b16 %v1206, %v1196
        %v1487 = vpack.c.b16 %v1207, %v1197
        %v1488 = vpack.c.b16 %v1208, %v1198
        %v1489 = vpack.c.b16 %v1209, %v1199
        %v1490 = vpack.c.b16 %v1210, %v1200
        %v1491 = vpack.c.b16 %v1211, %v1201
        %v1492 = vpack.c.b16 %v1222, %v1212
        %v1493 = vpack.c.b16 %v1223, %v1213
        %v1494 = vpack.c.b16 %v1224, %v1214
        %v1495 = vpack.c.b16 %v1225, %v1215
        %v1496 = vpack.c.b16 %v1226, %v1216
        %v1497 = vpack.c.b16 %v1227, %v1217
        %v1498 = vpack.c.b16 %v1228, %v1218
        %v1499 = vpack.c.b16 %v1229, %v1219
        %v1500 = vpack.c.b16 %v1230, %v1220
        %v1501 = vpack.c.b16 %v1231, %v1221
        %v1502 = vpack.c.b16 %v1242, %v1232
        %v1503 = vpack.c.b16 %v1243, %v1233
        %v1504 = vpack.c.b16 %v1244, %v1234
        %v1505 = vpack.c.b16 %v1245, %v1235
        %v1506 = vpack.c.b16 %v1246, %v1236
        %v1507 = vpack.c.b16 %v1247, %v1237
        %v1508 = vpack.c.b16 %v1248, %v1238
        %v1509 = vpack.c.b16 %v1249, %v1239
        %v1510 = vpack.c.b16 %v1250, %v1240
        %v1511 = vpack.c.b16 %v1251, %v1241
        %v1512 = vpack.c.b16 %v1262, %v1252
        %v1513 = vpack.c.b16 %v1263, %v1253
        %v1514 = vpack.c.b16 %v1264, %v1254
        %v1515 = vpack.c.b16 %v1265, %v1255
        %v1516 = vpack.c.b16 %v1266, %v1256
        %v1517 = vpack.c.b16 %v1267, %v1257
        %v1518 = vpack.c.b16 %v1268, %v1258
        %v1519 = vpack.c.b16 %v1269, %v1259
        %v1520 = vpack.c.b16 %v1270, %v1260
        %v1521 = vpack.c.b16 %v1271, %v1261
        %v1522 = vpack.c.b16 %v1282, %v1272
        %v1523 = vpack.c.b16 %v1283, %v1273
        %v1524 = vpack.c.b16 %v1284, %v1274
        %v1525 = vpack.c.b16 %v1285, %v1275
        %v1526 = vpack.c.b16 %v1286, %v1276
        %v1527 = vpack.c.b16 %v1287, %v1277
        %v1528 = vpack.c.b16 %v1288, %v1278
        %v1529 = vpack.c.b16 %v1289, %v1279
        %v1530 = vpack.c.b16 %v1290, %v1280
        %v1531 = vpack.c.b16 %v1291, %v1281
        %v1532 = vpack.c.b16 %v1302, %v1292
        %v1533 = vpack.c.b16 %v1303, %v1293
        %v1534 = vpack.c.b16 %v1304, %v1294
        %v1535 = vpack.c.b16 %v1305, %v1295
        %v1536 = vpack.c.b16 %v1306, %v1296
        %v1537 = vpack.c.b16 %v1307, %v1297
        %v1538 = vpack.c.b16 %v1308, %v1298
        %v1539 = vpack.c.b16 %v1309, %v1299
        %v1540 = vpack.c.b16 %v1310, %v1300
        %v1541 = vpack.c.b16 %v1311, %v1301
        %v1542 = vpack.c.b16 %v1322, %v1312
        %v1543 = vpack.c.b16 %v1323, %v1313
        %v1544 = vpack.c.b16 %v1324, %v1314
        %v1545 = vpack.c.b16 %v1325, %v1315
        %v1546 = vpack.c.b16 %v1326, %v1316
        %v1547 = vpack.c.b16 %v1327, %v1317
        %v1548 = vpack.c.b16 %v1328, %v1318
        %v1549 = vpack.c.b16 %v1329, %v1319
        %v1550 = vpack.c.b16 %v1330, %v1320
        %v1551 = vpack.c.b16 %v1331, %v1321
        %v1552 = vpack.c.b16 %v1342, %v1332
        %v1553 = vpack.c.b16 %v1343, %v1333
        %v1554 = vpack.c.b16 %v1344, %v1334
        %v1555 = vpack.c.b16 %v1345, %v1335
        %v1556 = vpack.c.b16 %v1346, %v1336
        %v1557 = vpack.c.b16 %v1347, %v1337
        %v1558 = vpack.c.b16 %v1348, %v1338
        %v1559 = vpack.c.b16 %v1349, %v1339
        %v1560 = vpack.c.b16 %v1350, %v1340
        %v1561 = vpack.c.b16 %v1351, %v1341
        %v1562 = vpack.c.b16 %v1362, %v1352
        %v1563 = vpack.c.b16 %v1363, %v1353
        %v1564 = vpack.c.b16 %v1364, %v1354
        %v1565 = vpack.c.b16 %v1365, %v1355
        %v1566 = vpack.c.b16 %v1366, %v1356
        %v1567 = vpack.c.b16 %v1367, %v1357
        %v1568 = vpack.c.b16 %v1368, %v1358
        %v1569 = vpack.c.b16 %v1369, %v1359
        %v1570 = vpack.c.b16 %v1370, %v1360
        %v1571 = vpack.c.b16 %v1371, %v1361
        %v1572 = vpack.c.b16 %v1382, %v1372
        %v1573 = vpack.c.b16 %v1383, %v1373
        %v1574 = vpack.c.b16 %v1384, %v1374
        %v1575 = vpack.c.b16 %v1385, %v1375
        %v1576 = vpack.c.b16 %v1386, %v1376
        %v1577 = vpack.c.b16 %v1387, %v1377
        %v1578 = vpack.c.b16 %v1388, %v1378
        %v1579 = vpack.c.b16 %v1389, %v1379
        %v1580 = vpack.c.b16 %v1390, %v1380
        %v1581 = vpack.c.b16 %v1391, %v1381
        %v1582 = vpack.c.b16 %v1402, %v1392
        %v1583 = vpack.c.b16 %v1403, %v1393
        %v1584 = vpack.c.b16 %v1404, %v1394
        %v1585 = vpack.c.b16 %v1405, %v1395
        %v1586 = vpack.c.b16 %v1406, %v1396
        %v1587 = vpack.c.b16 %v1407, %v1397
        %v1588 = vpack.c.b16 %v1408, %v1398
        %v1589 = vpack.c.b16 %v1409, %v1399
        %v1590 = vpack.c.b16 %v1410, %v1400
        %v1591 = vpack.c.b16 %v1411, %v1401
        %v1592 = vpack.c.b16 %v1422, %v1412
        %v1593 = vpack.c.b16 %v1423, %v1413
        %v1594 = vpack.c.b16 %v1424, %v1414
        %v1595 = vpack.c.b16 %v1425, %v1415
        %v1596 = vpack.c.b16 %v1426, %v1416
        %v1597 = vpack.c.b16 %v1427, %v1417
        %v1598 = vpack.c.b16 %v1428, %v1418
        %v1599 = vpack.c.b16 %v1429, %v1419
        %v1600 = vpack.c.b16 %v1430, %v1420
        %v1601 = vpack.c.b16 %v1431, %v1421
        %v1602 = vpack.c.b16 %v1442, %v1432
        %v1603 = vpack.c.b16 %v1443, %v1433
        %v1604 = vpack.c.b16 %v1444, %v1434
        %v1605 = vpack.c.b16 %v1445, %v1435
        %v1606 = vpack.c.b16 %v1446, %v1436
        %v1607 = vpack.c.b16 %v1447, %v1437
        %v1608 = vpack.c.b16 %v1448, %v1438
        %v1609 = vpack.c.b16 %v1449, %v1439
        %v1610 = vpack.c.b16 %v1450, %v1440
        %v1611 = vpack.c.b16 %v1451, %v1441
        %v1932 = vunpack.c.l.b16 %v812
        %v1933 = vunpack.c.l.b16 %v813
        %v1934 = vunpack.c.l.b16 %v814
        %v1935 = vunpack.c.l.b16 %v815
        %v1936 = vunpack.c.l.b16 %v816
        %v1937 = vunpack.c.l.b16 %v817
        %v1938 = vunpack.c.l.b16 %v818
        %v1939 = vunpack.c.l.b16 %v819
        %v1940 = vunpack.c.l.b16 %v820
        %v1941 = vunpack.c.l.b16 %v821
        %v1942 = vunpack.c.l.b16 %v822
        %v1943 = vunpack.c.l.b16 %v823
        %v1944 = vunpack.c.l.b16 %v824
        %v1945 = vunpack.c.l.b16 %v825
        %v1946 = vunpack.c.l.b16 %v826
        %v1947 = vunpack.c.l.b16 %v827
        %v1948 = vunpack.c.l.b16 %v828
        %v1949 = vunpack.c.l.b16 %v829
        %v1950 = vunpack.c.l.b16 %v830
        %v1951 = vunpack.c.l.b16 %v831
        %v1952 = vunpack.c.l.b16 %v832
        %v1953 = vunpack.c.l.b16 %v833
        %v1954 = vunpack.c.l.b16 %v834
        %v1955 = vunpack.c.l.b16 %v835
        %v1956 = vunpack.c.l.b16 %v836
        %v1957 = vunpack.c.l.b16 %v837
        %v1958 = vunpack.c.l.b16 %v838
        %v1959 = vunpack.c.l.b16 %v839
        %v1960 = vunpack.c.l.b16 %v840
        %v1961 = vunpack.c.l.b16 %v841
        %v1962 = vunpack.c.l.b16 %v842
        %v1963 = vunpack.c.l.b16 %v843
        %v1964 = vunpack.c.l.b16 %v844
        %v1965 = vunpack.c.l.b16 %v845
        %v1966 = vunpack.c.l.b16 %v846
        %v1967 = vunpack.c.l.b16 %v847
        %v1968 = vunpack.c.l.b16 %v848
        %v1969 = vunpack.c.l.b16 %v849
        %v1970 = vunpack.c.l.b16 %v850
        %v1971 = vunpack.c.l.b16 %v851
        %v1972 = vunpack.c.l.b16 %v852
        %v1973 = vunpack.c.l.b16 %v853
        %v1974 = vunpack.c.l.b16 %v854
        %v1975 = vunpack.c.l.b16 %v855
        %v1976 = vunpack.c.l.b16 %v856
        %v1977 = vunpack.c.l.b16 %v857
        %v1978 = vunpack.c.l.b16 %v858
        %v1979 = vunpack.c.l.b16 %v859
        %v1980 = vunpack.c.l.b16 %v860
        %v1981 = vunpack.c.l.b16 %v861
        %v1982 = vunpack.c.l.b16 %v862
        %v1983 = vunpack.c.l.b16 %v863
        %v1984 = vunpack.c.l.b16 %v864
        %v1985 = vunpack.c.l.b16 %v865
        %v1986 = vunpack.c.l.b16 %v866
        %v1987 = vunpack.c.l.b16 %v867
        %v1988 = vunpack.c.l.b16 %v868
        %v1989 = vunpack.c.l.b16 %v869
        %v1990 = vunpack.c.l.b16 %v870
        %v1991 = vunpack.c.l.b16 %v871
        %v1992 = vunpack.c.l.b16 %v872
        %v1993 = vunpack.c.l.b16 %v873
        %v1994 = vunpack.c.l.b16 %v874
        %v1995 = vunpack.c.l.b16 %v875
        %v1996 = vunpack.c.l.b16 %v876
        %v1997 = vunpack.c.l.b16 %v877
        %v1998 = vunpack.c.l.b16 %v878
        %v1999 = vunpack.c.l.b16 %v879
        %v2000 = vunpack.c.l.b16 %v880
        %v2001 = vunpack.c.l.b16 %v881
        %v2002 = vunpack.c.l.b16 %v882
        %v2003 = vunpack.c.l.b16 %v883
        %v2004 = vunpack.c.l.b16 %v884
        %v2005 = vunpack.c.l.b16 %v885
        %v2006 = vunpack.c.l.b16 %v886
        %v2007 = vunpack.c.l.b16 %v887
        %v2008 = vunpack.c.l.b16 %v888
        %v2009 = vunpack.c.l.b16 %v889
        %v2010 = vunpack.c.l.b16 %v890
        %v2011 = vunpack.c.l.b16 %v891
        %v2012 = vunpack.c.l.b16 %v892
        %v2013 = vunpack.c.l.b16 %v893
        %v2014 = vunpack.c.l.b16 %v894
        %v2015 = vunpack.c.l.b16 %v895
        %v2016 = vunpack.c.l.b16 %v896
        %v2017 = vunpack.c.l.b16 %v897
        %v2018 = vunpack.c.l.b16 %v898
        %v2019 = vunpack.c.l.b16 %v899
        %v2020 = vunpack.c.l.b16 %v900
        %v2021 = vunpack.c.l.b16 %v901
        %v2022 = vunpack.c.l.b16 %v902
        %v2023 = vunpack.c.l.b16 %v903
        %v2024 = vunpack.c.l.b16 %v904
        %v2025 = vunpack.c.l.b16 %v905
        %v2026 = vunpack.c.l.b16 %v906
        %v2027 = vunpack.c.l.b16 %v907
        %v2028 = vunpack.c.l.b16 %v908
        %v2029 = vunpack.c.l.b16 %v909
        %v2030 = vunpack.c.l.b16 %v910
        %v2031 = vunpack.c.l.b16 %v911
        %v2032 = vunpack.c.l.b16 %v912
        %v2033 = vunpack.c.l.b16 %v913
        %v2034 = vunpack.c.l.b16 %v914
        %v2035 = vunpack.c.l.b16 %v915
        %v2036 = vunpack.c.l.b16 %v916
        %v2037 = vunpack.c.l.b16 %v917
        %v2038 = vunpack.c.l.b16 %v918
        %v2039 = vunpack.c.l.b16 %v919
        %v2040 = vunpack.c.l.b16 %v920
        %v2041 = vunpack.c.l.b16 %v921
        %v2042 = vunpack.c.l.b16 %v922
        %v2043 = vunpack.c.l.b16 %v923
        %v2044 = vunpack.c.l.b16 %v924
        %v2045 = vunpack.c.l.b16 %v925
        %v2046 = vunpack.c.l.b16 %v926
        %v2047 = vunpack.c.l.b16 %v927
        %v2048 = vunpack.c.l.b16 %v928
        %v2049 = vunpack.c.l.b16 %v929
        %v2050 = vunpack.c.l.b16 %v930
        %v2051 = vunpack.c.l.b16 %v931
        %v2052 = vunpack.c.l.b16 %v932
        %v2053 = vunpack.c.l.b16 %v933
        %v2054 = vunpack.c.l.b16 %v934
        %v2055 = vunpack.c.l.b16 %v935
        %v2056 = vunpack.c.l.b16 %v936
        %v2057 = vunpack.c.l.b16 %v937
        %v2058 = vunpack.c.l.b16 %v938
        %v2059 = vunpack.c.l.b16 %v939
        %v2060 = vunpack.c.l.b16 %v940
        %v2061 = vunpack.c.l.b16 %v941
        %v2062 = vunpack.c.l.b16 %v942
        %v2063 = vunpack.c.l.b16 %v943
        %v2064 = vunpack.c.l.b16 %v944
        %v2065 = vunpack.c.l.b16 %v945
        %v2066 = vunpack.c.l.b16 %v946
        %v2067 = vunpack.c.l.b16 %v947
        %v2068 = vunpack.c.l.b16 %v948
        %v2069 = vunpack.c.l.b16 %v949
        %v2070 = vunpack.c.l.b16 %v950
        %v2071 = vunpack.c.l.b16 %v951
        %v2072 = vunpack.c.l.b16 %v952
        %v2073 = vunpack.c.l.b16 %v953
        %v2074 = vunpack.c.l.b16 %v954
        %v2075 = vunpack.c.l.b16 %v955
        %v2076 = vunpack.c.l.b16 %v956
        %v2077 = vunpack.c.l.b16 %v957
        %v2078 = vunpack.c.l.b16 %v958
        %v2079 = vunpack.c.l.b16 %v959
        %v2080 = vunpack.c.l.b16 %v960
        %v2081 = vunpack.c.l.b16 %v961
        %v2082 = vunpack.c.l.b16 %v962
        %v2083 = vunpack.c.l.b16 %v963
        %v2084 = vunpack.c.l.b16 %v964
        %v2085 = vunpack.c.l.b16 %v965
        %v2086 = vunpack.c.l.b16 %v966
        %v2087 = vunpack.c.l.b16 %v967
        %v2088 = vunpack.c.l.b16 %v968
        %v2089 = vunpack.c.l.b16 %v969
        %v2090 = vunpack.c.l.b16 %v970
        %v2091 = vunpack.c.l.b16 %v971
        %v2092 = vpack.c.b16 %v1933, %v1932
        %v2093 = vpack.c.b16 %v1935, %v1934
        %v2094 = vpack.c.b16 %v1937, %v1936
        %v2095 = vpack.c.b16 %v1939, %v1938
        %v2096 = vpack.c.b16 %v1941, %v1940
        %v2097 = vpack.c.b16 %v1943, %v1942
        %v2098 = vpack.c.b16 %v1945, %v1944
        %v2099 = vpack.c.b16 %v1947, %v1946
        %v2100 = vpack.c.b16 %v1949, %v1948
        %v2101 = vpack.c.b16 %v1951, %v1950
        %v2102 = vpack.c.b16 %v1953, %v1952
        %v2103 = vpack.c.b16 %v1955, %v1954
        %v2104 = vpack.c.b16 %v1957, %v1956
        %v2105 = vpack.c.b16 %v1959, %v1958
        %v2106 = vpack.c.b16 %v1961, %v1960
        %v2107 = vpack.c.b16 %v1963, %v1962
        %v2108 = vpack.c.b16 %v1965, %v1964
        %v2109 = vpack.c.b16 %v1967, %v1966
        %v2110 = vpack.c.b16 %v1969, %v1968
        %v2111 = vpack.c.b16 %v1971, %v1970
        %v2112 = vpack.c.b16 %v1973, %v1972
        %v2113 = vpack.c.b16 %v1975, %v1974
        %v2114 = vpack.c.b16 %v1977, %v1976
        %v2115 = vpack.c.b16 %v1979, %v1978
        %v2116 = vpack.c.b16 %v1981, %v1980
        %v2117 = vpack.c.b16 %v1983, %v1982
        %v2118 = vpack.c.b16 %v1985, %v1984
        %v2119 = vpack.c.b16 %v1987, %v1986
        %v2120 = vpack.c.b16 %v1989, %v1988
        %v2121 = vpack.c.b16 %v1991, %v1990
        %v2122 = vpack.c.b16 %v1993, %v1992
        %v2123 = vpack.c.b16 %v1995, %v1994
        %v2124 = vpack.c.b16 %v1997, %v1996
        %v2125 = vpack.c.b16 %v1999, %v1998
        %v2126 = vpack.c.b16 %v2001, %v2000
        %v2127 = vpack.c.b16 %v2003, %v2002
        %v2128 = vpack.c.b16 %v2005, %v2004
        %v2129 = vpack.c.b16 %v2007, %v2006
        %v2130 = vpack.c.b16 %v2009, %v2008
        %v2131 = vpack.c.b16 %v2011, %v2010
        %v2132 = vpack.c.b16 %v2013, %v2012
        %v2133 = vpack.c.b16 %v2015, %v2014
        %v2134 = vpack.c.b16 %v2017, %v2016
        %v2135 = vpack.c.b16 %v2019, %v2018
        %v2136 = vpack.c.b16 %v2021, %v2020
        %v2137 = vpack.c.b16 %v2023, %v2022
        %v2138 = vpack.c.b16 %v2025, %v2024
        %v2139 = vpack.c.b16 %v2027, %v2026
        %v2140 = vpack.c.b16 %v2029, %v2028
        %v2141 = vpack.c.b16 %v2031, %v2030
        %v2142 = vpack.c.b16 %v2033, %v2032
        %v2143 = vpack.c.b16 %v2035, %v2034
        %v2144 = vpack.c.b16 %v2037, %v2036
        %v2145 = vpack.c.b16 %v2039, %v2038
        %v2146 = vpack.c.b16 %v2041, %v2040
        %v2147 = vpack.c.b16 %v2043, %v2042
        %v2148 = vpack.c.b16 %v2045, %v2044
        %v2149 = vpack.c.b16 %v2047, %v2046
        %v2150 = vpack.c.b16 %v2049, %v2048
        %v2151 = vpack.c.b16 %v2051, %v2050
        %v2152 = vpack.c.b16 %v2053, %v2052
        %v2153 = vpack.c.b16 %v2055, %v2054
        %v2154 = vpack.c.b16 %v2057, %v2056
        %v2155 = vpack.c.b16 %v2059, %v2058
        %v2156 = vpack.c.b16 %v2061, %v2060
        %v2157 = vpack.c.b16 %v2063, %v2062
        %v2158 = vpack.c.b16 %v2065, %v2064
        %v2159 = vpack.c.b16 %v2067, %v2066
        %v2160 = vpack.c.b16 %v2069, %v2068
        %v2161 = vpack.c.b16 %v2071, %v2070
        %v2162 = vpack.c.b16 %v2073, %v2072
        %v2163 = vpack.c.b16 %v2075, %v2074
        %v2164 = vpack.c.b16 %v2077, %v2076
        %v2165 = vpack.c.b16 %v2079, %v2078
        %v2166 = vpack.c.b16 %v2081, %v2080
        %v2167 = vpack.c.b16 %v2083, %v2082
        %v2168 = vpack.c.b16 %v2085, %v2084
        %v2169 = vpack.c.b16 %v2087, %v2086
        %v2170 = vpack.c.b16 %v2089, %v2088
        %v2171 = vpack.c.b16 %v2091, %v2090
        %2252 = vmatprep.subr.bf16.mxu0 0
        %2253 = vmatpush1.bf16.msra.mxu0 %v2099
        %2254 = vmatprep.subr.bf16.mxu0 0
        %2255 = vmatpush1.bf16.msra.mxu0 %v2098
        %2256 = vmatprep.subr.bf16.mxu0 0
        %2257 = vmatpush1.bf16.msra.mxu0 %v2097
        %2258 = vmatprep.subr.bf16.mxu0 0
        %2259 = vmatpush1.bf16.msra.mxu0 %v2096
        %2260 = vmatprep.subr.bf16.mxu0 0
        %2261 = vmatpush1.bf16.msra.mxu0 %v2095
        %2262 = vmatprep.subr.bf16.mxu0 0
        %2263 = vmatpush1.bf16.msra.mxu0 %v2094
        %2264 = vmatprep.subr.bf16.mxu0 0
        %2265 = vmatpush1.bf16.msra.mxu0 %v2093
        %2266 = vmatprep.subr.bf16.mxu0 0
        %2267 = vmatpush1.bf16.msra.mxu0 %v2092
        %2268 = vmatprep.subr.bf16.mxu0 0
        %2269 = vmatpush2.bf16.msra.mxu0 %v2107
        %2270 = vmatprep.subr.bf16.mxu0 0
        %2271 = vmatpush2.bf16.msra.mxu0 %v2106
        %2272 = vmatprep.subr.bf16.mxu0 0
        %2273 = vmatpush2.bf16.msra.mxu0 %v2105
        %2274 = vmatprep.subr.bf16.mxu0 0
        %2275 = vmatpush2.bf16.msra.mxu0 %v2104
        %2276 = vmatprep.subr.bf16.mxu0 0
        %2277 = vmatpush2.bf16.msra.mxu0 %v2103
        %2278 = vmatprep.subr.bf16.mxu0 0
        %2279 = vmatpush2.bf16.msra.mxu0 %v2102
        %2280 = vmatprep.subr.bf16.mxu0 0
        %2281 = vmatpush2.bf16.msra.mxu0 %v2101
        %2282 = vmatprep.subr.bf16.mxu0 0
        %2283 = vmatpush2.bf16.msra.mxu0 %v2100
        %2284 = vmatprep.mubr.bf16.mxu0 %v1453
        %2285 = vmatmul.mubr.bf16.gmra.mxu0 %v1452
        %v2286 = vpop.f32.mrf.mxu0
        %v2287 = vadd.f32 0.0, %v2286
        %v2288 = vpop.f32.mrf.mxu0
        %v2289 = vpop.f32.mrf.mxu0
        %v2290 = vadd.f32 0.0, %v2289
        %v2291 = vpop.f32.mrf.mxu0
        %2292 = vmatprep.mubr.bf16.mxu0 %v1463
        %2293 = vmatmul.mubr.bf16.gmra.mxu0 %v1462
        %v2294 = vpop.f32.mrf.mxu0
        %v2295 = vadd.f32 0.0, %v2294
        %v2296 = vpop.f32.mrf.mxu0
        %v2297 = vpop.f32.mrf.mxu0
        %v2298 = vadd.f32 0.0, %v2297
        %v2299 = vpop.f32.mrf.mxu0
        %2300 = vmatprep.mubr.bf16.mxu0 %v1473
        %2301 = vmatmul.mubr.bf16.gmra.mxu0 %v1472
        %v2302 = vpop.f32.mrf.mxu0
        %v2303 = vadd.f32 0.0, %v2302
        %v2304 = vpop.f32.mrf.mxu0
        %v2305 = vpop.f32.mrf.mxu0
        %v2306 = vadd.f32 0.0, %v2305
        %v2307 = vpop.f32.mrf.mxu0
        %2308 = vmatprep.mubr.bf16.mxu0 %v1483
        %2309 = vmatmul.mubr.bf16.gmra.mxu0 %v1482
        %v2310 = vpop.f32.mrf.mxu0
        %v2311 = vadd.f32 0.0, %v2310
        %v2312 = vpop.f32.mrf.mxu0
        %v2313 = vpop.f32.mrf.mxu0
        %v2314 = vadd.f32 0.0, %v2313
        %v2315 = vpop.f32.mrf.mxu0
        %2316 = vmatprep.mubr.bf16.mxu0 %v1493
        %2317 = vmatmul.mubr.bf16.gmra.mxu0 %v1492
        %v2318 = vpop.f32.mrf.mxu0
        %v2319 = vadd.f32 0.0, %v2318
        %v2320 = vpop.f32.mrf.mxu0
        %v2321 = vpop.f32.mrf.mxu0
        %v2322 = vadd.f32 0.0, %v2321
        %v2323 = vpop.f32.mrf.mxu0
        %2324 = vmatprep.mubr.bf16.mxu0 %v1503
        %2325 = vmatmul.mubr.bf16.gmra.mxu0 %v1502
        %v2326 = vpop.f32.mrf.mxu0
        %v2327 = vadd.f32 0.0, %v2326
        %v2328 = vpop.f32.mrf.mxu0
        %v2329 = vpop.f32.mrf.mxu0
        %v2330 = vadd.f32 0.0, %v2329
        %v2331 = vpop.f32.mrf.mxu0
        %2332 = vmatprep.mubr.bf16.mxu0 %v1513
        %2333 = vmatmul.mubr.bf16.gmra.mxu0 %v1512
        %v2334 = vpop.f32.mrf.mxu0
        %v2335 = vadd.f32 0.0, %v2334
        %v2336 = vpop.f32.mrf.mxu0
        %v2337 = vpop.f32.mrf.mxu0
        %v2338 = vadd.f32 0.0, %v2337
        %v2339 = vpop.f32.mrf.mxu0
        %2340 = vmatprep.mubr.bf16.mxu0 %v1523
        %2341 = vmatmul.mubr.bf16.gmra.mxu0 %v1522
        %v2342 = vpop.f32.mrf.mxu0
        %v2343 = vadd.f32 0.0, %v2342
        %v2344 = vpop.f32.mrf.mxu0
        %v2345 = vpop.f32.mrf.mxu0
        %v2346 = vadd.f32 0.0, %v2345
        %v2347 = vpop.f32.mrf.mxu0
        %2348 = vmatprep.mubr.bf16.mxu0 %v1533
        %2349 = vmatmul.mubr.bf16.gmra.mxu0 %v1532
        %v2350 = vpop.f32.mrf.mxu0
        %v2351 = vadd.f32 0.0, %v2350
        %v2352 = vpop.f32.mrf.mxu0
        %v2353 = vpop.f32.mrf.mxu0
        %v2354 = vadd.f32 0.0, %v2353
        %v2355 = vpop.f32.mrf.mxu0
        %2356 = vmatprep.mubr.bf16.mxu0 %v1543
        %2357 = vmatmul.mubr.bf16.gmra.mxu0 %v1542
        %v2358 = vpop.f32.mrf.mxu0
        %v2359 = vadd.f32 0.0, %v2358
        %v2360 = vpop.f32.mrf.mxu0
        %v2361 = vpop.f32.mrf.mxu0
        %v2362 = vadd.f32 0.0, %v2361
        %v2363 = vpop.f32.mrf.mxu0
        %2364 = vmatprep.mubr.bf16.mxu0 %v1553
        %2365 = vmatmul.mubr.bf16.gmra.mxu0 %v1552
        %v2366 = vpop.f32.mrf.mxu0
        %v2367 = vadd.f32 0.0, %v2366
        %v2368 = vpop.f32.mrf.mxu0
        %v2369 = vpop.f32.mrf.mxu0
        %v2370 = vadd.f32 0.0, %v2369
        %v2371 = vpop.f32.mrf.mxu0
        %2372 = vmatprep.mubr.bf16.mxu0 %v1563
        %2373 = vmatmul.mubr.bf16.gmra.mxu0 %v1562
        %v2374 = vpop.f32.mrf.mxu0
        %v2375 = vadd.f32 0.0, %v2374
        %v2376 = vpop.f32.mrf.mxu0
        %v2377 = vpop.f32.mrf.mxu0
        %v2378 = vadd.f32 0.0, %v2377
        %v2379 = vpop.f32.mrf.mxu0
        %2380 = vmatprep.mubr.bf16.mxu0 %v1573
        %2381 = vmatmul.mubr.bf16.gmra.mxu0 %v1572
        %v2382 = vpop.f32.mrf.mxu0
        %v2383 = vadd.f32 0.0, %v2382
        %v2384 = vpop.f32.mrf.mxu0
        %v2385 = vpop.f32.mrf.mxu0
        %v2386 = vadd.f32 0.0, %v2385
        %v2387 = vpop.f32.mrf.mxu0
        %2388 = vmatprep.mubr.bf16.mxu0 %v1583
        %2389 = vmatmul.mubr.bf16.gmra.mxu0 %v1582
        %v2390 = vpop.f32.mrf.mxu0
        %v2391 = vadd.f32 0.0, %v2390
        %v2392 = vpop.f32.mrf.mxu0
        %v2393 = vpop.f32.mrf.mxu0
        %v2394 = vadd.f32 0.0, %v2393
        %v2395 = vpop.f32.mrf.mxu0
        %2396 = vmatprep.mubr.bf16.mxu0 %v1593
        %2397 = vmatmul.mubr.bf16.gmra.mxu0 %v1592
        %v2398 = vpop.f32.mrf.mxu0
        %v2399 = vadd.f32 0.0, %v2398
        %v2400 = vpop.f32.mrf.mxu0
        %v2401 = vpop.f32.mrf.mxu0
        %v2402 = vadd.f32 0.0, %v2401
        %v2403 = vpop.f32.mrf.mxu0
        %2404 = vmatprep.mubr.bf16.mxu0 %v1603
        %2405 = vmatmul.mubr.bf16.gmra.mxu0 %v1602
        %v2406 = vpop.f32.mrf.mxu0
        %v2407 = vadd.f32 0.0, %v2406
        %v2408 = vpop.f32.mrf.mxu0
        %v2409 = vpop.f32.mrf.mxu0
        %v2410 = vadd.f32 0.0, %v2409
        %v2411 = vpop.f32.mrf.mxu0
        %2412 = vdwg.mxu0
        %2413 = vmatprep.subr.bf16.mxu0 0
        %2414 = vmatpush1.bf16.msra.mxu0 %v2115
        %2415 = vmatprep.subr.bf16.mxu0 0
        %2416 = vmatpush1.bf16.msra.mxu0 %v2114
        %2417 = vmatprep.subr.bf16.mxu0 0
        %2418 = vmatpush1.bf16.msra.mxu0 %v2113
        %2419 = vmatprep.subr.bf16.mxu0 0
        %2420 = vmatpush1.bf16.msra.mxu0 %v2112
        %2421 = vmatprep.subr.bf16.mxu0 0
        %2422 = vmatpush1.bf16.msra.mxu0 %v2111
        %2423 = vmatprep.subr.bf16.mxu0 0
        %2424 = vmatpush1.bf16.msra.mxu0 %v2110
        %2425 = vmatprep.subr.bf16.mxu0 0
        %2426 = vmatpush1.bf16.msra.mxu0 %v2109
        %2427 = vmatprep.subr.bf16.mxu0 0
        %2428 = vmatpush1.bf16.msra.mxu0 %v2108
        %2429 = vmatprep.subr.bf16.mxu0 0
        %2430 = vmatpush2.bf16.msra.mxu0 %v2123
        %2431 = vmatprep.subr.bf16.mxu0 0
        %2432 = vmatpush2.bf16.msra.mxu0 %v2122
        %2433 = vmatprep.subr.bf16.mxu0 0
        %2434 = vmatpush2.bf16.msra.mxu0 %v2121
        %2435 = vmatprep.subr.bf16.mxu0 0
        %2436 = vmatpush2.bf16.msra.mxu0 %v2120
        %2437 = vmatprep.subr.bf16.mxu0 0
        %2438 = vmatpush2.bf16.msra.mxu0 %v2119
        %2439 = vmatprep.subr.bf16.mxu0 0
        %2440 = vmatpush2.bf16.msra.mxu0 %v2118
        %2441 = vmatprep.subr.bf16.mxu0 0
        %2442 = vmatpush2.bf16.msra.mxu0 %v2117
        %2443 = vmatprep.subr.bf16.mxu0 0
        %2444 = vmatpush2.bf16.msra.mxu0 %v2116
        %2445 = vmatprep.mubr.bf16.mxu0 %v1455
        %2446 = vmatmul.mubr.bf16.gmra.mxu0 %v1454
        %v2447 = vpop.f32.mrf.mxu0
        %v2448 = vadd.f32 %v2287, %v2447
        %v2449 = vpop.f32.mrf.mxu0
        %v2450 = vpop.f32.mrf.mxu0
        %v2451 = vadd.f32 %v2290, %v2450
        %v2452 = vpop.f32.mrf.mxu0
        %2453 = vmatprep.mubr.bf16.mxu0 %v1465
        %2454 = vmatmul.mubr.bf16.gmra.mxu0 %v1464
        %v2455 = vpop.f32.mrf.mxu0
        %v2456 = vadd.f32 %v2295, %v2455
        %v2457 = vpop.f32.mrf.mxu0
        %v2458 = vpop.f32.mrf.mxu0
        %v2459 = vadd.f32 %v2298, %v2458
        %v2460 = vpop.f32.mrf.mxu0
        %2461 = vmatprep.mubr.bf16.mxu0 %v1475
        %2462 = vmatmul.mubr.bf16.gmra.mxu0 %v1474
        %v2463 = vpop.f32.mrf.mxu0
        %v2464 = vadd.f32 %v2303, %v2463
        %v2465 = vpop.f32.mrf.mxu0
        %v2466 = vpop.f32.mrf.mxu0
        %v2467 = vadd.f32 %v2306, %v2466
        %v2468 = vpop.f32.mrf.mxu0
        %2469 = vmatprep.mubr.bf16.mxu0 %v1485
        %2470 = vmatmul.mubr.bf16.gmra.mxu0 %v1484
        %v2471 = vpop.f32.mrf.mxu0
        %v2472 = vadd.f32 %v2311, %v2471
        %v2473 = vpop.f32.mrf.mxu0
        %v2474 = vpop.f32.mrf.mxu0
        %v2475 = vadd.f32 %v2314, %v2474
        %v2476 = vpop.f32.mrf.mxu0
        %2477 = vmatprep.mubr.bf16.mxu0 %v1495
        %2478 = vmatmul.mubr.bf16.gmra.mxu0 %v1494
        %v2479 = vpop.f32.mrf.mxu0
        %v2480 = vadd.f32 %v2319, %v2479
        %v2481 = vpop.f32.mrf.mxu0
        %v2482 = vpop.f32.mrf.mxu0
        %v2483 = vadd.f32 %v2322, %v2482
        %v2484 = vpop.f32.mrf.mxu0
        %2485 = vmatprep.mubr.bf16.mxu0 %v1505
        %2486 = vmatmul.mubr.bf16.gmra.mxu0 %v1504
        %v2487 = vpop.f32.mrf.mxu0
        %v2488 = vadd.f32 %v2327, %v2487
        %v2489 = vpop.f32.mrf.mxu0
        %v2490 = vpop.f32.mrf.mxu0
        %v2491 = vadd.f32 %v2330, %v2490
        %v2492 = vpop.f32.mrf.mxu0
        %2493 = vmatprep.mubr.bf16.mxu0 %v1515
        %2494 = vmatmul.mubr.bf16.gmra.mxu0 %v1514
        %v2495 = vpop.f32.mrf.mxu0
        %v2496 = vadd.f32 %v2335, %v2495
        %v2497 = vpop.f32.mrf.mxu0
        %v2498 = vpop.f32.mrf.mxu0
        %v2499 = vadd.f32 %v2338, %v2498
        %v2500 = vpop.f32.mrf.mxu0
        %2501 = vmatprep.mubr.bf16.mxu0 %v1525
        %2502 = vmatmul.mubr.bf16.gmra.mxu0 %v1524
        %v2503 = vpop.f32.mrf.mxu0
        %v2504 = vadd.f32 %v2343, %v2503
        %v2505 = vpop.f32.mrf.mxu0
        %v2506 = vpop.f32.mrf.mxu0
        %v2507 = vadd.f32 %v2346, %v2506
        %v2508 = vpop.f32.mrf.mxu0
        %2509 = vmatprep.mubr.bf16.mxu0 %v1535
        %2510 = vmatmul.mubr.bf16.gmra.mxu0 %v1534
        %v2511 = vpop.f32.mrf.mxu0
        %v2512 = vadd.f32 %v2351, %v2511
        %v2513 = vpop.f32.mrf.mxu0
        %v2514 = vpop.f32.mrf.mxu0
        %v2515 = vadd.f32 %v2354, %v2514
        %v2516 = vpop.f32.mrf.mxu0
        %2517 = vmatprep.mubr.bf16.mxu0 %v1545
        %2518 = vmatmul.mubr.bf16.gmra.mxu0 %v1544
        %v2519 = vpop.f32.mrf.mxu0
        %v2520 = vadd.f32 %v2359, %v2519
        %v2521 = vpop.f32.mrf.mxu0
        %v2522 = vpop.f32.mrf.mxu0
        %v2523 = vadd.f32 %v2362, %v2522
        %v2524 = vpop.f32.mrf.mxu0
        %2525 = vmatprep.mubr.bf16.mxu0 %v1555
        %2526 = vmatmul.mubr.bf16.gmra.mxu0 %v1554
        %v2527 = vpop.f32.mrf.mxu0
        %v2528 = vadd.f32 %v2367, %v2527
        %v2529 = vpop.f32.mrf.mxu0
        %v2530 = vpop.f32.mrf.mxu0
        %v2531 = vadd.f32 %v2370, %v2530
        %v2532 = vpop.f32.mrf.mxu0
        %2533 = vmatprep.mubr.bf16.mxu0 %v1565
        %2534 = vmatmul.mubr.bf16.gmra.mxu0 %v1564
        %v2535 = vpop.f32.mrf.mxu0
        %v2536 = vadd.f32 %v2375, %v2535
        %v2537 = vpop.f32.mrf.mxu0
        %v2538 = vpop.f32.mrf.mxu0
        %v2539 = vadd.f32 %v2378, %v2538
        %v2540 = vpop.f32.mrf.mxu0
        %2541 = vmatprep.mubr.bf16.mxu0 %v1575
        %2542 = vmatmul.mubr.bf16.gmra.mxu0 %v1574
        %v2543 = vpop.f32.mrf.mxu0
        %v2544 = vadd.f32 %v2383, %v2543
        %v2545 = vpop.f32.mrf.mxu0
        %v2546 = vpop.f32.mrf.mxu0
        %v2547 = vadd.f32 %v2386, %v2546
        %v2548 = vpop.f32.mrf.mxu0
        %2549 = vmatprep.mubr.bf16.mxu0 %v1585
        %2550 = vmatmul.mubr.bf16.gmra.mxu0 %v1584
        %v2551 = vpop.f32.mrf.mxu0
        %v2552 = vadd.f32 %v2391, %v2551
        %v2553 = vpop.f32.mrf.mxu0
        %v2554 = vpop.f32.mrf.mxu0
        %v2555 = vadd.f32 %v2394, %v2554
        %v2556 = vpop.f32.mrf.mxu0
        %2557 = vmatprep.mubr.bf16.mxu0 %v1595
        %2558 = vmatmul.mubr.bf16.gmra.mxu0 %v1594
        %v2559 = vpop.f32.mrf.mxu0
        %v2560 = vadd.f32 %v2399, %v2559
        %v2561 = vpop.f32.mrf.mxu0
        %v2562 = vpop.f32.mrf.mxu0
        %v2563 = vadd.f32 %v2402, %v2562
        %v2564 = vpop.f32.mrf.mxu0
        %2565 = vmatprep.mubr.bf16.mxu0 %v1605
        %2566 = vmatmul.mubr.bf16.gmra.mxu0 %v1604
        %v2567 = vpop.f32.mrf.mxu0
        %v2568 = vadd.f32 %v2407, %v2567
        %v2569 = vpop.f32.mrf.mxu0
        %v2570 = vpop.f32.mrf.mxu0
        %v2571 = vadd.f32 %v2410, %v2570
        %v2572 = vpop.f32.mrf.mxu0
        %2573 = vdwg.mxu0
        %2574 = vmatprep.subr.bf16.mxu0 0
        %2575 = vmatpush1.bf16.msra.mxu0 %v2131
        %2576 = vmatprep.subr.bf16.mxu0 0
        %2577 = vmatpush1.bf16.msra.mxu0 %v2130
        %2578 = vmatprep.subr.bf16.mxu0 0
        %2579 = vmatpush1.bf16.msra.mxu0 %v2129
        %2580 = vmatprep.subr.bf16.mxu0 0
        %2581 = vmatpush1.bf16.msra.mxu0 %v2128
        %2582 = vmatprep.subr.bf16.mxu0 0
        %2583 = vmatpush1.bf16.msra.mxu0 %v2127
        %2584 = vmatprep.subr.bf16.mxu0 0
        %2585 = vmatpush1.bf16.msra.mxu0 %v2126
        %2586 = vmatprep.subr.bf16.mxu0 0
        %2587 = vmatpush1.bf16.msra.mxu0 %v2125
        %2588 = vmatprep.subr.bf16.mxu0 0
        %2589 = vmatpush1.bf16.msra.mxu0 %v2124
        %2590 = vmatprep.subr.bf16.mxu0 0
        %2591 = vmatpush2.bf16.msra.mxu0 %v2139
        %2592 = vmatprep.subr.bf16.mxu0 0
        %2593 = vmatpush2.bf16.msra.mxu0 %v2138
        %2594 = vmatprep.subr.bf16.mxu0 0
        %2595 = vmatpush2.bf16.msra.mxu0 %v2137
        %2596 = vmatprep.subr.bf16.mxu0 0
        %2597 = vmatpush2.bf16.msra.mxu0 %v2136
        %2598 = vmatprep.subr.bf16.mxu0 0
        %2599 = vmatpush2.bf16.msra.mxu0 %v2135
        %2600 = vmatprep.subr.bf16.mxu0 0
        %2601 = vmatpush2.bf16.msra.mxu0 %v2134
        %2602 = vmatprep.subr.bf16.mxu0 0
        %2603 = vmatpush2.bf16.msra.mxu0 %v2133
        %2604 = vmatprep.subr.bf16.mxu0 0
        %2605 = vmatpush2.bf16.msra.mxu0 %v2132
        %2606 = vmatprep.mubr.bf16.mxu0 %v1457
        %2607 = vmatmul.mubr.bf16.gmra.mxu0 %v1456
        %v2608 = vpop.f32.mrf.mxu0
        %v2609 = vadd.f32 %v2448, %v2608
        %v2610 = vpop.f32.mrf.mxu0
        %v2611 = vpop.f32.mrf.mxu0
        %v2612 = vadd.f32 %v2451, %v2611
        %v2613 = vpop.f32.mrf.mxu0
        %2614 = vmatprep.mubr.bf16.mxu0 %v1467
        %2615 = vmatmul.mubr.bf16.gmra.mxu0 %v1466
        %v2616 = vpop.f32.mrf.mxu0
        %v2617 = vadd.f32 %v2456, %v2616
        %v2618 = vpop.f32.mrf.mxu0
        %v2619 = vpop.f32.mrf.mxu0
        %v2620 = vadd.f32 %v2459, %v2619
        %v2621 = vpop.f32.mrf.mxu0
        %2622 = vmatprep.mubr.bf16.mxu0 %v1477
        %2623 = vmatmul.mubr.bf16.gmra.mxu0 %v1476
        %v2624 = vpop.f32.mrf.mxu0
        %v2625 = vadd.f32 %v2464, %v2624
        %v2626 = vpop.f32.mrf.mxu0
        %v2627 = vpop.f32.mrf.mxu0
        %v2628 = vadd.f32 %v2467, %v2627
        %v2629 = vpop.f32.mrf.mxu0
        %2630 = vmatprep.mubr.bf16.mxu0 %v1487
        %2631 = vmatmul.mubr.bf16.gmra.mxu0 %v1486
        %v2632 = vpop.f32.mrf.mxu0
        %v2633 = vadd.f32 %v2472, %v2632
        %v2634 = vpop.f32.mrf.mxu0
        %v2635 = vpop.f32.mrf.mxu0
        %v2636 = vadd.f32 %v2475, %v2635
        %v2637 = vpop.f32.mrf.mxu0
        %2638 = vmatprep.mubr.bf16.mxu0 %v1497
        %2639 = vmatmul.mubr.bf16.gmra.mxu0 %v1496
        %v2640 = vpop.f32.mrf.mxu0
        %v2641 = vadd.f32 %v2480, %v2640
        %v2642 = vpop.f32.mrf.mxu0
        %v2643 = vpop.f32.mrf.mxu0
        %v2644 = vadd.f32 %v2483, %v2643
        %v2645 = vpop.f32.mrf.mxu0
        %2646 = vmatprep.mubr.bf16.mxu0 %v1507
        %2647 = vmatmul.mubr.bf16.gmra.mxu0 %v1506
        %v2648 = vpop.f32.mrf.mxu0
        %v2649 = vadd.f32 %v2488, %v2648
        %v2650 = vpop.f32.mrf.mxu0
        %v2651 = vpop.f32.mrf.mxu0
        %v2652 = vadd.f32 %v2491, %v2651
        %v2653 = vpop.f32.mrf.mxu0
        %2654 = vmatprep.mubr.bf16.mxu0 %v1517
        %2655 = vmatmul.mubr.bf16.gmra.mxu0 %v1516
        %v2656 = vpop.f32.mrf.mxu0
        %v2657 = vadd.f32 %v2496, %v2656
        %v2658 = vpop.f32.mrf.mxu0
        %v2659 = vpop.f32.mrf.mxu0
        %v2660 = vadd.f32 %v2499, %v2659
        %v2661 = vpop.f32.mrf.mxu0
        %2662 = vmatprep.mubr.bf16.mxu0 %v1527
        %2663 = vmatmul.mubr.bf16.gmra.mxu0 %v1526
        %v2664 = vpop.f32.mrf.mxu0
        %v2665 = vadd.f32 %v2504, %v2664
        %v2666 = vpop.f32.mrf.mxu0
        %v2667 = vpop.f32.mrf.mxu0
        %v2668 = vadd.f32 %v2507, %v2667
        %v2669 = vpop.f32.mrf.mxu0
        %2670 = vmatprep.mubr.bf16.mxu0 %v1537
        %2671 = vmatmul.mubr.bf16.gmra.mxu0 %v1536
        %v2672 = vpop.f32.mrf.mxu0
        %v2673 = vadd.f32 %v2512, %v2672
        %v2674 = vpop.f32.mrf.mxu0
        %v2675 = vpop.f32.mrf.mxu0
        %v2676 = vadd.f32 %v2515, %v2675
        %v2677 = vpop.f32.mrf.mxu0
        %2678 = vmatprep.mubr.bf16.mxu0 %v1547
        %2679 = vmatmul.mubr.bf16.gmra.mxu0 %v1546
        %v2680 = vpop.f32.mrf.mxu0
        %v2681 = vadd.f32 %v2520, %v2680
        %v2682 = vpop.f32.mrf.mxu0
        %v2683 = vpop.f32.mrf.mxu0
        %v2684 = vadd.f32 %v2523, %v2683
        %v2685 = vpop.f32.mrf.mxu0
        %2686 = vmatprep.mubr.bf16.mxu0 %v1557
        %2687 = vmatmul.mubr.bf16.gmra.mxu0 %v1556
        %v2688 = vpop.f32.mrf.mxu0
        %v2689 = vadd.f32 %v2528, %v2688
        %v2690 = vpop.f32.mrf.mxu0
        %v2691 = vpop.f32.mrf.mxu0
        %v2692 = vadd.f32 %v2531, %v2691
        %v2693 = vpop.f32.mrf.mxu0
        %2694 = vmatprep.mubr.bf16.mxu0 %v1567
        %2695 = vmatmul.mubr.bf16.gmra.mxu0 %v1566
        %v2696 = vpop.f32.mrf.mxu0
        %v2697 = vadd.f32 %v2536, %v2696
        %v2698 = vpop.f32.mrf.mxu0
        %v2699 = vpop.f32.mrf.mxu0
        %v2700 = vadd.f32 %v2539, %v2699
        %v2701 = vpop.f32.mrf.mxu0
        %2702 = vmatprep.mubr.bf16.mxu0 %v1577
        %2703 = vmatmul.mubr.bf16.gmra.mxu0 %v1576
        %v2704 = vpop.f32.mrf.mxu0
        %v2705 = vadd.f32 %v2544, %v2704
        %v2706 = vpop.f32.mrf.mxu0
        %v2707 = vpop.f32.mrf.mxu0
        %v2708 = vadd.f32 %v2547, %v2707
        %v2709 = vpop.f32.mrf.mxu0
        %2710 = vmatprep.mubr.bf16.mxu0 %v1587
        %2711 = vmatmul.mubr.bf16.gmra.mxu0 %v1586
        %v2712 = vpop.f32.mrf.mxu0
        %v2713 = vadd.f32 %v2552, %v2712
        %v2714 = vpop.f32.mrf.mxu0
        %v2715 = vpop.f32.mrf.mxu0
        %v2716 = vadd.f32 %v2555, %v2715
        %v2717 = vpop.f32.mrf.mxu0
        %2718 = vmatprep.mubr.bf16.mxu0 %v1597
        %2719 = vmatmul.mubr.bf16.gmra.mxu0 %v1596
        %v2720 = vpop.f32.mrf.mxu0
        %v2721 = vadd.f32 %v2560, %v2720
        %v2722 = vpop.f32.mrf.mxu0
        %v2723 = vpop.f32.mrf.mxu0
        %v2724 = vadd.f32 %v2563, %v2723
        %v2725 = vpop.f32.mrf.mxu0
        %2726 = vmatprep.mubr.bf16.mxu0 %v1607
        %2727 = vmatmul.mubr.bf16.gmra.mxu0 %v1606
        %v2728 = vpop.f32.mrf.mxu0
        %v2729 = vadd.f32 %v2568, %v2728
        %v2730 = vpop.f32.mrf.mxu0
        %v2731 = vpop.f32.mrf.mxu0
        %v2732 = vadd.f32 %v2571, %v2731
        %v2733 = vpop.f32.mrf.mxu0
        %2734 = vdwg.mxu0
        %2735 = vmatprep.subr.bf16.mxu0 0
        %2736 = vmatpush1.bf16.msra.mxu0 %v2147
        %2737 = vmatprep.subr.bf16.mxu0 0
        %2738 = vmatpush1.bf16.msra.mxu0 %v2146
        %2739 = vmatprep.subr.bf16.mxu0 0
        %2740 = vmatpush1.bf16.msra.mxu0 %v2145
        %2741 = vmatprep.subr.bf16.mxu0 0
        %2742 = vmatpush1.bf16.msra.mxu0 %v2144
        %2743 = vmatprep.subr.bf16.mxu0 0
        %2744 = vmatpush1.bf16.msra.mxu0 %v2143
        %2745 = vmatprep.subr.bf16.mxu0 0
        %2746 = vmatpush1.bf16.msra.mxu0 %v2142
        %2747 = vmatprep.subr.bf16.mxu0 0
        %2748 = vmatpush1.bf16.msra.mxu0 %v2141
        %2749 = vmatprep.subr.bf16.mxu0 0
        %2750 = vmatpush1.bf16.msra.mxu0 %v2140
        %2751 = vmatprep.subr.bf16.mxu0 0
        %2752 = vmatpush2.bf16.msra.mxu0 %v2155
        %2753 = vmatprep.subr.bf16.mxu0 0
        %2754 = vmatpush2.bf16.msra.mxu0 %v2154
        %2755 = vmatprep.subr.bf16.mxu0 0
        %2756 = vmatpush2.bf16.msra.mxu0 %v2153
        %2757 = vmatprep.subr.bf16.mxu0 0
        %2758 = vmatpush2.bf16.msra.mxu0 %v2152
        %2759 = vmatprep.subr.bf16.mxu0 0
        %2760 = vmatpush2.bf16.msra.mxu0 %v2151
        %2761 = vmatprep.subr.bf16.mxu0 0
        %2762 = vmatpush2.bf16.msra.mxu0 %v2150
        %2763 = vmatprep.subr.bf16.mxu0 0
        %2764 = vmatpush2.bf16.msra.mxu0 %v2149
        %2765 = vmatprep.subr.bf16.mxu0 0
        %2766 = vmatpush2.bf16.msra.mxu0 %v2148
        %2767 = vmatprep.mubr.bf16.mxu0 %v1459
        %2768 = vmatmul.mubr.bf16.gmra.mxu0 %v1458
        %v2769 = vpop.f32.mrf.mxu0
        %v2770 = vadd.f32 %v2609, %v2769
        %v2771 = vpop.f32.mrf.mxu0
        %v2772 = vpop.f32.mrf.mxu0
        %v2773 = vadd.f32 %v2612, %v2772
        %v2774 = vpop.f32.mrf.mxu0
        %2775 = vmatprep.mubr.bf16.mxu0 %v1469
        %2776 = vmatmul.mubr.bf16.gmra.mxu0 %v1468
        %v2777 = vpop.f32.mrf.mxu0
        %v2778 = vadd.f32 %v2617, %v2777
        %v2779 = vpop.f32.mrf.mxu0
        %v2780 = vpop.f32.mrf.mxu0
        %v2781 = vadd.f32 %v2620, %v2780
        %v2782 = vpop.f32.mrf.mxu0
        %2783 = vmatprep.mubr.bf16.mxu0 %v1479
        %2784 = vmatmul.mubr.bf16.gmra.mxu0 %v1478
        %v2785 = vpop.f32.mrf.mxu0
        %v2786 = vadd.f32 %v2625, %v2785
        %v2787 = vpop.f32.mrf.mxu0
        %v2788 = vpop.f32.mrf.mxu0
        %v2789 = vadd.f32 %v2628, %v2788
        %v2790 = vpop.f32.mrf.mxu0
        %2791 = vmatprep.mubr.bf16.mxu0 %v1489
        %2792 = vmatmul.mubr.bf16.gmra.mxu0 %v1488
        %v2793 = vpop.f32.mrf.mxu0
        %v2794 = vadd.f32 %v2633, %v2793
        %v2795 = vpop.f32.mrf.mxu0
        %v2796 = vpop.f32.mrf.mxu0
        %v2797 = vadd.f32 %v2636, %v2796
        %v2798 = vpop.f32.mrf.mxu0
        %2799 = vmatprep.mubr.bf16.mxu0 %v1499
        %2800 = vmatmul.mubr.bf16.gmra.mxu0 %v1498
        %v2801 = vpop.f32.mrf.mxu0
        %v2802 = vadd.f32 %v2641, %v2801
        %v2803 = vpop.f32.mrf.mxu0
        %v2804 = vpop.f32.mrf.mxu0
        %v2805 = vadd.f32 %v2644, %v2804
        %v2806 = vpop.f32.mrf.mxu0
        %2807 = vmatprep.mubr.bf16.mxu0 %v1509
        %2808 = vmatmul.mubr.bf16.gmra.mxu0 %v1508
        %v2809 = vpop.f32.mrf.mxu0
        %v2810 = vadd.f32 %v2649, %v2809
        %v2811 = vpop.f32.mrf.mxu0
        %v2812 = vpop.f32.mrf.mxu0
        %v2813 = vadd.f32 %v2652, %v2812
        %v2814 = vpop.f32.mrf.mxu0
        %2815 = vmatprep.mubr.bf16.mxu0 %v1519
        %2816 = vmatmul.mubr.bf16.gmra.mxu0 %v1518
        %v2817 = vpop.f32.mrf.mxu0
        %v2818 = vadd.f32 %v2657, %v2817
        %v2819 = vpop.f32.mrf.mxu0
        %v2820 = vpop.f32.mrf.mxu0
        %v2821 = vadd.f32 %v2660, %v2820
        %v2822 = vpop.f32.mrf.mxu0
        %2823 = vmatprep.mubr.bf16.mxu0 %v1529
        %2824 = vmatmul.mubr.bf16.gmra.mxu0 %v1528
        %v2825 = vpop.f32.mrf.mxu0
        %v2826 = vadd.f32 %v2665, %v2825
        %v2827 = vpop.f32.mrf.mxu0
        %v2828 = vpop.f32.mrf.mxu0
        %v2829 = vadd.f32 %v2668, %v2828
        %v2830 = vpop.f32.mrf.mxu0
        %2831 = vmatprep.mubr.bf16.mxu0 %v1539
        %2832 = vmatmul.mubr.bf16.gmra.mxu0 %v1538
        %v2833 = vpop.f32.mrf.mxu0
        %v2834 = vadd.f32 %v2673, %v2833
        %v2835 = vpop.f32.mrf.mxu0
        %v2836 = vpop.f32.mrf.mxu0
        %v2837 = vadd.f32 %v2676, %v2836
        %v2838 = vpop.f32.mrf.mxu0
        %2839 = vmatprep.mubr.bf16.mxu0 %v1549
        %2840 = vmatmul.mubr.bf16.gmra.mxu0 %v1548
        %v2841 = vpop.f32.mrf.mxu0
        %v2842 = vadd.f32 %v2681, %v2841
        %v2843 = vpop.f32.mrf.mxu0
        %v2844 = vpop.f32.mrf.mxu0
        %v2845 = vadd.f32 %v2684, %v2844
        %v2846 = vpop.f32.mrf.mxu0
        %2847 = vmatprep.mubr.bf16.mxu0 %v1559
        %2848 = vmatmul.mubr.bf16.gmra.mxu0 %v1558
        %v2849 = vpop.f32.mrf.mxu0
        %v2850 = vadd.f32 %v2689, %v2849
        %v2851 = vpop.f32.mrf.mxu0
        %v2852 = vpop.f32.mrf.mxu0
        %v2853 = vadd.f32 %v2692, %v2852
        %v2854 = vpop.f32.mrf.mxu0
        %2855 = vmatprep.mubr.bf16.mxu0 %v1569
        %2856 = vmatmul.mubr.bf16.gmra.mxu0 %v1568
        %v2857 = vpop.f32.mrf.mxu0
        %v2858 = vadd.f32 %v2697, %v2857
        %v2859 = vpop.f32.mrf.mxu0
        %v2860 = vpop.f32.mrf.mxu0
        %v2861 = vadd.f32 %v2700, %v2860
        %v2862 = vpop.f32.mrf.mxu0
        %2863 = vmatprep.mubr.bf16.mxu0 %v1579
        %2864 = vmatmul.mubr.bf16.gmra.mxu0 %v1578
        %v2865 = vpop.f32.mrf.mxu0
        %v2866 = vadd.f32 %v2705, %v2865
        %v2867 = vpop.f32.mrf.mxu0
        %v2868 = vpop.f32.mrf.mxu0
        %v2869 = vadd.f32 %v2708, %v2868
        %v2870 = vpop.f32.mrf.mxu0
        %2871 = vmatprep.mubr.bf16.mxu0 %v1589
        %2872 = vmatmul.mubr.bf16.gmra.mxu0 %v1588
        %v2873 = vpop.f32.mrf.mxu0
        %v2874 = vadd.f32 %v2713, %v2873
        %v2875 = vpop.f32.mrf.mxu0
        %v2876 = vpop.f32.mrf.mxu0
        %v2877 = vadd.f32 %v2716, %v2876
        %v2878 = vpop.f32.mrf.mxu0
        %2879 = vmatprep.mubr.bf16.mxu0 %v1599
        %2880 = vmatmul.mubr.bf16.gmra.mxu0 %v1598
        %v2881 = vpop.f32.mrf.mxu0
        %v2882 = vadd.f32 %v2721, %v2881
        %v2883 = vpop.f32.mrf.mxu0
        %v2884 = vpop.f32.mrf.mxu0
        %v2885 = vadd.f32 %v2724, %v2884
        %v2886 = vpop.f32.mrf.mxu0
        %2887 = vmatprep.mubr.bf16.mxu0 %v1609
        %2888 = vmatmul.mubr.bf16.gmra.mxu0 %v1608
        %v2889 = vpop.f32.mrf.mxu0
        %v2890 = vadd.f32 %v2729, %v2889
        %v2891 = vpop.f32.mrf.mxu0
        %v2892 = vpop.f32.mrf.mxu0
        %v2893 = vadd.f32 %v2732, %v2892
        %v2894 = vpop.f32.mrf.mxu0
        %2895 = vdwg.mxu0
        %2896 = vmatprep.subr.bf16.mxu0 0
        %2897 = vmatpush1.bf16.msra.mxu0 %v2163
        %2898 = vmatprep.subr.bf16.mxu0 0
        %2899 = vmatpush1.bf16.msra.mxu0 %v2162
        %2900 = vmatprep.subr.bf16.mxu0 0
        %2901 = vmatpush1.bf16.msra.mxu0 %v2161
        %2902 = vmatprep.subr.bf16.mxu0 0
        %2903 = vmatpush1.bf16.msra.mxu0 %v2160
        %2904 = vmatprep.subr.bf16.mxu0 0
        %2905 = vmatpush1.bf16.msra.mxu0 %v2159
        %2906 = vmatprep.subr.bf16.mxu0 0
        %2907 = vmatpush1.bf16.msra.mxu0 %v2158
        %2908 = vmatprep.subr.bf16.mxu0 0
        %2909 = vmatpush1.bf16.msra.mxu0 %v2157
        %2910 = vmatprep.subr.bf16.mxu0 0
        %2911 = vmatpush1.bf16.msra.mxu0 %v2156
        %2912 = vmatprep.subr.bf16.mxu0 0
        %2913 = vmatpush2.bf16.msra.mxu0 %v2171
        %2914 = vmatprep.subr.bf16.mxu0 0
        %2915 = vmatpush2.bf16.msra.mxu0 %v2170
        %2916 = vmatprep.subr.bf16.mxu0 0
        %2917 = vmatpush2.bf16.msra.mxu0 %v2169
        %2918 = vmatprep.subr.bf16.mxu0 0
        %2919 = vmatpush2.bf16.msra.mxu0 %v2168
        %2920 = vmatprep.subr.bf16.mxu0 0
        %2921 = vmatpush2.bf16.msra.mxu0 %v2167
        %2922 = vmatprep.subr.bf16.mxu0 0
        %2923 = vmatpush2.bf16.msra.mxu0 %v2166
        %2924 = vmatprep.subr.bf16.mxu0 0
        %2925 = vmatpush2.bf16.msra.mxu0 %v2165
        %2926 = vmatprep.subr.bf16.mxu0 0
        %2927 = vmatpush2.bf16.msra.mxu0 %v2164
        %2928 = vmatprep.mubr.bf16.mxu0 %v1461
        %2929 = vmatmul.mubr.bf16.gmra.mxu0 %v1460
        %v2930 = vpop.f32.mrf.mxu0
        %v2931 = vadd.f32 %v2770, %v2930
        %v2932 = vpop.f32.mrf.mxu0
        %v2933 = vpop.f32.mrf.mxu0
        %v2934 = vadd.f32 %v2773, %v2933
        %v2935 = vpop.f32.mrf.mxu0
        %2936 = vmatprep.mubr.bf16.mxu0 %v1471
        %2937 = vmatmul.mubr.bf16.gmra.mxu0 %v1470
        %v2938 = vpop.f32.mrf.mxu0
        %v2939 = vadd.f32 %v2778, %v2938
        %v2940 = vpop.f32.mrf.mxu0
        %v2941 = vpop.f32.mrf.mxu0
        %v2942 = vadd.f32 %v2781, %v2941
        %v2943 = vpop.f32.mrf.mxu0
        %2944 = vmatprep.mubr.bf16.mxu0 %v1481
        %2945 = vmatmul.mubr.bf16.gmra.mxu0 %v1480
        %v2946 = vpop.f32.mrf.mxu0
        %v2947 = vadd.f32 %v2786, %v2946
        %v2948 = vpop.f32.mrf.mxu0
        %v2949 = vpop.f32.mrf.mxu0
        %v2950 = vadd.f32 %v2789, %v2949
        %v2951 = vpop.f32.mrf.mxu0
        %2952 = vmatprep.mubr.bf16.mxu0 %v1491
        %2953 = vmatmul.mubr.bf16.gmra.mxu0 %v1490
        %v2954 = vpop.f32.mrf.mxu0
        %v2955 = vadd.f32 %v2794, %v2954
        %v2956 = vpop.f32.mrf.mxu0
        %v2957 = vpop.f32.mrf.mxu0
        %v2958 = vadd.f32 %v2797, %v2957
        %v2959 = vpop.f32.mrf.mxu0
        %2960 = vmatprep.mubr.bf16.mxu0 %v1501
        %2961 = vmatmul.mubr.bf16.gmra.mxu0 %v1500
        %v2962 = vpop.f32.mrf.mxu0
        %v2963 = vadd.f32 %v2802, %v2962
        %v2964 = vpop.f32.mrf.mxu0
        %v2965 = vpop.f32.mrf.mxu0
        %v2966 = vadd.f32 %v2805, %v2965
        %v2967 = vpop.f32.mrf.mxu0
        %2968 = vmatprep.mubr.bf16.mxu0 %v1511
        %2969 = vmatmul.mubr.bf16.gmra.mxu0 %v1510
        %v2970 = vpop.f32.mrf.mxu0
        %v2971 = vadd.f32 %v2810, %v2970
        %v2972 = vpop.f32.mrf.mxu0
        %v2973 = vpop.f32.mrf.mxu0
        %v2974 = vadd.f32 %v2813, %v2973
        %v2975 = vpop.f32.mrf.mxu0
        %2976 = vmatprep.mubr.bf16.mxu0 %v1521
        %2977 = vmatmul.mubr.bf16.gmra.mxu0 %v1520
        %v2978 = vpop.f32.mrf.mxu0
        %v2979 = vadd.f32 %v2818, %v2978
        %v2980 = vpop.f32.mrf.mxu0
        %v2981 = vpop.f32.mrf.mxu0
        %v2982 = vadd.f32 %v2821, %v2981
        %v2983 = vpop.f32.mrf.mxu0
        %2984 = vmatprep.mubr.bf16.mxu0 %v1531
        %2985 = vmatmul.mubr.bf16.gmra.mxu0 %v1530
        %v2986 = vpop.f32.mrf.mxu0
        %v2987 = vadd.f32 %v2826, %v2986
        %v2988 = vpop.f32.mrf.mxu0
        %v2989 = vpop.f32.mrf.mxu0
        %v2990 = vadd.f32 %v2829, %v2989
        %v2991 = vpop.f32.mrf.mxu0
        %2992 = vmatprep.mubr.bf16.mxu0 %v1541
        %2993 = vmatmul.mubr.bf16.gmra.mxu0 %v1540
        %v2994 = vpop.f32.mrf.mxu0
        %v2995 = vadd.f32 %v2834, %v2994
        %v2996 = vpop.f32.mrf.mxu0
        %v2997 = vpop.f32.mrf.mxu0
        %v2998 = vadd.f32 %v2837, %v2997
        %v2999 = vpop.f32.mrf.mxu0
        %3000 = vmatprep.mubr.bf16.mxu0 %v1551
        %3001 = vmatmul.mubr.bf16.gmra.mxu0 %v1550
        %v3002 = vpop.f32.mrf.mxu0
        %v3003 = vadd.f32 %v2842, %v3002
        %v3004 = vpop.f32.mrf.mxu0
        %v3005 = vpop.f32.mrf.mxu0
        %v3006 = vadd.f32 %v2845, %v3005
        %v3007 = vpop.f32.mrf.mxu0
        %3008 = vmatprep.mubr.bf16.mxu0 %v1561
        %3009 = vmatmul.mubr.bf16.gmra.mxu0 %v1560
        %v3010 = vpop.f32.mrf.mxu0
        %v3011 = vadd.f32 %v2850, %v3010
        %v3012 = vpop.f32.mrf.mxu0
        %v3013 = vpop.f32.mrf.mxu0
        %v3014 = vadd.f32 %v2853, %v3013
        %v3015 = vpop.f32.mrf.mxu0
        %3016 = vmatprep.mubr.bf16.mxu0 %v1571
        %3017 = vmatmul.mubr.bf16.gmra.mxu0 %v1570
        %v3018 = vpop.f32.mrf.mxu0
        %v3019 = vadd.f32 %v2858, %v3018
        %v3020 = vpop.f32.mrf.mxu0
        %v3021 = vpop.f32.mrf.mxu0
        %v3022 = vadd.f32 %v2861, %v3021
        %v3023 = vpop.f32.mrf.mxu0
        %3024 = vmatprep.mubr.bf16.mxu0 %v1581
        %3025 = vmatmul.mubr.bf16.gmra.mxu0 %v1580
        %v3026 = vpop.f32.mrf.mxu0
        %v3027 = vadd.f32 %v2866, %v3026
        %v3028 = vpop.f32.mrf.mxu0
        %v3029 = vpop.f32.mrf.mxu0
        %v3030 = vadd.f32 %v2869, %v3029
        %v3031 = vpop.f32.mrf.mxu0
        %3032 = vmatprep.mubr.bf16.mxu0 %v1591
        %3033 = vmatmul.mubr.bf16.gmra.mxu0 %v1590
        %v3034 = vpop.f32.mrf.mxu0
        %v3035 = vadd.f32 %v2874, %v3034
        %v3036 = vpop.f32.mrf.mxu0
        %v3037 = vpop.f32.mrf.mxu0
        %v3038 = vadd.f32 %v2877, %v3037
        %v3039 = vpop.f32.mrf.mxu0
        %3040 = vmatprep.mubr.bf16.mxu0 %v1601
        %3041 = vmatmul.mubr.bf16.gmra.mxu0 %v1600
        %v3042 = vpop.f32.mrf.mxu0
        %v3043 = vadd.f32 %v2882, %v3042
        %v3044 = vpop.f32.mrf.mxu0
        %v3045 = vpop.f32.mrf.mxu0
        %v3046 = vadd.f32 %v2885, %v3045
        %v3047 = vpop.f32.mrf.mxu0
        %3048 = vmatprep.mubr.bf16.mxu0 %v1611
        %3049 = vmatmul.mubr.bf16.gmra.mxu0 %v1610
        %v3050 = vpop.f32.mrf.mxu0
        %v3051 = vadd.f32 %v2890, %v3050
        %v3052 = vpop.f32.mrf.mxu0
        %v3053 = vpop.f32.mrf.mxu0
        %v3054 = vadd.f32 %v2893, %v3053
        %v3055 = vpop.f32.mrf.mxu0
        %3056 = vdwg.mxu0
        %v3057 = vadd.f32 %v616, %v2931
        %v3058 = vadd.f32 %v617, %v2934
        %v3059 = vadd.f32 %v618, %v2939
        %v3060 = vadd.f32 %v619, %v2942
        %v3061 = vadd.f32 %v620, %v2947
        %v3062 = vadd.f32 %v621, %v2950
        %v3063 = vadd.f32 %v622, %v2955
        %v3064 = vadd.f32 %v623, %v2958
        %v3065 = vadd.f32 %v624, %v2963
        %v3066 = vadd.f32 %v625, %v2966
        %v3067 = vadd.f32 %v626, %v2971
        %v3068 = vadd.f32 %v627, %v2974
        %v3069 = vadd.f32 %v628, %v2979
        %v3070 = vadd.f32 %v629, %v2982
        %v3071 = vadd.f32 %v630, %v2987
        %v3072 = vadd.f32 %v631, %v2990
        %v3073 = vadd.f32 %v632, %v2995
        %v3074 = vadd.f32 %v633, %v2998
        %v3075 = vadd.f32 %v634, %v3003
        %v3076 = vadd.f32 %v635, %v3006
        %v3077 = vadd.f32 %v636, %v3011
        %v3078 = vadd.f32 %v637, %v3014
        %v3079 = vadd.f32 %v638, %v3019
        %v3080 = vadd.f32 %v639, %v3022
        %v3081 = vadd.f32 %v640, %v3027
        %v3082 = vadd.f32 %v641, %v3030
        %v3083 = vadd.f32 %v642, %v3035
        %v3084 = vadd.f32 %v643, %v3038
        %v3085 = vadd.f32 %v644, %v3043
        %v3086 = vadd.f32 %v645, %v3046
        %v3087 = vadd.f32 %v646, %v3051
        %v3088 = vadd.f32 %v647, %v3054
        %3089 = vst [vmem:[#allocation2] sm:$0xff] %v3057
        %3090 = vst [vmem:[#allocation2 + $0x8] sm:$0xff] %v3058
        %3091 = vst [vmem:[#allocation2 + $0x10] sm:$0xff] %v3059
        %3092 = vst [vmem:[#allocation2 + $0x18] sm:$0xff] %v3060
        %3093 = vst [vmem:[#allocation2 + $0x20] sm:$0xff] %v3061
        %3094 = vst [vmem:[#allocation2 + $0x28] sm:$0xff] %v3062
        %3095 = vst [vmem:[#allocation2 + $0x30] sm:$0xff] %v3063
        %3096 = vst [vmem:[#allocation2 + $0x38] sm:$0xff] %v3064
        %3097 = vst [vmem:[#allocation2 + $0x40] sm:$0xff] %v3065
        %3098 = vst [vmem:[#allocation2 + $0x48] sm:$0xff] %v3066
        %3099 = vst [vmem:[#allocation2 + $0x50] sm:$0xff] %v3067
        %3100 = vst [vmem:[#allocation2 + $0x58] sm:$0xff] %v3068
        %3101 = vst [vmem:[#allocation2 + $0x60] sm:$0xff] %v3069
        %3102 = vst [vmem:[#allocation2 + $0x68] sm:$0xff] %v3070
        %3103 = vst [vmem:[#allocation2 + $0x70] sm:$0xff] %v3071
        %3104 = vst [vmem:[#allocation2 + $0x78] sm:$0xff] %v3072
        %3105 = vst [vmem:[#allocation2 + $0x80] sm:$0xff] %v3073
        %3106 = vst [vmem:[#allocation2 + $0x88] sm:$0xff] %v3074
        %3107 = vst [vmem:[#allocation2 + $0x90] sm:$0xff] %v3075
        %3108 = vst [vmem:[#allocation2 + $0x98] sm:$0xff] %v3076
        %3109 = vst [vmem:[#allocation2 + $0xa0] sm:$0xff] %v3077
        %3110 = vst [vmem:[#allocation2 + $0xa8] sm:$0xff] %v3078
        %3111 = vst [vmem:[#allocation2 + $0xb0] sm:$0xff] %v3079
        %3112 = vst [vmem:[#allocation2 + $0xb8] sm:$0xff] %v3080
        %3113 = vst [vmem:[#allocation2 + $0xc0] sm:$0xff] %v3081
        %3114 = vst [vmem:[#allocation2 + $0xc8] sm:$0xff] %v3082
        %3115 = vst [vmem:[#allocation2 + $0xd0] sm:$0xff] %v3083
        %3116 = vst [vmem:[#allocation2 + $0xd8] sm:$0xff] %v3084
        %3117 = vst [vmem:[#allocation2 + $0xe0] sm:$0xff] %v3085
        %3118 = vst [vmem:[#allocation2 + $0xe8] sm:$0xff] %v3086
        %3119 = vst [vmem:[#allocation2 + $0xf0] sm:$0xff] %v3087
        %3120 = vst [vmem:[#allocation2 + $0xf8] sm:$0xff] %v3088
        %p3121 = scmp.eq.s32.totalorder %s20, 1
        // Predicated region
        $region64: #{gcn_forward.2} parent=54 // pred_check
          %p3122 = pneg %p3121
        $region65: #{gcn_forward.2} parent=54 // pred_check_branch
          %3124 = sbr.rel (%p3122) target = $region67
        $region66: #{gcn_forward.2} parent=54 // pred_region
          %v3125 = vld [vmem:[%s570] sm:$0xff]
          %v3126 = vld [vmem:[%s570 + $0x8] sm:$0xff]
          %v3127 = vld [vmem:[%s570 + $0x10] sm:$0xff]
          %v3128 = vld [vmem:[%s570 + $0x18] sm:$0xff]
          %v3129 = vld [vmem:[%s570 + $0x20] sm:$0xff]
          %v3130 = vld [vmem:[%s570 + $0x28] sm:$0xff]
          %v3131 = vld [vmem:[%s570 + $0x30] sm:$0xff]
          %v3132 = vld [vmem:[%s570 + $0x38] sm:$0xff]
          %v3133 = vld [vmem:[%s570 + $0x40] sm:$0xff]
          %v3134 = vld [vmem:[%s570 + $0x48] sm:$0xff]
          %v3135 = vld [vmem:[%s570 + $0x50] sm:$0xff]
          %v3136 = vld [vmem:[%s570 + $0x58] sm:$0xff]
          %v3137 = vld [vmem:[%s570 + $0x60] sm:$0xff]
          %v3138 = vld [vmem:[%s570 + $0x68] sm:$0xff]
          %v3139 = vld [vmem:[%s570 + $0x70] sm:$0xff]
          %v3140 = vld [vmem:[%s570 + $0x78] sm:$0xff]
          %v3141 = vld [vmem:[%s570 + $0x80] sm:$0xff]
          %v3142 = vld [vmem:[%s570 + $0x88] sm:$0xff]
          %v3143 = vld [vmem:[%s570 + $0x90] sm:$0xff]
          %v3144 = vld [vmem:[%s570 + $0x98] sm:$0xff]
          %v3145 = vld [vmem:[%s570 + $0xa0] sm:$0xff]
          %v3146 = vld [vmem:[%s570 + $0xa8] sm:$0xff]
          %v3147 = vld [vmem:[%s570 + $0xb0] sm:$0xff]
          %v3148 = vld [vmem:[%s570 + $0xb8] sm:$0xff]
          %v3149 = vld [vmem:[%s570 + $0xc0] sm:$0xff]
          %v3150 = vld [vmem:[%s570 + $0xc8] sm:$0xff]
          %v3151 = vld [vmem:[%s570 + $0xd0] sm:$0xff]
          %v3152 = vld [vmem:[%s570 + $0xd8] sm:$0xff]
          %v3153 = vld [vmem:[%s570 + $0xe0] sm:$0xff]
          %v3154 = vld [vmem:[%s570 + $0xe8] sm:$0xff]
          %v3155 = vld [vmem:[%s570 + $0xf0] sm:$0xff]
          %v3156 = vld [vmem:[%s570 + $0xf8] sm:$0xff]
          %v3157 = vld [vmem:[#allocation2] sm:$0xff]
          %v3158 = vld [vmem:[#allocation2 + $0x8] sm:$0xff]
          %v3159 = vld [vmem:[#allocation2 + $0x10] sm:$0xff]
          %v3160 = vld [vmem:[#allocation2 + $0x18] sm:$0xff]
          %v3161 = vld [vmem:[#allocation2 + $0x20] sm:$0xff]
          %v3162 = vld [vmem:[#allocation2 + $0x28] sm:$0xff]
          %v3163 = vld [vmem:[#allocation2 + $0x30] sm:$0xff]
          %v3164 = vld [vmem:[#allocation2 + $0x38] sm:$0xff]
          %v3165 = vld [vmem:[#allocation2 + $0x40] sm:$0xff]
          %v3166 = vld [vmem:[#allocation2 + $0x48] sm:$0xff]
          %v3167 = vld [vmem:[#allocation2 + $0x50] sm:$0xff]
          %v3168 = vld [vmem:[#allocation2 + $0x58] sm:$0xff]
          %v3169 = vld [vmem:[#allocation2 + $0x60] sm:$0xff]
          %v3170 = vld [vmem:[#allocation2 + $0x68] sm:$0xff]
          %v3171 = vld [vmem:[#allocation2 + $0x70] sm:$0xff]
          %v3172 = vld [vmem:[#allocation2 + $0x78] sm:$0xff]
          %v3173 = vld [vmem:[#allocation2 + $0x80] sm:$0xff]
          %v3174 = vld [vmem:[#allocation2 + $0x88] sm:$0xff]
          %v3175 = vld [vmem:[#allocation2 + $0x90] sm:$0xff]
          %v3176 = vld [vmem:[#allocation2 + $0x98] sm:$0xff]
          %v3177 = vld [vmem:[#allocation2 + $0xa0] sm:$0xff]
          %v3178 = vld [vmem:[#allocation2 + $0xa8] sm:$0xff]
          %v3179 = vld [vmem:[#allocation2 + $0xb0] sm:$0xff]
          %v3180 = vld [vmem:[#allocation2 + $0xb8] sm:$0xff]
          %v3181 = vld [vmem:[#allocation2 + $0xc0] sm:$0xff]
          %v3182 = vld [vmem:[#allocation2 + $0xc8] sm:$0xff]
          %v3183 = vld [vmem:[#allocation2 + $0xd0] sm:$0xff]
          %v3184 = vld [vmem:[#allocation2 + $0xd8] sm:$0xff]
          %v3185 = vld [vmem:[#allocation2 + $0xe0] sm:$0xff]
          %v3186 = vld [vmem:[#allocation2 + $0xe8] sm:$0xff]
          %v3187 = vld [vmem:[#allocation2 + $0xf0] sm:$0xff]
          %v3188 = vld [vmem:[#allocation2 + $0xf8] sm:$0xff]
          %3190 = vset.pattern.permute.xlu0 0
          %3191 = vperm.xlu0 %3190, %v3125
          %v3192 = vpop.permute.xlu0 %3191
          %3195 = vset.pattern.permute.xlu0 0
          %3196 = vperm.xlu0 %3195, %v3126
          %v3197 = vpop.permute.xlu0 %3196
          %3200 = vset.pattern.permute.xlu0 0
          %3201 = vperm.xlu0 %3200, %v3127
          %v3202 = vpop.permute.xlu0 %3201
          %3205 = vset.pattern.permute.xlu0 0
          %3206 = vperm.xlu0 %3205, %v3128
          %v3207 = vpop.permute.xlu0 %3206
          %3210 = vset.pattern.permute.xlu0 0
          %3211 = vperm.xlu0 %3210, %v3129
          %v3212 = vpop.permute.xlu0 %3211
          %3215 = vset.pattern.permute.xlu0 0
          %3216 = vperm.xlu0 %3215, %v3130
          %v3217 = vpop.permute.xlu0 %3216
          %3220 = vset.pattern.permute.xlu0 0
          %3221 = vperm.xlu0 %3220, %v3131
          %v3222 = vpop.permute.xlu0 %3221
          %3225 = vset.pattern.permute.xlu0 0
          %3226 = vperm.xlu0 %3225, %v3132
          %v3227 = vpop.permute.xlu0 %3226
          %3230 = vset.pattern.permute.xlu0 0
          %3231 = vperm.xlu0 %3230, %v3133
          %v3232 = vpop.permute.xlu0 %3231
          %3235 = vset.pattern.permute.xlu0 0
          %3236 = vperm.xlu0 %3235, %v3134
          %v3237 = vpop.permute.xlu0 %3236
          %3240 = vset.pattern.permute.xlu0 0
          %3241 = vperm.xlu0 %3240, %v3135
          %v3242 = vpop.permute.xlu0 %3241
          %3245 = vset.pattern.permute.xlu0 0
          %3246 = vperm.xlu0 %3245, %v3136
          %v3247 = vpop.permute.xlu0 %3246
          %3250 = vset.pattern.permute.xlu0 0
          %3251 = vperm.xlu0 %3250, %v3137
          %v3252 = vpop.permute.xlu0 %3251
          %3255 = vset.pattern.permute.xlu0 0
          %3256 = vperm.xlu0 %3255, %v3138
          %v3257 = vpop.permute.xlu0 %3256
          %3260 = vset.pattern.permute.xlu0 0
          %3261 = vperm.xlu0 %3260, %v3139
          %v3262 = vpop.permute.xlu0 %3261
          %3265 = vset.pattern.permute.xlu0 0
          %3266 = vperm.xlu0 %3265, %v3140
          %v3267 = vpop.permute.xlu0 %3266
          %3270 = vset.pattern.permute.xlu0 0
          %3271 = vperm.xlu0 %3270, %v3141
          %v3272 = vpop.permute.xlu0 %3271
          %3275 = vset.pattern.permute.xlu0 0
          %3276 = vperm.xlu0 %3275, %v3142
          %v3277 = vpop.permute.xlu0 %3276
          %3280 = vset.pattern.permute.xlu0 0
          %3281 = vperm.xlu0 %3280, %v3143
          %v3282 = vpop.permute.xlu0 %3281
          %3285 = vset.pattern.permute.xlu0 0
          %3286 = vperm.xlu0 %3285, %v3144
          %v3287 = vpop.permute.xlu0 %3286
          %3290 = vset.pattern.permute.xlu0 0
          %3291 = vperm.xlu0 %3290, %v3145
          %v3292 = vpop.permute.xlu0 %3291
          %3295 = vset.pattern.permute.xlu0 0
          %3296 = vperm.xlu0 %3295, %v3146
          %v3297 = vpop.permute.xlu0 %3296
          %3300 = vset.pattern.permute.xlu0 0
          %3301 = vperm.xlu0 %3300, %v3147
          %v3302 = vpop.permute.xlu0 %3301
          %3305 = vset.pattern.permute.xlu0 0
          %3306 = vperm.xlu0 %3305, %v3148
          %v3307 = vpop.permute.xlu0 %3306
          %3310 = vset.pattern.permute.xlu0 0
          %3311 = vperm.xlu0 %3310, %v3149
          %v3312 = vpop.permute.xlu0 %3311
          %3315 = vset.pattern.permute.xlu0 0
          %3316 = vperm.xlu0 %3315, %v3150
          %v3317 = vpop.permute.xlu0 %3316
          %3320 = vset.pattern.permute.xlu0 0
          %3321 = vperm.xlu0 %3320, %v3151
          %v3322 = vpop.permute.xlu0 %3321
          %3325 = vset.pattern.permute.xlu0 0
          %3326 = vperm.xlu0 %3325, %v3152
          %v3327 = vpop.permute.xlu0 %3326
          %3330 = vset.pattern.permute.xlu0 0
          %3331 = vperm.xlu0 %3330, %v3153
          %v3332 = vpop.permute.xlu0 %3331
          %3335 = vset.pattern.permute.xlu0 0
          %3336 = vperm.xlu0 %3335, %v3154
          %v3337 = vpop.permute.xlu0 %3336
          %3340 = vset.pattern.permute.xlu0 0
          %3341 = vperm.xlu0 %3340, %v3155
          %v3342 = vpop.permute.xlu0 %3341
          %3345 = vset.pattern.permute.xlu0 0
          %3346 = vperm.xlu0 %3345, %v3156
          %v3347 = vpop.permute.xlu0 %3346
          %v3349 = vmul.f32 %v3192, %v3157
          %v3350 = vmul.f32 %v3197, %v3158
          %v3351 = vmul.f32 %v3202, %v3159
          %v3352 = vmul.f32 %v3207, %v3160
          %v3353 = vmul.f32 %v3212, %v3161
          %v3354 = vmul.f32 %v3217, %v3162
          %v3355 = vmul.f32 %v3222, %v3163
          %v3356 = vmul.f32 %v3227, %v3164
          %v3357 = vmul.f32 %v3232, %v3165
          %v3358 = vmul.f32 %v3237, %v3166
          %v3359 = vmul.f32 %v3242, %v3167
          %v3360 = vmul.f32 %v3247, %v3168
          %v3361 = vmul.f32 %v3252, %v3169
          %v3362 = vmul.f32 %v3257, %v3170
          %v3363 = vmul.f32 %v3262, %v3171
          %v3364 = vmul.f32 %v3267, %v3172
          %v3365 = vmul.f32 %v3272, %v3173
          %v3366 = vmul.f32 %v3277, %v3174
          %v3367 = vmul.f32 %v3282, %v3175
          %v3368 = vmul.f32 %v3287, %v3176
          %v3369 = vmul.f32 %v3292, %v3177
          %v3370 = vmul.f32 %v3297, %v3178
          %v3371 = vmul.f32 %v3302, %v3179
          %v3372 = vmul.f32 %v3307, %v3180
          %v3373 = vmul.f32 %v3312, %v3181
          %v3374 = vmul.f32 %v3317, %v3182
          %v3375 = vmul.f32 %v3322, %v3183
          %v3376 = vmul.f32 %v3327, %v3184
          %v3377 = vmul.f32 %v3332, %v3185
          %v3378 = vmul.f32 %v3337, %v3186
          %v3379 = vmul.f32 %v3342, %v3187
          %v3380 = vmul.f32 %v3347, %v3188
          %v3381 = vld [vmem:[%s3] sm:$0x1]
          %v3383 = vlaneseq
          %v3384 = vshrl.u32 %v3383, 7
          %v3385 = vsub.s32 0, %v3384
          %v3386 = vrot.slane %v3381, %v3385
          %v3388 = vadd.f32 %v3349, %v3386
          %v3389 = vadd.f32 %v3350, %v3386
          %v3390 = vadd.f32 %v3351, %v3386
          %v3391 = vadd.f32 %v3352, %v3386
          %v3392 = vadd.f32 %v3353, %v3386
          %v3393 = vadd.f32 %v3354, %v3386
          %v3394 = vadd.f32 %v3355, %v3386
          %v3395 = vadd.f32 %v3356, %v3386
          %v3396 = vadd.f32 %v3357, %v3386
          %v3397 = vadd.f32 %v3358, %v3386
          %v3398 = vadd.f32 %v3359, %v3386
          %v3399 = vadd.f32 %v3360, %v3386
          %v3400 = vadd.f32 %v3361, %v3386
          %v3401 = vadd.f32 %v3362, %v3386
          %v3402 = vadd.f32 %v3363, %v3386
          %v3403 = vadd.f32 %v3364, %v3386
          %v3404 = vadd.f32 %v3365, %v3386
          %v3405 = vadd.f32 %v3366, %v3386
          %v3406 = vadd.f32 %v3367, %v3386
          %v3407 = vadd.f32 %v3368, %v3386
          %v3408 = vadd.f32 %v3369, %v3386
          %v3409 = vadd.f32 %v3370, %v3386
          %v3410 = vadd.f32 %v3371, %v3386
          %v3411 = vadd.f32 %v3372, %v3386
          %v3412 = vadd.f32 %v3373, %v3386
          %v3413 = vadd.f32 %v3374, %v3386
          %v3414 = vadd.f32 %v3375, %v3386
          %v3415 = vadd.f32 %v3376, %v3386
          %v3416 = vadd.f32 %v3377, %v3386
          %v3417 = vadd.f32 %v3378, %v3386
          %v3418 = vadd.f32 %v3379, %v3386
          %v3419 = vadd.f32 %v3380, %v3386
          %v3420 = vmax.f32 %v3388, 0.0
          %v3421 = vmax.f32 %v3389, 0.0
          %v3422 = vmax.f32 %v3390, 0.0
          %v3423 = vmax.f32 %v3391, 0.0
          %v3424 = vmax.f32 %v3392, 0.0
          %v3425 = vmax.f32 %v3393, 0.0
          %v3426 = vmax.f32 %v3394, 0.0
          %v3427 = vmax.f32 %v3395, 0.0
          %v3428 = vmax.f32 %v3396, 0.0
          %v3429 = vmax.f32 %v3397, 0.0
          %v3430 = vmax.f32 %v3398, 0.0
          %v3431 = vmax.f32 %v3399, 0.0
          %v3432 = vmax.f32 %v3400, 0.0
          %v3433 = vmax.f32 %v3401, 0.0
          %v3434 = vmax.f32 %v3402, 0.0
          %v3435 = vmax.f32 %v3403, 0.0
          %v3436 = vmax.f32 %v3404, 0.0
          %v3437 = vmax.f32 %v3405, 0.0
          %v3438 = vmax.f32 %v3406, 0.0
          %v3439 = vmax.f32 %v3407, 0.0
          %v3440 = vmax.f32 %v3408, 0.0
          %v3441 = vmax.f32 %v3409, 0.0
          %v3442 = vmax.f32 %v3410, 0.0
          %v3443 = vmax.f32 %v3411, 0.0
          %v3444 = vmax.f32 %v3412, 0.0
          %v3445 = vmax.f32 %v3413, 0.0
          %v3446 = vmax.f32 %v3414, 0.0
          %v3447 = vmax.f32 %v3415, 0.0
          %v3448 = vmax.f32 %v3416, 0.0
          %v3449 = vmax.f32 %v3417, 0.0
          %v3450 = vmax.f32 %v3418, 0.0
          %v3451 = vmax.f32 %v3419, 0.0
          %3452 = vst [vmem:[%s576] sm:$0xff] %v3420
          %3453 = vst [vmem:[%s576 + $0x8] sm:$0xff] %v3421
          %3454 = vst [vmem:[%s576 + $0x10] sm:$0xff] %v3422
          %3455 = vst [vmem:[%s576 + $0x18] sm:$0xff] %v3423
          %3456 = vst [vmem:[%s576 + $0x20] sm:$0xff] %v3424
          %3457 = vst [vmem:[%s576 + $0x28] sm:$0xff] %v3425
          %3458 = vst [vmem:[%s576 + $0x30] sm:$0xff] %v3426
          %3459 = vst [vmem:[%s576 + $0x38] sm:$0xff] %v3427
          %3460 = vst [vmem:[%s576 + $0x40] sm:$0xff] %v3428
          %3461 = vst [vmem:[%s576 + $0x48] sm:$0xff] %v3429
          %3462 = vst [vmem:[%s576 + $0x50] sm:$0xff] %v3430
          %3463 = vst [vmem:[%s576 + $0x58] sm:$0xff] %v3431
          %3464 = vst [vmem:[%s576 + $0x60] sm:$0xff] %v3432
          %3465 = vst [vmem:[%s576 + $0x68] sm:$0xff] %v3433
          %3466 = vst [vmem:[%s576 + $0x70] sm:$0xff] %v3434
          %3467 = vst [vmem:[%s576 + $0x78] sm:$0xff] %v3435
          %3468 = vst [vmem:[%s576 + $0x80] sm:$0xff] %v3436
          %3469 = vst [vmem:[%s576 + $0x88] sm:$0xff] %v3437
          %3470 = vst [vmem:[%s576 + $0x90] sm:$0xff] %v3438
          %3471 = vst [vmem:[%s576 + $0x98] sm:$0xff] %v3439
          %3472 = vst [vmem:[%s576 + $0xa0] sm:$0xff] %v3440
          %3473 = vst [vmem:[%s576 + $0xa8] sm:$0xff] %v3441
          %3474 = vst [vmem:[%s576 + $0xb0] sm:$0xff] %v3442
          %3475 = vst [vmem:[%s576 + $0xb8] sm:$0xff] %v3443
          %3476 = vst [vmem:[%s576 + $0xc0] sm:$0xff] %v3444
          %3477 = vst [vmem:[%s576 + $0xc8] sm:$0xff] %v3445
          %3478 = vst [vmem:[%s576 + $0xd0] sm:$0xff] %v3446
          %3479 = vst [vmem:[%s576 + $0xd8] sm:$0xff] %v3447
          %3480 = vst [vmem:[%s576 + $0xe0] sm:$0xff] %v3448
          %3481 = vst [vmem:[%s576 + $0xe8] sm:$0xff] %v3449
          %3482 = vst [vmem:[%s576 + $0xf0] sm:$0xff] %v3450
          %3483 = vst [vmem:[%s576 + $0xf8] sm:$0xff] %v3451
        $region67: #{gcn_forward.2} parent=54 // pred_fallthru
          _
        %s3484 = smul.u32 32, %s19
        %p3485 = scmp.lt.s32.totalorder %s3484, 319
        %s3486 = scalar_select %p3485, %s3484, 319
        %s3487 = smul.addr %s3486, 8
        %s3488 = scalar_lea.vmem %s4, %s3487
        // Predicated region
        $region68: #{gcn_forward.2} parent=54 // pred_check
          %p3489 = pneg %p141
        $region69: #{gcn_forward.2} parent=54 // pred_check_branch
          %3491 = sbr.rel (%p3489) target = $region71
        $region70: #{gcn_forward.2} parent=54 // pred_region
          %s3492 = smul.u32 32, %s19
        $region71: #{gcn_forward.2} parent=54 // pred_fallthru
          _
      $region55: #{gcn_forward.2} parent=5 // pred_fallthru
        _
      %p3493 = scmp.le.s32.totalorder 2, %s10
      // Predicated region
      $region72: #{gcn_forward.2} parent=5 // pred_check
        %p3494 = pneg %p3493
      $region73: #{gcn_forward.2} parent=5 // pred_check_branch
        %3496 = sbr.rel (%p3494) target = $region75
      $region74: #{gcn_forward.2} parent=5 // pred_region
        %s3497 = ssub.s32 %s10, 2
        // Predicated region
        $region76: #{gcn_forward.2} parent=74 // pred_check
          %p3498 = pneg %p147
        $region77: #{gcn_forward.2} parent=74 // pred_check_branch
          %3500 = sbr.rel (%p3498) target = $region79
        $region78: #{gcn_forward.2} parent=74 // pred_region
          %s3501 = smul.u32 32, %s21
          %p3502 = scmp.lt.s32.totalorder %s3501, 319
          %s3503 = scalar_select %p3502, %s3501, 319
          %s3504 = smul.addr %s3503, 8
          %s3505 = scalar_lea.vmem %s4, %s3504
        $region79: #{gcn_forward.2} parent=74 // pred_fallthru
          _
      $region75: #{gcn_forward.2} parent=5 // pred_fallthru
        _
    $region6: #{gcn_forward.2} parent=1 // loop_footer
      %s14 = sadd.s32 1, %s10
    $region7: #{gcn_forward.2} parent=1 // loop_footer_branch
      %9 = sbr.rel target = $region3
    $region8: #{gcn_forward.2} parent=1 // loop_exit
      _

// kernel: gcn_forward.3
$region0: #{gcn_forward.3}
  #allocation0 [shape = 'u32[]', space=smem, size = 0x4, offset = 0x4, fixed_abs, tag = 'smem constant byte address 0x4 - core index']
  #allocation1 [shape = 'u32[144,128]{1,0:T(1,128)}', space=vmem, size = 0x12000, scoped, tag = 'internal scratch']
  #allocation2 [shape = 'f32[256,128]{1,0:T(8,128)}', space=vmem, size = 0x20000, scoped, tag = 'scratch operand']
  %s0 = inlined_call_operand.vmem [shape: bf16[2560,2560], index: 0, kind: input, shape index: {}]
  %s1 = inlined_call_operand.vmem [shape: bf16[2560,128], index: 1, kind: input, shape index: {}]
  %s2 = inlined_call_operand.vmem [shape: f32[2560,1], index: 2, kind: input, shape index: {}]
  %s3 = inlined_call_operand.vmem [shape: f32[1,128], index: 3, kind: input, shape index: {}]
  %s4 = inlined_call_operand.vmem [shape: f32[2560,128], index: 4, kind: output, shape index: {}]
  %s5 = sld [smem:[#allocation0]]
  $region80: #{gcn_forward.3} parent=0
    _
  %s7 = ssub.s32 1, %s5
  %s8 = scalar_select 0, %s7, %s5
  $region1: #{gcn_forward.3} parent=0
    #allocation3 [shape = 'u8[1310720]{0}', space=vmem, size = 0x140000, scoped, tag = 'input window, operand 0']
    loop: start=0, step=1, limit=22
    $region2: #{gcn_forward.3} parent=1 // loop_pre_header
      _
    $region3: #{gcn_forward.3} parent=1 // loop_header
      %s10 = sphi 0, %s14
      %p11 = scmp.ge.s32.totalorder %s10, 22
      %s17 = sphi 0, %s29
      %s18 = sphi 0, %s25
      %s19 = sphi 0, %s17
      %s20 = sphi 0, %s18
      %s21 = sphi 0, %s19
      %s22 = sphi 0, %s20
      %s34 = sphi 0, %s36
      %s37 = sphi 0, %s34
      %s38 = sphi 0, %s37
      %s54 = sphi 0, %s38
      %s58 = sphi 0, %s58
      %s60 = sphi 0, %s58
      %s61 = sphi 0, %s60
      %s75 = sphi 0, %s61
      %s81 = sphi 0, %s83
      %s84 = sphi 0, %s81
      %s85 = sphi 0, %s84
      %s101 = sphi 0, %s85
      %s105 = sphi 0, %s105
      %s107 = sphi 0, %s105
      %s108 = sphi 0, %s107
      %s122 = sphi 0, %s108
      %s128 = sphi 0, %s130
      %s131 = sphi 0, %s128
      %s132 = sphi 0, %s131
      %s148 = sphi 0, %s132
    $region4: #{gcn_forward.3} parent=1 // loop_header_branch
      %13 = sbr.rel (%p11) target = $region8
    $region5: #{gcn_forward.3} parent=1 // loop_body
      %s15 = ssub.s32 %s10, 1
      %s16 = ssub.s32 %s10, 2
      %s23 = sadd.s32 1, %s18
      %p24 = scmp.ge.s32.totalorder %s23, 2
      %s25 = scalar_select %p24, 0, %s23
      %s26 = sadd.s32 1, %s17
      %s27 = scalar_select %p24, %s26, %s17
      %p28 = scmp.ge.s32.totalorder %s27, 10
      %s29 = scalar_select %p28, 0, %s27
      %s30 = ssub.s32 %s17, %s29
      %s31 = ssub.s32 %s18, %s25
      %s32 = sor.u32 %s30, %s31
      %p33 = scmp.eq.s32.totalorder %s32, 0
      %s35 = sadd.s32 %s34, 1
      %s36 = scalar_select %p33, %s34, %s35
      %p39 = pneg %p33
      %p40 = scmp.eq.s32.totalorder %s10, 19
      %p41 = por %p39, %p40
      %p42 = scmp.ne.s32.totalorder %s34, %s37
      %p43 = scmp.eq.s32.totalorder %s10, 0
      %p44 = por %p42, %p43
      %p45 = scmp.ne.s32.totalorder %s34, %s37
      %p46 = scmp.eq.s32.totalorder %s15, 19
      %p47 = por %p45, %p46
      %p48 = scmp.ne.s32.totalorder %s37, %s38
      %p49 = scmp.eq.s32.totalorder %s15, 0
      %p50 = por %p48, %p49
      %p51 = scmp.ne.s32.totalorder %s37, %s38
      %p52 = scmp.eq.s32.totalorder %s16, 19
      %p53 = por %p51, %p52
      %p55 = scmp.ne.s32.totalorder %s38, %s54
      %p56 = scmp.eq.s32.totalorder %s16, 0
      %p57 = por %p55, %p56
      %s59 = sadd.s32 %s58, 1
      %p62 = scmp.eq.s32.totalorder %s10, 19
      %p63 = scmp.ne.s32.totalorder %s58, %s60
      %p64 = scmp.eq.s32.totalorder %s10, 0
      %p65 = por %p63, %p64
      %p66 = scmp.ne.s32.totalorder %s58, %s60
      %p67 = scmp.eq.s32.totalorder %s15, 19
      %p68 = por %p66, %p67
      %p69 = scmp.ne.s32.totalorder %s60, %s61
      %p70 = scmp.eq.s32.totalorder %s15, 0
      %p71 = por %p69, %p70
      %p72 = scmp.ne.s32.totalorder %s60, %s61
      %p73 = scmp.eq.s32.totalorder %s16, 19
      %p74 = por %p72, %p73
      %p76 = scmp.ne.s32.totalorder %s61, %s75
      %p77 = scmp.eq.s32.totalorder %s16, 0
      %p78 = por %p76, %p77
      %s79 = ssub.s32 %s17, %s29
      %p80 = scmp.eq.s32.totalorder %s79, 0
      %s82 = sadd.s32 %s81, 1
      %s83 = scalar_select %p80, %s81, %s82
      %p86 = pneg %p80
      %p87 = scmp.eq.s32.totalorder %s10, 19
      %p88 = por %p86, %p87
      %p89 = scmp.ne.s32.totalorder %s81, %s84
      %p90 = scmp.eq.s32.totalorder %s10, 0
      %p91 = por %p89, %p90
      %p92 = scmp.ne.s32.totalorder %s81, %s84
      %p93 = scmp.eq.s32.totalorder %s15, 19
      %p94 = por %p92, %p93
      %p95 = scmp.ne.s32.totalorder %s84, %s85
      %p96 = scmp.eq.s32.totalorder %s15, 0
      %p97 = por %p95, %p96
      %p98 = scmp.ne.s32.totalorder %s84, %s85
      %p99 = scmp.eq.s32.totalorder %s16, 19
      %p100 = por %p98, %p99
      %p102 = scmp.ne.s32.totalorder %s85, %s101
      %p103 = scmp.eq.s32.totalorder %s16, 0
      %p104 = por %p102, %p103
      %s106 = sadd.s32 %s105, 1
      %p109 = scmp.eq.s32.totalorder %s10, 19
      %p110 = scmp.ne.s32.totalorder %s105, %s107
      %p111 = scmp.eq.s32.totalorder %s10, 0
      %p112 = por %p110, %p111
      %p113 = scmp.ne.s32.totalorder %s105, %s107
      %p114 = scmp.eq.s32.totalorder %s15, 19
      %p115 = por %p113, %p114
      %p116 = scmp.ne.s32.totalorder %s107, %s108
      %p117 = scmp.eq.s32.totalorder %s15, 0
      %p118 = por %p116, %p117
      %p119 = scmp.ne.s32.totalorder %s107, %s108
      %p120 = scmp.eq.s32.totalorder %s16, 19
      %p121 = por %p119, %p120
      %p123 = scmp.ne.s32.totalorder %s108, %s122
      %p124 = scmp.eq.s32.totalorder %s16, 0
      %p125 = por %p123, %p124
      %s126 = ssub.s32 %s17, %s29
      %p127 = scmp.eq.s32.totalorder %s126, 0
      %s129 = sadd.s32 %s128, 1
      %s130 = scalar_select %p127, %s128, %s129
      %p133 = pneg %p127
      %p134 = scmp.eq.s32.totalorder %s10, 19
      %p135 = por %p133, %p134
      %p136 = scmp.ne.s32.totalorder %s128, %s131
      %p137 = scmp.eq.s32.totalorder %s10, 0
      %p138 = por %p136, %p137
      %p139 = scmp.ne.s32.totalorder %s128, %s131
      %p140 = scmp.eq.s32.totalorder %s15, 19
      %p141 = por %p139, %p140
      %p142 = scmp.ne.s32.totalorder %s131, %s132
      %p143 = scmp.eq.s32.totalorder %s15, 0
      %p144 = por %p142, %p143
      %p145 = scmp.ne.s32.totalorder %s131, %s132
      %p146 = scmp.eq.s32.totalorder %s16, 19
      %p147 = por %p145, %p146
      %p149 = scmp.ne.s32.totalorder %s132, %s148
      %p150 = scmp.eq.s32.totalorder %s16, 0
      %p151 = por %p149, %p150
      %p152 = scmp.le.s32.totalorder 1, %s10
      %p153 = scmp.lt.s32.totalorder %s10, 21
      %p154 = pnand %p152, %p153
      %p155 = pneg %p154
      // Predicated region
      $region9: #{gcn_forward.3} parent=5 // pred_check
        _
      $region10: #{gcn_forward.3} parent=5 // pred_check_branch
        %157 = sbr.rel (%p154) target = $region12
      $region11: #{gcn_forward.3} parent=5 // pred_region
        %s158 = ssub.s32 %s10, 1
        // Predicated region
        $region13: #{gcn_forward.3} parent=11 // pred_check
          %p159 = pneg %p71
        $region14: #{gcn_forward.3} parent=11 // pred_check_branch
          %161 = sbr.rel (%p159) target = $region16
        $region15: #{gcn_forward.3} parent=11 // pred_region
          _
        $region16: #{gcn_forward.3} parent=11 // pred_fallthru
          _
        // Predicated region
        $region17: #{gcn_forward.3} parent=11 // pred_check
          %p162 = pneg %p118
        $region18: #{gcn_forward.3} parent=11 // pred_check_branch
          %164 = sbr.rel (%p162) target = $region20
        $region19: #{gcn_forward.3} parent=11 // pred_region
          _
        $region20: #{gcn_forward.3} parent=11 // pred_fallthru
          _
      $region12: #{gcn_forward.3} parent=5 // pred_fallthru
        _
      %p165 = scmp.lt.s32.totalorder %s10, 20
      // Predicated region
      $region21: #{gcn_forward.3} parent=5 // pred_check
        %p166 = pneg %p165
      $region22: #{gcn_forward.3} parent=5 // pred_check_branch
        %168 = sbr.rel (%p166) target = $region24
      $region23: #{gcn_forward.3} parent=5 // pred_region
        // Predicated region
        $region25: #{gcn_forward.3} parent=23 // pred_check
          %p169 = pneg %p44
        $region26: #{gcn_forward.3} parent=23 // pred_check_branch
          %171 = sbr.rel (%p169) target = $region28
        $region27: #{gcn_forward.3} parent=23 // pred_region
          %s172 = sand.u32 %s34, 1
          %s173 = sand.u32 %s34, 1
          %s174 = smul.addr %s173, 1280
          %s175 = scalar_lea.vmem [#allocation3], %s174
          %s176 = smul.u32 32, %s17
          %s177 = smul.u32 10, %s18
          %s178 = smul.addr %s176, 20
          %s179 = sadd.s32 %s177, %s178
          %s180 = smul.addr %s179, 4
          %s181 = scalar_lea.vmem %s0, %s180
          // Predicated region
          $region29: #{gcn_forward.3} parent=27 // pred_check
            _
          $region30: #{gcn_forward.3} parent=27 // pred_check_branch
            %183 = sbr.rel (0) target = $region32
          $region31: #{gcn_forward.3} parent=27 // pred_region
            // Predicated region
            $region33: #{gcn_forward.3} parent=31 // pred_check
              _
            $region34: #{gcn_forward.3} parent=31 // pred_check_branch
              %185 = sbr.rel (0) target = $region36
            $region35: #{gcn_forward.3} parent=31 // pred_region
              loop: start=0, step=1, limit=1
              $region37: #{gcn_forward.3} parent=35 // loop_pre_header
                _
              $region38: #{gcn_forward.3} parent=35 // loop_header
                %s187 = sphi 0, %s191
                %p188 = scmp.ge.s32.totalorder %s187, 1
                %s192 = sphi %s181, %s181
                %s193 = sphi %s175, %s175
              $region39: #{gcn_forward.3} parent=35 // loop_header_branch
                %190 = sbr.rel (%p188) target = $region43
              $region40: #{gcn_forward.3} parent=35 // loop_body
                %v194 = vld [vmem:[%s192] sm:$0xff]
                %195 = vst [vmem:[%s193] sm:$0xff] %v194
                %v196 = vld [vmem:[%s192 + $0x8] sm:$0xff]
                %197 = vst [vmem:[%s193 + $0x8] sm:$0xff] %v196
                %v198 = vld [vmem:[%s192 + $0x10] sm:$0xff]
                %199 = vst [vmem:[%s193 + $0x10] sm:$0xff] %v198
                %v200 = vld [vmem:[%s192 + $0x18] sm:$0xff]
                %201 = vst [vmem:[%s193 + $0x18] sm:$0xff] %v200
                %v202 = vld [vmem:[%s192 + $0x20] sm:$0xff]
                %203 = vst [vmem:[%s193 + $0x20] sm:$0xff] %v202
                %v204 = vld [vmem:[%s192 + $0x50] sm:$0xff]
                %205 = vst [vmem:[%s193 + $0x28] sm:$0xff] %v204
                %v206 = vld [vmem:[%s192 + $0x58] sm:$0xff]
                %207 = vst [vmem:[%s193 + $0x30] sm:$0xff] %v206
                %v208 = vld [vmem:[%s192 + $0x60] sm:$0xff]
                %209 = vst [vmem:[%s193 + $0x38] sm:$0xff] %v208
                %v210 = vld [vmem:[%s192 + $0x68] sm:$0xff]
                %211 = vst [vmem:[%s193 + $0x40] sm:$0xff] %v210
                %v212 = vld [vmem:[%s192 + $0x70] sm:$0xff]
                %213 = vst [vmem:[%s193 + $0x48] sm:$0xff] %v212
                %v214 = vld [vmem:[%s192 + $0xa0] sm:$0xff]
                %215 = vst [vmem:[%s193 + $0x50] sm:$0xff] %v214
                %v216 = vld [vmem:[%s192 + $0xa8] sm:$0xff]
                %217 = vst [vmem:[%s193 + $0x58] sm:$0xff] %v216
                %v218 = vld [vmem:[%s192 + $0xb0] sm:$0xff]
                %219 = vst [vmem:[%s193 + $0x60] sm:$0xff] %v218
                %v220 = vld [vmem:[%s192 + $0xb8] sm:$0xff]
                %221 = vst [vmem:[%s193 + $0x68] sm:$0xff] %v220
                %v222 = vld [vmem:[%s192 + $0xc0] sm:$0xff]
                %223 = vst [vmem:[%s193 + $0x70] sm:$0xff] %v222
                %v224 = vld [vmem:[%s192 + $0xf0] sm:$0xff]
                %225 = vst [vmem:[%s193 + $0x78] sm:$0xff] %v224
                %v226 = vld [vmem:[%s192 + $0xf8] sm:$0xff]
                %227 = vst [vmem:[%s193 + $0x80] sm:$0xff] %v226
                %v228 = vld [vmem:[%s192 + $0x100] sm:$0xff]
                %229 = vst [vmem:[%s193 + $0x88] sm:$0xff] %v228
                %v230 = vld [vmem:[%s192 + $0x108] sm:$0xff]
                %231 = vst [vmem:[%s193 + $0x90] sm:$0xff] %v230
                %v232 = vld [vmem:[%s192 + $0x110] sm:$0xff]
                %233 = vst [vmem:[%s193 + $0x98] sm:$0xff] %v232
                %v234 = vld [vmem:[%s192 + $0x140] sm:$0xff]
                %235 = vst [vmem:[%s193 + $0xa0] sm:$0xff] %v234
                %v236 = vld [vmem:[%s192 + $0x148] sm:$0xff]
                %237 = vst [vmem:[%s193 + $0xa8] sm:$0xff] %v236
                %v238 = vld [vmem:[%s192 + $0x150] sm:$0xff]
                %239 = vst [vmem:[%s193 + $0xb0] sm:$0xff] %v238
                %v240 = vld [vmem:[%s192 + $0x158] sm:$0xff]
                %241 = vst [vmem:[%s193 + $0xb8] sm:$0xff] %v240
                %v242 = vld [vmem:[%s192 + $0x160] sm:$0xff]
                %243 = vst [vmem:[%s193 + $0xc0] sm:$0xff] %v242
                %v244 = vld [vmem:[%s192 + $0x190] sm:$0xff]
                %245 = vst [vmem:[%s193 + $0xc8] sm:$0xff] %v244
                %v246 = vld [vmem:[%s192 + $0x198] sm:$0xff]
                %247 = vst [vmem:[%s193 + $0xd0] sm:$0xff] %v246
                %v248 = vld [vmem:[%s192 + $0x1a0] sm:$0xff]
                %249 = vst [vmem:[%s193 + $0xd8] sm:$0xff] %v248
                %v250 = vld [vmem:[%s192 + $0x1a8] sm:$0xff]
                %251 = vst [vmem:[%s193 + $0xe0] sm:$0xff] %v250
                %v252 = vld [vmem:[%s192 + $0x1b0] sm:$0xff]
                %253 = vst [vmem:[%s193 + $0xe8] sm:$0xff] %v252
                %v254 = vld [vmem:[%s192 + $0x1e0] sm:$0xff]
                %255 = vst [vmem:[%s193 + $0xf0] sm:$0xff] %v254
                %v256 = vld [vmem:[%s192 + $0x1e8] sm:$0xff]
                %257 = vst [vmem:[%s193 + $0xf8] sm:$0xff] %v256
                %v258 = vld [vmem:[%s192 + $0x1f0] sm:$0xff]
                %259 = vst [vmem:[%s193 + $0x100] sm:$0xff] %v258
                %v260 = vld [vmem:[%s192 + $0x1f8] sm:$0xff]
                %261 = vst [vmem:[%s193 + $0x108] sm:$0xff] %v260
                %v262 = vld [vmem:[%s192 + $0x200] sm:$0xff]
                %263 = vst [vmem:[%s193 + $0x110] sm:$0xff] %v262
                %v264 = vld [vmem:[%s192 + $0x230] sm:$0xff]
                %265 = vst [vmem:[%s193 + $0x118] sm:$0xff] %v264
                %v266 = vld [vmem:[%s192 + $0x238] sm:$0xff]
                %267 = vst [vmem:[%s193 + $0x120] sm:$0xff] %v266
                %v268 = vld [vmem:[%s192 + $0x240] sm:$0xff]
                %269 = vst [vmem:[%s193 + $0x128] sm:$0xff] %v268
                %v270 = vld [vmem:[%s192 + $0x248] sm:$0xff]
                %271 = vst [vmem:[%s193 + $0x130] sm:$0xff] %v270
                %v272 = vld [vmem:[%s192 + $0x250] sm:$0xff]
                %273 = vst [vmem:[%s193 + $0x138] sm:$0xff] %v272
                %v274 = vld [vmem:[%s192 + $0x280] sm:$0xff]
                %275 = vst [vmem:[%s193 + $0x140] sm:$0xff] %v274
                %v276 = vld [vmem:[%s192 + $0x288] sm:$0xff]
                %277 = vst [vmem:[%s193 + $0x148] sm:$0xff] %v276
                %v278 = vld [vmem:[%s192 + $0x290] sm:$0xff]
                %279 = vst [vmem:[%s193 + $0x150] sm:$0xff] %v278
                %v280 = vld [vmem:[%s192 + $0x298] sm:$0xff]
                %281 = vst [vmem:[%s193 + $0x158] sm:$0xff] %v280
                %v282 = vld [vmem:[%s192 + $0x2a0] sm:$0xff]
                %283 = vst [vmem:[%s193 + $0x160] sm:$0xff] %v282
                %v284 = vld [vmem:[%s192 + $0x2d0] sm:$0xff]
                %285 = vst [vmem:[%s193 + $0x168] sm:$0xff] %v284
                %v286 = vld [vmem:[%s192 + $0x2d8] sm:$0xff]
                %287 = vst [vmem:[%s193 + $0x170] sm:$0xff] %v286
                %v288 = vld [vmem:[%s192 + $0x2e0] sm:$0xff]
                %289 = vst [vmem:[%s193 + $0x178] sm:$0xff] %v288
                %v290 = vld [vmem:[%s192 + $0x2e8] sm:$0xff]
                %291 = vst [vmem:[%s193 + $0x180] sm:$0xff] %v290
                %v292 = vld [vmem:[%s192 + $0x2f0] sm:$0xff]
                %293 = vst [vmem:[%s193 + $0x188] sm:$0xff] %v292
                %v294 = vld [vmem:[%s192 + $0x320] sm:$0xff]
                %295 = vst [vmem:[%s193 + $0x190] sm:$0xff] %v294
                %v296 = vld [vmem:[%s192 + $0x328] sm:$0xff]
                %297 = vst [vmem:[%s193 + $0x198] sm:$0xff] %v296
                %v298 = vld [vmem:[%s192 + $0x330] sm:$0xff]
                %299 = vst [vmem:[%s193 + $0x1a0] sm:$0xff] %v298
                %v300 = vld [vmem:[%s192 + $0x338] sm:$0xff]
                %301 = vst [vmem:[%s193 + $0x1a8] sm:$0xff] %v300
                %v302 = vld [vmem:[%s192 + $0x340] sm:$0xff]
                %303 = vst [vmem:[%s193 + $0x1b0] sm:$0xff] %v302
                %v304 = vld [vmem:[%s192 + $0x370] sm:$0xff]
                %305 = vst [vmem:[%s193 + $0x1b8] sm:$0xff] %v304
                %v306 = vld [vmem:[%s192 + $0x378] sm:$0xff]
                %307 = vst [vmem:[%s193 + $0x1c0] sm:$0xff] %v306
                %v308 = vld [vmem:[%s192 + $0x380] sm:$0xff]
                %309 = vst [vmem:[%s193 + $0x1c8] sm:$0xff] %v308
                %v310 = vld [vmem:[%s192 + $0x388] sm:$0xff]
                %311 = vst [vmem:[%s193 + $0x1d0] sm:$0xff] %v310
                %v312 = vld [vmem:[%s192 + $0x390] sm:$0xff]
                %313 = vst [vmem:[%s193 + $0x1d8] sm:$0xff] %v312
                %v314 = vld [vmem:[%s192 + $0x3c0] sm:$0xff]
                %315 = vst [vmem:[%s193 + $0x1e0] sm:$0xff] %v314
                %v316 = vld [vmem:[%s192 + $0x3c8] sm:$0xff]
                %317 = vst [vmem:[%s193 + $0x1e8] sm:$0xff] %v316
                %v318 = vld [vmem:[%s192 + $0x3d0] sm:$0xff]
                %319 = vst [vmem:[%s193 + $0x1f0] sm:$0xff] %v318
                %v320 = vld [vmem:[%s192 + $0x3d8] sm:$0xff]
                %321 = vst [vmem:[%s193 + $0x1f8] sm:$0xff] %v320
                %v322 = vld [vmem:[%s192 + $0x3e0] sm:$0xff]
                %323 = vst [vmem:[%s193 + $0x200] sm:$0xff] %v322
                %v324 = vld [vmem:[%s192 + $0x410] sm:$0xff]
                %325 = vst [vmem:[%s193 + $0x208] sm:$0xff] %v324
                %v326 = vld [vmem:[%s192 + $0x418] sm:$0xff]
                %327 = vst [vmem:[%s193 + $0x210] sm:$0xff] %v326
                %v328 = vld [vmem:[%s192 + $0x420] sm:$0xff]
                %329 = vst [vmem:[%s193 + $0x218] sm:$0xff] %v328
                %v330 = vld [vmem:[%s192 + $0x428] sm:$0xff]
                %331 = vst [vmem:[%s193 + $0x220] sm:$0xff] %v330
                %v332 = vld [vmem:[%s192 + $0x430] sm:$0xff]
                %333 = vst [vmem:[%s193 + $0x228] sm:$0xff] %v332
                %v334 = vld [vmem:[%s192 + $0x460] sm:$0xff]
                %335 = vst [vmem:[%s193 + $0x230] sm:$0xff] %v334
                %v336 = vld [vmem:[%s192 + $0x468] sm:$0xff]
                %337 = vst [vmem:[%s193 + $0x238] sm:$0xff] %v336
                %v338 = vld [vmem:[%s192 + $0x470] sm:$0xff]
                %339 = vst [vmem:[%s193 + $0x240] sm:$0xff] %v338
                %v340 = vld [vmem:[%s192 + $0x478] sm:$0xff]
                %341 = vst [vmem:[%s193 + $0x248] sm:$0xff] %v340
                %v342 = vld [vmem:[%s192 + $0x480] sm:$0xff]
                %343 = vst [vmem:[%s193 + $0x250] sm:$0xff] %v342
                %v344 = vld [vmem:[%s192 + $0x4b0] sm:$0xff]
                %345 = vst [vmem:[%s193 + $0x258] sm:$0xff] %v344
                %v346 = vld [vmem:[%s192 + $0x4b8] sm:$0xff]
                %347 = vst [vmem:[%s193 + $0x260] sm:$0xff] %v346
                %v348 = vld [vmem:[%s192 + $0x4c0] sm:$0xff]
                %349 = vst [vmem:[%s193 + $0x268] sm:$0xff] %v348
                %v350 = vld [vmem:[%s192 + $0x4c8] sm:$0xff]
                %351 = vst [vmem:[%s193 + $0x270] sm:$0xff] %v350
                %v352 = vld [vmem:[%s192 + $0x4d0] sm:$0xff]
                %353 = vst [vmem:[%s193 + $0x278] sm:$0xff] %v352
                %v354 = vld [vmem:[%s192 + $0x500] sm:$0xff]
                %355 = vst [vmem:[%s193 + $0x280] sm:$0xff] %v354
                %v356 = vld [vmem:[%s192 + $0x508] sm:$0xff]
                %357 = vst [vmem:[%s193 + $0x288] sm:$0xff] %v356
                %v358 = vld [vmem:[%s192 + $0x510] sm:$0xff]
                %359 = vst [vmem:[%s193 + $0x290] sm:$0xff] %v358
                %v360 = vld [vmem:[%s192 + $0x518] sm:$0xff]
                %361 = vst [vmem:[%s193 + $0x298] sm:$0xff] %v360
                %v362 = vld [vmem:[%s192 + $0x520] sm:$0xff]
                %363 = vst [vmem:[%s193 + $0x2a0] sm:$0xff] %v362
                %v364 = vld [vmem:[%s192 + $0x550] sm:$0xff]
                %365 = vst [vmem:[%s193 + $0x2a8] sm:$0xff] %v364
                %v366 = vld [vmem:[%s192 + $0x558] sm:$0xff]
                %367 = vst [vmem:[%s193 + $0x2b0] sm:$0xff] %v366
                %v368 = vld [vmem:[%s192 + $0x560] sm:$0xff]
                %369 = vst [vmem:[%s193 + $0x2b8] sm:$0xff] %v368
                %v370 = vld [vmem:[%s192 + $0x568] sm:$0xff]
                %371 = vst [vmem:[%s193 + $0x2c0] sm:$0xff] %v370
                %v372 = vld [vmem:[%s192 + $0x570] sm:$0xff]
                %373 = vst [vmem:[%s193 + $0x2c8] sm:$0xff] %v372
                %v374 = vld [vmem:[%s192 + $0x5a0] sm:$0xff]
                %375 = vst [vmem:[%s193 + $0x2d0] sm:$0xff] %v374
                %v376 = vld [vmem:[%s192 + $0x5a8] sm:$0xff]
                %377 = vst [vmem:[%s193 + $0x2d8] sm:$0xff] %v376
                %v378 = vld [vmem:[%s192 + $0x5b0] sm:$0xff]
                %379 = vst [vmem:[%s193 + $0x2e0] sm:$0xff] %v378
                %v380 = vld [vmem:[%s192 + $0x5b8] sm:$0xff]
                %381 = vst [vmem:[%s193 + $0x2e8] sm:$0xff] %v380
                %v382 = vld [vmem:[%s192 + $0x5c0] sm:$0xff]
                %383 = vst [vmem:[%s193 + $0x2f0] sm:$0xff] %v382
                %v384 = vld [vmem:[%s192 + $0x5f0] sm:$0xff]
                %385 = vst [vmem:[%s193 + $0x2f8] sm:$0xff] %v384
                %v386 = vld [vmem:[%s192 + $0x5f8] sm:$0xff]
                %387 = vst [vmem:[%s193 + $0x300] sm:$0xff] %v386
                %v388 = vld [vmem:[%s192 + $0x600] sm:$0xff]
                %389 = vst [vmem:[%s193 + $0x308] sm:$0xff] %v388
                %v390 = vld [vmem:[%s192 + $0x608] sm:$0xff]
                %391 = vst [vmem:[%s193 + $0x310] sm:$0xff] %v390
                %v392 = vld [vmem:[%s192 + $0x610] sm:$0xff]
                %393 = vst [vmem:[%s193 + $0x318] sm:$0xff] %v392
                %v394 = vld [vmem:[%s192 + $0x640] sm:$0xff]
                %395 = vst [vmem:[%s193 + $0x320] sm:$0xff] %v394
                %v396 = vld [vmem:[%s192 + $0x648] sm:$0xff]
                %397 = vst [vmem:[%s193 + $0x328] sm:$0xff] %v396
                %v398 = vld [vmem:[%s192 + $0x650] sm:$0xff]
                %399 = vst [vmem:[%s193 + $0x330] sm:$0xff] %v398
                %v400 = vld [vmem:[%s192 + $0x658] sm:$0xff]
                %401 = vst [vmem:[%s193 + $0x338] sm:$0xff] %v400
                %v402 = vld [vmem:[%s192 + $0x660] sm:$0xff]
                %403 = vst [vmem:[%s193 + $0x340] sm:$0xff] %v402
                %v404 = vld [vmem:[%s192 + $0x690] sm:$0xff]
                %405 = vst [vmem:[%s193 + $0x348] sm:$0xff] %v404
                %v406 = vld [vmem:[%s192 + $0x698] sm:$0xff]
                %407 = vst [vmem:[%s193 + $0x350] sm:$0xff] %v406
                %v408 = vld [vmem:[%s192 + $0x6a0] sm:$0xff]
                %409 = vst [vmem:[%s193 + $0x358] sm:$0xff] %v408
                %v410 = vld [vmem:[%s192 + $0x6a8] sm:$0xff]
                %411 = vst [vmem:[%s193 + $0x360] sm:$0xff] %v410
                %v412 = vld [vmem:[%s192 + $0x6b0] sm:$0xff]
                %413 = vst [vmem:[%s193 + $0x368] sm:$0xff] %v412
                %v414 = vld [vmem:[%s192 + $0x6e0] sm:$0xff]
                %415 = vst [vmem:[%s193 + $0x370] sm:$0xff] %v414
                %v416 = vld [vmem:[%s192 + $0x6e8] sm:$0xff]
                %417 = vst [vmem:[%s193 + $0x378] sm:$0xff] %v416
                %v418 = vld [vmem:[%s192 + $0x6f0] sm:$0xff]
                %419 = vst [vmem:[%s193 + $0x380] sm:$0xff] %v418
                %v420 = vld [vmem:[%s192 + $0x6f8] sm:$0xff]
                %421 = vst [vmem:[%s193 + $0x388] sm:$0xff] %v420
                %v422 = vld [vmem:[%s192 + $0x700] sm:$0xff]
                %423 = vst [vmem:[%s193 + $0x390] sm:$0xff] %v422
                %v424 = vld [vmem:[%s192 + $0x730] sm:$0xff]
                %425 = vst [vmem:[%s193 + $0x398] sm:$0xff] %v424
                %v426 = vld [vmem:[%s192 + $0x738] sm:$0xff]
                %427 = vst [vmem:[%s193 + $0x3a0] sm:$0xff] %v426
                %v428 = vld [vmem:[%s192 + $0x740] sm:$0xff]
                %429 = vst [vmem:[%s193 + $0x3a8] sm:$0xff] %v428
                %v430 = vld [vmem:[%s192 + $0x748] sm:$0xff]
                %431 = vst [vmem:[%s193 + $0x3b0] sm:$0xff] %v430
                %v432 = vld [vmem:[%s192 + $0x750] sm:$0xff]
                %433 = vst [vmem:[%s193 + $0x3b8] sm:$0xff] %v432
                %v434 = vld [vmem:[%s192 + $0x780] sm:$0xff]
                %435 = vst [vmem:[%s193 + $0x3c0] sm:$0xff] %v434
                %v436 = vld [vmem:[%s192 + $0x788] sm:$0xff]
                %437 = vst [vmem:[%s193 + $0x3c8] sm:$0xff] %v436
                %v438 = vld [vmem:[%s192 + $0x790] sm:$0xff]
                %439 = vst [vmem:[%s193 + $0x3d0] sm:$0xff] %v438
                %v440 = vld [vmem:[%s192 + $0x798] sm:$0xff]
                %441 = vst [vmem:[%s193 + $0x3d8] sm:$0xff] %v440
                %v442 = vld [vmem:[%s192 + $0x7a0] sm:$0xff]
                %443 = vst [vmem:[%s193 + $0x3e0] sm:$0xff] %v442
                %v444 = vld [vmem:[%s192 + $0x7d0] sm:$0xff]
                %445 = vst [vmem:[%s193 + $0x3e8] sm:$0xff] %v444
                %v446 = vld [vmem:[%s192 + $0x7d8] sm:$0xff]
                %447 = vst [vmem:[%s193 + $0x3f0] sm:$0xff] %v446
                %v448 = vld [vmem:[%s192 + $0x7e0] sm:$0xff]
                %449 = vst [vmem:[%s193 + $0x3f8] sm:$0xff] %v448
                %v450 = vld [vmem:[%s192 + $0x7e8] sm:$0xff]
                %451 = vst [vmem:[%s193 + $0x400] sm:$0xff] %v450
                %v452 = vld [vmem:[%s192 + $0x7f0] sm:$0xff]
                %453 = vst [vmem:[%s193 + $0x408] sm:$0xff] %v452
                %v454 = vld [vmem:[%s192 + $0x820] sm:$0xff]
                %455 = vst [vmem:[%s193 + $0x410] sm:$0xff] %v454
                %v456 = vld [vmem:[%s192 + $0x828] sm:$0xff]
                %457 = vst [vmem:[%s193 + $0x418] sm:$0xff] %v456
                %v458 = vld [vmem:[%s192 + $0x830] sm:$0xff]
                %459 = vst [vmem:[%s193 + $0x420] sm:$0xff] %v458
                %v460 = vld [vmem:[%s192 + $0x838] sm:$0xff]
                %461 = vst [vmem:[%s193 + $0x428] sm:$0xff] %v460
                %v462 = vld [vmem:[%s192 + $0x840] sm:$0xff]
                %463 = vst [vmem:[%s193 + $0x430] sm:$0xff] %v462
                %v464 = vld [vmem:[%s192 + $0x870] sm:$0xff]
                %465 = vst [vmem:[%s193 + $0x438] sm:$0xff] %v464
                %v466 = vld [vmem:[%s192 + $0x878] sm:$0xff]
                %467 = vst [vmem:[%s193 + $0x440] sm:$0xff] %v466
                %v468 = vld [vmem:[%s192 + $0x880] sm:$0xff]
                %469 = vst [vmem:[%s193 + $0x448] sm:$0xff] %v468
                %v470 = vld [vmem:[%s192 + $0x888] sm:$0xff]
                %471 = vst [vmem:[%s193 + $0x450] sm:$0xff] %v470
                %v472 = vld [vmem:[%s192 + $0x890] sm:$0xff]
                %473 = vst [vmem:[%s193 + $0x458] sm:$0xff] %v472
                %v474 = vld [vmem:[%s192 + $0x8c0] sm:$0xff]
                %475 = vst [vmem:[%s193 + $0x460] sm:$0xff] %v474
                %v476 = vld [vmem:[%s192 + $0x8c8] sm:$0xff]
                %477 = vst [vmem:[%s193 + $0x468] sm:$0xff] %v476
                %v478 = vld [vmem:[%s192 + $0x8d0] sm:$0xff]
                %479 = vst [vmem:[%s193 + $0x470] sm:$0xff] %v478
                %v480 = vld [vmem:[%s192 + $0x8d8] sm:$0xff]
                %481 = vst [vmem:[%s193 + $0x478] sm:$0xff] %v480
                %v482 = vld [vmem:[%s192 + $0x8e0] sm:$0xff]
                %483 = vst [vmem:[%s193 + $0x480] sm:$0xff] %v482
                %v484 = vld [vmem:[%s192 + $0x910] sm:$0xff]
                %485 = vst [vmem:[%s193 + $0x488] sm:$0xff] %v484
                %v486 = vld [vmem:[%s192 + $0x918] sm:$0xff]
                %487 = vst [vmem:[%s193 + $0x490] sm:$0xff] %v486
                %v488 = vld [vmem:[%s192 + $0x920] sm:$0xff]
                %489 = vst [vmem:[%s193 + $0x498] sm:$0xff] %v488
                %v490 = vld [vmem:[%s192 + $0x928] sm:$0xff]
                %491 = vst [vmem:[%s193 + $0x4a0] sm:$0xff] %v490
                %v492 = vld [vmem:[%s192 + $0x930] sm:$0xff]
                %493 = vst [vmem:[%s193 + $0x4a8] sm:$0xff] %v492
                %v494 = vld [vmem:[%s192 + $0x960] sm:$0xff]
                %495 = vst [vmem:[%s193 + $0x4b0] sm:$0xff] %v494
                %v496 = vld [vmem:[%s192 + $0x968] sm:$0xff]
                %497 = vst [vmem:[%s193 + $0x4b8] sm:$0xff] %v496
                %v498 = vld [vmem:[%s192 + $0x970] sm:$0xff]
                %499 = vst [vmem:[%s193 + $0x4c0] sm:$0xff] %v498
                %v500 = vld [vmem:[%s192 + $0x978] sm:$0xff]
                %501 = vst [vmem:[%s193 + $0x4c8] sm:$0xff] %v500
                %v502 = vld [vmem:[%s192 + $0x980] sm:$0xff]
                %503 = vst [vmem:[%s193 + $0x4d0] sm:$0xff] %v502
                %v504 = vld [vmem:[%s192 + $0x9b0] sm:$0xff]
                %505 = vst [vmem:[%s193 + $0x4d8] sm:$0xff] %v504
                %v506 = vld [vmem:[%s192 + $0x9b8] sm:$0xff]
                %507 = vst [vmem:[%s193 + $0x4e0] sm:$0xff] %v506
                %v508 = vld [vmem:[%s192 + $0x9c0] sm:$0xff]
                %509 = vst [vmem:[%s193 + $0x4e8] sm:$0xff] %v508
                %v510 = vld [vmem:[%s192 + $0x9c8] sm:$0xff]
                %511 = vst [vmem:[%s193 + $0x4f0] sm:$0xff] %v510
                %v512 = vld [vmem:[%s192 + $0x9d0] sm:$0xff]
                %513 = vst [vmem:[%s193 + $0x4f8] sm:$0xff] %v512
              $region41: #{gcn_forward.3} parent=35 // loop_footer
                %s191 = sadd.s32 1, %s187
              $region42: #{gcn_forward.3} parent=35 // loop_footer_branch
                %186 = sbr.rel target = $region38
              $region43: #{gcn_forward.3} parent=35 // loop_exit
                _
            $region36: #{gcn_forward.3} parent=31 // pred_fallthru
              _
            // Predicated region
            $region44: #{gcn_forward.3} parent=31 // pred_check
              _
            $region45: #{gcn_forward.3} parent=31 // pred_check_branch
              %515 = sbr.rel target = $region47
            $region46: #{gcn_forward.3} parent=31 // pred_region
              _
            $region47: #{gcn_forward.3} parent=31 // pred_fallthru
              _
          $region32: #{gcn_forward.3} parent=27 // pred_fallthru
            _
          %516 = vnop
        $region28: #{gcn_forward.3} parent=23 // pred_fallthru
          _
        // Predicated region
        $region48: #{gcn_forward.3} parent=23 // pred_check
          %p517 = pneg %p91
        $region49: #{gcn_forward.3} parent=23 // pred_check_branch
          %519 = sbr.rel (%p517) target = $region51
        $region50: #{gcn_forward.3} parent=23 // pred_region
          %s520 = smul.u32 32, %s17
          %p521 = scmp.lt.s32.totalorder %s520, 319
          %s522 = scalar_select %p521, %s520, 319
          %s523 = smul.addr %s522, 8
          %s524 = scalar_lea.vmem %s2, %s523
          %s525 = smul.u32 32, %s17
        $region51: #{gcn_forward.3} parent=23 // pred_fallthru
          _
      $region24: #{gcn_forward.3} parent=5 // pred_fallthru
        _
      %p526 = scmp.le.s32.totalorder 1, %s10
      %p527 = scmp.lt.s32.totalorder %s10, 21
      %p528 = pnand %p526, %p527
      %p529 = pneg %p528
      // Predicated region
      $region52: #{gcn_forward.3} parent=5 // pred_check
        _
      $region53: #{gcn_forward.3} parent=5 // pred_check_branch
        %531 = sbr.rel (%p528) target = $region55
      $region54: #{gcn_forward.3} parent=5 // pred_region
        %s532 = ssub.s32 %s10, 1
        %s533 = sand.u32 %s37, 1
        %s534 = sand.u32 %s37, 1
        %s535 = smul.addr %s534, 1280
        %s536 = scalar_lea.vmem [#allocation3], %s535
        // Predicated region
        $region56: #{gcn_forward.3} parent=54 // pred_check
          %p537 = pneg %p50
        $region57: #{gcn_forward.3} parent=54 // pred_check_branch
          %539 = sbr.rel (%p537) target = $region59
        $region58: #{gcn_forward.3} parent=54 // pred_region
          _
        $region59: #{gcn_forward.3} parent=54 // pred_fallthru
          _
        %s540 = sand.u32 %s37, 1
        %s541 = sand.u32 %s37, 1
        %s542 = smul.addr %s541, 1280
        %s543 = scalar_lea.vmem [#allocation3], %s542
        %p544 = pneg %p50
        %p545 = pneg %p47
        %p546 = pneg %p71
        %p547 = pneg %p68
        %s548 = smul.u32 32, %s19
        %p549 = scmp.lt.s32.totalorder %s548, 319
        %s550 = scalar_select %p549, %s548, 319
        %s551 = smul.addr %s550, 8
        %s552 = scalar_lea.vmem %s2, %s551
        %p553 = pneg %p97
        %p554 = pneg %p94
        %p555 = pneg %p118
        %p556 = pneg %p115
        %p557 = pneg %p144
        %p558 = pneg %p141
        %s559 = smul.u32 32, %s19
        %p560 = scmp.lt.s32.totalorder %s559, 319
        %s561 = scalar_select %p560, %s559, 319
        %s562 = smul.addr %s561, 8
        %s563 = scalar_lea.vmem %s4, %s562
        %s564 = smul.u32 32, %s19
        %s565 = smul.u32 10, %s20
        %s566 = smul.u32 32, %s19
        %p567 = scmp.lt.s32.totalorder %s566, 319
        %s568 = scalar_select %p567, %s566, 319
        %s569 = smul.addr %s568, 8
        %s570 = scalar_lea.vmem %s2, %s569
        %s571 = smul.u32 32, %s19
        %s572 = smul.u32 32, %s19
        %p573 = scmp.lt.s32.totalorder %s572, 319
        %s574 = scalar_select %p573, %s572, 319
        %s575 = smul.addr %s574, 8
        %s576 = scalar_lea.vmem %s4, %s575
        %s577 = smul.u32 32, %s19
        %p579 = scmp.eq.s32.totalorder %s20, 0
        // Predicated region
        $region60: #{gcn_forward.3} parent=54 // pred_check
          %p580 = pneg %p579
        $region61: #{gcn_forward.3} parent=54 // pred_check_branch
          %582 = sbr.rel (%p580) target = $region63
        $region62: #{gcn_forward.3} parent=54 // pred_region
          %583 = vst [vmem:[#allocation2] sm:$0xff] 0.0
          %584 = vst [vmem:[#allocation2 + $0x8] sm:$0xff] 0.0
          %585 = vst [vmem:[#allocation2 + $0x10] sm:$0xff] 0.0
          %586 = vst [vmem:[#allocation2 + $0x18] sm:$0xff] 0.0
          %587 = vst [vmem:[#allocation2 + $0x20] sm:$0xff] 0.0
          %588 = vst [vmem:[#allocation2 + $0x28] sm:$0xff] 0.0
          %589 = vst [vmem:[#allocation2 + $0x30] sm:$0xff] 0.0
          %590 = vst [vmem:[#allocation2 + $0x38] sm:$0xff] 0.0
          %591 = vst [vmem:[#allocation2 + $0x40] sm:$0xff] 0.0
          %592 = vst [vmem:[#allocation2 + $0x48] sm:$0xff] 0.0
          %593 = vst [vmem:[#allocation2 + $0x50] sm:$0xff] 0.0
          %594 = vst [vmem:[#allocation2 + $0x58] sm:$0xff] 0.0
          %595 = vst [vmem:[#allocation2 + $0x60] sm:$0xff] 0.0
          %596 = vst [vmem:[#allocation2 + $0x68] sm:$0xff] 0.0
          %597 = vst [vmem:[#allocation2 + $0x70] sm:$0xff] 0.0
          %598 = vst [vmem:[#allocation2 + $0x78] sm:$0xff] 0.0
          %599 = vst [vmem:[#allocation2 + $0x80] sm:$0xff] 0.0
          %600 = vst [vmem:[#allocation2 + $0x88] sm:$0xff] 0.0
          %601 = vst [vmem:[#allocation2 + $0x90] sm:$0xff] 0.0
          %602 = vst [vmem:[#allocation2 + $0x98] sm:$0xff] 0.0
          %603 = vst [vmem:[#allocation2 + $0xa0] sm:$0xff] 0.0
          %604 = vst [vmem:[#allocation2 + $0xa8] sm:$0xff] 0.0
          %605 = vst [vmem:[#allocation2 + $0xb0] sm:$0xff] 0.0
          %606 = vst [vmem:[#allocation2 + $0xb8] sm:$0xff] 0.0
          %607 = vst [vmem:[#allocation2 + $0xc0] sm:$0xff] 0.0
          %608 = vst [vmem:[#allocation2 + $0xc8] sm:$0xff] 0.0
          %609 = vst [vmem:[#allocation2 + $0xd0] sm:$0xff] 0.0
          %610 = vst [vmem:[#allocation2 + $0xd8] sm:$0xff] 0.0
          %611 = vst [vmem:[#allocation2 + $0xe0] sm:$0xff] 0.0
          %612 = vst [vmem:[#allocation2 + $0xe8] sm:$0xff] 0.0
          %613 = vst [vmem:[#allocation2 + $0xf0] sm:$0xff] 0.0
          %614 = vst [vmem:[#allocation2 + $0xf8] sm:$0xff] 0.0
        $region63: #{gcn_forward.3} parent=54 // pred_fallthru
          _
        %s615 = smul.u32 %s20, 1280
        %v616 = vld [vmem:[#allocation2] sm:$0xff]
        %v617 = vld [vmem:[#allocation2 + $0x8] sm:$0xff]
        %v618 = vld [vmem:[#allocation2 + $0x10] sm:$0xff]
        %v619 = vld [vmem:[#allocation2 + $0x18] sm:$0xff]
        %v620 = vld [vmem:[#allocation2 + $0x20] sm:$0xff]
        %v621 = vld [vmem:[#allocation2 + $0x28] sm:$0xff]
        %v622 = vld [vmem:[#allocation2 + $0x30] sm:$0xff]
        %v623 = vld [vmem:[#allocation2 + $0x38] sm:$0xff]
        %v624 = vld [vmem:[#allocation2 + $0x40] sm:$0xff]
        %v625 = vld [vmem:[#allocation2 + $0x48] sm:$0xff]
        %v626 = vld [vmem:[#allocation2 + $0x50] sm:$0xff]
        %v627 = vld [vmem:[#allocation2 + $0x58] sm:$0xff]
        %v628 = vld [vmem:[#allocation2 + $0x60] sm:$0xff]
        %v629 = vld [vmem:[#allocation2 + $0x68] sm:$0xff]
        %v630 = vld [vmem:[#allocation2 + $0x70] sm:$0xff]
        %v631 = vld [vmem:[#allocation2 + $0x78] sm:$0xff]
        %v632 = vld [vmem:[#allocation2 + $0x80] sm:$0xff]
        %v633 = vld [vmem:[#allocation2 + $0x88] sm:$0xff]
        %v634 = vld [vmem:[#allocation2 + $0x90] sm:$0xff]
        %v635 = vld [vmem:[#allocation2 + $0x98] sm:$0xff]
        %v636 = vld [vmem:[#allocation2 + $0xa0] sm:$0xff]
        %v637 = vld [vmem:[#allocation2 + $0xa8] sm:$0xff]
        %v638 = vld [vmem:[#allocation2 + $0xb0] sm:$0xff]
        %v639 = vld [vmem:[#allocation2 + $0xb8] sm:$0xff]
        %v640 = vld [vmem:[#allocation2 + $0xc0] sm:$0xff]
        %v641 = vld [vmem:[#allocation2 + $0xc8] sm:$0xff]
        %v642 = vld [vmem:[#allocation2 + $0xd0] sm:$0xff]
        %v643 = vld [vmem:[#allocation2 + $0xd8] sm:$0xff]
        %v644 = vld [vmem:[#allocation2 + $0xe0] sm:$0xff]
        %v645 = vld [vmem:[#allocation2 + $0xe8] sm:$0xff]
        %v646 = vld [vmem:[#allocation2 + $0xf0] sm:$0xff]
        %v647 = vld [vmem:[#allocation2 + $0xf8] sm:$0xff]
        %v648 = vld [vmem:[%s536] sm:$0xff]
        %v649 = vld [vmem:[%s536 + $0x8] sm:$0xff]
        %v650 = vld [vmem:[%s536 + $0x10] sm:$0xff]
        %v651 = vld [vmem:[%s536 + $0x18] sm:$0xff]
        %v652 = vld [vmem:[%s536 + $0x20] sm:$0xff]
        %v653 = vld [vmem:[%s536 + $0x28] sm:$0xff]
        %v654 = vld [vmem:[%s536 + $0x30] sm:$0xff]
        %v655 = vld [vmem:[%s536 + $0x38] sm:$0xff]
        %v656 = vld [vmem:[%s536 + $0x40] sm:$0xff]
        %v657 = vld [vmem:[%s536 + $0x48] sm:$0xff]
        %v658 = vld [vmem:[%s536 + $0x50] sm:$0xff]
        %v659 = vld [vmem:[%s536 + $0x58] sm:$0xff]
        %v660 = vld [vmem:[%s536 + $0x60] sm:$0xff]
        %v661 = vld [vmem:[%s536 + $0x68] sm:$0xff]
        %v662 = vld [vmem:[%s536 + $0x70] sm:$0xff]
        %v663 = vld [vmem:[%s536 + $0x78] sm:$0xff]
        %v664 = vld [vmem:[%s536 + $0x80] sm:$0xff]
        %v665 = vld [vmem:[%s536 + $0x88] sm:$0xff]
        %v666 = vld [vmem:[%s536 + $0x90] sm:$0xff]
        %v667 = vld [vmem:[%s536 + $0x98] sm:$0xff]
        %v668 = vld [vmem:[%s536 + $0xa0] sm:$0xff]
        %v669 = vld [vmem:[%s536 + $0xa8] sm:$0xff]
        %v670 = vld [vmem:[%s536 + $0xb0] sm:$0xff]
        %v671 = vld [vmem:[%s536 + $0xb8] sm:$0xff]
        %v672 = vld [vmem:[%s536 + $0xc0] sm:$0xff]
        %v673 = vld [vmem:[%s536 + $0xc8] sm:$0xff]
        %v674 = vld [vmem:[%s536 + $0xd0] sm:$0xff]
        %v675 = vld [vmem:[%s536 + $0xd8] sm:$0xff]
        %v676 = vld [vmem:[%s536 + $0xe0] sm:$0xff]
        %v677 = vld [vmem:[%s536 + $0xe8] sm:$0xff]
        %v678 = vld [vmem:[%s536 + $0xf0] sm:$0xff]
        %v679 = vld [vmem:[%s536 + $0xf8] sm:$0xff]
        %v680 = vld [vmem:[%s536 + $0x100] sm:$0xff]
        %v681 = vld [vmem:[%s536 + $0x108] sm:$0xff]
        %v682 = vld [vmem:[%s536 + $0x110] sm:$0xff]
        %v683 = vld [vmem:[%s536 + $0x118] sm:$0xff]
        %v684 = vld [vmem:[%s536 + $0x120] sm:$0xff]
        %v685 = vld [vmem:[%s536 + $0x128] sm:$0xff]
        %v686 = vld [vmem:[%s536 + $0x130] sm:$0xff]
        %v687 = vld [vmem:[%s536 + $0x138] sm:$0xff]
        %v688 = vld [vmem:[%s536 + $0x140] sm:$0xff]
        %v689 = vld [vmem:[%s536 + $0x148] sm:$0xff]
        %v690 = vld [vmem:[%s536 + $0x150] sm:$0xff]
        %v691 = vld [vmem:[%s536 + $0x158] sm:$0xff]
        %v692 = vld [vmem:[%s536 + $0x160] sm:$0xff]
        %v693 = vld [vmem:[%s536 + $0x168] sm:$0xff]
        %v694 = vld [vmem:[%s536 + $0x170] sm:$0xff]
        %v695 = vld [vmem:[%s536 + $0x178] sm:$0xff]
        %v696 = vld [vmem:[%s536 + $0x180] sm:$0xff]
        %v697 = vld [vmem:[%s536 + $0x188] sm:$0xff]
        %v698 = vld [vmem:[%s536 + $0x190] sm:$0xff]
        %v699 = vld [vmem:[%s536 + $0x198] sm:$0xff]
        %v700 = vld [vmem:[%s536 + $0x1a0] sm:$0xff]
        %v701 = vld [vmem:[%s536 + $0x1a8] sm:$0xff]
        %v702 = vld [vmem:[%s536 + $0x1b0] sm:$0xff]
        %v703 = vld [vmem:[%s536 + $0x1b8] sm:$0xff]
        %v704 = vld [vmem:[%s536 + $0x1c0] sm:$0xff]
        %v705 = vld [vmem:[%s536 + $0x1c8] sm:$0xff]
        %v706 = vld [vmem:[%s536 + $0x1d0] sm:$0xff]
        %v707 = vld [vmem:[%s536 + $0x1d8] sm:$0xff]
        %v708 = vld [vmem:[%s536 + $0x1e0] sm:$0xff]
        %v709 = vld [vmem:[%s536 + $0x1e8] sm:$0xff]
        %v710 = vld [vmem:[%s536 + $0x1f0] sm:$0xff]
        %v711 = vld [vmem:[%s536 + $0x1f8] sm:$0xff]
        %v712 = vld [vmem:[%s536 + $0x200] sm:$0xff]
        %v713 = vld [vmem:[%s536 + $0x208] sm:$0xff]
        %v714 = vld [vmem:[%s536 + $0x210] sm:$0xff]
        %v715 = vld [vmem:[%s536 + $0x218] sm:$0xff]
        %v716 = vld [vmem:[%s536 + $0x220] sm:$0xff]
        %v717 = vld [vmem:[%s536 + $0x228] sm:$0xff]
        %v718 = vld [vmem:[%s536 + $0x230] sm:$0xff]
        %v719 = vld [vmem:[%s536 + $0x238] sm:$0xff]
        %v720 = vld [vmem:[%s536 + $0x240] sm:$0xff]
        %v721 = vld [vmem:[%s536 + $0x248] sm:$0xff]
        %v722 = vld [vmem:[%s536 + $0x250] sm:$0xff]
        %v723 = vld [vmem:[%s536 + $0x258] sm:$0xff]
        %v724 = vld [vmem:[%s536 + $0x260] sm:$0xff]
        %v725 = vld [vmem:[%s536 + $0x268] sm:$0xff]
        %v726 = vld [vmem:[%s536 + $0x270] sm:$0xff]
        %v727 = vld [vmem:[%s536 + $0x278] sm:$0xff]
        %v728 = vld [vmem:[%s536 + $0x280] sm:$0xff]
        %v729 = vld [vmem:[%s536 + $0x288] sm:$0xff]
        %v730 = vld [vmem:[%s536 + $0x290] sm:$0xff]
        %v731 = vld [vmem:[%s536 + $0x298] sm:$0xff]
        %v732 = vld [vmem:[%s536 + $0x2a0] sm:$0xff]
        %v733 = vld [vmem:[%s536 + $0x2a8] sm:$0xff]
        %v734 = vld [vmem:[%s536 + $0x2b0] sm:$0xff]
        %v735 = vld [vmem:[%s536 + $0x2b8] sm:$0xff]
        %v736 = vld [vmem:[%s536 + $0x2c0] sm:$0xff]
        %v737 = vld [vmem:[%s536 + $0x2c8] sm:$0xff]
        %v738 = vld [vmem:[%s536 + $0x2d0] sm:$0xff]
        %v739 = vld [vmem:[%s536 + $0x2d8] sm:$0xff]
        %v740 = vld [vmem:[%s536 + $0x2e0] sm:$0xff]
        %v741 = vld [vmem:[%s536 + $0x2e8] sm:$0xff]
        %v742 = vld [vmem:[%s536 + $0x2f0] sm:$0xff]
        %v743 = vld [vmem:[%s536 + $0x2f8] sm:$0xff]
        %v744 = vld [vmem:[%s536 + $0x300] sm:$0xff]
        %v745 = vld [vmem:[%s536 + $0x308] sm:$0xff]
        %v746 = vld [vmem:[%s536 + $0x310] sm:$0xff]
        %v747 = vld [vmem:[%s536 + $0x318] sm:$0xff]
        %v748 = vld [vmem:[%s536 + $0x320] sm:$0xff]
        %v749 = vld [vmem:[%s536 + $0x328] sm:$0xff]
        %v750 = vld [vmem:[%s536 + $0x330] sm:$0xff]
        %v751 = vld [vmem:[%s536 + $0x338] sm:$0xff]
        %v752 = vld [vmem:[%s536 + $0x340] sm:$0xff]
        %v753 = vld [vmem:[%s536 + $0x348] sm:$0xff]
        %v754 = vld [vmem:[%s536 + $0x350] sm:$0xff]
        %v755 = vld [vmem:[%s536 + $0x358] sm:$0xff]
        %v756 = vld [vmem:[%s536 + $0x360] sm:$0xff]
        %v757 = vld [vmem:[%s536 + $0x368] sm:$0xff]
        %v758 = vld [vmem:[%s536 + $0x370] sm:$0xff]
        %v759 = vld [vmem:[%s536 + $0x378] sm:$0xff]
        %v760 = vld [vmem:[%s536 + $0x380] sm:$0xff]
        %v761 = vld [vmem:[%s536 + $0x388] sm:$0xff]
        %v762 = vld [vmem:[%s536 + $0x390] sm:$0xff]
        %v763 = vld [vmem:[%s536 + $0x398] sm:$0xff]
        %v764 = vld [vmem:[%s536 + $0x3a0] sm:$0xff]
        %v765 = vld [vmem:[%s536 + $0x3a8] sm:$0xff]
        %v766 = vld [vmem:[%s536 + $0x3b0] sm:$0xff]
        %v767 = vld [vmem:[%s536 + $0x3b8] sm:$0xff]
        %v768 = vld [vmem:[%s536 + $0x3c0] sm:$0xff]
        %v769 = vld [vmem:[%s536 + $0x3c8] sm:$0xff]
        %v770 = vld [vmem:[%s536 + $0x3d0] sm:$0xff]
        %v771 = vld [vmem:[%s536 + $0x3d8] sm:$0xff]
        %v772 = vld [vmem:[%s536 + $0x3e0] sm:$0xff]
        %v773 = vld [vmem:[%s536 + $0x3e8] sm:$0xff]
        %v774 = vld [vmem:[%s536 + $0x3f0] sm:$0xff]
        %v775 = vld [vmem:[%s536 + $0x3f8] sm:$0xff]
        %v776 = vld [vmem:[%s536 + $0x400] sm:$0xff]
        %v777 = vld [vmem:[%s536 + $0x408] sm:$0xff]
        %v778 = vld [vmem:[%s536 + $0x410] sm:$0xff]
        %v779 = vld [vmem:[%s536 + $0x418] sm:$0xff]
        %v780 = vld [vmem:[%s536 + $0x420] sm:$0xff]
        %v781 = vld [vmem:[%s536 + $0x428] sm:$0xff]
        %v782 = vld [vmem:[%s536 + $0x430] sm:$0xff]
        %v783 = vld [vmem:[%s536 + $0x438] sm:$0xff]
        %v784 = vld [vmem:[%s536 + $0x440] sm:$0xff]
        %v785 = vld [vmem:[%s536 + $0x448] sm:$0xff]
        %v786 = vld [vmem:[%s536 + $0x450] sm:$0xff]
        %v787 = vld [vmem:[%s536 + $0x458] sm:$0xff]
        %v788 = vld [vmem:[%s536 + $0x460] sm:$0xff]
        %v789 = vld [vmem:[%s536 + $0x468] sm:$0xff]
        %v790 = vld [vmem:[%s536 + $0x470] sm:$0xff]
        %v791 = vld [vmem:[%s536 + $0x478] sm:$0xff]
        %v792 = vld [vmem:[%s536 + $0x480] sm:$0xff]
        %v793 = vld [vmem:[%s536 + $0x488] sm:$0xff]
        %v794 = vld [vmem:[%s536 + $0x490] sm:$0xff]
        %v795 = vld [vmem:[%s536 + $0x498] sm:$0xff]
        %v796 = vld [vmem:[%s536 + $0x4a0] sm:$0xff]
        %v797 = vld [vmem:[%s536 + $0x4a8] sm:$0xff]
        %v798 = vld [vmem:[%s536 + $0x4b0] sm:$0xff]
        %v799 = vld [vmem:[%s536 + $0x4b8] sm:$0xff]
        %v800 = vld [vmem:[%s536 + $0x4c0] sm:$0xff]
        %v801 = vld [vmem:[%s536 + $0x4c8] sm:$0xff]
        %v802 = vld [vmem:[%s536 + $0x4d0] sm:$0xff]
        %v803 = vld [vmem:[%s536 + $0x4d8] sm:$0xff]
        %v804 = vld [vmem:[%s536 + $0x4e0] sm:$0xff]
        %v805 = vld [vmem:[%s536 + $0x4e8] sm:$0xff]
        %v806 = vld [vmem:[%s536 + $0x4f0] sm:$0xff]
        %v807 = vld [vmem:[%s536 + $0x4f8] sm:$0xff]
        %s808 = sshra.s32 %s615, 3
        %s809 = sand.u32 %s615, 7
        %s810 = smul.addr %s808, 4
        %s811 = scalar_lea.vmem %s1, %s810
        %v812 = vld [vmem:[%s811] sm:$0xf]
        %v813 = vld [vmem:[%s811 + $0x4] sm:$0xf]
        %v814 = vld [vmem:[%s811 + $0x8] sm:$0xf]
        %v815 = vld [vmem:[%s811 + $0xc] sm:$0xf]
        %v816 = vld [vmem:[%s811 + $0x10] sm:$0xf]
        %v817 = vld [vmem:[%s811 + $0x14] sm:$0xf]
        %v818 = vld [vmem:[%s811 + $0x18] sm:$0xf]
        %v819 = vld [vmem:[%s811 + $0x1c] sm:$0xf]
        %v820 = vld [vmem:[%s811 + $0x20] sm:$0xf]
        %v821 = vld [vmem:[%s811 + $0x24] sm:$0xf]
        %v822 = vld [vmem:[%s811 + $0x28] sm:$0xf]
        %v823 = vld [vmem:[%s811 + $0x2c] sm:$0xf]
        %v824 = vld [vmem:[%s811 + $0x30] sm:$0xf]
        %v825 = vld [vmem:[%s811 + $0x34] sm:$0xf]
        %v826 = vld [vmem:[%s811 + $0x38] sm:$0xf]
        %v827 = vld [vmem:[%s811 + $0x3c] sm:$0xf]
        %v828 = vld [vmem:[%s811 + $0x40] sm:$0xf]
        %v829 = vld [vmem:[%s811 + $0x44] sm:$0xf]
        %v830 = vld [vmem:[%s811 + $0x48] sm:$0xf]
        %v831 = vld [vmem:[%s811 + $0x4c] sm:$0xf]
        %v832 = vld [vmem:[%s811 + $0x50] sm:$0xf]
        %v833 = vld [vmem:[%s811 + $0x54] sm:$0xf]
        %v834 = vld [vmem:[%s811 + $0x58] sm:$0xf]
        %v835 = vld [vmem:[%s811 + $0x5c] sm:$0xf]
        %v836 = vld [vmem:[%s811 + $0x60] sm:$0xf]
        %v837 = vld [vmem:[%s811 + $0x64] sm:$0xf]
        %v838 = vld [vmem:[%s811 + $0x68] sm:$0xf]
        %v839 = vld [vmem:[%s811 + $0x6c] sm:$0xf]
        %v840 = vld [vmem:[%s811 + $0x70] sm:$0xf]
        %v841 = vld [vmem:[%s811 + $0x74] sm:$0xf]
        %v842 = vld [vmem:[%s811 + $0x78] sm:$0xf]
        %v843 = vld [vmem:[%s811 + $0x7c] sm:$0xf]
        %v844 = vld [vmem:[%s811 + $0x80] sm:$0xf]
        %v845 = vld [vmem:[%s811 + $0x84] sm:$0xf]
        %v846 = vld [vmem:[%s811 + $0x88] sm:$0xf]
        %v847 = vld [vmem:[%s811 + $0x8c] sm:$0xf]
        %v848 = vld [vmem:[%s811 + $0x90] sm:$0xf]
        %v849 = vld [vmem:[%s811 + $0x94] sm:$0xf]
        %v850 = vld [vmem:[%s811 + $0x98] sm:$0xf]
        %v851 = vld [vmem:[%s811 + $0x9c] sm:$0xf]
        %v852 = vld [vmem:[%s811 + $0xa0] sm:$0xf]
        %v853 = vld [vmem:[%s811 + $0xa4] sm:$0xf]
        %v854 = vld [vmem:[%s811 + $0xa8] sm:$0xf]
        %v855 = vld [vmem:[%s811 + $0xac] sm:$0xf]
        %v856 = vld [vmem:[%s811 + $0xb0] sm:$0xf]
        %v857 = vld [vmem:[%s811 + $0xb4] sm:$0xf]
        %v858 = vld [vmem:[%s811 + $0xb8] sm:$0xf]
        %v859 = vld [vmem:[%s811 + $0xbc] sm:$0xf]
        %v860 = vld [vmem:[%s811 + $0xc0] sm:$0xf]
        %v861 = vld [vmem:[%s811 + $0xc4] sm:$0xf]
        %v862 = vld [vmem:[%s811 + $0xc8] sm:$0xf]
        %v863 = vld [vmem:[%s811 + $0xcc] sm:$0xf]
        %v864 = vld [vmem:[%s811 + $0xd0] sm:$0xf]
        %v865 = vld [vmem:[%s811 + $0xd4] sm:$0xf]
        %v866 = vld [vmem:[%s811 + $0xd8] sm:$0xf]
        %v867 = vld [vmem:[%s811 + $0xdc] sm:$0xf]
        %v868 = vld [vmem:[%s811 + $0xe0] sm:$0xf]
        %v869 = vld [vmem:[%s811 + $0xe4] sm:$0xf]
        %v870 = vld [vmem:[%s811 + $0xe8] sm:$0xf]
        %v871 = vld [vmem:[%s811 + $0xec] sm:$0xf]
        %v872 = vld [vmem:[%s811 + $0xf0] sm:$0xf]
        %v873 = vld [vmem:[%s811 + $0xf4] sm:$0xf]
        %v874 = vld [vmem:[%s811 + $0xf8] sm:$0xf]
        %v875 = vld [vmem:[%s811 + $0xfc] sm:$0xf]
        %v876 = vld [vmem:[%s811 + $0x100] sm:$0xf]
        %v877 = vld [vmem:[%s811 + $0x104] sm:$0xf]
        %v878 = vld [vmem:[%s811 + $0x108] sm:$0xf]
        %v879 = vld [vmem:[%s811 + $0x10c] sm:$0xf]
        %v880 = vld [vmem:[%s811 + $0x110] sm:$0xf]
        %v881 = vld [vmem:[%s811 + $0x114] sm:$0xf]
        %v882 = vld [vmem:[%s811 + $0x118] sm:$0xf]
        %v883 = vld [vmem:[%s811 + $0x11c] sm:$0xf]
        %v884 = vld [vmem:[%s811 + $0x120] sm:$0xf]
        %v885 = vld [vmem:[%s811 + $0x124] sm:$0xf]
        %v886 = vld [vmem:[%s811 + $0x128] sm:$0xf]
        %v887 = vld [vmem:[%s811 + $0x12c] sm:$0xf]
        %v888 = vld [vmem:[%s811 + $0x130] sm:$0xf]
        %v889 = vld [vmem:[%s811 + $0x134] sm:$0xf]
        %v890 = vld [vmem:[%s811 + $0x138] sm:$0xf]
        %v891 = vld [vmem:[%s811 + $0x13c] sm:$0xf]
        %v892 = vld [vmem:[%s811 + $0x140] sm:$0xf]
        %v893 = vld [vmem:[%s811 + $0x144] sm:$0xf]
        %v894 = vld [vmem:[%s811 + $0x148] sm:$0xf]
        %v895 = vld [vmem:[%s811 + $0x14c] sm:$0xf]
        %v896 = vld [vmem:[%s811 + $0x150] sm:$0xf]
        %v897 = vld [vmem:[%s811 + $0x154] sm:$0xf]
        %v898 = vld [vmem:[%s811 + $0x158] sm:$0xf]
        %v899 = vld [vmem:[%s811 + $0x15c] sm:$0xf]
        %v900 = vld [vmem:[%s811 + $0x160] sm:$0xf]
        %v901 = vld [vmem:[%s811 + $0x164] sm:$0xf]
        %v902 = vld [vmem:[%s811 + $0x168] sm:$0xf]
        %v903 = vld [vmem:[%s811 + $0x16c] sm:$0xf]
        %v904 = vld [vmem:[%s811 + $0x170] sm:$0xf]
        %v905 = vld [vmem:[%s811 + $0x174] sm:$0xf]
        %v906 = vld [vmem:[%s811 + $0x178] sm:$0xf]
        %v907 = vld [vmem:[%s811 + $0x17c] sm:$0xf]
        %v908 = vld [vmem:[%s811 + $0x180] sm:$0xf]
        %v909 = vld [vmem:[%s811 + $0x184] sm:$0xf]
        %v910 = vld [vmem:[%s811 + $0x188] sm:$0xf]
        %v911 = vld [vmem:[%s811 + $0x18c] sm:$0xf]
        %v912 = vld [vmem:[%s811 + $0x190] sm:$0xf]
        %v913 = vld [vmem:[%s811 + $0x194] sm:$0xf]
        %v914 = vld [vmem:[%s811 + $0x198] sm:$0xf]
        %v915 = vld [vmem:[%s811 + $0x19c] sm:$0xf]
        %v916 = vld [vmem:[%s811 + $0x1a0] sm:$0xf]
        %v917 = vld [vmem:[%s811 + $0x1a4] sm:$0xf]
        %v918 = vld [vmem:[%s811 + $0x1a8] sm:$0xf]
        %v919 = vld [vmem:[%s811 + $0x1ac] sm:$0xf]
        %v920 = vld [vmem:[%s811 + $0x1b0] sm:$0xf]
        %v921 = vld [vmem:[%s811 + $0x1b4] sm:$0xf]
        %v922 = vld [vmem:[%s811 + $0x1b8] sm:$0xf]
        %v923 = vld [vmem:[%s811 + $0x1bc] sm:$0xf]
        %v924 = vld [vmem:[%s811 + $0x1c0] sm:$0xf]
        %v925 = vld [vmem:[%s811 + $0x1c4] sm:$0xf]
        %v926 = vld [vmem:[%s811 + $0x1c8] sm:$0xf]
        %v927 = vld [vmem:[%s811 + $0x1cc] sm:$0xf]
        %v928 = vld [vmem:[%s811 + $0x1d0] sm:$0xf]
        %v929 = vld [vmem:[%s811 + $0x1d4] sm:$0xf]
        %v930 = vld [vmem:[%s811 + $0x1d8] sm:$0xf]
        %v931 = vld [vmem:[%s811 + $0x1dc] sm:$0xf]
        %v932 = vld [vmem:[%s811 + $0x1e0] sm:$0xf]
        %v933 = vld [vmem:[%s811 + $0x1e4] sm:$0xf]
        %v934 = vld [vmem:[%s811 + $0x1e8] sm:$0xf]
        %v935 = vld [vmem:[%s811 + $0x1ec] sm:$0xf]
        %v936 = vld [vmem:[%s811 + $0x1f0] sm:$0xf]
        %v937 = vld [vmem:[%s811 + $0x1f4] sm:$0xf]
        %v938 = vld [vmem:[%s811 + $0x1f8] sm:$0xf]
        %v939 = vld [vmem:[%s811 + $0x1fc] sm:$0xf]
        %v940 = vld [vmem:[%s811 + $0x200] sm:$0xf]
        %v941 = vld [vmem:[%s811 + $0x204] sm:$0xf]
        %v942 = vld [vmem:[%s811 + $0x208] sm:$0xf]
        %v943 = vld [vmem:[%s811 + $0x20c] sm:$0xf]
        %v944 = vld [vmem:[%s811 + $0x210] sm:$0xf]
        %v945 = vld [vmem:[%s811 + $0x214] sm:$0xf]
        %v946 = vld [vmem:[%s811 + $0x218] sm:$0xf]
        %v947 = vld [vmem:[%s811 + $0x21c] sm:$0xf]
        %v948 = vld [vmem:[%s811 + $0x220] sm:$0xf]
        %v949 = vld [vmem:[%s811 + $0x224] sm:$0xf]
        %v950 = vld [vmem:[%s811 + $0x228] sm:$0xf]
        %v951 = vld [vmem:[%s811 + $0x22c] sm:$0xf]
        %v952 = vld [vmem:[%s811 + $0x230] sm:$0xf]
        %v953 = vld [vmem:[%s811 + $0x234] sm:$0xf]
        %v954 = vld [vmem:[%s811 + $0x238] sm:$0xf]
        %v955 = vld [vmem:[%s811 + $0x23c] sm:$0xf]
        %v956 = vld [vmem:[%s811 + $0x240] sm:$0xf]
        %v957 = vld [vmem:[%s811 + $0x244] sm:$0xf]
        %v958 = vld [vmem:[%s811 + $0x248] sm:$0xf]
        %v959 = vld [vmem:[%s811 + $0x24c] sm:$0xf]
        %v960 = vld [vmem:[%s811 + $0x250] sm:$0xf]
        %v961 = vld [vmem:[%s811 + $0x254] sm:$0xf]
        %v962 = vld [vmem:[%s811 + $0x258] sm:$0xf]
        %v963 = vld [vmem:[%s811 + $0x25c] sm:$0xf]
        %v964 = vld [vmem:[%s811 + $0x260] sm:$0xf]
        %v965 = vld [vmem:[%s811 + $0x264] sm:$0xf]
        %v966 = vld [vmem:[%s811 + $0x268] sm:$0xf]
        %v967 = vld [vmem:[%s811 + $0x26c] sm:$0xf]
        %v968 = vld [vmem:[%s811 + $0x270] sm:$0xf]
        %v969 = vld [vmem:[%s811 + $0x274] sm:$0xf]
        %v970 = vld [vmem:[%s811 + $0x278] sm:$0xf]
        %v971 = vld [vmem:[%s811 + $0x27c] sm:$0xf]
        %v1132 = vunpack.c.l.b16 %v648
        %v1133 = vunpack.c.h.b16 %v648
        %v1134 = vunpack.c.l.b16 %v649
        %v1135 = vunpack.c.h.b16 %v649
        %v1136 = vunpack.c.l.b16 %v650
        %v1137 = vunpack.c.h.b16 %v650
        %v1138 = vunpack.c.l.b16 %v651
        %v1139 = vunpack.c.h.b16 %v651
        %v1140 = vunpack.c.l.b16 %v652
        %v1141 = vunpack.c.h.b16 %v652
        %v1142 = vunpack.c.l.b16 %v653
        %v1143 = vunpack.c.h.b16 %v653
        %v1144 = vunpack.c.l.b16 %v654
        %v1145 = vunpack.c.h.b16 %v654
        %v1146 = vunpack.c.l.b16 %v655
        %v1147 = vunpack.c.h.b16 %v655
        %v1148 = vunpack.c.l.b16 %v656
        %v1149 = vunpack.c.h.b16 %v656
        %v1150 = vunpack.c.l.b16 %v657
        %v1151 = vunpack.c.h.b16 %v657
        %v1152 = vunpack.c.l.b16 %v658
        %v1153 = vunpack.c.h.b16 %v658
        %v1154 = vunpack.c.l.b16 %v659
        %v1155 = vunpack.c.h.b16 %v659
        %v1156 = vunpack.c.l.b16 %v660
        %v1157 = vunpack.c.h.b16 %v660
        %v1158 = vunpack.c.l.b16 %v661
        %v1159 = vunpack.c.h.b16 %v661
        %v1160 = vunpack.c.l.b16 %v662
        %v1161 = vunpack.c.h.b16 %v662
        %v1162 = vunpack.c.l.b16 %v663
        %v1163 = vunpack.c.h.b16 %v663
        %v1164 = vunpack.c.l.b16 %v664
        %v1165 = vunpack.c.h.b16 %v664
        %v1166 = vunpack.c.l.b16 %v665
        %v1167 = vunpack.c.h.b16 %v665
        %v1168 = vunpack.c.l.b16 %v666
        %v1169 = vunpack.c.h.b16 %v666
        %v1170 = vunpack.c.l.b16 %v667
        %v1171 = vunpack.c.h.b16 %v667
        %v1172 = vunpack.c.l.b16 %v668
        %v1173 = vunpack.c.h.b16 %v668
        %v1174 = vunpack.c.l.b16 %v669
        %v1175 = vunpack.c.h.b16 %v669
        %v1176 = vunpack.c.l.b16 %v670
        %v1177 = vunpack.c.h.b16 %v670
        %v1178 = vunpack.c.l.b16 %v671
        %v1179 = vunpack.c.h.b16 %v671
        %v1180 = vunpack.c.l.b16 %v672
        %v1181 = vunpack.c.h.b16 %v672
        %v1182 = vunpack.c.l.b16 %v673
        %v1183 = vunpack.c.h.b16 %v673
        %v1184 = vunpack.c.l.b16 %v674
        %v1185 = vunpack.c.h.b16 %v674
        %v1186 = vunpack.c.l.b16 %v675
        %v1187 = vunpack.c.h.b16 %v675
        %v1188 = vunpack.c.l.b16 %v676
        %v1189 = vunpack.c.h.b16 %v676
        %v1190 = vunpack.c.l.b16 %v677
        %v1191 = vunpack.c.h.b16 %v677
        %v1192 = vunpack.c.l.b16 %v678
        %v1193 = vunpack.c.h.b16 %v678
        %v1194 = vunpack.c.l.b16 %v679
        %v1195 = vunpack.c.h.b16 %v679
        %v1196 = vunpack.c.l.b16 %v680
        %v1197 = vunpack.c.h.b16 %v680
        %v1198 = vunpack.c.l.b16 %v681
        %v1199 = vunpack.c.h.b16 %v681
        %v1200 = vunpack.c.l.b16 %v682
        %v1201 = vunpack.c.h.b16 %v682
        %v1202 = vunpack.c.l.b16 %v683
        %v1203 = vunpack.c.h.b16 %v683
        %v1204 = vunpack.c.l.b16 %v684
        %v1205 = vunpack.c.h.b16 %v684
        %v1206 = vunpack.c.l.b16 %v685
        %v1207 = vunpack.c.h.b16 %v685
        %v1208 = vunpack.c.l.b16 %v686
        %v1209 = vunpack.c.h.b16 %v686
        %v1210 = vunpack.c.l.b16 %v687
        %v1211 = vunpack.c.h.b16 %v687
        %v1212 = vunpack.c.l.b16 %v688
        %v1213 = vunpack.c.h.b16 %v688
        %v1214 = vunpack.c.l.b16 %v689
        %v1215 = vunpack.c.h.b16 %v689
        %v1216 = vunpack.c.l.b16 %v690
        %v1217 = vunpack.c.h.b16 %v690
        %v1218 = vunpack.c.l.b16 %v691
        %v1219 = vunpack.c.h.b16 %v691
        %v1220 = vunpack.c.l.b16 %v692
        %v1221 = vunpack.c.h.b16 %v692
        %v1222 = vunpack.c.l.b16 %v693
        %v1223 = vunpack.c.h.b16 %v693
        %v1224 = vunpack.c.l.b16 %v694
        %v1225 = vunpack.c.h.b16 %v694
        %v1226 = vunpack.c.l.b16 %v695
        %v1227 = vunpack.c.h.b16 %v695
        %v1228 = vunpack.c.l.b16 %v696
        %v1229 = vunpack.c.h.b16 %v696
        %v1230 = vunpack.c.l.b16 %v697
        %v1231 = vunpack.c.h.b16 %v697
        %v1232 = vunpack.c.l.b16 %v698
        %v1233 = vunpack.c.h.b16 %v698
        %v1234 = vunpack.c.l.b16 %v699
        %v1235 = vunpack.c.h.b16 %v699
        %v1236 = vunpack.c.l.b16 %v700
        %v1237 = vunpack.c.h.b16 %v700
        %v1238 = vunpack.c.l.b16 %v701
        %v1239 = vunpack.c.h.b16 %v701
        %v1240 = vunpack.c.l.b16 %v702
        %v1241 = vunpack.c.h.b16 %v702
        %v1242 = vunpack.c.l.b16 %v703
        %v1243 = vunpack.c.h.b16 %v703
        %v1244 = vunpack.c.l.b16 %v704
        %v1245 = vunpack.c.h.b16 %v704
        %v1246 = vunpack.c.l.b16 %v705
        %v1247 = vunpack.c.h.b16 %v705
        %v1248 = vunpack.c.l.b16 %v706
        %v1249 = vunpack.c.h.b16 %v706
        %v1250 = vunpack.c.l.b16 %v707
        %v1251 = vunpack.c.h.b16 %v707
        %v1252 = vunpack.c.l.b16 %v708
        %v1253 = vunpack.c.h.b16 %v708
        %v1254 = vunpack.c.l.b16 %v709
        %v1255 = vunpack.c.h.b16 %v709
        %v1256 = vunpack.c.l.b16 %v710
        %v1257 = vunpack.c.h.b16 %v710
        %v1258 = vunpack.c.l.b16 %v711
        %v1259 = vunpack.c.h.b16 %v711
        %v1260 = vunpack.c.l.b16 %v712
        %v1261 = vunpack.c.h.b16 %v712
        %v1262 = vunpack.c.l.b16 %v713
        %v1263 = vunpack.c.h.b16 %v713
        %v1264 = vunpack.c.l.b16 %v714
        %v1265 = vunpack.c.h.b16 %v714
        %v1266 = vunpack.c.l.b16 %v715
        %v1267 = vunpack.c.h.b16 %v715
        %v1268 = vunpack.c.l.b16 %v716
        %v1269 = vunpack.c.h.b16 %v716
        %v1270 = vunpack.c.l.b16 %v717
        %v1271 = vunpack.c.h.b16 %v717
        %v1272 = vunpack.c.l.b16 %v718
        %v1273 = vunpack.c.h.b16 %v718
        %v1274 = vunpack.c.l.b16 %v719
        %v1275 = vunpack.c.h.b16 %v719
        %v1276 = vunpack.c.l.b16 %v720
        %v1277 = vunpack.c.h.b16 %v720
        %v1278 = vunpack.c.l.b16 %v721
        %v1279 = vunpack.c.h.b16 %v721
        %v1280 = vunpack.c.l.b16 %v722
        %v1281 = vunpack.c.h.b16 %v722
        %v1282 = vunpack.c.l.b16 %v723
        %v1283 = vunpack.c.h.b16 %v723
        %v1284 = vunpack.c.l.b16 %v724
        %v1285 = vunpack.c.h.b16 %v724
        %v1286 = vunpack.c.l.b16 %v725
        %v1287 = vunpack.c.h.b16 %v725
        %v1288 = vunpack.c.l.b16 %v726
        %v1289 = vunpack.c.h.b16 %v726
        %v1290 = vunpack.c.l.b16 %v727
        %v1291 = vunpack.c.h.b16 %v727
        %v1292 = vunpack.c.l.b16 %v728
        %v1293 = vunpack.c.h.b16 %v728
        %v1294 = vunpack.c.l.b16 %v729
        %v1295 = vunpack.c.h.b16 %v729
        %v1296 = vunpack.c.l.b16 %v730
        %v1297 = vunpack.c.h.b16 %v730
        %v1298 = vunpack.c.l.b16 %v731
        %v1299 = vunpack.c.h.b16 %v731
        %v1300 = vunpack.c.l.b16 %v732
        %v1301 = vunpack.c.h.b16 %v732
        %v1302 = vunpack.c.l.b16 %v733
        %v1303 = vunpack.c.h.b16 %v733
        %v1304 = vunpack.c.l.b16 %v734
        %v1305 = vunpack.c.h.b16 %v734
        %v1306 = vunpack.c.l.b16 %v735
        %v1307 = vunpack.c.h.b16 %v735
        %v1308 = vunpack.c.l.b16 %v736
        %v1309 = vunpack.c.h.b16 %v736
        %v1310 = vunpack.c.l.b16 %v737
        %v1311 = vunpack.c.h.b16 %v737
        %v1312 = vunpack.c.l.b16 %v738
        %v1313 = vunpack.c.h.b16 %v738
        %v1314 = vunpack.c.l.b16 %v739
        %v1315 = vunpack.c.h.b16 %v739
        %v1316 = vunpack.c.l.b16 %v740
        %v1317 = vunpack.c.h.b16 %v740
        %v1318 = vunpack.c.l.b16 %v741
        %v1319 = vunpack.c.h.b16 %v741
        %v1320 = vunpack.c.l.b16 %v742
        %v1321 = vunpack.c.h.b16 %v742
        %v1322 = vunpack.c.l.b16 %v743
        %v1323 = vunpack.c.h.b16 %v743
        %v1324 = vunpack.c.l.b16 %v744
        %v1325 = vunpack.c.h.b16 %v744
        %v1326 = vunpack.c.l.b16 %v745
        %v1327 = vunpack.c.h.b16 %v745
        %v1328 = vunpack.c.l.b16 %v746
        %v1329 = vunpack.c.h.b16 %v746
        %v1330 = vunpack.c.l.b16 %v747
        %v1331 = vunpack.c.h.b16 %v747
        %v1332 = vunpack.c.l.b16 %v748
        %v1333 = vunpack.c.h.b16 %v748
        %v1334 = vunpack.c.l.b16 %v749
        %v1335 = vunpack.c.h.b16 %v749
        %v1336 = vunpack.c.l.b16 %v750
        %v1337 = vunpack.c.h.b16 %v750
        %v1338 = vunpack.c.l.b16 %v751
        %v1339 = vunpack.c.h.b16 %v751
        %v1340 = vunpack.c.l.b16 %v752
        %v1341 = vunpack.c.h.b16 %v752
        %v1342 = vunpack.c.l.b16 %v753
        %v1343 = vunpack.c.h.b16 %v753
        %v1344 = vunpack.c.l.b16 %v754
        %v1345 = vunpack.c.h.b16 %v754
        %v1346 = vunpack.c.l.b16 %v755
        %v1347 = vunpack.c.h.b16 %v755
        %v1348 = vunpack.c.l.b16 %v756
        %v1349 = vunpack.c.h.b16 %v756
        %v1350 = vunpack.c.l.b16 %v757
        %v1351 = vunpack.c.h.b16 %v757
        %v1352 = vunpack.c.l.b16 %v758
        %v1353 = vunpack.c.h.b16 %v758
        %v1354 = vunpack.c.l.b16 %v759
        %v1355 = vunpack.c.h.b16 %v759
        %v1356 = vunpack.c.l.b16 %v760
        %v1357 = vunpack.c.h.b16 %v760
        %v1358 = vunpack.c.l.b16 %v761
        %v1359 = vunpack.c.h.b16 %v761
        %v1360 = vunpack.c.l.b16 %v762
        %v1361 = vunpack.c.h.b16 %v762
        %v1362 = vunpack.c.l.b16 %v763
        %v1363 = vunpack.c.h.b16 %v763
        %v1364 = vunpack.c.l.b16 %v764
        %v1365 = vunpack.c.h.b16 %v764
        %v1366 = vunpack.c.l.b16 %v765
        %v1367 = vunpack.c.h.b16 %v765
        %v1368 = vunpack.c.l.b16 %v766
        %v1369 = vunpack.c.h.b16 %v766
        %v1370 = vunpack.c.l.b16 %v767
        %v1371 = vunpack.c.h.b16 %v767
        %v1372 = vunpack.c.l.b16 %v768
        %v1373 = vunpack.c.h.b16 %v768
        %v1374 = vunpack.c.l.b16 %v769
        %v1375 = vunpack.c.h.b16 %v769
        %v1376 = vunpack.c.l.b16 %v770
        %v1377 = vunpack.c.h.b16 %v770
        %v1378 = vunpack.c.l.b16 %v771
        %v1379 = vunpack.c.h.b16 %v771
        %v1380 = vunpack.c.l.b16 %v772
        %v1381 = vunpack.c.h.b16 %v772
        %v1382 = vunpack.c.l.b16 %v773
        %v1383 = vunpack.c.h.b16 %v773
        %v1384 = vunpack.c.l.b16 %v774
        %v1385 = vunpack.c.h.b16 %v774
        %v1386 = vunpack.c.l.b16 %v775
        %v1387 = vunpack.c.h.b16 %v775
        %v1388 = vunpack.c.l.b16 %v776
        %v1389 = vunpack.c.h.b16 %v776
        %v1390 = vunpack.c.l.b16 %v777
        %v1391 = vunpack.c.h.b16 %v777
        %v1392 = vunpack.c.l.b16 %v778
        %v1393 = vunpack.c.h.b16 %v778
        %v1394 = vunpack.c.l.b16 %v779
        %v1395 = vunpack.c.h.b16 %v779
        %v1396 = vunpack.c.l.b16 %v780
        %v1397 = vunpack.c.h.b16 %v780
        %v1398 = vunpack.c.l.b16 %v781
        %v1399 = vunpack.c.h.b16 %v781
        %v1400 = vunpack.c.l.b16 %v782
        %v1401 = vunpack.c.h.b16 %v782
        %v1402 = vunpack.c.l.b16 %v783
        %v1403 = vunpack.c.h.b16 %v783
        %v1404 = vunpack.c.l.b16 %v784
        %v1405 = vunpack.c.h.b16 %v784
        %v1406 = vunpack.c.l.b16 %v785
        %v1407 = vunpack.c.h.b16 %v785
        %v1408 = vunpack.c.l.b16 %v786
        %v1409 = vunpack.c.h.b16 %v786
        %v1410 = vunpack.c.l.b16 %v787
        %v1411 = vunpack.c.h.b16 %v787
        %v1412 = vunpack.c.l.b16 %v788
        %v1413 = vunpack.c.h.b16 %v788
        %v1414 = vunpack.c.l.b16 %v789
        %v1415 = vunpack.c.h.b16 %v789
        %v1416 = vunpack.c.l.b16 %v790
        %v1417 = vunpack.c.h.b16 %v790
        %v1418 = vunpack.c.l.b16 %v791
        %v1419 = vunpack.c.h.b16 %v791
        %v1420 = vunpack.c.l.b16 %v792
        %v1421 = vunpack.c.h.b16 %v792
        %v1422 = vunpack.c.l.b16 %v793
        %v1423 = vunpack.c.h.b16 %v793
        %v1424 = vunpack.c.l.b16 %v794
        %v1425 = vunpack.c.h.b16 %v794
        %v1426 = vunpack.c.l.b16 %v795
        %v1427 = vunpack.c.h.b16 %v795
        %v1428 = vunpack.c.l.b16 %v796
        %v1429 = vunpack.c.h.b16 %v796
        %v1430 = vunpack.c.l.b16 %v797
        %v1431 = vunpack.c.h.b16 %v797
        %v1432 = vunpack.c.l.b16 %v798
        %v1433 = vunpack.c.h.b16 %v798
        %v1434 = vunpack.c.l.b16 %v799
        %v1435 = vunpack.c.h.b16 %v799
        %v1436 = vunpack.c.l.b16 %v800
        %v1437 = vunpack.c.h.b16 %v800
        %v1438 = vunpack.c.l.b16 %v801
        %v1439 = vunpack.c.h.b16 %v801
        %v1440 = vunpack.c.l.b16 %v802
        %v1441 = vunpack.c.h.b16 %v802
        %v1442 = vunpack.c.l.b16 %v803
        %v1443 = vunpack.c.h.b16 %v803
        %v1444 = vunpack.c.l.b16 %v804
        %v1445 = vunpack.c.h.b16 %v804
        %v1446 = vunpack.c.l.b16 %v805
        %v1447 = vunpack.c.h.b16 %v805
        %v1448 = vunpack.c.l.b16 %v806
        %v1449 = vunpack.c.h.b16 %v806
        %v1450 = vunpack.c.l.b16 %v807
        %v1451 = vunpack.c.h.b16 %v807
        %v1452 = vpack.c.b16 %v1142, %v1132
        %v1453 = vpack.c.b16 %v1143, %v1133
        %v1454 = vpack.c.b16 %v1144, %v1134
        %v1455 = vpack.c.b16 %v1145, %v1135
        %v1456 = vpack.c.b16 %v1146, %v1136
        %v1457 = vpack.c.b16 %v1147, %v1137
        %v1458 = vpack.c.b16 %v1148, %v1138
        %v1459 = vpack.c.b16 %v1149, %v1139
        %v1460 = vpack.c.b16 %v1150, %v1140
        %v1461 = vpack.c.b16 %v1151, %v1141
        %v1462 = vpack.c.b16 %v1162, %v1152
        %v1463 = vpack.c.b16 %v1163, %v1153
        %v1464 = vpack.c.b16 %v1164, %v1154
        %v1465 = vpack.c.b16 %v1165, %v1155
        %v1466 = vpack.c.b16 %v1166, %v1156
        %v1467 = vpack.c.b16 %v1167, %v1157
        %v1468 = vpack.c.b16 %v1168, %v1158
        %v1469 = vpack.c.b16 %v1169, %v1159
        %v1470 = vpack.c.b16 %v1170, %v1160
        %v1471 = vpack.c.b16 %v1171, %v1161
        %v1472 = vpack.c.b16 %v1182, %v1172
        %v1473 = vpack.c.b16 %v1183, %v1173
        %v1474 = vpack.c.b16 %v1184, %v1174
        %v1475 = vpack.c.b16 %v1185, %v1175
        %v1476 = vpack.c.b16 %v1186, %v1176
        %v1477 = vpack.c.b16 %v1187, %v1177
        %v1478 = vpack.c.b16 %v1188, %v1178
        %v1479 = vpack.c.b16 %v1189, %v1179
        %v1480 = vpack.c.b16 %v1190, %v1180
        %v1481 = vpack.c.b16 %v1191, %v1181
        %v1482 = vpack.c.b16 %v1202, %v1192
        %v1483 = vpack.c.b16 %v1203, %v1193
        %v1484 = vpack.c.b16 %v1204, %v1194
        %v1485 = vpack.c.b16 %v1205, %v1195
        %v1486 = vpack.c.b16 %v1206, %v1196
        %v1487 = vpack.c.b16 %v1207, %v1197
        %v1488 = vpack.c.b16 %v1208, %v1198
        %v1489 = vpack.c.b16 %v1209, %v1199
        %v1490 = vpack.c.b16 %v1210, %v1200
        %v1491 = vpack.c.b16 %v1211, %v1201
        %v1492 = vpack.c.b16 %v1222, %v1212
        %v1493 = vpack.c.b16 %v1223, %v1213
        %v1494 = vpack.c.b16 %v1224, %v1214
        %v1495 = vpack.c.b16 %v1225, %v1215
        %v1496 = vpack.c.b16 %v1226, %v1216
        %v1497 = vpack.c.b16 %v1227, %v1217
        %v1498 = vpack.c.b16 %v1228, %v1218
        %v1499 = vpack.c.b16 %v1229, %v1219
        %v1500 = vpack.c.b16 %v1230, %v1220
        %v1501 = vpack.c.b16 %v1231, %v1221
        %v1502 = vpack.c.b16 %v1242, %v1232
        %v1503 = vpack.c.b16 %v1243, %v1233
        %v1504 = vpack.c.b16 %v1244, %v1234
        %v1505 = vpack.c.b16 %v1245, %v1235
        %v1506 = vpack.c.b16 %v1246, %v1236
        %v1507 = vpack.c.b16 %v1247, %v1237
        %v1508 = vpack.c.b16 %v1248, %v1238
        %v1509 = vpack.c.b16 %v1249, %v1239
        %v1510 = vpack.c.b16 %v1250, %v1240
        %v1511 = vpack.c.b16 %v1251, %v1241
        %v1512 = vpack.c.b16 %v1262, %v1252
        %v1513 = vpack.c.b16 %v1263, %v1253
        %v1514 = vpack.c.b16 %v1264, %v1254
        %v1515 = vpack.c.b16 %v1265, %v1255
        %v1516 = vpack.c.b16 %v1266, %v1256
        %v1517 = vpack.c.b16 %v1267, %v1257
        %v1518 = vpack.c.b16 %v1268, %v1258
        %v1519 = vpack.c.b16 %v1269, %v1259
        %v1520 = vpack.c.b16 %v1270, %v1260
        %v1521 = vpack.c.b16 %v1271, %v1261
        %v1522 = vpack.c.b16 %v1282, %v1272
        %v1523 = vpack.c.b16 %v1283, %v1273
        %v1524 = vpack.c.b16 %v1284, %v1274
        %v1525 = vpack.c.b16 %v1285, %v1275
        %v1526 = vpack.c.b16 %v1286, %v1276
        %v1527 = vpack.c.b16 %v1287, %v1277
        %v1528 = vpack.c.b16 %v1288, %v1278
        %v1529 = vpack.c.b16 %v1289, %v1279
        %v1530 = vpack.c.b16 %v1290, %v1280
        %v1531 = vpack.c.b16 %v1291, %v1281
        %v1532 = vpack.c.b16 %v1302, %v1292
        %v1533 = vpack.c.b16 %v1303, %v1293
        %v1534 = vpack.c.b16 %v1304, %v1294
        %v1535 = vpack.c.b16 %v1305, %v1295
        %v1536 = vpack.c.b16 %v1306, %v1296
        %v1537 = vpack.c.b16 %v1307, %v1297
        %v1538 = vpack.c.b16 %v1308, %v1298
        %v1539 = vpack.c.b16 %v1309, %v1299
        %v1540 = vpack.c.b16 %v1310, %v1300
        %v1541 = vpack.c.b16 %v1311, %v1301
        %v1542 = vpack.c.b16 %v1322, %v1312
        %v1543 = vpack.c.b16 %v1323, %v1313
        %v1544 = vpack.c.b16 %v1324, %v1314
        %v1545 = vpack.c.b16 %v1325, %v1315
        %v1546 = vpack.c.b16 %v1326, %v1316
        %v1547 = vpack.c.b16 %v1327, %v1317
        %v1548 = vpack.c.b16 %v1328, %v1318
        %v1549 = vpack.c.b16 %v1329, %v1319
        %v1550 = vpack.c.b16 %v1330, %v1320
        %v1551 = vpack.c.b16 %v1331, %v1321
        %v1552 = vpack.c.b16 %v1342, %v1332
        %v1553 = vpack.c.b16 %v1343, %v1333
        %v1554 = vpack.c.b16 %v1344, %v1334
        %v1555 = vpack.c.b16 %v1345, %v1335
        %v1556 = vpack.c.b16 %v1346, %v1336
        %v1557 = vpack.c.b16 %v1347, %v1337
        %v1558 = vpack.c.b16 %v1348, %v1338
        %v1559 = vpack.c.b16 %v1349, %v1339
        %v1560 = vpack.c.b16 %v1350, %v1340
        %v1561 = vpack.c.b16 %v1351, %v1341
        %v1562 = vpack.c.b16 %v1362, %v1352
        %v1563 = vpack.c.b16 %v1363, %v1353
        %v1564 = vpack.c.b16 %v1364, %v1354
        %v1565 = vpack.c.b16 %v1365, %v1355
        %v1566 = vpack.c.b16 %v1366, %v1356
        %v1567 = vpack.c.b16 %v1367, %v1357
        %v1568 = vpack.c.b16 %v1368, %v1358
        %v1569 = vpack.c.b16 %v1369, %v1359
        %v1570 = vpack.c.b16 %v1370, %v1360
        %v1571 = vpack.c.b16 %v1371, %v1361
        %v1572 = vpack.c.b16 %v1382, %v1372
        %v1573 = vpack.c.b16 %v1383, %v1373
        %v1574 = vpack.c.b16 %v1384, %v1374
        %v1575 = vpack.c.b16 %v1385, %v1375
        %v1576 = vpack.c.b16 %v1386, %v1376
        %v1577 = vpack.c.b16 %v1387, %v1377
        %v1578 = vpack.c.b16 %v1388, %v1378
        %v1579 = vpack.c.b16 %v1389, %v1379
        %v1580 = vpack.c.b16 %v1390, %v1380
        %v1581 = vpack.c.b16 %v1391, %v1381
        %v1582 = vpack.c.b16 %v1402, %v1392
        %v1583 = vpack.c.b16 %v1403, %v1393
        %v1584 = vpack.c.b16 %v1404, %v1394
        %v1585 = vpack.c.b16 %v1405, %v1395
        %v1586 = vpack.c.b16 %v1406, %v1396
        %v1587 = vpack.c.b16 %v1407, %v1397
        %v1588 = vpack.c.b16 %v1408, %v1398
        %v1589 = vpack.c.b16 %v1409, %v1399
        %v1590 = vpack.c.b16 %v1410, %v1400
        %v1591 = vpack.c.b16 %v1411, %v1401
        %v1592 = vpack.c.b16 %v1422, %v1412
        %v1593 = vpack.c.b16 %v1423, %v1413
        %v1594 = vpack.c.b16 %v1424, %v1414
        %v1595 = vpack.c.b16 %v1425, %v1415
        %v1596 = vpack.c.b16 %v1426, %v1416
        %v1597 = vpack.c.b16 %v1427, %v1417
        %v1598 = vpack.c.b16 %v1428, %v1418
        %v1599 = vpack.c.b16 %v1429, %v1419
        %v1600 = vpack.c.b16 %v1430, %v1420
        %v1601 = vpack.c.b16 %v1431, %v1421
        %v1602 = vpack.c.b16 %v1442, %v1432
        %v1603 = vpack.c.b16 %v1443, %v1433
        %v1604 = vpack.c.b16 %v1444, %v1434
        %v1605 = vpack.c.b16 %v1445, %v1435
        %v1606 = vpack.c.b16 %v1446, %v1436
        %v1607 = vpack.c.b16 %v1447, %v1437
        %v1608 = vpack.c.b16 %v1448, %v1438
        %v1609 = vpack.c.b16 %v1449, %v1439
        %v1610 = vpack.c.b16 %v1450, %v1440
        %v1611 = vpack.c.b16 %v1451, %v1441
        %v1932 = vunpack.c.l.b16 %v812
        %v1933 = vunpack.c.l.b16 %v813
        %v1934 = vunpack.c.l.b16 %v814
        %v1935 = vunpack.c.l.b16 %v815
        %v1936 = vunpack.c.l.b16 %v816
        %v1937 = vunpack.c.l.b16 %v817
        %v1938 = vunpack.c.l.b16 %v818
        %v1939 = vunpack.c.l.b16 %v819
        %v1940 = vunpack.c.l.b16 %v820
        %v1941 = vunpack.c.l.b16 %v821
        %v1942 = vunpack.c.l.b16 %v822
        %v1943 = vunpack.c.l.b16 %v823
        %v1944 = vunpack.c.l.b16 %v824
        %v1945 = vunpack.c.l.b16 %v825
        %v1946 = vunpack.c.l.b16 %v826
        %v1947 = vunpack.c.l.b16 %v827
        %v1948 = vunpack.c.l.b16 %v828
        %v1949 = vunpack.c.l.b16 %v829
        %v1950 = vunpack.c.l.b16 %v830
        %v1951 = vunpack.c.l.b16 %v831
        %v1952 = vunpack.c.l.b16 %v832
        %v1953 = vunpack.c.l.b16 %v833
        %v1954 = vunpack.c.l.b16 %v834
        %v1955 = vunpack.c.l.b16 %v835
        %v1956 = vunpack.c.l.b16 %v836
        %v1957 = vunpack.c.l.b16 %v837
        %v1958 = vunpack.c.l.b16 %v838
        %v1959 = vunpack.c.l.b16 %v839
        %v1960 = vunpack.c.l.b16 %v840
        %v1961 = vunpack.c.l.b16 %v841
        %v1962 = vunpack.c.l.b16 %v842
        %v1963 = vunpack.c.l.b16 %v843
        %v1964 = vunpack.c.l.b16 %v844
        %v1965 = vunpack.c.l.b16 %v845
        %v1966 = vunpack.c.l.b16 %v846
        %v1967 = vunpack.c.l.b16 %v847
        %v1968 = vunpack.c.l.b16 %v848
        %v1969 = vunpack.c.l.b16 %v849
        %v1970 = vunpack.c.l.b16 %v850
        %v1971 = vunpack.c.l.b16 %v851
        %v1972 = vunpack.c.l.b16 %v852
        %v1973 = vunpack.c.l.b16 %v853
        %v1974 = vunpack.c.l.b16 %v854
        %v1975 = vunpack.c.l.b16 %v855
        %v1976 = vunpack.c.l.b16 %v856
        %v1977 = vunpack.c.l.b16 %v857
        %v1978 = vunpack.c.l.b16 %v858
        %v1979 = vunpack.c.l.b16 %v859
        %v1980 = vunpack.c.l.b16 %v860
        %v1981 = vunpack.c.l.b16 %v861
        %v1982 = vunpack.c.l.b16 %v862
        %v1983 = vunpack.c.l.b16 %v863
        %v1984 = vunpack.c.l.b16 %v864
        %v1985 = vunpack.c.l.b16 %v865
        %v1986 = vunpack.c.l.b16 %v866
        %v1987 = vunpack.c.l.b16 %v867
        %v1988 = vunpack.c.l.b16 %v868
        %v1989 = vunpack.c.l.b16 %v869
        %v1990 = vunpack.c.l.b16 %v870
        %v1991 = vunpack.c.l.b16 %v871
        %v1992 = vunpack.c.l.b16 %v872
        %v1993 = vunpack.c.l.b16 %v873
        %v1994 = vunpack.c.l.b16 %v874
        %v1995 = vunpack.c.l.b16 %v875
        %v1996 = vunpack.c.l.b16 %v876
        %v1997 = vunpack.c.l.b16 %v877
        %v1998 = vunpack.c.l.b16 %v878
        %v1999 = vunpack.c.l.b16 %v879
        %v2000 = vunpack.c.l.b16 %v880
        %v2001 = vunpack.c.l.b16 %v881
        %v2002 = vunpack.c.l.b16 %v882
        %v2003 = vunpack.c.l.b16 %v883
        %v2004 = vunpack.c.l.b16 %v884
        %v2005 = vunpack.c.l.b16 %v885
        %v2006 = vunpack.c.l.b16 %v886
        %v2007 = vunpack.c.l.b16 %v887
        %v2008 = vunpack.c.l.b16 %v888
        %v2009 = vunpack.c.l.b16 %v889
        %v2010 = vunpack.c.l.b16 %v890
        %v2011 = vunpack.c.l.b16 %v891
        %v2012 = vunpack.c.l.b16 %v892
        %v2013 = vunpack.c.l.b16 %v893
        %v2014 = vunpack.c.l.b16 %v894
        %v2015 = vunpack.c.l.b16 %v895
        %v2016 = vunpack.c.l.b16 %v896
        %v2017 = vunpack.c.l.b16 %v897
        %v2018 = vunpack.c.l.b16 %v898
        %v2019 = vunpack.c.l.b16 %v899
        %v2020 = vunpack.c.l.b16 %v900
        %v2021 = vunpack.c.l.b16 %v901
        %v2022 = vunpack.c.l.b16 %v902
        %v2023 = vunpack.c.l.b16 %v903
        %v2024 = vunpack.c.l.b16 %v904
        %v2025 = vunpack.c.l.b16 %v905
        %v2026 = vunpack.c.l.b16 %v906
        %v2027 = vunpack.c.l.b16 %v907
        %v2028 = vunpack.c.l.b16 %v908
        %v2029 = vunpack.c.l.b16 %v909
        %v2030 = vunpack.c.l.b16 %v910
        %v2031 = vunpack.c.l.b16 %v911
        %v2032 = vunpack.c.l.b16 %v912
        %v2033 = vunpack.c.l.b16 %v913
        %v2034 = vunpack.c.l.b16 %v914
        %v2035 = vunpack.c.l.b16 %v915
        %v2036 = vunpack.c.l.b16 %v916
        %v2037 = vunpack.c.l.b16 %v917
        %v2038 = vunpack.c.l.b16 %v918
        %v2039 = vunpack.c.l.b16 %v919
        %v2040 = vunpack.c.l.b16 %v920
        %v2041 = vunpack.c.l.b16 %v921
        %v2042 = vunpack.c.l.b16 %v922
        %v2043 = vunpack.c.l.b16 %v923
        %v2044 = vunpack.c.l.b16 %v924
        %v2045 = vunpack.c.l.b16 %v925
        %v2046 = vunpack.c.l.b16 %v926
        %v2047 = vunpack.c.l.b16 %v927
        %v2048 = vunpack.c.l.b16 %v928
        %v2049 = vunpack.c.l.b16 %v929
        %v2050 = vunpack.c.l.b16 %v930
        %v2051 = vunpack.c.l.b16 %v931
        %v2052 = vunpack.c.l.b16 %v932
        %v2053 = vunpack.c.l.b16 %v933
        %v2054 = vunpack.c.l.b16 %v934
        %v2055 = vunpack.c.l.b16 %v935
        %v2056 = vunpack.c.l.b16 %v936
        %v2057 = vunpack.c.l.b16 %v937
        %v2058 = vunpack.c.l.b16 %v938
        %v2059 = vunpack.c.l.b16 %v939
        %v2060 = vunpack.c.l.b16 %v940
        %v2061 = vunpack.c.l.b16 %v941
        %v2062 = vunpack.c.l.b16 %v942
        %v2063 = vunpack.c.l.b16 %v943
        %v2064 = vunpack.c.l.b16 %v944
        %v2065 = vunpack.c.l.b16 %v945
        %v2066 = vunpack.c.l.b16 %v946
        %v2067 = vunpack.c.l.b16 %v947
        %v2068 = vunpack.c.l.b16 %v948
        %v2069 = vunpack.c.l.b16 %v949
        %v2070 = vunpack.c.l.b16 %v950
        %v2071 = vunpack.c.l.b16 %v951
        %v2072 = vunpack.c.l.b16 %v952
        %v2073 = vunpack.c.l.b16 %v953
        %v2074 = vunpack.c.l.b16 %v954
        %v2075 = vunpack.c.l.b16 %v955
        %v2076 = vunpack.c.l.b16 %v956
        %v2077 = vunpack.c.l.b16 %v957
        %v2078 = vunpack.c.l.b16 %v958
        %v2079 = vunpack.c.l.b16 %v959
        %v2080 = vunpack.c.l.b16 %v960
        %v2081 = vunpack.c.l.b16 %v961
        %v2082 = vunpack.c.l.b16 %v962
        %v2083 = vunpack.c.l.b16 %v963
        %v2084 = vunpack.c.l.b16 %v964
        %v2085 = vunpack.c.l.b16 %v965
        %v2086 = vunpack.c.l.b16 %v966
        %v2087 = vunpack.c.l.b16 %v967
        %v2088 = vunpack.c.l.b16 %v968
        %v2089 = vunpack.c.l.b16 %v969
        %v2090 = vunpack.c.l.b16 %v970
        %v2091 = vunpack.c.l.b16 %v971
        %v2092 = vpack.c.b16 %v1933, %v1932
        %v2093 = vpack.c.b16 %v1935, %v1934
        %v2094 = vpack.c.b16 %v1937, %v1936
        %v2095 = vpack.c.b16 %v1939, %v1938
        %v2096 = vpack.c.b16 %v1941, %v1940
        %v2097 = vpack.c.b16 %v1943, %v1942
        %v2098 = vpack.c.b16 %v1945, %v1944
        %v2099 = vpack.c.b16 %v1947, %v1946
        %v2100 = vpack.c.b16 %v1949, %v1948
        %v2101 = vpack.c.b16 %v1951, %v1950
        %v2102 = vpack.c.b16 %v1953, %v1952
        %v2103 = vpack.c.b16 %v1955, %v1954
        %v2104 = vpack.c.b16 %v1957, %v1956
        %v2105 = vpack.c.b16 %v1959, %v1958
        %v2106 = vpack.c.b16 %v1961, %v1960
        %v2107 = vpack.c.b16 %v1963, %v1962
        %v2108 = vpack.c.b16 %v1965, %v1964
        %v2109 = vpack.c.b16 %v1967, %v1966
        %v2110 = vpack.c.b16 %v1969, %v1968
        %v2111 = vpack.c.b16 %v1971, %v1970
        %v2112 = vpack.c.b16 %v1973, %v1972
        %v2113 = vpack.c.b16 %v1975, %v1974
        %v2114 = vpack.c.b16 %v1977, %v1976
        %v2115 = vpack.c.b16 %v1979, %v1978
        %v2116 = vpack.c.b16 %v1981, %v1980
        %v2117 = vpack.c.b16 %v1983, %v1982
        %v2118 = vpack.c.b16 %v1985, %v1984
        %v2119 = vpack.c.b16 %v1987, %v1986
        %v2120 = vpack.c.b16 %v1989, %v1988
        %v2121 = vpack.c.b16 %v1991, %v1990
        %v2122 = vpack.c.b16 %v1993, %v1992
        %v2123 = vpack.c.b16 %v1995, %v1994
        %v2124 = vpack.c.b16 %v1997, %v1996
        %v2125 = vpack.c.b16 %v1999, %v1998
        %v2126 = vpack.c.b16 %v2001, %v2000
        %v2127 = vpack.c.b16 %v2003, %v2002
        %v2128 = vpack.c.b16 %v2005, %v2004
        %v2129 = vpack.c.b16 %v2007, %v2006
        %v2130 = vpack.c.b16 %v2009, %v2008
        %v2131 = vpack.c.b16 %v2011, %v2010
        %v2132 = vpack.c.b16 %v2013, %v2012
        %v2133 = vpack.c.b16 %v2015, %v2014
        %v2134 = vpack.c.b16 %v2017, %v2016
        %v2135 = vpack.c.b16 %v2019, %v2018
        %v2136 = vpack.c.b16 %v2021, %v2020
        %v2137 = vpack.c.b16 %v2023, %v2022
        %v2138 = vpack.c.b16 %v2025, %v2024
        %v2139 = vpack.c.b16 %v2027, %v2026
        %v2140 = vpack.c.b16 %v2029, %v2028
        %v2141 = vpack.c.b16 %v2031, %v2030
        %v2142 = vpack.c.b16 %v2033, %v2032
        %v2143 = vpack.c.b16 %v2035, %v2034
        %v2144 = vpack.c.b16 %v2037, %v2036
        %v2145 = vpack.c.b16 %v2039, %v2038
        %v2146 = vpack.c.b16 %v2041, %v2040
        %v2147 = vpack.c.b16 %v2043, %v2042
        %v2148 = vpack.c.b16 %v2045, %v2044
        %v2149 = vpack.c.b16 %v2047, %v2046
        %v2150 = vpack.c.b16 %v2049, %v2048
        %v2151 = vpack.c.b16 %v2051, %v2050
        %v2152 = vpack.c.b16 %v2053, %v2052
        %v2153 = vpack.c.b16 %v2055, %v2054
        %v2154 = vpack.c.b16 %v2057, %v2056
        %v2155 = vpack.c.b16 %v2059, %v2058
        %v2156 = vpack.c.b16 %v2061, %v2060
        %v2157 = vpack.c.b16 %v2063, %v2062
        %v2158 = vpack.c.b16 %v2065, %v2064
        %v2159 = vpack.c.b16 %v2067, %v2066
        %v2160 = vpack.c.b16 %v2069, %v2068
        %v2161 = vpack.c.b16 %v2071, %v2070
        %v2162 = vpack.c.b16 %v2073, %v2072
        %v2163 = vpack.c.b16 %v2075, %v2074
        %v2164 = vpack.c.b16 %v2077, %v2076
        %v2165 = vpack.c.b16 %v2079, %v2078
        %v2166 = vpack.c.b16 %v2081, %v2080
        %v2167 = vpack.c.b16 %v2083, %v2082
        %v2168 = vpack.c.b16 %v2085, %v2084
        %v2169 = vpack.c.b16 %v2087, %v2086
        %v2170 = vpack.c.b16 %v2089, %v2088
        %v2171 = vpack.c.b16 %v2091, %v2090
        %2252 = vmatprep.subr.bf16.mxu0 0
        %2253 = vmatpush1.bf16.msra.mxu0 %v2099
        %2254 = vmatprep.subr.bf16.mxu0 0
        %2255 = vmatpush1.bf16.msra.mxu0 %v2098
        %2256 = vmatprep.subr.bf16.mxu0 0
        %2257 = vmatpush1.bf16.msra.mxu0 %v2097
        %2258 = vmatprep.subr.bf16.mxu0 0
        %2259 = vmatpush1.bf16.msra.mxu0 %v2096
        %2260 = vmatprep.subr.bf16.mxu0 0
        %2261 = vmatpush1.bf16.msra.mxu0 %v2095
        %2262 = vmatprep.subr.bf16.mxu0 0
        %2263 = vmatpush1.bf16.msra.mxu0 %v2094
        %2264 = vmatprep.subr.bf16.mxu0 0
        %2265 = vmatpush1.bf16.msra.mxu0 %v2093
        %2266 = vmatprep.subr.bf16.mxu0 0
        %2267 = vmatpush1.bf16.msra.mxu0 %v2092
        %2268 = vmatprep.subr.bf16.mxu0 0
        %2269 = vmatpush2.bf16.msra.mxu0 %v2107
        %2270 = vmatprep.subr.bf16.mxu0 0
        %2271 = vmatpush2.bf16.msra.mxu0 %v2106
        %2272 = vmatprep.subr.bf16.mxu0 0
        %2273 = vmatpush2.bf16.msra.mxu0 %v2105
        %2274 = vmatprep.subr.bf16.mxu0 0
        %2275 = vmatpush2.bf16.msra.mxu0 %v2104
        %2276 = vmatprep.subr.bf16.mxu0 0
        %2277 = vmatpush2.bf16.msra.mxu0 %v2103
        %2278 = vmatprep.subr.bf16.mxu0 0
        %2279 = vmatpush2.bf16.msra.mxu0 %v2102
        %2280 = vmatprep.subr.bf16.mxu0 0
        %2281 = vmatpush2.bf16.msra.mxu0 %v2101
        %2282 = vmatprep.subr.bf16.mxu0 0
        %2283 = vmatpush2.bf16.msra.mxu0 %v2100
        %2284 = vmatprep.mubr.bf16.mxu0 %v1453
        %2285 = vmatmul.mubr.bf16.gmra.mxu0 %v1452
        %v2286 = vpop.f32.mrf.mxu0
        %v2287 = vadd.f32 0.0, %v2286
        %v2288 = vpop.f32.mrf.mxu0
        %v2289 = vpop.f32.mrf.mxu0
        %v2290 = vadd.f32 0.0, %v2289
        %v2291 = vpop.f32.mrf.mxu0
        %2292 = vmatprep.mubr.bf16.mxu0 %v1463
        %2293 = vmatmul.mubr.bf16.gmra.mxu0 %v1462
        %v2294 = vpop.f32.mrf.mxu0
        %v2295 = vadd.f32 0.0, %v2294
        %v2296 = vpop.f32.mrf.mxu0
        %v2297 = vpop.f32.mrf.mxu0
        %v2298 = vadd.f32 0.0, %v2297
        %v2299 = vpop.f32.mrf.mxu0
        %2300 = vmatprep.mubr.bf16.mxu0 %v1473
        %2301 = vmatmul.mubr.bf16.gmra.mxu0 %v1472
        %v2302 = vpop.f32.mrf.mxu0
        %v2303 = vadd.f32 0.0, %v2302
        %v2304 = vpop.f32.mrf.mxu0
        %v2305 = vpop.f32.mrf.mxu0
        %v2306 = vadd.f32 0.0, %v2305
        %v2307 = vpop.f32.mrf.mxu0
        %2308 = vmatprep.mubr.bf16.mxu0 %v1483
        %2309 = vmatmul.mubr.bf16.gmra.mxu0 %v1482
        %v2310 = vpop.f32.mrf.mxu0
        %v2311 = vadd.f32 0.0, %v2310
        %v2312 = vpop.f32.mrf.mxu0
        %v2313 = vpop.f32.mrf.mxu0
        %v2314 = vadd.f32 0.0, %v2313
        %v2315 = vpop.f32.mrf.mxu0
        %2316 = vmatprep.mubr.bf16.mxu0 %v1493
        %2317 = vmatmul.mubr.bf16.gmra.mxu0 %v1492
        %v2318 = vpop.f32.mrf.mxu0
        %v2319 = vadd.f32 0.0, %v2318
        %v2320 = vpop.f32.mrf.mxu0
        %v2321 = vpop.f32.mrf.mxu0
        %v2322 = vadd.f32 0.0, %v2321
        %v2323 = vpop.f32.mrf.mxu0
        %2324 = vmatprep.mubr.bf16.mxu0 %v1503
        %2325 = vmatmul.mubr.bf16.gmra.mxu0 %v1502
        %v2326 = vpop.f32.mrf.mxu0
        %v2327 = vadd.f32 0.0, %v2326
        %v2328 = vpop.f32.mrf.mxu0
        %v2329 = vpop.f32.mrf.mxu0
        %v2330 = vadd.f32 0.0, %v2329
        %v2331 = vpop.f32.mrf.mxu0
        %2332 = vmatprep.mubr.bf16.mxu0 %v1513
        %2333 = vmatmul.mubr.bf16.gmra.mxu0 %v1512
        %v2334 = vpop.f32.mrf.mxu0
        %v2335 = vadd.f32 0.0, %v2334
        %v2336 = vpop.f32.mrf.mxu0
        %v2337 = vpop.f32.mrf.mxu0
        %v2338 = vadd.f32 0.0, %v2337
        %v2339 = vpop.f32.mrf.mxu0
        %2340 = vmatprep.mubr.bf16.mxu0 %v1523
        %2341 = vmatmul.mubr.bf16.gmra.mxu0 %v1522
        %v2342 = vpop.f32.mrf.mxu0
        %v2343 = vadd.f32 0.0, %v2342
        %v2344 = vpop.f32.mrf.mxu0
        %v2345 = vpop.f32.mrf.mxu0
        %v2346 = vadd.f32 0.0, %v2345
        %v2347 = vpop.f32.mrf.mxu0
        %2348 = vmatprep.mubr.bf16.mxu0 %v1533
        %2349 = vmatmul.mubr.bf16.gmra.mxu0 %v1532
        %v2350 = vpop.f32.mrf.mxu0
        %v2351 = vadd.f32 0.0, %v2350
        %v2352 = vpop.f32.mrf.mxu0
        %v2353 = vpop.f32.mrf.mxu0
        %v2354 = vadd.f32 0.0, %v2353
        %v2355 = vpop.f32.mrf.mxu0
        %2356 = vmatprep.mubr.bf16.mxu0 %v1543
        %2357 = vmatmul.mubr.bf16.gmra.mxu0 %v1542
        %v2358 = vpop.f32.mrf.mxu0
        %v2359 = vadd.f32 0.0, %v2358
        %v2360 = vpop.f32.mrf.mxu0
        %v2361 = vpop.f32.mrf.mxu0
        %v2362 = vadd.f32 0.0, %v2361
        %v2363 = vpop.f32.mrf.mxu0
        %2364 = vmatprep.mubr.bf16.mxu0 %v1553
        %2365 = vmatmul.mubr.bf16.gmra.mxu0 %v1552
        %v2366 = vpop.f32.mrf.mxu0
        %v2367 = vadd.f32 0.0, %v2366
        %v2368 = vpop.f32.mrf.mxu0
        %v2369 = vpop.f32.mrf.mxu0
        %v2370 = vadd.f32 0.0, %v2369
        %v2371 = vpop.f32.mrf.mxu0
        %2372 = vmatprep.mubr.bf16.mxu0 %v1563
        %2373 = vmatmul.mubr.bf16.gmra.mxu0 %v1562
        %v2374 = vpop.f32.mrf.mxu0
        %v2375 = vadd.f32 0.0, %v2374
        %v2376 = vpop.f32.mrf.mxu0
        %v2377 = vpop.f32.mrf.mxu0
        %v2378 = vadd.f32 0.0, %v2377
        %v2379 = vpop.f32.mrf.mxu0
        %2380 = vmatprep.mubr.bf16.mxu0 %v1573
        %2381 = vmatmul.mubr.bf16.gmra.mxu0 %v1572
        %v2382 = vpop.f32.mrf.mxu0
        %v2383 = vadd.f32 0.0, %v2382
        %v2384 = vpop.f32.mrf.mxu0
        %v2385 = vpop.f32.mrf.mxu0
        %v2386 = vadd.f32 0.0, %v2385
        %v2387 = vpop.f32.mrf.mxu0
        %2388 = vmatprep.mubr.bf16.mxu0 %v1583
        %2389 = vmatmul.mubr.bf16.gmra.mxu0 %v1582
        %v2390 = vpop.f32.mrf.mxu0
        %v2391 = vadd.f32 0.0, %v2390
        %v2392 = vpop.f32.mrf.mxu0
        %v2393 = vpop.f32.mrf.mxu0
        %v2394 = vadd.f32 0.0, %v2393
        %v2395 = vpop.f32.mrf.mxu0
        %2396 = vmatprep.mubr.bf16.mxu0 %v1593
        %2397 = vmatmul.mubr.bf16.gmra.mxu0 %v1592
        %v2398 = vpop.f32.mrf.mxu0
        %v2399 = vadd.f32 0.0, %v2398
        %v2400 = vpop.f32.mrf.mxu0
        %v2401 = vpop.f32.mrf.mxu0
        %v2402 = vadd.f32 0.0, %v2401
        %v2403 = vpop.f32.mrf.mxu0
        %2404 = vmatprep.mubr.bf16.mxu0 %v1603
        %2405 = vmatmul.mubr.bf16.gmra.mxu0 %v1602
        %v2406 = vpop.f32.mrf.mxu0
        %v2407 = vadd.f32 0.0, %v2406
        %v2408 = vpop.f32.mrf.mxu0
        %v2409 = vpop.f32.mrf.mxu0
        %v2410 = vadd.f32 0.0, %v2409
        %v2411 = vpop.f32.mrf.mxu0
        %2412 = vdwg.mxu0
        %2413 = vmatprep.subr.bf16.mxu0 0
        %2414 = vmatpush1.bf16.msra.mxu0 %v2115
        %2415 = vmatprep.subr.bf16.mxu0 0
        %2416 = vmatpush1.bf16.msra.mxu0 %v2114
        %2417 = vmatprep.subr.bf16.mxu0 0
        %2418 = vmatpush1.bf16.msra.mxu0 %v2113
        %2419 = vmatprep.subr.bf16.mxu0 0
        %2420 = vmatpush1.bf16.msra.mxu0 %v2112
        %2421 = vmatprep.subr.bf16.mxu0 0
        %2422 = vmatpush1.bf16.msra.mxu0 %v2111
        %2423 = vmatprep.subr.bf16.mxu0 0
        %2424 = vmatpush1.bf16.msra.mxu0 %v2110
        %2425 = vmatprep.subr.bf16.mxu0 0
        %2426 = vmatpush1.bf16.msra.mxu0 %v2109
        %2427 = vmatprep.subr.bf16.mxu0 0
        %2428 = vmatpush1.bf16.msra.mxu0 %v2108
        %2429 = vmatprep.subr.bf16.mxu0 0
        %2430 = vmatpush2.bf16.msra.mxu0 %v2123
        %2431 = vmatprep.subr.bf16.mxu0 0
        %2432 = vmatpush2.bf16.msra.mxu0 %v2122
        %2433 = vmatprep.subr.bf16.mxu0 0
        %2434 = vmatpush2.bf16.msra.mxu0 %v2121
        %2435 = vmatprep.subr.bf16.mxu0 0
        %2436 = vmatpush2.bf16.msra.mxu0 %v2120
        %2437 = vmatprep.subr.bf16.mxu0 0
        %2438 = vmatpush2.bf16.msra.mxu0 %v2119
        %2439 = vmatprep.subr.bf16.mxu0 0
        %2440 = vmatpush2.bf16.msra.mxu0 %v2118
        %2441 = vmatprep.subr.bf16.mxu0 0
        %2442 = vmatpush2.bf16.msra.mxu0 %v2117
        %2443 = vmatprep.subr.bf16.mxu0 0
        %2444 = vmatpush2.bf16.msra.mxu0 %v2116
        %2445 = vmatprep.mubr.bf16.mxu0 %v1455
        %2446 = vmatmul.mubr.bf16.gmra.mxu0 %v1454
        %v2447 = vpop.f32.mrf.mxu0
        %v2448 = vadd.f32 %v2287, %v2447
        %v2449 = vpop.f32.mrf.mxu0
        %v2450 = vpop.f32.mrf.mxu0
        %v2451 = vadd.f32 %v2290, %v2450
        %v2452 = vpop.f32.mrf.mxu0
        %2453 = vmatprep.mubr.bf16.mxu0 %v1465
        %2454 = vmatmul.mubr.bf16.gmra.mxu0 %v1464
        %v2455 = vpop.f32.mrf.mxu0
        %v2456 = vadd.f32 %v2295, %v2455
        %v2457 = vpop.f32.mrf.mxu0
        %v2458 = vpop.f32.mrf.mxu0
        %v2459 = vadd.f32 %v2298, %v2458
        %v2460 = vpop.f32.mrf.mxu0
        %2461 = vmatprep.mubr.bf16.mxu0 %v1475
        %2462 = vmatmul.mubr.bf16.gmra.mxu0 %v1474
        %v2463 = vpop.f32.mrf.mxu0
        %v2464 = vadd.f32 %v2303, %v2463
        %v2465 = vpop.f32.mrf.mxu0
        %v2466 = vpop.f32.mrf.mxu0
        %v2467 = vadd.f32 %v2306, %v2466
        %v2468 = vpop.f32.mrf.mxu0
        %2469 = vmatprep.mubr.bf16.mxu0 %v1485
        %2470 = vmatmul.mubr.bf16.gmra.mxu0 %v1484
        %v2471 = vpop.f32.mrf.mxu0
        %v2472 = vadd.f32 %v2311, %v2471
        %v2473 = vpop.f32.mrf.mxu0
        %v2474 = vpop.f32.mrf.mxu0
        %v2475 = vadd.f32 %v2314, %v2474
        %v2476 = vpop.f32.mrf.mxu0
        %2477 = vmatprep.mubr.bf16.mxu0 %v1495
        %2478 = vmatmul.mubr.bf16.gmra.mxu0 %v1494
        %v2479 = vpop.f32.mrf.mxu0
        %v2480 = vadd.f32 %v2319, %v2479
        %v2481 = vpop.f32.mrf.mxu0
        %v2482 = vpop.f32.mrf.mxu0
        %v2483 = vadd.f32 %v2322, %v2482
        %v2484 = vpop.f32.mrf.mxu0
        %2485 = vmatprep.mubr.bf16.mxu0 %v1505
        %2486 = vmatmul.mubr.bf16.gmra.mxu0 %v1504
        %v2487 = vpop.f32.mrf.mxu0
        %v2488 = vadd.f32 %v2327, %v2487
        %v2489 = vpop.f32.mrf.mxu0
        %v2490 = vpop.f32.mrf.mxu0
        %v2491 = vadd.f32 %v2330, %v2490
        %v2492 = vpop.f32.mrf.mxu0
        %2493 = vmatprep.mubr.bf16.mxu0 %v1515
        %2494 = vmatmul.mubr.bf16.gmra.mxu0 %v1514
        %v2495 = vpop.f32.mrf.mxu0
        %v2496 = vadd.f32 %v2335, %v2495
        %v2497 = vpop.f32.mrf.mxu0
        %v2498 = vpop.f32.mrf.mxu0
        %v2499 = vadd.f32 %v2338, %v2498
        %v2500 = vpop.f32.mrf.mxu0
        %2501 = vmatprep.mubr.bf16.mxu0 %v1525
        %2502 = vmatmul.mubr.bf16.gmra.mxu0 %v1524
        %v2503 = vpop.f32.mrf.mxu0
        %v2504 = vadd.f32 %v2343, %v2503
        %v2505 = vpop.f32.mrf.mxu0
        %v2506 = vpop.f32.mrf.mxu0
        %v2507 = vadd.f32 %v2346, %v2506
        %v2508 = vpop.f32.mrf.mxu0
        %2509 = vmatprep.mubr.bf16.mxu0 %v1535
        %2510 = vmatmul.mubr.bf16.gmra.mxu0 %v1534
        %v2511 = vpop.f32.mrf.mxu0
        %v2512 = vadd.f32 %v2351, %v2511
        %v2513 = vpop.f32.mrf.mxu0
        %v2514 = vpop.f32.mrf.mxu0
        %v2515 = vadd.f32 %v2354, %v2514
        %v2516 = vpop.f32.mrf.mxu0
        %2517 = vmatprep.mubr.bf16.mxu0 %v1545
        %2518 = vmatmul.mubr.bf16.gmra.mxu0 %v1544
        %v2519 = vpop.f32.mrf.mxu0
        %v2520 = vadd.f32 %v2359, %v2519
        %v2521 = vpop.f32.mrf.mxu0
        %v2522 = vpop.f32.mrf.mxu0
        %v2523 = vadd.f32 %v2362, %v2522
        %v2524 = vpop.f32.mrf.mxu0
        %2525 = vmatprep.mubr.bf16.mxu0 %v1555
        %2526 = vmatmul.mubr.bf16.gmra.mxu0 %v1554
        %v2527 = vpop.f32.mrf.mxu0
        %v2528 = vadd.f32 %v2367, %v2527
        %v2529 = vpop.f32.mrf.mxu0
        %v2530 = vpop.f32.mrf.mxu0
        %v2531 = vadd.f32 %v2370, %v2530
        %v2532 = vpop.f32.mrf.mxu0
        %2533 = vmatprep.mubr.bf16.mxu0 %v1565
        %2534 = vmatmul.mubr.bf16.gmra.mxu0 %v1564
        %v2535 = vpop.f32.mrf.mxu0
        %v2536 = vadd.f32 %v2375, %v2535
        %v2537 = vpop.f32.mrf.mxu0
        %v2538 = vpop.f32.mrf.mxu0
        %v2539 = vadd.f32 %v2378, %v2538
        %v2540 = vpop.f32.mrf.mxu0
        %2541 = vmatprep.mubr.bf16.mxu0 %v1575
        %2542 = vmatmul.mubr.bf16.gmra.mxu0 %v1574
        %v2543 = vpop.f32.mrf.mxu0
        %v2544 = vadd.f32 %v2383, %v2543
        %v2545 = vpop.f32.mrf.mxu0
        %v2546 = vpop.f32.mrf.mxu0
        %v2547 = vadd.f32 %v2386, %v2546
        %v2548 = vpop.f32.mrf.mxu0
        %2549 = vmatprep.mubr.bf16.mxu0 %v1585
        %2550 = vmatmul.mubr.bf16.gmra.mxu0 %v1584
        %v2551 = vpop.f32.mrf.mxu0
        %v2552 = vadd.f32 %v2391, %v2551
        %v2553 = vpop.f32.mrf.mxu0
        %v2554 = vpop.f32.mrf.mxu0
        %v2555 = vadd.f32 %v2394, %v2554
        %v2556 = vpop.f32.mrf.mxu0
        %2557 = vmatprep.mubr.bf16.mxu0 %v1595
        %2558 = vmatmul.mubr.bf16.gmra.mxu0 %v1594
        %v2559 = vpop.f32.mrf.mxu0
        %v2560 = vadd.f32 %v2399, %v2559
        %v2561 = vpop.f32.mrf.mxu0
        %v2562 = vpop.f32.mrf.mxu0
        %v2563 = vadd.f32 %v2402, %v2562
        %v2564 = vpop.f32.mrf.mxu0
        %2565 = vmatprep.mubr.bf16.mxu0 %v1605
        %2566 = vmatmul.mubr.bf16.gmra.mxu0 %v1604
        %v2567 = vpop.f32.mrf.mxu0
        %v2568 = vadd.f32 %v2407, %v2567
        %v2569 = vpop.f32.mrf.mxu0
        %v2570 = vpop.f32.mrf.mxu0
        %v2571 = vadd.f32 %v2410, %v2570
        %v2572 = vpop.f32.mrf.mxu0
        %2573 = vdwg.mxu0
        %2574 = vmatprep.subr.bf16.mxu0 0
        %2575 = vmatpush1.bf16.msra.mxu0 %v2131
        %2576 = vmatprep.subr.bf16.mxu0 0
        %2577 = vmatpush1.bf16.msra.mxu0 %v2130
        %2578 = vmatprep.subr.bf16.mxu0 0
        %2579 = vmatpush1.bf16.msra.mxu0 %v2129
        %2580 = vmatprep.subr.bf16.mxu0 0
        %2581 = vmatpush1.bf16.msra.mxu0 %v2128
        %2582 = vmatprep.subr.bf16.mxu0 0
        %2583 = vmatpush1.bf16.msra.mxu0 %v2127
        %2584 = vmatprep.subr.bf16.mxu0 0
        %2585 = vmatpush1.bf16.msra.mxu0 %v2126
        %2586 = vmatprep.subr.bf16.mxu0 0
        %2587 = vmatpush1.bf16.msra.mxu0 %v2125
        %2588 = vmatprep.subr.bf16.mxu0 0
        %2589 = vmatpush1.bf16.msra.mxu0 %v2124
        %2590 = vmatprep.subr.bf16.mxu0 0
        %2591 = vmatpush2.bf16.msra.mxu0 %v2139
        %2592 = vmatprep.subr.bf16.mxu0 0
        %2593 = vmatpush2.bf16.msra.mxu0 %v2138
        %2594 = vmatprep.subr.bf16.mxu0 0
        %2595 = vmatpush2.bf16.msra.mxu0 %v2137
        %2596 = vmatprep.subr.bf16.mxu0 0
        %2597 = vmatpush2.bf16.msra.mxu0 %v2136
        %2598 = vmatprep.subr.bf16.mxu0 0
        %2599 = vmatpush2.bf16.msra.mxu0 %v2135
        %2600 = vmatprep.subr.bf16.mxu0 0
        %2601 = vmatpush2.bf16.msra.mxu0 %v2134
        %2602 = vmatprep.subr.bf16.mxu0 0
        %2603 = vmatpush2.bf16.msra.mxu0 %v2133
        %2604 = vmatprep.subr.bf16.mxu0 0
        %2605 = vmatpush2.bf16.msra.mxu0 %v2132
        %2606 = vmatprep.mubr.bf16.mxu0 %v1457
        %2607 = vmatmul.mubr.bf16.gmra.mxu0 %v1456
        %v2608 = vpop.f32.mrf.mxu0
        %v2609 = vadd.f32 %v2448, %v2608
        %v2610 = vpop.f32.mrf.mxu0
        %v2611 = vpop.f32.mrf.mxu0
        %v2612 = vadd.f32 %v2451, %v2611
        %v2613 = vpop.f32.mrf.mxu0
        %2614 = vmatprep.mubr.bf16.mxu0 %v1467
        %2615 = vmatmul.mubr.bf16.gmra.mxu0 %v1466
        %v2616 = vpop.f32.mrf.mxu0
        %v2617 = vadd.f32 %v2456, %v2616
        %v2618 = vpop.f32.mrf.mxu0
        %v2619 = vpop.f32.mrf.mxu0
        %v2620 = vadd.f32 %v2459, %v2619
        %v2621 = vpop.f32.mrf.mxu0
        %2622 = vmatprep.mubr.bf16.mxu0 %v1477
        %2623 = vmatmul.mubr.bf16.gmra.mxu0 %v1476
        %v2624 = vpop.f32.mrf.mxu0
        %v2625 = vadd.f32 %v2464, %v2624
        %v2626 = vpop.f32.mrf.mxu0
        %v2627 = vpop.f32.mrf.mxu0
        %v2628 = vadd.f32 %v2467, %v2627
        %v2629 = vpop.f32.mrf.mxu0
        %2630 = vmatprep.mubr.bf16.mxu0 %v1487
        %2631 = vmatmul.mubr.bf16.gmra.mxu0 %v1486
        %v2632 = vpop.f32.mrf.mxu0
        %v2633 = vadd.f32 %v2472, %v2632
        %v2634 = vpop.f32.mrf.mxu0
        %v2635 = vpop.f32.mrf.mxu0
        %v2636 = vadd.f32 %v2475, %v2635
        %v2637 = vpop.f32.mrf.mxu0
        %2638 = vmatprep.mubr.bf16.mxu0 %v1497
        %2639 = vmatmul.mubr.bf16.gmra.mxu0 %v1496
        %v2640 = vpop.f32.mrf.mxu0
        %v2641 = vadd.f32 %v2480, %v2640
        %v2642 = vpop.f32.mrf.mxu0
        %v2643 = vpop.f32.mrf.mxu0
        %v2644 = vadd.f32 %v2483, %v2643
        %v2645 = vpop.f32.mrf.mxu0
        %2646 = vmatprep.mubr.bf16.mxu0 %v1507
        %2647 = vmatmul.mubr.bf16.gmra.mxu0 %v1506
        %v2648 = vpop.f32.mrf.mxu0
        %v2649 = vadd.f32 %v2488, %v2648
        %v2650 = vpop.f32.mrf.mxu0
        %v2651 = vpop.f32.mrf.mxu0
        %v2652 = vadd.f32 %v2491, %v2651
        %v2653 = vpop.f32.mrf.mxu0
        %2654 = vmatprep.mubr.bf16.mxu0 %v1517
        %2655 = vmatmul.mubr.bf16.gmra.mxu0 %v1516
        %v2656 = vpop.f32.mrf.mxu0
        %v2657 = vadd.f32 %v2496, %v2656
        %v2658 = vpop.f32.mrf.mxu0
        %v2659 = vpop.f32.mrf.mxu0
        %v2660 = vadd.f32 %v2499, %v2659
        %v2661 = vpop.f32.mrf.mxu0
        %2662 = vmatprep.mubr.bf16.mxu0 %v1527
        %2663 = vmatmul.mubr.bf16.gmra.mxu0 %v1526
        %v2664 = vpop.f32.mrf.mxu0
        %v2665 = vadd.f32 %v2504, %v2664
        %v2666 = vpop.f32.mrf.mxu0
        %v2667 = vpop.f32.mrf.mxu0
        %v2668 = vadd.f32 %v2507, %v2667
        %v2669 = vpop.f32.mrf.mxu0
        %2670 = vmatprep.mubr.bf16.mxu0 %v1537
        %2671 = vmatmul.mubr.bf16.gmra.mxu0 %v1536
        %v2672 = vpop.f32.mrf.mxu0
        %v2673 = vadd.f32 %v2512, %v2672
        %v2674 = vpop.f32.mrf.mxu0
        %v2675 = vpop.f32.mrf.mxu0
        %v2676 = vadd.f32 %v2515, %v2675
        %v2677 = vpop.f32.mrf.mxu0
        %2678 = vmatprep.mubr.bf16.mxu0 %v1547
        %2679 = vmatmul.mubr.bf16.gmra.mxu0 %v1546
        %v2680 = vpop.f32.mrf.mxu0
        %v2681 = vadd.f32 %v2520, %v2680
        %v2682 = vpop.f32.mrf.mxu0
        %v2683 = vpop.f32.mrf.mxu0
        %v2684 = vadd.f32 %v2523, %v2683
        %v2685 = vpop.f32.mrf.mxu0
        %2686 = vmatprep.mubr.bf16.mxu0 %v1557
        %2687 = vmatmul.mubr.bf16.gmra.mxu0 %v1556
        %v2688 = vpop.f32.mrf.mxu0
        %v2689 = vadd.f32 %v2528, %v2688
        %v2690 = vpop.f32.mrf.mxu0
        %v2691 = vpop.f32.mrf.mxu0
        %v2692 = vadd.f32 %v2531, %v2691
        %v2693 = vpop.f32.mrf.mxu0
        %2694 = vmatprep.mubr.bf16.mxu0 %v1567
        %2695 = vmatmul.mubr.bf16.gmra.mxu0 %v1566
        %v2696 = vpop.f32.mrf.mxu0
        %v2697 = vadd.f32 %v2536, %v2696
        %v2698 = vpop.f32.mrf.mxu0
        %v2699 = vpop.f32.mrf.mxu0
        %v2700 = vadd.f32 %v2539, %v2699
        %v2701 = vpop.f32.mrf.mxu0
        %2702 = vmatprep.mubr.bf16.mxu0 %v1577
        %2703 = vmatmul.mubr.bf16.gmra.mxu0 %v1576
        %v2704 = vpop.f32.mrf.mxu0
        %v2705 = vadd.f32 %v2544, %v2704
        %v2706 = vpop.f32.mrf.mxu0
        %v2707 = vpop.f32.mrf.mxu0
        %v2708 = vadd.f32 %v2547, %v2707
        %v2709 = vpop.f32.mrf.mxu0
        %2710 = vmatprep.mubr.bf16.mxu0 %v1587
        %2711 = vmatmul.mubr.bf16.gmra.mxu0 %v1586
        %v2712 = vpop.f32.mrf.mxu0
        %v2713 = vadd.f32 %v2552, %v2712
        %v2714 = vpop.f32.mrf.mxu0
        %v2715 = vpop.f32.mrf.mxu0
        %v2716 = vadd.f32 %v2555, %v2715
        %v2717 = vpop.f32.mrf.mxu0
        %2718 = vmatprep.mubr.bf16.mxu0 %v1597
        %2719 = vmatmul.mubr.bf16.gmra.mxu0 %v1596
        %v2720 = vpop.f32.mrf.mxu0
        %v2721 = vadd.f32 %v2560, %v2720
        %v2722 = vpop.f32.mrf.mxu0
        %v2723 = vpop.f32.mrf.mxu0
        %v2724 = vadd.f32 %v2563, %v2723
        %v2725 = vpop.f32.mrf.mxu0
        %2726 = vmatprep.mubr.bf16.mxu0 %v1607
        %2727 = vmatmul.mubr.bf16.gmra.mxu0 %v1606
        %v2728 = vpop.f32.mrf.mxu0
        %v2729 = vadd.f32 %v2568, %v2728
        %v2730 = vpop.f32.mrf.mxu0
        %v2731 = vpop.f32.mrf.mxu0
        %v2732 = vadd.f32 %v2571, %v2731
        %v2733 = vpop.f32.mrf.mxu0
        %2734 = vdwg.mxu0
        %2735 = vmatprep.subr.bf16.mxu0 0
        %2736 = vmatpush1.bf16.msra.mxu0 %v2147
        %2737 = vmatprep.subr.bf16.mxu0 0
        %2738 = vmatpush1.bf16.msra.mxu0 %v2146
        %2739 = vmatprep.subr.bf16.mxu0 0
        %2740 = vmatpush1.bf16.msra.mxu0 %v2145
        %2741 = vmatprep.subr.bf16.mxu0 0
        %2742 = vmatpush1.bf16.msra.mxu0 %v2144
        %2743 = vmatprep.subr.bf16.mxu0 0
        %2744 = vmatpush1.bf16.msra.mxu0 %v2143
        %2745 = vmatprep.subr.bf16.mxu0 0
        %2746 = vmatpush1.bf16.msra.mxu0 %v2142
        %2747 = vmatprep.subr.bf16.mxu0 0
        %2748 = vmatpush1.bf16.msra.mxu0 %v2141
        %2749 = vmatprep.subr.bf16.mxu0 0
        %2750 = vmatpush1.bf16.msra.mxu0 %v2140
        %2751 = vmatprep.subr.bf16.mxu0 0
        %2752 = vmatpush2.bf16.msra.mxu0 %v2155
        %2753 = vmatprep.subr.bf16.mxu0 0
        %2754 = vmatpush2.bf16.msra.mxu0 %v2154
        %2755 = vmatprep.subr.bf16.mxu0 0
        %2756 = vmatpush2.bf16.msra.mxu0 %v2153
        %2757 = vmatprep.subr.bf16.mxu0 0
        %2758 = vmatpush2.bf16.msra.mxu0 %v2152
        %2759 = vmatprep.subr.bf16.mxu0 0
        %2760 = vmatpush2.bf16.msra.mxu0 %v2151
        %2761 = vmatprep.subr.bf16.mxu0 0
        %2762 = vmatpush2.bf16.msra.mxu0 %v2150
        %2763 = vmatprep.subr.bf16.mxu0 0
        %2764 = vmatpush2.bf16.msra.mxu0 %v2149
        %2765 = vmatprep.subr.bf16.mxu0 0
        %2766 = vmatpush2.bf16.msra.mxu0 %v2148
        %2767 = vmatprep.mubr.bf16.mxu0 %v1459
        %2768 = vmatmul.mubr.bf16.gmra.mxu0 %v1458
        %v2769 = vpop.f32.mrf.mxu0
        %v2770 = vadd.f32 %v2609, %v2769
        %v2771 = vpop.f32.mrf.mxu0
        %v2772 = vpop.f32.mrf.mxu0
        %v2773 = vadd.f32 %v2612, %v2772
        %v2774 = vpop.f32.mrf.mxu0
        %2775 = vmatprep.mubr.bf16.mxu0 %v1469
        %2776 = vmatmul.mubr.bf16.gmra.mxu0 %v1468
        %v2777 = vpop.f32.mrf.mxu0
        %v2778 = vadd.f32 %v2617, %v2777
        %v2779 = vpop.f32.mrf.mxu0
        %v2780 = vpop.f32.mrf.mxu0
        %v2781 = vadd.f32 %v2620, %v2780
        %v2782 = vpop.f32.mrf.mxu0
        %2783 = vmatprep.mubr.bf16.mxu0 %v1479
        %2784 = vmatmul.mubr.bf16.gmra.mxu0 %v1478
        %v2785 = vpop.f32.mrf.mxu0
        %v2786 = vadd.f32 %v2625, %v2785
        %v2787 = vpop.f32.mrf.mxu0
        %v2788 = vpop.f32.mrf.mxu0
        %v2789 = vadd.f32 %v2628, %v2788
        %v2790 = vpop.f32.mrf.mxu0
        %2791 = vmatprep.mubr.bf16.mxu0 %v1489
        %2792 = vmatmul.mubr.bf16.gmra.mxu0 %v1488
        %v2793 = vpop.f32.mrf.mxu0
        %v2794 = vadd.f32 %v2633, %v2793
        %v2795 = vpop.f32.mrf.mxu0
        %v2796 = vpop.f32.mrf.mxu0
        %v2797 = vadd.f32 %v2636, %v2796
        %v2798 = vpop.f32.mrf.mxu0
        %2799 = vmatprep.mubr.bf16.mxu0 %v1499
        %2800 = vmatmul.mubr.bf16.gmra.mxu0 %v1498
        %v2801 = vpop.f32.mrf.mxu0
        %v2802 = vadd.f32 %v2641, %v2801
        %v2803 = vpop.f32.mrf.mxu0
        %v2804 = vpop.f32.mrf.mxu0
        %v2805 = vadd.f32 %v2644, %v2804
        %v2806 = vpop.f32.mrf.mxu0
        %2807 = vmatprep.mubr.bf16.mxu0 %v1509
        %2808 = vmatmul.mubr.bf16.gmra.mxu0 %v1508
        %v2809 = vpop.f32.mrf.mxu0
        %v2810 = vadd.f32 %v2649, %v2809
        %v2811 = vpop.f32.mrf.mxu0
        %v2812 = vpop.f32.mrf.mxu0
        %v2813 = vadd.f32 %v2652, %v2812
        %v2814 = vpop.f32.mrf.mxu0
        %2815 = vmatprep.mubr.bf16.mxu0 %v1519
        %2816 = vmatmul.mubr.bf16.gmra.mxu0 %v1518
        %v2817 = vpop.f32.mrf.mxu0
        %v2818 = vadd.f32 %v2657, %v2817
        %v2819 = vpop.f32.mrf.mxu0
        %v2820 = vpop.f32.mrf.mxu0
        %v2821 = vadd.f32 %v2660, %v2820
        %v2822 = vpop.f32.mrf.mxu0
        %2823 = vmatprep.mubr.bf16.mxu0 %v1529
        %2824 = vmatmul.mubr.bf16.gmra.mxu0 %v1528
        %v2825 = vpop.f32.mrf.mxu0
        %v2826 = vadd.f32 %v2665, %v2825
        %v2827 = vpop.f32.mrf.mxu0
        %v2828 = vpop.f32.mrf.mxu0
        %v2829 = vadd.f32 %v2668, %v2828
        %v2830 = vpop.f32.mrf.mxu0
        %2831 = vmatprep.mubr.bf16.mxu0 %v1539
        %2832 = vmatmul.mubr.bf16.gmra.mxu0 %v1538
        %v2833 = vpop.f32.mrf.mxu0
        %v2834 = vadd.f32 %v2673, %v2833
        %v2835 = vpop.f32.mrf.mxu0
        %v2836 = vpop.f32.mrf.mxu0
        %v2837 = vadd.f32 %v2676, %v2836
        %v2838 = vpop.f32.mrf.mxu0
        %2839 = vmatprep.mubr.bf16.mxu0 %v1549
        %2840 = vmatmul.mubr.bf16.gmra.mxu0 %v1548
        %v2841 = vpop.f32.mrf.mxu0
        %v2842 = vadd.f32 %v2681, %v2841
        %v2843 = vpop.f32.mrf.mxu0
        %v2844 = vpop.f32.mrf.mxu0
        %v2845 = vadd.f32 %v2684, %v2844
        %v2846 = vpop.f32.mrf.mxu0
        %2847 = vmatprep.mubr.bf16.mxu0 %v1559
        %2848 = vmatmul.mubr.bf16.gmra.mxu0 %v1558
        %v2849 = vpop.f32.mrf.mxu0
        %v2850 = vadd.f32 %v2689, %v2849
        %v2851 = vpop.f32.mrf.mxu0
        %v2852 = vpop.f32.mrf.mxu0
        %v2853 = vadd.f32 %v2692, %v2852
        %v2854 = vpop.f32.mrf.mxu0
        %2855 = vmatprep.mubr.bf16.mxu0 %v1569
        %2856 = vmatmul.mubr.bf16.gmra.mxu0 %v1568
        %v2857 = vpop.f32.mrf.mxu0
        %v2858 = vadd.f32 %v2697, %v2857
        %v2859 = vpop.f32.mrf.mxu0
        %v2860 = vpop.f32.mrf.mxu0
        %v2861 = vadd.f32 %v2700, %v2860
        %v2862 = vpop.f32.mrf.mxu0
        %2863 = vmatprep.mubr.bf16.mxu0 %v1579
        %2864 = vmatmul.mubr.bf16.gmra.mxu0 %v1578
        %v2865 = vpop.f32.mrf.mxu0
        %v2866 = vadd.f32 %v2705, %v2865
        %v2867 = vpop.f32.mrf.mxu0
        %v2868 = vpop.f32.mrf.mxu0
        %v2869 = vadd.f32 %v2708, %v2868
        %v2870 = vpop.f32.mrf.mxu0
        %2871 = vmatprep.mubr.bf16.mxu0 %v1589
        %2872 = vmatmul.mubr.bf16.gmra.mxu0 %v1588
        %v2873 = vpop.f32.mrf.mxu0
        %v2874 = vadd.f32 %v2713, %v2873
        %v2875 = vpop.f32.mrf.mxu0
        %v2876 = vpop.f32.mrf.mxu0
        %v2877 = vadd.f32 %v2716, %v2876
        %v2878 = vpop.f32.mrf.mxu0
        %2879 = vmatprep.mubr.bf16.mxu0 %v1599
        %2880 = vmatmul.mubr.bf16.gmra.mxu0 %v1598
        %v2881 = vpop.f32.mrf.mxu0
        %v2882 = vadd.f32 %v2721, %v2881
        %v2883 = vpop.f32.mrf.mxu0
        %v2884 = vpop.f32.mrf.mxu0
        %v2885 = vadd.f32 %v2724, %v2884
        %v2886 = vpop.f32.mrf.mxu0
        %2887 = vmatprep.mubr.bf16.mxu0 %v1609
        %2888 = vmatmul.mubr.bf16.gmra.mxu0 %v1608
        %v2889 = vpop.f32.mrf.mxu0
        %v2890 = vadd.f32 %v2729, %v2889
        %v2891 = vpop.f32.mrf.mxu0
        %v2892 = vpop.f32.mrf.mxu0
        %v2893 = vadd.f32 %v2732, %v2892
        %v2894 = vpop.f32.mrf.mxu0
        %2895 = vdwg.mxu0
        %2896 = vmatprep.subr.bf16.mxu0 0
        %2897 = vmatpush1.bf16.msra.mxu0 %v2163
        %2898 = vmatprep.subr.bf16.mxu0 0
        %2899 = vmatpush1.bf16.msra.mxu0 %v2162
        %2900 = vmatprep.subr.bf16.mxu0 0
        %2901 = vmatpush1.bf16.msra.mxu0 %v2161
        %2902 = vmatprep.subr.bf16.mxu0 0
        %2903 = vmatpush1.bf16.msra.mxu0 %v2160
        %2904 = vmatprep.subr.bf16.mxu0 0
        %2905 = vmatpush1.bf16.msra.mxu0 %v2159
        %2906 = vmatprep.subr.bf16.mxu0 0
        %2907 = vmatpush1.bf16.msra.mxu0 %v2158
        %2908 = vmatprep.subr.bf16.mxu0 0
        %2909 = vmatpush1.bf16.msra.mxu0 %v2157
        %2910 = vmatprep.subr.bf16.mxu0 0
        %2911 = vmatpush1.bf16.msra.mxu0 %v2156
        %2912 = vmatprep.subr.bf16.mxu0 0
        %2913 = vmatpush2.bf16.msra.mxu0 %v2171
        %2914 = vmatprep.subr.bf16.mxu0 0
        %2915 = vmatpush2.bf16.msra.mxu0 %v2170
        %2916 = vmatprep.subr.bf16.mxu0 0
        %2917 = vmatpush2.bf16.msra.mxu0 %v2169
        %2918 = vmatprep.subr.bf16.mxu0 0
        %2919 = vmatpush2.bf16.msra.mxu0 %v2168
        %2920 = vmatprep.subr.bf16.mxu0 0
        %2921 = vmatpush2.bf16.msra.mxu0 %v2167
        %2922 = vmatprep.subr.bf16.mxu0 0
        %2923 = vmatpush2.bf16.msra.mxu0 %v2166
        %2924 = vmatprep.subr.bf16.mxu0 0
        %2925 = vmatpush2.bf16.msra.mxu0 %v2165
        %2926 = vmatprep.subr.bf16.mxu0 0
        %2927 = vmatpush2.bf16.msra.mxu0 %v2164
        %2928 = vmatprep.mubr.bf16.mxu0 %v1461
        %2929 = vmatmul.mubr.bf16.gmra.mxu0 %v1460
        %v2930 = vpop.f32.mrf.mxu0
        %v2931 = vadd.f32 %v2770, %v2930
        %v2932 = vpop.f32.mrf.mxu0
        %v2933 = vpop.f32.mrf.mxu0
        %v2934 = vadd.f32 %v2773, %v2933
        %v2935 = vpop.f32.mrf.mxu0
        %2936 = vmatprep.mubr.bf16.mxu0 %v1471
        %2937 = vmatmul.mubr.bf16.gmra.mxu0 %v1470
        %v2938 = vpop.f32.mrf.mxu0
        %v2939 = vadd.f32 %v2778, %v2938
        %v2940 = vpop.f32.mrf.mxu0
        %v2941 = vpop.f32.mrf.mxu0
        %v2942 = vadd.f32 %v2781, %v2941
        %v2943 = vpop.f32.mrf.mxu0
        %2944 = vmatprep.mubr.bf16.mxu0 %v1481
        %2945 = vmatmul.mubr.bf16.gmra.mxu0 %v1480
        %v2946 = vpop.f32.mrf.mxu0
        %v2947 = vadd.f32 %v2786, %v2946
        %v2948 = vpop.f32.mrf.mxu0
        %v2949 = vpop.f32.mrf.mxu0
        %v2950 = vadd.f32 %v2789, %v2949
        %v2951 = vpop.f32.mrf.mxu0
        %2952 = vmatprep.mubr.bf16.mxu0 %v1491
        %2953 = vmatmul.mubr.bf16.gmra.mxu0 %v1490
        %v2954 = vpop.f32.mrf.mxu0
        %v2955 = vadd.f32 %v2794, %v2954
        %v2956 = vpop.f32.mrf.mxu0
        %v2957 = vpop.f32.mrf.mxu0
        %v2958 = vadd.f32 %v2797, %v2957
        %v2959 = vpop.f32.mrf.mxu0
        %2960 = vmatprep.mubr.bf16.mxu0 %v1501
        %2961 = vmatmul.mubr.bf16.gmra.mxu0 %v1500
        %v2962 = vpop.f32.mrf.mxu0
        %v2963 = vadd.f32 %v2802, %v2962
        %v2964 = vpop.f32.mrf.mxu0
        %v2965 = vpop.f32.mrf.mxu0
        %v2966 = vadd.f32 %v2805, %v2965
        %v2967 = vpop.f32.mrf.mxu0
        %2968 = vmatprep.mubr.bf16.mxu0 %v1511
        %2969 = vmatmul.mubr.bf16.gmra.mxu0 %v1510
        %v2970 = vpop.f32.mrf.mxu0
        %v2971 = vadd.f32 %v2810, %v2970
        %v2972 = vpop.f32.mrf.mxu0
        %v2973 = vpop.f32.mrf.mxu0
        %v2974 = vadd.f32 %v2813, %v2973
        %v2975 = vpop.f32.mrf.mxu0
        %2976 = vmatprep.mubr.bf16.mxu0 %v1521
        %2977 = vmatmul.mubr.bf16.gmra.mxu0 %v1520
        %v2978 = vpop.f32.mrf.mxu0
        %v2979 = vadd.f32 %v2818, %v2978
        %v2980 = vpop.f32.mrf.mxu0
        %v2981 = vpop.f32.mrf.mxu0
        %v2982 = vadd.f32 %v2821, %v2981
        %v2983 = vpop.f32.mrf.mxu0
        %2984 = vmatprep.mubr.bf16.mxu0 %v1531
        %2985 = vmatmul.mubr.bf16.gmra.mxu0 %v1530
        %v2986 = vpop.f32.mrf.mxu0
        %v2987 = vadd.f32 %v2826, %v2986
        %v2988 = vpop.f32.mrf.mxu0
        %v2989 = vpop.f32.mrf.mxu0
        %v2990 = vadd.f32 %v2829, %v2989
        %v2991 = vpop.f32.mrf.mxu0
        %2992 = vmatprep.mubr.bf16.mxu0 %v1541
        %2993 = vmatmul.mubr.bf16.gmra.mxu0 %v1540
        %v2994 = vpop.f32.mrf.mxu0
        %v2995 = vadd.f32 %v2834, %v2994
        %v2996 = vpop.f32.mrf.mxu0
        %v2997 = vpop.f32.mrf.mxu0
        %v2998 = vadd.f32 %v2837, %v2997
        %v2999 = vpop.f32.mrf.mxu0
        %3000 = vmatprep.mubr.bf16.mxu0 %v1551
        %3001 = vmatmul.mubr.bf16.gmra.mxu0 %v1550
        %v3002 = vpop.f32.mrf.mxu0
        %v3003 = vadd.f32 %v2842, %v3002
        %v3004 = vpop.f32.mrf.mxu0
        %v3005 = vpop.f32.mrf.mxu0
        %v3006 = vadd.f32 %v2845, %v3005
        %v3007 = vpop.f32.mrf.mxu0
        %3008 = vmatprep.mubr.bf16.mxu0 %v1561
        %3009 = vmatmul.mubr.bf16.gmra.mxu0 %v1560
        %v3010 = vpop.f32.mrf.mxu0
        %v3011 = vadd.f32 %v2850, %v3010
        %v3012 = vpop.f32.mrf.mxu0
        %v3013 = vpop.f32.mrf.mxu0
        %v3014 = vadd.f32 %v2853, %v3013
        %v3015 = vpop.f32.mrf.mxu0
        %3016 = vmatprep.mubr.bf16.mxu0 %v1571
        %3017 = vmatmul.mubr.bf16.gmra.mxu0 %v1570
        %v3018 = vpop.f32.mrf.mxu0
        %v3019 = vadd.f32 %v2858, %v3018
        %v3020 = vpop.f32.mrf.mxu0
        %v3021 = vpop.f32.mrf.mxu0
        %v3022 = vadd.f32 %v2861, %v3021
        %v3023 = vpop.f32.mrf.mxu0
        %3024 = vmatprep.mubr.bf16.mxu0 %v1581
        %3025 = vmatmul.mubr.bf16.gmra.mxu0 %v1580
        %v3026 = vpop.f32.mrf.mxu0
        %v3027 = vadd.f32 %v2866, %v3026
        %v3028 = vpop.f32.mrf.mxu0
        %v3029 = vpop.f32.mrf.mxu0
        %v3030 = vadd.f32 %v2869, %v3029
        %v3031 = vpop.f32.mrf.mxu0
        %3032 = vmatprep.mubr.bf16.mxu0 %v1591
        %3033 = vmatmul.mubr.bf16.gmra.mxu0 %v1590
        %v3034 = vpop.f32.mrf.mxu0
        %v3035 = vadd.f32 %v2874, %v3034
        %v3036 = vpop.f32.mrf.mxu0
        %v3037 = vpop.f32.mrf.mxu0
        %v3038 = vadd.f32 %v2877, %v3037
        %v3039 = vpop.f32.mrf.mxu0
        %3040 = vmatprep.mubr.bf16.mxu0 %v1601
        %3041 = vmatmul.mubr.bf16.gmra.mxu0 %v1600
        %v3042 = vpop.f32.mrf.mxu0
        %v3043 = vadd.f32 %v2882, %v3042
        %v3044 = vpop.f32.mrf.mxu0
        %v3045 = vpop.f32.mrf.mxu0
        %v3046 = vadd.f32 %v2885, %v3045
        %v3047 = vpop.f32.mrf.mxu0
        %3048 = vmatprep.mubr.bf16.mxu0 %v1611
        %3049 = vmatmul.mubr.bf16.gmra.mxu0 %v1610
        %v3050 = vpop.f32.mrf.mxu0
        %v3051 = vadd.f32 %v2890, %v3050
        %v3052 = vpop.f32.mrf.mxu0
        %v3053 = vpop.f32.mrf.mxu0
        %v3054 = vadd.f32 %v2893, %v3053
        %v3055 = vpop.f32.mrf.mxu0
        %3056 = vdwg.mxu0
        %v3057 = vadd.f32 %v616, %v2931
        %v3058 = vadd.f32 %v617, %v2934
        %v3059 = vadd.f32 %v618, %v2939
        %v3060 = vadd.f32 %v619, %v2942
        %v3061 = vadd.f32 %v620, %v2947
        %v3062 = vadd.f32 %v621, %v2950
        %v3063 = vadd.f32 %v622, %v2955
        %v3064 = vadd.f32 %v623, %v2958
        %v3065 = vadd.f32 %v624, %v2963
        %v3066 = vadd.f32 %v625, %v2966
        %v3067 = vadd.f32 %v626, %v2971
        %v3068 = vadd.f32 %v627, %v2974
        %v3069 = vadd.f32 %v628, %v2979
        %v3070 = vadd.f32 %v629, %v2982
        %v3071 = vadd.f32 %v630, %v2987
        %v3072 = vadd.f32 %v631, %v2990
        %v3073 = vadd.f32 %v632, %v2995
        %v3074 = vadd.f32 %v633, %v2998
        %v3075 = vadd.f32 %v634, %v3003
        %v3076 = vadd.f32 %v635, %v3006
        %v3077 = vadd.f32 %v636, %v3011
        %v3078 = vadd.f32 %v637, %v3014
        %v3079 = vadd.f32 %v638, %v3019
        %v3080 = vadd.f32 %v639, %v3022
        %v3081 = vadd.f32 %v640, %v3027
        %v3082 = vadd.f32 %v641, %v3030
        %v3083 = vadd.f32 %v642, %v3035
        %v3084 = vadd.f32 %v643, %v3038
        %v3085 = vadd.f32 %v644, %v3043
        %v3086 = vadd.f32 %v645, %v3046
        %v3087 = vadd.f32 %v646, %v3051
        %v3088 = vadd.f32 %v647, %v3054
        %3089 = vst [vmem:[#allocation2] sm:$0xff] %v3057
        %3090 = vst [vmem:[#allocation2 + $0x8] sm:$0xff] %v3058
        %3091 = vst [vmem:[#allocation2 + $0x10] sm:$0xff] %v3059
        %3092 = vst [vmem:[#allocation2 + $0x18] sm:$0xff] %v3060
        %3093 = vst [vmem:[#allocation2 + $0x20] sm:$0xff] %v3061
        %3094 = vst [vmem:[#allocation2 + $0x28] sm:$0xff] %v3062
        %3095 = vst [vmem:[#allocation2 + $0x30] sm:$0xff] %v3063
        %3096 = vst [vmem:[#allocation2 + $0x38] sm:$0xff] %v3064
        %3097 = vst [vmem:[#allocation2 + $0x40] sm:$0xff] %v3065
        %3098 = vst [vmem:[#allocation2 + $0x48] sm:$0xff] %v3066
        %3099 = vst [vmem:[#allocation2 + $0x50] sm:$0xff] %v3067
        %3100 = vst [vmem:[#allocation2 + $0x58] sm:$0xff] %v3068
        %3101 = vst [vmem:[#allocation2 + $0x60] sm:$0xff] %v3069
        %3102 = vst [vmem:[#allocation2 + $0x68] sm:$0xff] %v3070
        %3103 = vst [vmem:[#allocation2 + $0x70] sm:$0xff] %v3071
        %3104 = vst [vmem:[#allocation2 + $0x78] sm:$0xff] %v3072
        %3105 = vst [vmem:[#allocation2 + $0x80] sm:$0xff] %v3073
        %3106 = vst [vmem:[#allocation2 + $0x88] sm:$0xff] %v3074
        %3107 = vst [vmem:[#allocation2 + $0x90] sm:$0xff] %v3075
        %3108 = vst [vmem:[#allocation2 + $0x98] sm:$0xff] %v3076
        %3109 = vst [vmem:[#allocation2 + $0xa0] sm:$0xff] %v3077
        %3110 = vst [vmem:[#allocation2 + $0xa8] sm:$0xff] %v3078
        %3111 = vst [vmem:[#allocation2 + $0xb0] sm:$0xff] %v3079
        %3112 = vst [vmem:[#allocation2 + $0xb8] sm:$0xff] %v3080
        %3113 = vst [vmem:[#allocation2 + $0xc0] sm:$0xff] %v3081
        %3114 = vst [vmem:[#allocation2 + $0xc8] sm:$0xff] %v3082
        %3115 = vst [vmem:[#allocation2 + $0xd0] sm:$0xff] %v3083
        %3116 = vst [vmem:[#allocation2 + $0xd8] sm:$0xff] %v3084
        %3117 = vst [vmem:[#allocation2 + $0xe0] sm:$0xff] %v3085
        %3118 = vst [vmem:[#allocation2 + $0xe8] sm:$0xff] %v3086
        %3119 = vst [vmem:[#allocation2 + $0xf0] sm:$0xff] %v3087
        %3120 = vst [vmem:[#allocation2 + $0xf8] sm:$0xff] %v3088
        %p3121 = scmp.eq.s32.totalorder %s20, 1
        // Predicated region
        $region64: #{gcn_forward.3} parent=54 // pred_check
          %p3122 = pneg %p3121
        $region65: #{gcn_forward.3} parent=54 // pred_check_branch
          %3124 = sbr.rel (%p3122) target = $region67
        $region66: #{gcn_forward.3} parent=54 // pred_region
          %v3125 = vld [vmem:[%s570] sm:$0xff]
          %v3126 = vld [vmem:[%s570 + $0x8] sm:$0xff]
          %v3127 = vld [vmem:[%s570 + $0x10] sm:$0xff]
          %v3128 = vld [vmem:[%s570 + $0x18] sm:$0xff]
          %v3129 = vld [vmem:[%s570 + $0x20] sm:$0xff]
          %v3130 = vld [vmem:[%s570 + $0x28] sm:$0xff]
          %v3131 = vld [vmem:[%s570 + $0x30] sm:$0xff]
          %v3132 = vld [vmem:[%s570 + $0x38] sm:$0xff]
          %v3133 = vld [vmem:[%s570 + $0x40] sm:$0xff]
          %v3134 = vld [vmem:[%s570 + $0x48] sm:$0xff]
          %v3135 = vld [vmem:[%s570 + $0x50] sm:$0xff]
          %v3136 = vld [vmem:[%s570 + $0x58] sm:$0xff]
          %v3137 = vld [vmem:[%s570 + $0x60] sm:$0xff]
          %v3138 = vld [vmem:[%s570 + $0x68] sm:$0xff]
          %v3139 = vld [vmem:[%s570 + $0x70] sm:$0xff]
          %v3140 = vld [vmem:[%s570 + $0x78] sm:$0xff]
          %v3141 = vld [vmem:[%s570 + $0x80] sm:$0xff]
          %v3142 = vld [vmem:[%s570 + $0x88] sm:$0xff]
          %v3143 = vld [vmem:[%s570 + $0x90] sm:$0xff]
          %v3144 = vld [vmem:[%s570 + $0x98] sm:$0xff]
          %v3145 = vld [vmem:[%s570 + $0xa0] sm:$0xff]
          %v3146 = vld [vmem:[%s570 + $0xa8] sm:$0xff]
          %v3147 = vld [vmem:[%s570 + $0xb0] sm:$0xff]
          %v3148 = vld [vmem:[%s570 + $0xb8] sm:$0xff]
          %v3149 = vld [vmem:[%s570 + $0xc0] sm:$0xff]
          %v3150 = vld [vmem:[%s570 + $0xc8] sm:$0xff]
          %v3151 = vld [vmem:[%s570 + $0xd0] sm:$0xff]
          %v3152 = vld [vmem:[%s570 + $0xd8] sm:$0xff]
          %v3153 = vld [vmem:[%s570 + $0xe0] sm:$0xff]
          %v3154 = vld [vmem:[%s570 + $0xe8] sm:$0xff]
          %v3155 = vld [vmem:[%s570 + $0xf0] sm:$0xff]
          %v3156 = vld [vmem:[%s570 + $0xf8] sm:$0xff]
          %v3157 = vld [vmem:[#allocation2] sm:$0xff]
          %v3158 = vld [vmem:[#allocation2 + $0x8] sm:$0xff]
          %v3159 = vld [vmem:[#allocation2 + $0x10] sm:$0xff]
          %v3160 = vld [vmem:[#allocation2 + $0x18] sm:$0xff]
          %v3161 = vld [vmem:[#allocation2 + $0x20] sm:$0xff]
          %v3162 = vld [vmem:[#allocation2 + $0x28] sm:$0xff]
          %v3163 = vld [vmem:[#allocation2 + $0x30] sm:$0xff]
          %v3164 = vld [vmem:[#allocation2 + $0x38] sm:$0xff]
          %v3165 = vld [vmem:[#allocation2 + $0x40] sm:$0xff]
          %v3166 = vld [vmem:[#allocation2 + $0x48] sm:$0xff]
          %v3167 = vld [vmem:[#allocation2 + $0x50] sm:$0xff]
          %v3168 = vld [vmem:[#allocation2 + $0x58] sm:$0xff]
          %v3169 = vld [vmem:[#allocation2 + $0x60] sm:$0xff]
          %v3170 = vld [vmem:[#allocation2 + $0x68] sm:$0xff]
          %v3171 = vld [vmem:[#allocation2 + $0x70] sm:$0xff]
          %v3172 = vld [vmem:[#allocation2 + $0x78] sm:$0xff]
          %v3173 = vld [vmem:[#allocation2 + $0x80] sm:$0xff]
          %v3174 = vld [vmem:[#allocation2 + $0x88] sm:$0xff]
          %v3175 = vld [vmem:[#allocation2 + $0x90] sm:$0xff]
          %v3176 = vld [vmem:[#allocation2 + $0x98] sm:$0xff]
          %v3177 = vld [vmem:[#allocation2 + $0xa0] sm:$0xff]
          %v3178 = vld [vmem:[#allocation2 + $0xa8] sm:$0xff]
          %v3179 = vld [vmem:[#allocation2 + $0xb0] sm:$0xff]
          %v3180 = vld [vmem:[#allocation2 + $0xb8] sm:$0xff]
          %v3181 = vld [vmem:[#allocation2 + $0xc0] sm:$0xff]
          %v3182 = vld [vmem:[#allocation2 + $0xc8] sm:$0xff]
          %v3183 = vld [vmem:[#allocation2 + $0xd0] sm:$0xff]
          %v3184 = vld [vmem:[#allocation2 + $0xd8] sm:$0xff]
          %v3185 = vld [vmem:[#allocation2 + $0xe0] sm:$0xff]
          %v3186 = vld [vmem:[#allocation2 + $0xe8] sm:$0xff]
          %v3187 = vld [vmem:[#allocation2 + $0xf0] sm:$0xff]
          %v3188 = vld [vmem:[#allocation2 + $0xf8] sm:$0xff]
          %3190 = vset.pattern.permute.xlu0 0
          %3191 = vperm.xlu0 %3190, %v3125
          %v3192 = vpop.permute.xlu0 %3191
          %3195 = vset.pattern.permute.xlu0 0
          %3196 = vperm.xlu0 %3195, %v3126
          %v3197 = vpop.permute.xlu0 %3196
          %3200 = vset.pattern.permute.xlu0 0
          %3201 = vperm.xlu0 %3200, %v3127
          %v3202 = vpop.permute.xlu0 %3201
          %3205 = vset.pattern.permute.xlu0 0
          %3206 = vperm.xlu0 %3205, %v3128
          %v3207 = vpop.permute.xlu0 %3206
          %3210 = vset.pattern.permute.xlu0 0
          %3211 = vperm.xlu0 %3210, %v3129
          %v3212 = vpop.permute.xlu0 %3211
          %3215 = vset.pattern.permute.xlu0 0
          %3216 = vperm.xlu0 %3215, %v3130
          %v3217 = vpop.permute.xlu0 %3216
          %3220 = vset.pattern.permute.xlu0 0
          %3221 = vperm.xlu0 %3220, %v3131
          %v3222 = vpop.permute.xlu0 %3221
          %3225 = vset.pattern.permute.xlu0 0
          %3226 = vperm.xlu0 %3225, %v3132
          %v3227 = vpop.permute.xlu0 %3226
          %3230 = vset.pattern.permute.xlu0 0
          %3231 = vperm.xlu0 %3230, %v3133
          %v3232 = vpop.permute.xlu0 %3231
          %3235 = vset.pattern.permute.xlu0 0
          %3236 = vperm.xlu0 %3235, %v3134
          %v3237 = vpop.permute.xlu0 %3236
          %3240 = vset.pattern.permute.xlu0 0
          %3241 = vperm.xlu0 %3240, %v3135
          %v3242 = vpop.permute.xlu0 %3241
          %3245 = vset.pattern.permute.xlu0 0
          %3246 = vperm.xlu0 %3245, %v3136
          %v3247 = vpop.permute.xlu0 %3246
          %3250 = vset.pattern.permute.xlu0 0
          %3251 = vperm.xlu0 %3250, %v3137
          %v3252 = vpop.permute.xlu0 %3251
          %3255 = vset.pattern.permute.xlu0 0
          %3256 = vperm.xlu0 %3255, %v3138
          %v3257 = vpop.permute.xlu0 %3256
          %3260 = vset.pattern.permute.xlu0 0
          %3261 = vperm.xlu0 %3260, %v3139
          %v3262 = vpop.permute.xlu0 %3261
          %3265 = vset.pattern.permute.xlu0 0
          %3266 = vperm.xlu0 %3265, %v3140
          %v3267 = vpop.permute.xlu0 %3266
          %3270 = vset.pattern.permute.xlu0 0
          %3271 = vperm.xlu0 %3270, %v3141
          %v3272 = vpop.permute.xlu0 %3271
          %3275 = vset.pattern.permute.xlu0 0
          %3276 = vperm.xlu0 %3275, %v3142
          %v3277 = vpop.permute.xlu0 %3276
          %3280 = vset.pattern.permute.xlu0 0
          %3281 = vperm.xlu0 %3280, %v3143
          %v3282 = vpop.permute.xlu0 %3281
          %3285 = vset.pattern.permute.xlu0 0
          %3286 = vperm.xlu0 %3285, %v3144
          %v3287 = vpop.permute.xlu0 %3286
          %3290 = vset.pattern.permute.xlu0 0
          %3291 = vperm.xlu0 %3290, %v3145
          %v3292 = vpop.permute.xlu0 %3291
          %3295 = vset.pattern.permute.xlu0 0
          %3296 = vperm.xlu0 %3295, %v3146
          %v3297 = vpop.permute.xlu0 %3296
          %3300 = vset.pattern.permute.xlu0 0
          %3301 = vperm.xlu0 %3300, %v3147
          %v3302 = vpop.permute.xlu0 %3301
          %3305 = vset.pattern.permute.xlu0 0
          %3306 = vperm.xlu0 %3305, %v3148
          %v3307 = vpop.permute.xlu0 %3306
          %3310 = vset.pattern.permute.xlu0 0
          %3311 = vperm.xlu0 %3310, %v3149
          %v3312 = vpop.permute.xlu0 %3311
          %3315 = vset.pattern.permute.xlu0 0
          %3316 = vperm.xlu0 %3315, %v3150
          %v3317 = vpop.permute.xlu0 %3316
          %3320 = vset.pattern.permute.xlu0 0
          %3321 = vperm.xlu0 %3320, %v3151
          %v3322 = vpop.permute.xlu0 %3321
          %3325 = vset.pattern.permute.xlu0 0
          %3326 = vperm.xlu0 %3325, %v3152
          %v3327 = vpop.permute.xlu0 %3326
          %3330 = vset.pattern.permute.xlu0 0
          %3331 = vperm.xlu0 %3330, %v3153
          %v3332 = vpop.permute.xlu0 %3331
          %3335 = vset.pattern.permute.xlu0 0
          %3336 = vperm.xlu0 %3335, %v3154
          %v3337 = vpop.permute.xlu0 %3336
          %3340 = vset.pattern.permute.xlu0 0
          %3341 = vperm.xlu0 %3340, %v3155
          %v3342 = vpop.permute.xlu0 %3341
          %3345 = vset.pattern.permute.xlu0 0
          %3346 = vperm.xlu0 %3345, %v3156
          %v3347 = vpop.permute.xlu0 %3346
          %v3349 = vmul.f32 %v3192, %v3157
          %v3350 = vmul.f32 %v3197, %v3158
          %v3351 = vmul.f32 %v3202, %v3159
          %v3352 = vmul.f32 %v3207, %v3160
          %v3353 = vmul.f32 %v3212, %v3161
          %v3354 = vmul.f32 %v3217, %v3162
          %v3355 = vmul.f32 %v3222, %v3163
          %v3356 = vmul.f32 %v3227, %v3164
          %v3357 = vmul.f32 %v3232, %v3165
          %v3358 = vmul.f32 %v3237, %v3166
          %v3359 = vmul.f32 %v3242, %v3167
          %v3360 = vmul.f32 %v3247, %v3168
          %v3361 = vmul.f32 %v3252, %v3169
          %v3362 = vmul.f32 %v3257, %v3170
          %v3363 = vmul.f32 %v3262, %v3171
          %v3364 = vmul.f32 %v3267, %v3172
          %v3365 = vmul.f32 %v3272, %v3173
          %v3366 = vmul.f32 %v3277, %v3174
          %v3367 = vmul.f32 %v3282, %v3175
          %v3368 = vmul.f32 %v3287, %v3176
          %v3369 = vmul.f32 %v3292, %v3177
          %v3370 = vmul.f32 %v3297, %v3178
          %v3371 = vmul.f32 %v3302, %v3179
          %v3372 = vmul.f32 %v3307, %v3180
          %v3373 = vmul.f32 %v3312, %v3181
          %v3374 = vmul.f32 %v3317, %v3182
          %v3375 = vmul.f32 %v3322, %v3183
          %v3376 = vmul.f32 %v3327, %v3184
          %v3377 = vmul.f32 %v3332, %v3185
          %v3378 = vmul.f32 %v3337, %v3186
          %v3379 = vmul.f32 %v3342, %v3187
          %v3380 = vmul.f32 %v3347, %v3188
          %v3381 = vld [vmem:[%s3] sm:$0x1]
          %v3383 = vlaneseq
          %v3384 = vshrl.u32 %v3383, 7
          %v3385 = vsub.s32 0, %v3384
          %v3386 = vrot.slane %v3381, %v3385
          %v3388 = vadd.f32 %v3349, %v3386
          %v3389 = vadd.f32 %v3350, %v3386
          %v3390 = vadd.f32 %v3351, %v3386
          %v3391 = vadd.f32 %v3352, %v3386
          %v3392 = vadd.f32 %v3353, %v3386
          %v3393 = vadd.f32 %v3354, %v3386
          %v3394 = vadd.f32 %v3355, %v3386
          %v3395 = vadd.f32 %v3356, %v3386
          %v3396 = vadd.f32 %v3357, %v3386
          %v3397 = vadd.f32 %v3358, %v3386
          %v3398 = vadd.f32 %v3359, %v3386
          %v3399 = vadd.f32 %v3360, %v3386
          %v3400 = vadd.f32 %v3361, %v3386
          %v3401 = vadd.f32 %v3362, %v3386
          %v3402 = vadd.f32 %v3363, %v3386
          %v3403 = vadd.f32 %v3364, %v3386
          %v3404 = vadd.f32 %v3365, %v3386
          %v3405 = vadd.f32 %v3366, %v3386
          %v3406 = vadd.f32 %v3367, %v3386
          %v3407 = vadd.f32 %v3368, %v3386
          %v3408 = vadd.f32 %v3369, %v3386
          %v3409 = vadd.f32 %v3370, %v3386
          %v3410 = vadd.f32 %v3371, %v3386
          %v3411 = vadd.f32 %v3372, %v3386
          %v3412 = vadd.f32 %v3373, %v3386
          %v3413 = vadd.f32 %v3374, %v3386
          %v3414 = vadd.f32 %v3375, %v3386
          %v3415 = vadd.f32 %v3376, %v3386
          %v3416 = vadd.f32 %v3377, %v3386
          %v3417 = vadd.f32 %v3378, %v3386
          %v3418 = vadd.f32 %v3379, %v3386
          %v3419 = vadd.f32 %v3380, %v3386
          %v3420 = vlaneseq
          %v3421 = vand.u32 %v3420, 127
          %vm3422 = vcmp.lt.s32.totalorder %v3421, 2
          %v3423 = vsel %vm3422, %v3388, -1e+30
          %v3424 = vsel %vm3422, %v3389, -1e+30
          %v3425 = vsel %vm3422, %v3390, -1e+30
          %v3426 = vsel %vm3422, %v3391, -1e+30
          %v3427 = vsel %vm3422, %v3392, -1e+30
          %v3428 = vsel %vm3422, %v3393, -1e+30
          %v3429 = vsel %vm3422, %v3394, -1e+30
          %v3430 = vsel %vm3422, %v3395, -1e+30
          %v3431 = vsel %vm3422, %v3396, -1e+30
          %v3432 = vsel %vm3422, %v3397, -1e+30
          %v3433 = vsel %vm3422, %v3398, -1e+30
          %v3434 = vsel %vm3422, %v3399, -1e+30
          %v3435 = vsel %vm3422, %v3400, -1e+30
          %v3436 = vsel %vm3422, %v3401, -1e+30
          %v3437 = vsel %vm3422, %v3402, -1e+30
          %v3438 = vsel %vm3422, %v3403, -1e+30
          %v3439 = vsel %vm3422, %v3404, -1e+30
          %v3440 = vsel %vm3422, %v3405, -1e+30
          %v3441 = vsel %vm3422, %v3406, -1e+30
          %v3442 = vsel %vm3422, %v3407, -1e+30
          %v3443 = vsel %vm3422, %v3408, -1e+30
          %v3444 = vsel %vm3422, %v3409, -1e+30
          %v3445 = vsel %vm3422, %v3410, -1e+30
          %v3446 = vsel %vm3422, %v3411, -1e+30
          %v3447 = vsel %vm3422, %v3412, -1e+30
          %v3448 = vsel %vm3422, %v3413, -1e+30
          %v3449 = vsel %vm3422, %v3414, -1e+30
          %v3450 = vsel %vm3422, %v3415, -1e+30
          %v3451 = vsel %vm3422, %v3416, -1e+30
          %v3452 = vsel %vm3422, %v3417, -1e+30
          %v3453 = vsel %vm3422, %v3418, -1e+30
          %v3454 = vsel %vm3422, %v3419, -1e+30
          %3455 = vmax.xlane.f32.xlu0 %v3423
          %v3456 = vpop.xlane.xlu0 %3455
          %3457 = vmax.xlane.f32.xlu0 %v3424
          %v3458 = vpop.xlane.xlu0 %3457
          %3459 = vmax.xlane.f32.xlu0 %v3425
          %v3460 = vpop.xlane.xlu0 %3459
          %3461 = vmax.xlane.f32.xlu0 %v3426
          %v3462 = vpop.xlane.xlu0 %3461
          %3463 = vmax.xlane.f32.xlu0 %v3427
          %v3464 = vpop.xlane.xlu0 %3463
          %3465 = vmax.xlane.f32.xlu0 %v3428
          %v3466 = vpop.xlane.xlu0 %3465
          %3467 = vmax.xlane.f32.xlu0 %v3429
          %v3468 = vpop.xlane.xlu0 %3467
          %3469 = vmax.xlane.f32.xlu0 %v3430
          %v3470 = vpop.xlane.xlu0 %3469
          %3471 = vmax.xlane.f32.xlu0 %v3431
          %v3472 = vpop.xlane.xlu0 %3471
          %3473 = vmax.xlane.f32.xlu0 %v3432
          %v3474 = vpop.xlane.xlu0 %3473
          %3475 = vmax.xlane.f32.xlu0 %v3433
          %v3476 = vpop.xlane.xlu0 %3475
          %3477 = vmax.xlane.f32.xlu0 %v3434
          %v3478 = vpop.xlane.xlu0 %3477
          %3479 = vmax.xlane.f32.xlu0 %v3435
          %v3480 = vpop.xlane.xlu0 %3479
          %3481 = vmax.xlane.f32.xlu0 %v3436
          %v3482 = vpop.xlane.xlu0 %3481
          %3483 = vmax.xlane.f32.xlu0 %v3437
          %v3484 = vpop.xlane.xlu0 %3483
          %3485 = vmax.xlane.f32.xlu0 %v3438
          %v3486 = vpop.xlane.xlu0 %3485
          %3487 = vmax.xlane.f32.xlu0 %v3439
          %v3488 = vpop.xlane.xlu0 %3487
          %3489 = vmax.xlane.f32.xlu0 %v3440
          %v3490 = vpop.xlane.xlu0 %3489
          %3491 = vmax.xlane.f32.xlu0 %v3441
          %v3492 = vpop.xlane.xlu0 %3491
          %3493 = vmax.xlane.f32.xlu0 %v3442
          %v3494 = vpop.xlane.xlu0 %3493
          %3495 = vmax.xlane.f32.xlu0 %v3443
          %v3496 = vpop.xlane.xlu0 %3495
          %3497 = vmax.xlane.f32.xlu0 %v3444
          %v3498 = vpop.xlane.xlu0 %3497
          %3499 = vmax.xlane.f32.xlu0 %v3445
          %v3500 = vpop.xlane.xlu0 %3499
          %3501 = vmax.xlane.f32.xlu0 %v3446
          %v3502 = vpop.xlane.xlu0 %3501
          %3503 = vmax.xlane.f32.xlu0 %v3447
          %v3504 = vpop.xlane.xlu0 %3503
          %3505 = vmax.xlane.f32.xlu0 %v3448
          %v3506 = vpop.xlane.xlu0 %3505
          %3507 = vmax.xlane.f32.xlu0 %v3449
          %v3508 = vpop.xlane.xlu0 %3507
          %3509 = vmax.xlane.f32.xlu0 %v3450
          %v3510 = vpop.xlane.xlu0 %3509
          %3511 = vmax.xlane.f32.xlu0 %v3451
          %v3512 = vpop.xlane.xlu0 %3511
          %3513 = vmax.xlane.f32.xlu0 %v3452
          %v3514 = vpop.xlane.xlu0 %3513
          %3515 = vmax.xlane.f32.xlu0 %v3453
          %v3516 = vpop.xlane.xlu0 %3515
          %3517 = vmax.xlane.f32.xlu0 %v3454
          %v3518 = vpop.xlane.xlu0 %3517
          %v3519 = vsub.f32 %v3423, %v3456
          %v3520 = vsub.f32 %v3424, %v3458
          %v3521 = vsub.f32 %v3425, %v3460
          %v3522 = vsub.f32 %v3426, %v3462
          %v3523 = vsub.f32 %v3427, %v3464
          %v3524 = vsub.f32 %v3428, %v3466
          %v3525 = vsub.f32 %v3429, %v3468
          %v3526 = vsub.f32 %v3430, %v3470
          %v3527 = vsub.f32 %v3431, %v3472
          %v3528 = vsub.f32 %v3432, %v3474
          %v3529 = vsub.f32 %v3433, %v3476
          %v3530 = vsub.f32 %v3434, %v3478
          %v3531 = vsub.f32 %v3435, %v3480
          %v3532 = vsub.f32 %v3436, %v3482
          %v3533 = vsub.f32 %v3437, %v3484
          %v3534 = vsub.f32 %v3438, %v3486
          %v3535 = vsub.f32 %v3439, %v3488
          %v3536 = vsub.f32 %v3440, %v3490
          %v3537 = vsub.f32 %v3441, %v3492
          %v3538 = vsub.f32 %v3442, %v3494
          %v3539 = vsub.f32 %v3443, %v3496
          %v3540 = vsub.f32 %v3444, %v3498
          %v3541 = vsub.f32 %v3445, %v3500
          %v3542 = vsub.f32 %v3446, %v3502
          %v3543 = vsub.f32 %v3447, %v3504
          %v3544 = vsub.f32 %v3448, %v3506
          %v3545 = vsub.f32 %v3449, %v3508
          %v3546 = vsub.f32 %v3450, %v3510
          %v3547 = vsub.f32 %v3451, %v3512
          %v3548 = vsub.f32 %v3452, %v3514
          %v3549 = vsub.f32 %v3453, %v3516
          %v3550 = vsub.f32 %v3454, %v3518
          %v3551 = vmul.f32 %v3519, 1.442695
          %v3552 = vpow.pop %v3551
          %v3553 = vmul.f32 %v3520, 1.442695
          %v3554 = vpow.pop %v3553
          %v3555 = vmul.f32 %v3521, 1.442695
          %v3556 = vpow.pop %v3555
          %v3557 = vmul.f32 %v3522, 1.442695
          %v3558 = vpow.pop %v3557
          %v3559 = vmul.f32 %v3523, 1.442695
          %v3560 = vpow.pop %v3559
          %v3561 = vmul.f32 %v3524, 1.442695
          %v3562 = vpow.pop %v3561
          %v3563 = vmul.f32 %v3525, 1.442695
          %v3564 = vpow.pop %v3563
          %v3565 = vmul.f32 %v3526, 1.442695
          %v3566 = vpow.pop %v3565
          %v3567 = vmul.f32 %v3527, 1.442695
          %v3568 = vpow.pop %v3567
          %v3569 = vmul.f32 %v3528, 1.442695
          %v3570 = vpow.pop %v3569
          %v3571 = vmul.f32 %v3529, 1.442695
          %v3572 = vpow.pop %v3571
          %v3573 = vmul.f32 %v3530, 1.442695
          %v3574 = vpow.pop %v3573
          %v3575 = vmul.f32 %v3531, 1.442695
          %v3576 = vpow.pop %v3575
          %v3577 = vmul.f32 %v3532, 1.442695
          %v3578 = vpow.pop %v3577
          %v3579 = vmul.f32 %v3533, 1.442695
          %v3580 = vpow.pop %v3579
          %v3581 = vmul.f32 %v3534, 1.442695
          %v3582 = vpow.pop %v3581
          %v3583 = vmul.f32 %v3535, 1.442695
          %v3584 = vpow.pop %v3583
          %v3585 = vmul.f32 %v3536, 1.442695
          %v3586 = vpow.pop %v3585
          %v3587 = vmul.f32 %v3537, 1.442695
          %v3588 = vpow.pop %v3587
          %v3589 = vmul.f32 %v3538, 1.442695
          %v3590 = vpow.pop %v3589
          %v3591 = vmul.f32 %v3539, 1.442695
          %v3592 = vpow.pop %v3591
          %v3593 = vmul.f32 %v3540, 1.442695
          %v3594 = vpow.pop %v3593
          %v3595 = vmul.f32 %v3541, 1.442695
          %v3596 = vpow.pop %v3595
          %v3597 = vmul.f32 %v3542, 1.442695
          %v3598 = vpow.pop %v3597
          %v3599 = vmul.f32 %v3543, 1.442695
          %v3600 = vpow.pop %v3599
          %v3601 = vmul.f32 %v3544, 1.442695
          %v3602 = vpow.pop %v3601
          %v3603 = vmul.f32 %v3545, 1.442695
          %v3604 = vpow.pop %v3603
          %v3605 = vmul.f32 %v3546, 1.442695
          %v3606 = vpow.pop %v3605
          %v3607 = vmul.f32 %v3547, 1.442695
          %v3608 = vpow.pop %v3607
          %v3609 = vmul.f32 %v3548, 1.442695
          %v3610 = vpow.pop %v3609
          %v3611 = vmul.f32 %v3549, 1.442695
          %v3612 = vpow.pop %v3611
          %v3613 = vmul.f32 %v3550, 1.442695
          %v3614 = vpow.pop %v3613
          %3615 = vadd.xlane.f32.xlu0 %v3552
          %v3616 = vpop.xlane.xlu0 %3615
          %3617 = vadd.xlane.f32.xlu0 %v3554
          %v3618 = vpop.xlane.xlu0 %3617
          %3619 = vadd.xlane.f32.xlu0 %v3556
          %v3620 = vpop.xlane.xlu0 %3619
          %3621 = vadd.xlane.f32.xlu0 %v3558
          %v3622 = vpop.xlane.xlu0 %3621
          %3623 = vadd.xlane.f32.xlu0 %v3560
          %v3624 = vpop.xlane.xlu0 %3623
          %3625 = vadd.xlane.f32.xlu0 %v3562
          %v3626 = vpop.xlane.xlu0 %3625
          %3627 = vadd.xlane.f32.xlu0 %v3564
          %v3628 = vpop.xlane.xlu0 %3627
          %3629 = vadd.xlane.f32.xlu0 %v3566
          %v3630 = vpop.xlane.xlu0 %3629
          %3631 = vadd.xlane.f32.xlu0 %v3568
          %v3632 = vpop.xlane.xlu0 %3631
          %3633 = vadd.xlane.f32.xlu0 %v3570
          %v3634 = vpop.xlane.xlu0 %3633
          %3635 = vadd.xlane.f32.xlu0 %v3572
          %v3636 = vpop.xlane.xlu0 %3635
          %3637 = vadd.xlane.f32.xlu0 %v3574
          %v3638 = vpop.xlane.xlu0 %3637
          %3639 = vadd.xlane.f32.xlu0 %v3576
          %v3640 = vpop.xlane.xlu0 %3639
          %3641 = vadd.xlane.f32.xlu0 %v3578
          %v3642 = vpop.xlane.xlu0 %3641
          %3643 = vadd.xlane.f32.xlu0 %v3580
          %v3644 = vpop.xlane.xlu0 %3643
          %3645 = vadd.xlane.f32.xlu0 %v3582
          %v3646 = vpop.xlane.xlu0 %3645
          %3647 = vadd.xlane.f32.xlu0 %v3584
          %v3648 = vpop.xlane.xlu0 %3647
          %3649 = vadd.xlane.f32.xlu0 %v3586
          %v3650 = vpop.xlane.xlu0 %3649
          %3651 = vadd.xlane.f32.xlu0 %v3588
          %v3652 = vpop.xlane.xlu0 %3651
          %3653 = vadd.xlane.f32.xlu0 %v3590
          %v3654 = vpop.xlane.xlu0 %3653
          %3655 = vadd.xlane.f32.xlu0 %v3592
          %v3656 = vpop.xlane.xlu0 %3655
          %3657 = vadd.xlane.f32.xlu0 %v3594
          %v3658 = vpop.xlane.xlu0 %3657
          %3659 = vadd.xlane.f32.xlu0 %v3596
          %v3660 = vpop.xlane.xlu0 %3659
          %3661 = vadd.xlane.f32.xlu0 %v3598
          %v3662 = vpop.xlane.xlu0 %3661
          %3663 = vadd.xlane.f32.xlu0 %v3600
          %v3664 = vpop.xlane.xlu0 %3663
          %3665 = vadd.xlane.f32.xlu0 %v3602
          %v3666 = vpop.xlane.xlu0 %3665
          %3667 = vadd.xlane.f32.xlu0 %v3604
          %v3668 = vpop.xlane.xlu0 %3667
          %3669 = vadd.xlane.f32.xlu0 %v3606
          %v3670 = vpop.xlane.xlu0 %3669
          %3671 = vadd.xlane.f32.xlu0 %v3608
          %v3672 = vpop.xlane.xlu0 %3671
          %3673 = vadd.xlane.f32.xlu0 %v3610
          %v3674 = vpop.xlane.xlu0 %3673
          %3675 = vadd.xlane.f32.xlu0 %v3612
          %v3676 = vpop.xlane.xlu0 %3675
          %3677 = vadd.xlane.f32.xlu0 %v3614
          %v3678 = vpop.xlane.xlu0 %3677
          %v3679 = vlog2.pop %v3616
          %v3680 = vmul.f32 %v3679, 0.6931472
          %v3681 = vlog2.pop %v3618
          %v3682 = vmul.f32 %v3681, 0.6931472
          %v3683 = vlog2.pop %v3620
          %v3684 = vmul.f32 %v3683, 0.6931472
          %v3685 = vlog2.pop %v3622
          %v3686 = vmul.f32 %v3685, 0.6931472
          %v3687 = vlog2.pop %v3624
          %v3688 = vmul.f32 %v3687, 0.6931472
          %v3689 = vlog2.pop %v3626
          %v3690 = vmul.f32 %v3689, 0.6931472
          %v3691 = vlog2.pop %v3628
          %v3692 = vmul.f32 %v3691, 0.6931472
          %v3693 = vlog2.pop %v3630
          %v3694 = vmul.f32 %v3693, 0.6931472
          %v3695 = vlog2.pop %v3632
          %v3696 = vmul.f32 %v3695, 0.6931472
          %v3697 = vlog2.pop %v3634
          %v3698 = vmul.f32 %v3697, 0.6931472
          %v3699 = vlog2.pop %v3636
          %v3700 = vmul.f32 %v3699, 0.6931472
          %v3701 = vlog2.pop %v3638
          %v3702 = vmul.f32 %v3701, 0.6931472
          %v3703 = vlog2.pop %v3640
          %v3704 = vmul.f32 %v3703, 0.6931472
          %v3705 = vlog2.pop %v3642
          %v3706 = vmul.f32 %v3705, 0.6931472
          %v3707 = vlog2.pop %v3644
          %v3708 = vmul.f32 %v3707, 0.6931472
          %v3709 = vlog2.pop %v3646
          %v3710 = vmul.f32 %v3709, 0.6931472
          %v3711 = vlog2.pop %v3648
          %v3712 = vmul.f32 %v3711, 0.6931472
          %v3713 = vlog2.pop %v3650
          %v3714 = vmul.f32 %v3713, 0.6931472
          %v3715 = vlog2.pop %v3652
          %v3716 = vmul.f32 %v3715, 0.6931472
          %v3717 = vlog2.pop %v3654
          %v3718 = vmul.f32 %v3717, 0.6931472
          %v3719 = vlog2.pop %v3656
          %v3720 = vmul.f32 %v3719, 0.6931472
          %v3721 = vlog2.pop %v3658
          %v3722 = vmul.f32 %v3721, 0.6931472
          %v3723 = vlog2.pop %v3660
          %v3724 = vmul.f32 %v3723, 0.6931472
          %v3725 = vlog2.pop %v3662
          %v3726 = vmul.f32 %v3725, 0.6931472
          %v3727 = vlog2.pop %v3664
          %v3728 = vmul.f32 %v3727, 0.6931472
          %v3729 = vlog2.pop %v3666
          %v3730 = vmul.f32 %v3729, 0.6931472
          %v3731 = vlog2.pop %v3668
          %v3732 = vmul.f32 %v3731, 0.6931472
          %v3733 = vlog2.pop %v3670
          %v3734 = vmul.f32 %v3733, 0.6931472
          %v3735 = vlog2.pop %v3672
          %v3736 = vmul.f32 %v3735, 0.6931472
          %v3737 = vlog2.pop %v3674
          %v3738 = vmul.f32 %v3737, 0.6931472
          %v3739 = vlog2.pop %v3676
          %v3740 = vmul.f32 %v3739, 0.6931472
          %v3741 = vlog2.pop %v3678
          %v3742 = vmul.f32 %v3741, 0.6931472
          %v3743 = vadd.f32 %v3680, %v3456
          %v3744 = vadd.f32 %v3682, %v3458
          %v3745 = vadd.f32 %v3684, %v3460
          %v3746 = vadd.f32 %v3686, %v3462
          %v3747 = vadd.f32 %v3688, %v3464
          %v3748 = vadd.f32 %v3690, %v3466
          %v3749 = vadd.f32 %v3692, %v3468
          %v3750 = vadd.f32 %v3694, %v3470
          %v3751 = vadd.f32 %v3696, %v3472
          %v3752 = vadd.f32 %v3698, %v3474
          %v3753 = vadd.f32 %v3700, %v3476
          %v3754 = vadd.f32 %v3702, %v3478
          %v3755 = vadd.f32 %v3704, %v3480
          %v3756 = vadd.f32 %v3706, %v3482
          %v3757 = vadd.f32 %v3708, %v3484
          %v3758 = vadd.f32 %v3710, %v3486
          %v3759 = vadd.f32 %v3712, %v3488
          %v3760 = vadd.f32 %v3714, %v3490
          %v3761 = vadd.f32 %v3716, %v3492
          %v3762 = vadd.f32 %v3718, %v3494
          %v3763 = vadd.f32 %v3720, %v3496
          %v3764 = vadd.f32 %v3722, %v3498
          %v3765 = vadd.f32 %v3724, %v3500
          %v3766 = vadd.f32 %v3726, %v3502
          %v3767 = vadd.f32 %v3728, %v3504
          %v3768 = vadd.f32 %v3730, %v3506
          %v3769 = vadd.f32 %v3732, %v3508
          %v3770 = vadd.f32 %v3734, %v3510
          %v3771 = vadd.f32 %v3736, %v3512
          %v3772 = vadd.f32 %v3738, %v3514
          %v3773 = vadd.f32 %v3740, %v3516
          %v3774 = vadd.f32 %v3742, %v3518
          %v3775 = vsub.f32 %v3423, %v3743
          %v3776 = vsub.f32 %v3424, %v3744
          %v3777 = vsub.f32 %v3425, %v3745
          %v3778 = vsub.f32 %v3426, %v3746
          %v3779 = vsub.f32 %v3427, %v3747
          %v3780 = vsub.f32 %v3428, %v3748
          %v3781 = vsub.f32 %v3429, %v3749
          %v3782 = vsub.f32 %v3430, %v3750
          %v3783 = vsub.f32 %v3431, %v3751
          %v3784 = vsub.f32 %v3432, %v3752
          %v3785 = vsub.f32 %v3433, %v3753
          %v3786 = vsub.f32 %v3434, %v3754
          %v3787 = vsub.f32 %v3435, %v3755
          %v3788 = vsub.f32 %v3436, %v3756
          %v3789 = vsub.f32 %v3437, %v3757
          %v3790 = vsub.f32 %v3438, %v3758
          %v3791 = vsub.f32 %v3439, %v3759
          %v3792 = vsub.f32 %v3440, %v3760
          %v3793 = vsub.f32 %v3441, %v3761
          %v3794 = vsub.f32 %v3442, %v3762
          %v3795 = vsub.f32 %v3443, %v3763
          %v3796 = vsub.f32 %v3444, %v3764
          %v3797 = vsub.f32 %v3445, %v3765
          %v3798 = vsub.f32 %v3446, %v3766
          %v3799 = vsub.f32 %v3447, %v3767
          %v3800 = vsub.f32 %v3448, %v3768
          %v3801 = vsub.f32 %v3449, %v3769
          %v3802 = vsub.f32 %v3450, %v3770
          %v3803 = vsub.f32 %v3451, %v3771
          %v3804 = vsub.f32 %v3452, %v3772
          %v3805 = vsub.f32 %v3453, %v3773
          %v3806 = vsub.f32 %v3454, %v3774
          %3807 = vst [vmem:[%s576] sm:$0xff] %v3775
          %3808 = vst [vmem:[%s576 + $0x8] sm:$0xff] %v3776
          %3809 = vst [vmem:[%s576 + $0x10] sm:$0xff] %v3777
          %3810 = vst [vmem:[%s576 + $0x18] sm:$0xff] %v3778
          %3811 = vst [vmem:[%s576 + $0x20] sm:$0xff] %v3779
          %3812 = vst [vmem:[%s576 + $0x28] sm:$0xff] %v3780
          %3813 = vst [vmem:[%s576 + $0x30] sm:$0xff] %v3781
          %3814 = vst [vmem:[%s576 + $0x38] sm:$0xff] %v3782
          %3815 = vst [vmem:[%s576 + $0x40] sm:$0xff] %v3783
          %3816 = vst [vmem:[%s576 + $0x48] sm:$0xff] %v3784
          %3817 = vst [vmem:[%s576 + $0x50] sm:$0xff] %v3785
          %3818 = vst [vmem:[%s576 + $0x58] sm:$0xff] %v3786
          %3819 = vst [vmem:[%s576 + $0x60] sm:$0xff] %v3787
          %3820 = vst [vmem:[%s576 + $0x68] sm:$0xff] %v3788
          %3821 = vst [vmem:[%s576 + $0x70] sm:$0xff] %v3789
          %3822 = vst [vmem:[%s576 + $0x78] sm:$0xff] %v3790
          %3823 = vst [vmem:[%s576 + $0x80] sm:$0xff] %v3791
          %3824 = vst [vmem:[%s576 + $0x88] sm:$0xff] %v3792
          %3825 = vst [vmem:[%s576 + $0x90] sm:$0xff] %v3793
          %3826 = vst [vmem:[%s576 + $0x98] sm:$0xff] %v3794
          %3827 = vst [vmem:[%s576 + $0xa0] sm:$0xff] %v3795
          %3828 = vst [vmem:[%s576 + $0xa8] sm:$0xff] %v3796
          %3829 = vst [vmem:[%s576 + $0xb0] sm:$0xff] %v3797
          %3830 = vst [vmem:[%s576 + $0xb8] sm:$0xff] %v3798
          %3831 = vst [vmem:[%s576 + $0xc0] sm:$0xff] %v3799
          %3832 = vst [vmem:[%s576 + $0xc8] sm:$0xff] %v3800
          %3833 = vst [vmem:[%s576 + $0xd0] sm:$0xff] %v3801
          %3834 = vst [vmem:[%s576 + $0xd8] sm:$0xff] %v3802
          %3835 = vst [vmem:[%s576 + $0xe0] sm:$0xff] %v3803
          %3836 = vst [vmem:[%s576 + $0xe8] sm:$0xff] %v3804
          %3837 = vst [vmem:[%s576 + $0xf0] sm:$0xff] %v3805
          %3838 = vst [vmem:[%s576 + $0xf8] sm:$0xff] %v3806
        $region67: #{gcn_forward.3} parent=54 // pred_fallthru
          _
        %s3839 = smul.u32 32, %s19
        %p3840 = scmp.lt.s32.totalorder %s3839, 319
        %s3841 = scalar_select %p3840, %s3839, 319
        %s3842 = smul.addr %s3841, 8
        %s3843 = scalar_lea.vmem %s4, %s3842
        // Predicated region
        $region68: #{gcn_forward.3} parent=54 // pred_check
          %p3844 = pneg %p141
        $region69: #{gcn_forward.3} parent=54 // pred_check_branch
          %3846 = sbr.rel (%p3844) target = $region71
        $region70: #{gcn_forward.3} parent=54 // pred_region
          %s3847 = smul.u32 32, %s19
        $region71: #{gcn_forward.3} parent=54 // pred_fallthru
          _
      $region55: #{gcn_forward.3} parent=5 // pred_fallthru
        _
      %p3848 = scmp.le.s32.totalorder 2, %s10
      // Predicated region
      $region72: #{gcn_forward.3} parent=5 // pred_check
        %p3849 = pneg %p3848
      $region73: #{gcn_forward.3} parent=5 // pred_check_branch
        %3851 = sbr.rel (%p3849) target = $region75
      $region74: #{gcn_forward.3} parent=5 // pred_region
        %s3852 = ssub.s32 %s10, 2
        // Predicated region
        $region76: #{gcn_forward.3} parent=74 // pred_check
          %p3853 = pneg %p147
        $region77: #{gcn_forward.3} parent=74 // pred_check_branch
          %3855 = sbr.rel (%p3853) target = $region79
        $region78: #{gcn_forward.3} parent=74 // pred_region
          %s3856 = smul.u32 32, %s21
          %p3857 = scmp.lt.s32.totalorder %s3856, 319
          %s3858 = scalar_select %p3857, %s3856, 319
          %s3859 = smul.addr %s3858, 8
          %s3860 = scalar_lea.vmem %s4, %s3859
        $region79: #{gcn_forward.3} parent=74 // pred_fallthru
          _
      $region75: #{gcn_forward.3} parent=5 // pred_fallthru
        _
    $region6: #{gcn_forward.3} parent=1 // loop_footer
      %s14 = sadd.s32 1, %s10
    $region7: #{gcn_forward.3} parent=1 // loop_footer_branch
      %9 = sbr.rel target = $region3
    $region8: #{gcn_forward.3} parent=1 // loop_exit
      _

</llo_original>
